<compile_context>
chip_gen: v7x
topology: tpu7x:2x2x1
jax: 0.10.0
libtpu: 0.0.40
codegen_flags: <defaults>
</compile_context>

<pallas_src>
import functools
import math

import jax
import jax.numpy as jnp
from jax import lax
from jax.experimental import pallas as pl
from jax.experimental.pallas import tpu as pltpu
from jax.scipy.linalg import block_diag

QKV_BLOCK = 4  # qkv_block_size (head dim) of the vision-LSTM layer


# ----------------------------------------------------------------------------
# in-kernel helpers
# ----------------------------------------------------------------------------

def _ksigmoid(x):
    # sigmoid with the reciprocal routed to the EUP slot
    return pl.reciprocal(1.0 + jnp.exp(-x), approx=True)


def _ksilu(x):
    return x * _ksigmoid(x)


# ----------------------------------------------------------------------------
# fused ViL (vision-LSTM) layer kernel
#   grid = (B, 2):  axis 0 = batch (parallel), axis 1 = direction (arbitrary,
#   accumulated into the same output block).  The reverse direction is realized
#   with a permutation matmul inside the kernel, so the wrapper never flips data.
# ----------------------------------------------------------------------------

def _vil_kernel(S, inner, NH, DH, K,
                x_ref, perm_ref, shift_ref,
                ln_g_ref, ln_b_ref, w_up_ref, b_up_ref,
                conv_w_ref, conv_b_ref,
                w_qk_ref, b_qk_ref, w_v_ref, b_v_ref,
                w_if_ref, b_if_ref,
                mln_g_ref, mln_b_ref, skip_ref,
                w_down_ref, b_down_ref,
                o_ref, ht_ref):
    d = pl.program_id(1)

    x = x_ref[0]                                              # (S, C)
    # pre-LayerNorm
    mu = jnp.mean(x, axis=-1, keepdims=True)
    var = jnp.mean((x - mu) ** 2, axis=-1, keepdims=True)
    xn = (x - mu) * lax.rsqrt(var + 1e-5) * ln_g_ref[...] + ln_b_ref[...]

    perm = perm_ref[0]                                        # (S, S) identity / reverse
    u = jnp.dot(perm, xn, preferred_element_type=jnp.float32)

    # up-projection (expand=2): (S, C) @ (C, 2*inner)
    xi = jnp.dot(u, w_up_ref[...], preferred_element_type=jnp.float32) + b_up_ref[...]
    x_mlstm = xi[:, :inner]
    z = xi[:, inner:]

    # causal depthwise conv1d (k=K) via precomputed shift matrices + SiLU
    cw = conv_w_ref[...]                                      # (K, inner)
    xc = jnp.zeros((S, inner), jnp.float32) + conv_b_ref[...]
    for j in range(K):
        xc = xc + jnp.dot(shift_ref[j], x_mlstm,
                          preferred_element_type=jnp.float32) * cw[j:j + 1, :]
    xc_act = _ksilu(xc)

    # fused q|k projection (same input), v projection (pre-conv input)
    qk = jnp.dot(xc_act, w_qk_ref[...], preferred_element_type=jnp.float32) + b_qk_ref[...]
    q = qk[:, :inner]
    k = qk[:, inner:]
    v = jnp.dot(x_mlstm, w_v_ref[...], preferred_element_type=jnp.float32) + b_v_ref[...]

    # fused input|forget gate projection from cat([q, k, v]) (done as 3 partial matmuls
    # to avoid an in-kernel lane concat)
    wif = w_if_ref[...]                                       # (3*inner, 2*NH)
    gates = (jnp.dot(q, wif[:inner, :], preferred_element_type=jnp.float32)
             + jnp.dot(k, wif[inner:2 * inner, :], preferred_element_type=jnp.float32)
             + jnp.dot(v, wif[2 * inner:, :], preferred_element_type=jnp.float32)
             + b_if_ref[...])                                 # (S, 2*NH)
    igs = gates[:, :NH]
    fgs = gates[:, NH:]
    # stable log-sigmoid of the forget gates, all heads at once
    logf = jnp.minimum(fgs, 0.0) - jnp.log(1.0 + jnp.exp(-jnp.abs(fgs)))

    rows = lax.broadcasted_iota(jnp.int32, (S, S), 0)
    cols = lax.broadcasted_iota(jnp.int32, (S, S), 1)
    ltr = rows >= cols
    # inclusive prefix-sum of log forget gates (one tiny matmul for all heads)
    cs = jnp.dot(ltr.astype(jnp.float32), logf, preferred_element_type=jnp.float32)

    mg = mln_g_ref[...]
    mb = mln_b_ref[...]
    inv_sqrt_dh = 1.0 / math.sqrt(DH)

    # stabilized parallel mLSTM, heads unrolled (everything stays in VMEM/vregs)
    for h in range(NH):
        lo, hi = h * DH, (h + 1) * DH
        qh = q[:, lo:hi]
        kh = k[:, lo:hi]
        vh = v[:, lo:hi]
        cs_h = cs[:, h:h + 1]                                 # (S, 1)
        ig_h = igs[:, h:h + 1]                                # (S, 1)
        log_fg_mat = cs_h - jnp.transpose(cs_h)               # (S, S)
        log_d = jnp.where(ltr, log_fg_mat + jnp.transpose(ig_h), -1e30)
        max_d = jnp.max(log_d, axis=-1, keepdims=True)
        dmat = jnp.exp(log_d - max_d)
        qkh = lax.dot_general(qh, kh, (((1,), (1,)), ((), ())),
                              preferred_element_type=jnp.float32) * inv_sqrt_dh
        cmat = qkh * dmat
        normalizer = jnp.maximum(jnp.abs(jnp.sum(cmat, axis=-1, keepdims=True)),
                                 jnp.exp(-max_d))
        cn = cmat * pl.reciprocal(normalizer + 1e-6, approx=True)
        hh = jnp.dot(cn, vh, preferred_element_type=jnp.float32)   # (S, DH)
        # per-head group-norm
        mu_h = jnp.mean(hh, axis=-1, keepdims=True)
        var_h = jnp.mean((hh - mu_h) ** 2, axis=-1, keepdims=True)
        hn = (hh - mu_h) * lax.rsqrt(var_h + 1e-5)
        ht_ref[:, lo:hi] = hn * mg[:, lo:hi] + mb[:, lo:hi]

    h_tilde = ht_ref[...]
    h_state = (h_tilde + skip_ref[...] * xc_act) * _ksilu(z)
    y = jnp.dot(h_state, w_down_ref[...], preferred_element_type=jnp.float32) + b_down_ref[...]

    # un-permute + residual; accumulate the two directions in the same output block
    contrib = x + jnp.dot(perm, y, preferred_element_type=jnp.float32)

    @pl.when(d == 0)
    def _():
        o_ref[...] = jnp.zeros_like(o_ref)

    o_ref[0] += contrib


def vil_layer_bidirectional(p, x_bcn):
    """xlstm(x) + flip(xlstm(flip(x))) for a ViLLayer.  x_bcn: (B, C, N) -> (B, C, N)."""
    B, C, S = x_bcn.shape
    inner = 2 * C
    NH = inner // QKV_BLOCK
    DH = QKV_BLOCK
    K = p["conv_w"].shape[0]

    x = jnp.transpose(x_bcn, (0, 2, 1))                       # (B, S, C)
    # direction-0: identity, direction-1: sequence reversal
    perms = jnp.stack([jnp.eye(S, dtype=jnp.float32),
                       jnp.eye(S, dtype=jnp.float32)[::-1]])
    # causal-conv shift matrices: tap j selects x[t - (K-1-j)]
    shiftm = jnp.stack([jnp.eye(S, k=-(K - 1 - j), dtype=jnp.float32) for j in range(K)])

    weights = [p["ln_g"], p["ln_b"], p["w_up"], p["b_up"], p["conv_w"], p["conv_b"],
               p["w_qk"], p["b_qk"], p["w_v"], p["b_v"], p["w_if"], p["b_if"],
               p["mln_g"], p["mln_b"], p["skip"], p["w_down"], p["b_down"]]

    def full(a):
        nd = a.ndim
        return pl.BlockSpec(a.shape, lambda b, d, _nd=nd: (0,) * _nd)

    kern = functools.partial(_vil_kernel, S, inner, NH, DH, K)
    out = pl.pallas_call(
        kern,
        out_shape=jax.ShapeDtypeStruct((B, S, C), jnp.float32),
        grid=(B, 2),
        in_specs=[pl.BlockSpec((1, S, C), lambda b, d: (b, 0, 0)),
                  pl.BlockSpec((1, S, S), lambda b, d: (d, 0, 0)),
                  pl.BlockSpec((K, S, S), lambda b, d: (0, 0, 0))]
                 + [full(w) for w in weights],
        out_specs=pl.BlockSpec((1, S, C), lambda b, d: (b, 0, 0)),
        scratch_shapes=[pltpu.VMEM((S, inner), jnp.float32)],
        compiler_params=pltpu.CompilerParams(
            dimension_semantics=("parallel", "arbitrary")),
    )(x, perms, shiftm, *weights)
    return jnp.transpose(out, (0, 2, 1))                      # (B, C, S)


# ----------------------------------------------------------------------------
# fused spatial gating kernel (channels-first, lane-dense on H*W)
#   computes x_xlstm = sigmoid(relu(BN(conv1x1(x_sum)))),
#            x_diffA/B = relu(BN(dsconv3x3(cat))), A/B gate weights, and the
#            gated tensors [xA_g | xB_g], all in one kernel per batch element.
# ----------------------------------------------------------------------------

def _spatial_gate_kernel(C,
                         xsum_ref, pd_ref, pa_ref, pb_ref, xa_ref, xb_ref,
                         wxc_ref, bxc_ref,
                         wad_ref, waa_ref, ba_ref,
                         wbd_ref, wbb_ref, bb_ref,
                         wga_ref, bga_ref, wgb_ref, bgb_ref,
                         o_ref):
    # 1x1 conv + folded BN + ReLU + sigmoid                      (C, HW)
    x_xlstm = _ksigmoid(jnp.maximum(
        jnp.dot(wxc_ref[...], xsum_ref[0], preferred_element_type=jnp.float32)
        + bxc_ref[...], 0.0))

    # folded dsconv_3x3 on cat([x_diff, xA]) / cat([x_diff, xB]) as im2col matmuls
    da = jnp.maximum(
        jnp.dot(wad_ref[...], pd_ref[0], preferred_element_type=jnp.float32)
        + jnp.dot(waa_ref[...], pa_ref[0], preferred_element_type=jnp.float32)
        + ba_ref[...], 0.0)                                     # (C, HW)
    db = jnp.maximum(
        jnp.dot(wbd_ref[...], pd_ref[0], preferred_element_type=jnp.float32)
        + jnp.dot(wbb_ref[...], pb_ref[0], preferred_element_type=jnp.float32)
        + bb_ref[...], 0.0)

    # 1-channel gate convs
    aw = _ksigmoid(jnp.dot(wga_ref[...], da, preferred_element_type=jnp.float32)
                   + bga_ref[...])                              # (1, HW)
    bw = _ksigmoid(jnp.dot(wgb_ref[...], db, preferred_element_type=jnp.float32)
                   + bgb_ref[...])

    o_ref[0, 0:C, :] = aw * x_xlstm * xa_ref[0]
    o_ref[0, C:2 * C, :] = bw * x_xlstm * xb_ref[0]


def spatial_gate(p, xsum, pd, pa, pb, xa, xb):
    B, C, HW = xsum.shape
    C9 = pd.shape[1]
    weights = [p["xc_w"], p["xc_b"], p["wa_d"], p["wa_a"], p["ba"],
               p["wb_d"], p["wb_b"], p["bb"],
               p["conva_w"], p["conva_b"], p["convb_w"], p["convb_b"]]

    def full(a):
        nd = a.ndim
        return pl.BlockSpec(a.shape, lambda b, _nd=nd: (0,) * _nd)

    def data(ch):
        return pl.BlockSpec((1, ch, HW), lambda b: (b, 0, 0))

    kern = functools.partial(_spatial_gate_kernel, C)
    return pl.pallas_call(
        kern,
        out_shape=jax.ShapeDtypeStruct((B, 2 * C, HW), jnp.float32),
        grid=(B,),
        in_specs=[data(C), data(C9), data(C9), data(C9), data(C), data(C)]
                 + [full(w) for w in weights],
        out_specs=pl.BlockSpec((1, 2 * C, HW), lambda b: (b, 0, 0)),
        compiler_params=pltpu.CompilerParams(dimension_semantics=("parallel",)),
    )(xsum, pd, pa, pb, xa, xb, *weights)


def _final_conv_kernel(p_ref, w_ref, b_ref, o_ref):
    y = jnp.dot(w_ref[...], p_ref[0], preferred_element_type=jnp.float32) + b_ref[...]
    o_ref[0] = jnp.maximum(y, 0.0)


def final_conv(p, pg, oc):
    B, C9, HW = pg.shape

    def full(a):
        nd = a.ndim
        return pl.BlockSpec(a.shape, lambda b, _nd=nd: (0,) * _nd)

    return pl.pallas_call(
        _final_conv_kernel,
        out_shape=jax.ShapeDtypeStruct((B, oc, HW), jnp.float32),
        grid=(B,),
        in_specs=[pl.BlockSpec((1, C9, HW), lambda b: (b, 0, 0)),
                  full(p["wf"]), full(p["bf"])],
        out_specs=pl.BlockSpec((1, oc, HW), lambda b: (b, 0, 0)),
        compiler_params=pltpu.CompilerParams(dimension_semantics=("parallel",)),
    )(pg, p["wf"], p["bf"])


# ----------------------------------------------------------------------------
# plain-XLA glue: positional-embedding interpolation and im2col patch building
# ----------------------------------------------------------------------------

def interp_linear(pe, n):
    # F.interpolate(pe, size=n, mode="linear", align_corners=False); pe: (1, C, L)
    L = pe.shape[-1]
    if L == n:
        return pe
    scale = L / n
    coords = jnp.clip((jnp.arange(n) + 0.5) * scale - 0.5, 0.0, L - 1)
    lo = jnp.floor(coords).astype(jnp.int32)
    hi = jnp.minimum(lo + 1, L - 1)
    w = coords - lo
    return jnp.take(pe, lo, axis=-1) * (1.0 - w) + jnp.take(pe, hi, axis=-1) * w


def _im2col_cf(x_nchw):
    # channels-first im2col for a 3x3 / pad=1 conv: (B, C, H, W) -> (B, 9*C, H*W)
    B, C, H, W = x_nchw.shape
    xp = jnp.pad(x_nchw, ((0, 0), (0, 0), (1, 1), (1, 1)))
    cols = [xp[:, :, dy:dy + H, dx:dx + W].reshape(B, C, H * W)
            for dy in range(3) for dx in range(3)]
    return jnp.concatenate(cols, axis=1)


# ----------------------------------------------------------------------------
# XLSTM_axial forward
# ----------------------------------------------------------------------------

def xlstm_axial_forward(params, xA, xB):
    B, C, H, W = xA.shape
    HW = H * W
    x_diff = xA - xB

    pos_h = x_diff.mean(-1) + interp_linear(params["pe_h"], H)    # (B, C, H)
    pos_w = x_diff.mean(-2) + interp_linear(params["pe_w"], W)    # (B, C, W)

    xh = vil_layer_bidirectional(params["vil_h"], pos_h)          # (B, C, H)
    xw = vil_layer_bidirectional(params["vil_w"], pos_w)          # (B, C, W)

    x_sum = x_diff + xh[:, :, :, None] + xw[:, :, None, :]        # (B, C, H, W)

    pd = _im2col_cf(x_diff)                                       # (B, 9C, HW)
    pa = _im2col_cf(xA)
    pb = _im2col_cf(xB)

    xab = spatial_gate(params, x_sum.reshape(B, C, HW), pd, pa, pb,
                       xA.reshape(B, C, HW), xB.reshape(B, C, HW))   # (B, 2C, HW)

    pg = _im2col_cf(xab.reshape(B, 2 * C, H, W))                  # (B, 18C, HW)
    oc = params["wf"].shape[0]
    out = final_conv(params, pg, oc)                              # (B, OC, HW)
    return out.reshape(B, oc, H, W)


# ----------------------------------------------------------------------------
# deterministic parameter init (synthetic weights, BN folded in eval mode)
# ----------------------------------------------------------------------------

def _fold_bn(cout, eps=1e-5):
    gamma, beta = jnp.ones((cout,)), jnp.zeros((cout,))
    mean, var = jnp.zeros((cout,)), jnp.ones((cout,))
    scale = gamma / jnp.sqrt(var + eps)
    return scale, beta - mean * scale


def _init_dsconv_folded(key, cin, cout, split):
    """dsconv_3x3 (depthwise 3x3 + pointwise 1x1 + BN) folded to im2col matmul form."""
    k1, k2 = jax.random.split(key)
    dw_w = jax.random.normal(k1, (3, 3, cin), jnp.float32) / 3.0
    dw_b = jnp.zeros((cin,), jnp.float32)
    pw_w = jax.random.normal(k2, (cin, cout), jnp.float32) / math.sqrt(cin)
    pw_b = jnp.zeros((cout,), jnp.float32)
    scale, shift = _fold_bn(cout)

    w_full = dw_w[:, :, :, None] * pw_w[None, None, :, :]          # (3,3,cin,cout)
    b_eff = dw_b @ pw_w + pw_b                                     # (cout,)
    w_full = w_full * scale[None, None, None, :]                   # fold BN scale
    b_eff = scale * b_eff + shift
    if split:
        half = cin // 2
        wd = w_full[:, :, :half, :].reshape(9 * half, cout).T      # (cout, 9*half)
        wo = w_full[:, :, half:, :].reshape(9 * half, cout).T
        return wd, wo, b_eff.reshape(cout, 1)
    w = w_full.reshape(9 * cin, cout).T                            # (cout, 9*cin)
    return w, b_eff.reshape(cout, 1)


def _init_vil(key, dim):
    inner = 2 * dim
    nh = inner // QKV_BLOCK
    dh = QKV_BLOCK
    ks = jax.random.split(key, 9)

    def nrm(k, shape, s):
        return jax.random.normal(k, shape, jnp.float32) * s

    def headwise(k):
        w = nrm(k, (nh, dh, dh), 1.0 / math.sqrt(dh))
        return block_diag(*[w[i].T for i in range(nh)])            # (inner, inner)

    wq, wk, wv = headwise(ks[2]), headwise(ks[3]), headwise(ks[4])
    w_ig = nrm(ks[5], (3 * inner, nh), 0.05)
    b_ig = nrm(ks[6], (nh,), 0.1)
    w_fg = nrm(ks[7], (3 * inner, nh), 0.05)
    b_fg = jnp.linspace(3.0, 6.0, nh)

    return dict(
        ln_g=jnp.ones((1, dim)), ln_b=jnp.zeros((1, dim)),
        w_up=nrm(ks[0], (dim, 2 * inner), 1.0 / math.sqrt(dim)),
        b_up=jnp.zeros((1, 2 * inner)),
        conv_w=nrm(ks[1], (4, inner), 0.3), conv_b=jnp.zeros((1, inner)),
        w_qk=jnp.concatenate([wq, wk], axis=1), b_qk=jnp.zeros((1, 2 * inner)),
        w_v=wv, b_v=jnp.zeros((1, inner)),
        w_if=jnp.concatenate([w_ig, w_fg], axis=1),
        b_if=jnp.concatenate([b_ig, b_fg]).reshape(1, 2 * nh),
        mln_g=jnp.ones((1, inner)), mln_b=jnp.zeros((1, inner)),
        skip=jnp.ones((1, inner)),
        w_down=nrm(ks[8], (inner, dim), 1.0 / math.sqrt(inner)),
        b_down=jnp.zeros((1, dim)),
    )


def init_params(key, c, oc):
    ks = jax.random.split(key, 10)
    wa_d, wa_a, ba = _init_dsconv_folded(ks[0], 2 * c, c, split=True)
    wb_d, wb_b, bb = _init_dsconv_folded(ks[1], 2 * c, c, split=True)
    wf, bf = _init_dsconv_folded(ks[2], 2 * c, oc, split=False)
    xc_scale, xc_shift = _fold_bn(c)
    xc_w = jax.random.normal(ks[5], (c, c), jnp.float32) / math.sqrt(c)   # (Cout, Cin)
    return dict(
        wa_d=wa_d, wa_a=wa_a, ba=ba,
        wb_d=wb_d, wb_b=wb_b, bb=bb,
        wf=wf, bf=bf,
        conva_w=jax.random.normal(ks[3], (1, c), jnp.float32) / math.sqrt(c),
        conva_b=jnp.zeros((1, 1), jnp.float32),
        convb_w=jax.random.normal(ks[4], (1, c), jnp.float32) / math.sqrt(c),
        convb_b=jnp.zeros((1, 1), jnp.float32),
        xc_w=xc_w * xc_scale[:, None], xc_b=xc_shift.reshape(c, 1),
        pe_h=jax.random.normal(ks[6], (1, c, 16), jnp.float32),
        pe_w=jax.random.normal(ks[7], (1, c, 16), jnp.float32),
        vil_h=_init_vil(ks[8], c),
        vil_w=_init_vil(ks[9], c),
    )


# ----------------------------------------------------------------------------

if __name__ == "__main__":
    B, C, H, W = 2, 8, 16, 16     # in_channel = 8, spatial 16x16 (matches pos_emb shape 16)
    OC = 8                        # out_channel

    key = jax.random.PRNGKey(0)
    kp, ka, kb = jax.random.split(key, 3)
    params = init_params(kp, C, OC)
    xA = jax.random.normal(ka, (B, C, H, W), jnp.float32)
    xB = jax.random.normal(kb, (B, C, H, W), jnp.float32)

    fwd = jax.jit(xlstm_axial_forward)
    out = fwd(params, xA, xB)
    jax.block_until_ready(out)

    assert out.shape == (B, OC, H, W), out.shape
    assert bool(jnp.all(jnp.isfinite(out)))
    print("KERNEL_OK")
</pallas_src>

<mosaic_0001>
module attributes {stable_mosaic.version = 11 : i64} {
  func.func @_vil_kernel(%arg0: i32, %arg1: i32, %arg2: memref<1x16x8xf32, #tpu.memory_space<vmem>>, %arg3: memref<1x16x16xf32, #tpu.memory_space<vmem>>, %arg4: memref<4x16x16xf32, #tpu.memory_space<vmem>>, %arg5: memref<1x8xf32, #tpu.memory_space<vmem>>, %arg6: memref<1x8xf32, #tpu.memory_space<vmem>>, %arg7: memref<8x32xf32, #tpu.memory_space<vmem>>, %arg8: memref<1x32xf32, #tpu.memory_space<vmem>>, %arg9: memref<4x16xf32, #tpu.memory_space<vmem>>, %arg10: memref<1x16xf32, #tpu.memory_space<vmem>>, %arg11: memref<16x32xf32, #tpu.memory_space<vmem>>, %arg12: memref<1x32xf32, #tpu.memory_space<vmem>>, %arg13: memref<16x16xf32, #tpu.memory_space<vmem>>, %arg14: memref<1x16xf32, #tpu.memory_space<vmem>>, %arg15: memref<48x8xf32, #tpu.memory_space<vmem>>, %arg16: memref<1x8xf32, #tpu.memory_space<vmem>>, %arg17: memref<1x16xf32, #tpu.memory_space<vmem>>, %arg18: memref<1x16xf32, #tpu.memory_space<vmem>>, %arg19: memref<1x16xf32, #tpu.memory_space<vmem>>, %arg20: memref<16x8xf32, #tpu.memory_space<vmem>>, %arg21: memref<1x8xf32, #tpu.memory_space<vmem>>, %arg22: memref<1x16x8xf32, #tpu.memory_space<vmem>>, %arg23: memref<16x16xf32, #tpu.memory_space<vmem>>) attributes {dimension_semantics = [#tpu.dimension_semantics<parallel>, #tpu.dimension_semantics<arbitrary>], iteration_bounds = array<i64: 2, 2>, scalar_prefetch = 0 : i64, scratch_operands = 1 : i64, tpu.core_type = #tpu.core_type<tc>, window_params = [{transform_indices = @transform_0, window_bounds = array<i64: 1, 16, 8>}, {transform_indices = @transform_1, window_bounds = array<i64: 1, 16, 16>}, {pipeline_mode = #tpu.pipeline_mode<synchronous>, transform_indices = @transform_2, window_bounds = array<i64: 4, 16, 16>}, {pipeline_mode = #tpu.pipeline_mode<synchronous>, transform_indices = @transform_3, window_bounds = array<i64: 1, 8>}, {pipeline_mode = #tpu.pipeline_mode<synchronous>, transform_indices = @transform_4, window_bounds = array<i64: 1, 8>}, {pipeline_mode = #tpu.pipeline_mode<synchronous>, transform_indices = @transform_5, window_bounds = array<i64: 8, 32>}, {pipeline_mode = #tpu.pipeline_mode<synchronous>, transform_indices = @transform_6, window_bounds = array<i64: 1, 32>}, {pipeline_mode = #tpu.pipeline_mode<synchronous>, transform_indices = @transform_7, window_bounds = array<i64: 4, 16>}, {pipeline_mode = #tpu.pipeline_mode<synchronous>, transform_indices = @transform_8, window_bounds = array<i64: 1, 16>}, {pipeline_mode = #tpu.pipeline_mode<synchronous>, transform_indices = @transform_9, window_bounds = array<i64: 16, 32>}, {pipeline_mode = #tpu.pipeline_mode<synchronous>, transform_indices = @transform_10, window_bounds = array<i64: 1, 32>}, {pipeline_mode = #tpu.pipeline_mode<synchronous>, transform_indices = @transform_11, window_bounds = array<i64: 16, 16>}, {pipeline_mode = #tpu.pipeline_mode<synchronous>, transform_indices = @transform_12, window_bounds = array<i64: 1, 16>}, {pipeline_mode = #tpu.pipeline_mode<synchronous>, transform_indices = @transform_13, window_bounds = array<i64: 48, 8>}, {pipeline_mode = #tpu.pipeline_mode<synchronous>, transform_indices = @transform_14, window_bounds = array<i64: 1, 8>}, {pipeline_mode = #tpu.pipeline_mode<synchronous>, transform_indices = @transform_15, window_bounds = array<i64: 1, 16>}, {pipeline_mode = #tpu.pipeline_mode<synchronous>, transform_indices = @transform_16, window_bounds = array<i64: 1, 16>}, {pipeline_mode = #tpu.pipeline_mode<synchronous>, transform_indices = @transform_17, window_bounds = array<i64: 1, 16>}, {pipeline_mode = #tpu.pipeline_mode<synchronous>, transform_indices = @transform_18, window_bounds = array<i64: 16, 8>}, {pipeline_mode = #tpu.pipeline_mode<synchronous>, transform_indices = @transform_19, window_bounds = array<i64: 1, 8>}, {transform_indices = @transform_20, window_bounds = array<i64: 1, 16, 8>}]} {
    %c0 = arith.constant 0 : index
    %c0_0 = arith.constant 0 : index
    %c0_1 = arith.constant 0 : index
    %0 = vector.load %arg2[%c0, %c0_0, %c0_1] : memref<1x16x8xf32, #tpu.memory_space<vmem>>, vector<1x16x8xf32>
    %1 = vector.shape_cast %0 : vector<1x16x8xf32> to vector<16x8xf32>
    %cst = arith.constant dense<0.000000e+00> : vector<16xf32>
    %2 = vector.multi_reduction <add>, %1, %cst [1] : vector<16x8xf32> to vector<16xf32>
    %3 = vector.shape_cast %2 : vector<16xf32> to vector<16x1xf32>
    %cst_2 = arith.constant 8.000000e+00 : f32
    %4 = vector.broadcast %cst_2 : f32 to vector<16x1xf32>
    %5 = arith.divf %3, %4 : vector<16x1xf32>
    %6 = vector.broadcast %5 : vector<16x1xf32> to vector<16x8xf32>
    %7 = arith.subf %1, %6 : vector<16x8xf32>
    %8 = arith.mulf %7, %7 : vector<16x8xf32>
    %cst_3 = arith.constant dense<0.000000e+00> : vector<16xf32>
    %9 = vector.multi_reduction <add>, %8, %cst_3 [1] : vector<16x8xf32> to vector<16xf32>
    %10 = vector.shape_cast %9 : vector<16xf32> to vector<16x1xf32>
    %cst_4 = arith.constant 8.000000e+00 : f32
    %11 = vector.broadcast %cst_4 : f32 to vector<16x1xf32>
    %12 = arith.divf %10, %11 : vector<16x1xf32>
    %13 = vector.broadcast %5 : vector<16x1xf32> to vector<16x8xf32>
    %14 = arith.subf %1, %13 : vector<16x8xf32>
    %cst_5 = arith.constant 9.99999974E-6 : f32
    %15 = vector.broadcast %cst_5 : f32 to vector<16x1xf32>
    %16 = arith.addf %12, %15 : vector<16x1xf32>
    %17 = math.rsqrt %16 : vector<16x1xf32>
    %18 = vector.broadcast %17 : vector<16x1xf32> to vector<16x8xf32>
    %19 = arith.mulf %14, %18 : vector<16x8xf32>
    %c0_6 = arith.constant 0 : index
    %c0_7 = arith.constant 0 : index
    %20 = vector.load %arg5[%c0_6, %c0_7] : memref<1x8xf32, #tpu.memory_space<vmem>>, vector<1x8xf32>
    %21 = vector.broadcast %20 : vector<1x8xf32> to vector<16x8xf32>
    %22 = arith.mulf %19, %21 : vector<16x8xf32>
    %c0_8 = arith.constant 0 : index
    %c0_9 = arith.constant 0 : index
    %23 = vector.load %arg6[%c0_8, %c0_9] : memref<1x8xf32, #tpu.memory_space<vmem>>, vector<1x8xf32>
    %24 = vector.broadcast %23 : vector<1x8xf32> to vector<16x8xf32>
    %25 = arith.addf %22, %24 : vector<16x8xf32>
    %c0_10 = arith.constant 0 : index
    %c0_11 = arith.constant 0 : index
    %c0_12 = arith.constant 0 : index
    %26 = vector.load %arg3[%c0_10, %c0_11, %c0_12] : memref<1x16x16xf32, #tpu.memory_space<vmem>>, vector<1x16x16xf32>
    %27 = vector.shape_cast %26 : vector<1x16x16xf32> to vector<16x16xf32>
    %cst_13 = arith.constant dense<0.000000e+00> : vector<16x8xf32>
    %28 = tpu.matmul %27, %25, %cst_13 {dimension_numbers = #tpu.dot_dimension_numbers<[1], [0], [0], [1], [0, 0, 1, 1], [], []>} : vector<16x16xf32>, vector<16x8xf32>, vector<16x8xf32> -> vector<16x8xf32>
    %c0_14 = arith.constant 0 : index
    %c0_15 = arith.constant 0 : index
    %29 = vector.load %arg7[%c0_14, %c0_15] : memref<8x32xf32, #tpu.memory_space<vmem>>, vector<8x32xf32>
    %cst_16 = arith.constant dense<0.000000e+00> : vector<16x32xf32>
    %30 = tpu.matmul %28, %29, %cst_16 {dimension_numbers = #tpu.dot_dimension_numbers<[1], [0], [0], [1], [0, 0, 1, 1], [], []>} : vector<16x8xf32>, vector<8x32xf32>, vector<16x32xf32> -> vector<16x32xf32>
    %c0_17 = arith.constant 0 : index
    %c0_18 = arith.constant 0 : index
    %31 = vector.load %arg8[%c0_17, %c0_18] : memref<1x32xf32, #tpu.memory_space<vmem>>, vector<1x32xf32>
    %32 = vector.broadcast %31 : vector<1x32xf32> to vector<16x32xf32>
    %33 = arith.addf %30, %32 : vector<16x32xf32>
    %34 = vector.extract_strided_slice %33 {offsets = [0, 0], sizes = [16, 16], strides = [1, 1]} : vector<16x32xf32> to vector<16x16xf32>
    %35 = vector.extract_strided_slice %33 {offsets = [0, 16], sizes = [16, 16], strides = [1, 1]} : vector<16x32xf32> to vector<16x16xf32>
    %c0_19 = arith.constant 0 : index
    %c0_20 = arith.constant 0 : index
    %36 = vector.load %arg9[%c0_19, %c0_20] : memref<4x16xf32, #tpu.memory_space<vmem>>, vector<4x16xf32>
    %cst_21 = arith.constant 0.000000e+00 : f32
    %37 = vector.broadcast %cst_21 : f32 to vector<16x16xf32>
    %c0_22 = arith.constant 0 : index
    %c0_23 = arith.constant 0 : index
    %38 = vector.load %arg10[%c0_22, %c0_23] : memref<1x16xf32, #tpu.memory_space<vmem>>, vector<1x16xf32>
    %39 = vector.broadcast %38 : vector<1x16xf32> to vector<16x16xf32>
    %40 = arith.addf %37, %39 : vector<16x16xf32>
    %c0_24 = arith.constant 0 : index
    %c0_25 = arith.constant 0 : index
    %c0_26 = arith.constant 0 : index
    %41 = vector.load %arg4[%c0_24, %c0_25, %c0_26] : memref<4x16x16xf32, #tpu.memory_space<vmem>>, vector<1x16x16xf32>
    %42 = vector.shape_cast %41 : vector<1x16x16xf32> to vector<16x16xf32>
    %cst_27 = arith.constant dense<0.000000e+00> : vector<16x16xf32>
    %43 = tpu.matmul %42, %34, %cst_27 {dimension_numbers = #tpu.dot_dimension_numbers<[1], [0], [0], [1], [0, 0, 1, 1], [], []>} : vector<16x16xf32>, vector<16x16xf32>, vector<16x16xf32> -> vector<16x16xf32>
    %44 = vector.extract_strided_slice %36 {offsets = [0, 0], sizes = [1, 16], strides = [1, 1]} : vector<4x16xf32> to vector<1x16xf32>
    %45 = vector.broadcast %44 : vector<1x16xf32> to vector<16x16xf32>
    %46 = arith.mulf %43, %45 : vector<16x16xf32>
    %47 = arith.addf %40, %46 : vector<16x16xf32>
    %c1 = arith.constant 1 : index
    %c0_28 = arith.constant 0 : index
    %c0_29 = arith.constant 0 : index
    %48 = vector.load %arg4[%c1, %c0_28, %c0_29] : memref<4x16x16xf32, #tpu.memory_space<vmem>>, vector<1x16x16xf32>
    %49 = vector.shape_cast %48 : vector<1x16x16xf32> to vector<16x16xf32>
    %cst_30 = arith.constant dense<0.000000e+00> : vector<16x16xf32>
    %50 = tpu.matmul %49, %34, %cst_30 {dimension_numbers = #tpu.dot_dimension_numbers<[1], [0], [0], [1], [0, 0, 1, 1], [], []>} : vector<16x16xf32>, vector<16x16xf32>, vector<16x16xf32> -> vector<16x16xf32>
    %51 = vector.extract_strided_slice %36 {offsets = [1, 0], sizes = [1, 16], strides = [1, 1]} : vector<4x16xf32> to vector<1x16xf32>
    %52 = vector.broadcast %51 : vector<1x16xf32> to vector<16x16xf32>
    %53 = arith.mulf %50, %52 : vector<16x16xf32>
    %54 = arith.addf %47, %53 : vector<16x16xf32>
    %c2 = arith.constant 2 : index
    %c0_31 = arith.constant 0 : index
    %c0_32 = arith.constant 0 : index
    %55 = vector.load %arg4[%c2, %c0_31, %c0_32] : memref<4x16x16xf32, #tpu.memory_space<vmem>>, vector<1x16x16xf32>
    %56 = vector.shape_cast %55 : vector<1x16x16xf32> to vector<16x16xf32>
    %cst_33 = arith.constant dense<0.000000e+00> : vector<16x16xf32>
    %57 = tpu.matmul %56, %34, %cst_33 {dimension_numbers = #tpu.dot_dimension_numbers<[1], [0], [0], [1], [0, 0, 1, 1], [], []>} : vector<16x16xf32>, vector<16x16xf32>, vector<16x16xf32> -> vector<16x16xf32>
    %58 = vector.extract_strided_slice %36 {offsets = [2, 0], sizes = [1, 16], strides = [1, 1]} : vector<4x16xf32> to vector<1x16xf32>
    %59 = vector.broadcast %58 : vector<1x16xf32> to vector<16x16xf32>
    %60 = arith.mulf %57, %59 : vector<16x16xf32>
    %61 = arith.addf %54, %60 : vector<16x16xf32>
    %c3 = arith.constant 3 : index
    %c0_34 = arith.constant 0 : index
    %c0_35 = arith.constant 0 : index
    %62 = vector.load %arg4[%c3, %c0_34, %c0_35] : memref<4x16x16xf32, #tpu.memory_space<vmem>>, vector<1x16x16xf32>
    %63 = vector.shape_cast %62 : vector<1x16x16xf32> to vector<16x16xf32>
    %cst_36 = arith.constant dense<0.000000e+00> : vector<16x16xf32>
    %64 = tpu.matmul %63, %34, %cst_36 {dimension_numbers = #tpu.dot_dimension_numbers<[1], [0], [0], [1], [0, 0, 1, 1], [], []>} : vector<16x16xf32>, vector<16x16xf32>, vector<16x16xf32> -> vector<16x16xf32>
    %65 = vector.extract_strided_slice %36 {offsets = [3, 0], sizes = [1, 16], strides = [1, 1]} : vector<4x16xf32> to vector<1x16xf32>
    %66 = vector.broadcast %65 : vector<1x16xf32> to vector<16x16xf32>
    %67 = arith.mulf %64, %66 : vector<16x16xf32>
    %68 = arith.addf %61, %67 : vector<16x16xf32>
    %cst_37 = arith.constant 0.000000e+00 : f32
    %69 = vector.broadcast %cst_37 : f32 to vector<16x16xf32>
    %70 = arith.subf %69, %68 : vector<16x16xf32>
    %71 = math.exp %70 : vector<16x16xf32>
    %cst_38 = arith.constant 1.000000e+00 : f32
    %72 = vector.broadcast %cst_38 : f32 to vector<16x16xf32>
    %73 = arith.addf %72, %71 : vector<16x16xf32>
    %74 = tpu.reciprocal %73 {approx = true} : vector<16x16xf32> -> vector<16x16xf32>
    %75 = arith.mulf %68, %74 : vector<16x16xf32>
    %c0_39 = arith.constant 0 : index
    %c0_40 = arith.constant 0 : index
    %76 = vector.load %arg11[%c0_39, %c0_40] : memref<16x32xf32, #tpu.memory_space<vmem>>, vector<16x32xf32>
    %cst_41 = arith.constant dense<0.000000e+00> : vector<16x32xf32>
    %77 = tpu.matmul %75, %76, %cst_41 {dimension_numbers = #tpu.dot_dimension_numbers<[1], [0], [0], [1], [0, 0, 1, 1], [], []>} : vector<16x16xf32>, vector<16x32xf32>, vector<16x32xf32> -> vector<16x32xf32>
    %c0_42 = arith.constant 0 : index
    %c0_43 = arith.constant 0 : index
    %78 = vector.load %arg12[%c0_42, %c0_43] : memref<1x32xf32, #tpu.memory_space<vmem>>, vector<1x32xf32>
    %79 = vector.broadcast %78 : vector<1x32xf32> to vector<16x32xf32>
    %80 = arith.addf %77, %79 : vector<16x32xf32>
    %81 = vector.extract_strided_slice %80 {offsets = [0, 0], sizes = [16, 16], strides = [1, 1]} : vector<16x32xf32> to vector<16x16xf32>
    %82 = vector.extract_strided_slice %80 {offsets = [0, 16], sizes = [16, 16], strides = [1, 1]} : vector<16x32xf32> to vector<16x16xf32>
    %c0_44 = arith.constant 0 : index
    %c0_45 = arith.constant 0 : index
    %83 = vector.load %arg13[%c0_44, %c0_45] : memref<16x16xf32, #tpu.memory_space<vmem>>, vector<16x16xf32>
    %cst_46 = arith.constant dense<0.000000e+00> : vector<16x16xf32>
    %84 = tpu.matmul %34, %83, %cst_46 {dimension_numbers = #tpu.dot_dimension_numbers<[1], [0], [0], [1], [0, 0, 1, 1], [], []>} : vector<16x16xf32>, vector<16x16xf32>, vector<16x16xf32> -> vector<16x16xf32>
    %c0_47 = arith.constant 0 : index
    %c0_48 = arith.constant 0 : index
    %85 = vector.load %arg14[%c0_47, %c0_48] : memref<1x16xf32, #tpu.memory_space<vmem>>, vector<1x16xf32>
    %86 = vector.broadcast %85 : vector<1x16xf32> to vector<16x16xf32>
    %87 = arith.addf %84, %86 : vector<16x16xf32>
    %c0_49 = arith.constant 0 : index
    %c0_50 = arith.constant 0 : index
    %88 = vector.load %arg15[%c0_49, %c0_50] : memref<48x8xf32, #tpu.memory_space<vmem>>, vector<48x8xf32>
    %89 = vector.extract_strided_slice %88 {offsets = [0, 0], sizes = [16, 8], strides = [1, 1]} : vector<48x8xf32> to vector<16x8xf32>
    %cst_51 = arith.constant dense<0.000000e+00> : vector<16x8xf32>
    %90 = tpu.matmul %81, %89, %cst_51 {dimension_numbers = #tpu.dot_dimension_numbers<[1], [0], [0], [1], [0, 0, 1, 1], [], []>} : vector<16x16xf32>, vector<16x8xf32>, vector<16x8xf32> -> vector<16x8xf32>
    %91 = vector.extract_strided_slice %88 {offsets = [16, 0], sizes = [16, 8], strides = [1, 1]} : vector<48x8xf32> to vector<16x8xf32>
    %cst_52 = arith.constant dense<0.000000e+00> : vector<16x8xf32>
    %92 = tpu.matmul %82, %91, %cst_52 {dimension_numbers = #tpu.dot_dimension_numbers<[1], [0], [0], [1], [0, 0, 1, 1], [], []>} : vector<16x16xf32>, vector<16x8xf32>, vector<16x8xf32> -> vector<16x8xf32>
    %93 = arith.addf %90, %92 : vector<16x8xf32>
    %94 = vector.extract_strided_slice %88 {offsets = [32, 0], sizes = [16, 8], strides = [1, 1]} : vector<48x8xf32> to vector<16x8xf32>
    %cst_53 = arith.constant dense<0.000000e+00> : vector<16x8xf32>
    %95 = tpu.matmul %87, %94, %cst_53 {dimension_numbers = #tpu.dot_dimension_numbers<[1], [0], [0], [1], [0, 0, 1, 1], [], []>} : vector<16x16xf32>, vector<16x8xf32>, vector<16x8xf32> -> vector<16x8xf32>
    %96 = arith.addf %93, %95 : vector<16x8xf32>
    %c0_54 = arith.constant 0 : index
    %c0_55 = arith.constant 0 : index
    %97 = vector.load %arg16[%c0_54, %c0_55] : memref<1x8xf32, #tpu.memory_space<vmem>>, vector<1x8xf32>
    %98 = vector.broadcast %97 : vector<1x8xf32> to vector<16x8xf32>
    %99 = arith.addf %96, %98 : vector<16x8xf32>
    %100 = vector.extract_strided_slice %99 {offsets = [0, 0], sizes = [16, 4], strides = [1, 1]} : vector<16x8xf32> to vector<16x4xf32>
    %101 = vector.extract_strided_slice %99 {offsets = [0, 4], sizes = [16, 4], strides = [1, 1]} : vector<16x8xf32> to vector<16x4xf32>
    %cst_56 = arith.constant 0.000000e+00 : f32
    %102 = vector.broadcast %cst_56 : f32 to vector<16x4xf32>
    %103 = arith.minimumf %101, %102 : vector<16x4xf32>
    %104 = math.absf %101 : vector<16x4xf32>
    %cst_57 = arith.constant 0.000000e+00 : f32
    %105 = vector.broadcast %cst_57 : f32 to vector<16x4xf32>
    %106 = arith.subf %105, %104 : vector<16x4xf32>
    %107 = math.exp %106 : vector<16x4xf32>
    %cst_58 = arith.constant 1.000000e+00 : f32
    %108 = vector.broadcast %cst_58 : f32 to vector<16x4xf32>
    %109 = arith.addf %108, %107 : vector<16x4xf32>
    %110 = math.log %109 : vector<16x4xf32>
    %111 = arith.subf %103, %110 : vector<16x4xf32>
    %112 = tpu.iota {dimensions = array<i32: 0>} : vector<16x16xi32>
    %113 = tpu.iota {dimensions = array<i32: 1>} : vector<16x16xi32>
    %114 = arith.cmpi sge, %112, %113 : vector<16x16xi32>
    %115 = arith.extui %114 : vector<16x16xi1> to vector<16x16xi32>
    %116 = arith.sitofp %115 : vector<16x16xi32> to vector<16x16xf32>
    %cst_59 = arith.constant dense<0.000000e+00> : vector<16x4xf32>
    %117 = tpu.matmul %116, %111, %cst_59 {dimension_numbers = #tpu.dot_dimension_numbers<[1], [0], [0], [1], [0, 0, 1, 1], [], []>} : vector<16x16xf32>, vector<16x4xf32>, vector<16x4xf32> -> vector<16x4xf32>
    %c0_60 = arith.constant 0 : index
    %c0_61 = arith.constant 0 : index
    %118 = vector.load %arg17[%c0_60, %c0_61] : memref<1x16xf32, #tpu.memory_space<vmem>>, vector<1x16xf32>
    %c0_62 = arith.constant 0 : index
    %c0_63 = arith.constant 0 : index
    %119 = vector.load %arg18[%c0_62, %c0_63] : memref<1x16xf32, #tpu.memory_space<vmem>>, vector<1x16xf32>
    %120 = vector.extract_strided_slice %81 {offsets = [0, 0], sizes = [16, 4], strides = [1, 1]} : vector<16x16xf32> to vector<16x4xf32>
    %121 = vector.extract_strided_slice %82 {offsets = [0, 0], sizes = [16, 4], strides = [1, 1]} : vector<16x16xf32> to vector<16x4xf32>
    %122 = vector.extract_strided_slice %87 {offsets = [0, 0], sizes = [16, 4], strides = [1, 1]} : vector<16x16xf32> to vector<16x4xf32>
    %123 = vector.extract_strided_slice %117 {offsets = [0, 0], sizes = [16, 1], strides = [1, 1]} : vector<16x4xf32> to vector<16x1xf32>
    %124 = vector.extract_strided_slice %100 {offsets = [0, 0], sizes = [16, 1], strides = [1, 1]} : vector<16x4xf32> to vector<16x1xf32>
    %125 = tpu.transpose %123, [1, 0] : vector<16x1xf32> -> vector<1x16xf32>
    %126 = vector.broadcast %123 : vector<16x1xf32> to vector<16x16xf32>
    %127 = vector.broadcast %125 : vector<1x16xf32> to vector<16x16xf32>
    %128 = arith.subf %126, %127 : vector<16x16xf32>
    %129 = tpu.transpose %124, [1, 0] : vector<16x1xf32> -> vector<1x16xf32>
    %130 = vector.broadcast %129 : vector<1x16xf32> to vector<16x16xf32>
    %131 = arith.addf %128, %130 : vector<16x16xf32>
    %cst_64 = arith.constant -1.000000e+30 : f32
    %132 = vector.broadcast %cst_64 : f32 to vector<16x16xf32>
    %133 = arith.select %114, %131, %132 : vector<16x16xi1>, vector<16x16xf32>
    %cst_65 = arith.constant dense<0xFF800000> : vector<16xf32>
    %134 = vector.multi_reduction <maximumf>, %133, %cst_65 [1] : vector<16x16xf32> to vector<16xf32>
    %135 = vector.shape_cast %134 : vector<16xf32> to vector<16x1xf32>
    %136 = vector.broadcast %135 : vector<16x1xf32> to vector<16x16xf32>
    %137 = arith.subf %133, %136 : vector<16x16xf32>
    %138 = math.exp %137 : vector<16x16xf32>
    %cst_66 = arith.constant dense<0.000000e+00> : vector<16x16xf32>
    %139 = tpu.matmul %120, %121, %cst_66 {dimension_numbers = #tpu.dot_dimension_numbers<[1], [1], [0], [0], [0, 0, 1, 0], [], []>} : vector<16x4xf32>, vector<16x4xf32>, vector<16x16xf32> -> vector<16x16xf32>
    %cst_67 = arith.constant 5.000000e-01 : f32
    %140 = vector.broadcast %cst_67 : f32 to vector<16x16xf32>
    %141 = arith.mulf %139, %140 : vector<16x16xf32>
    %142 = arith.mulf %141, %138 : vector<16x16xf32>
    %cst_68 = arith.constant dense<0.000000e+00> : vector<16xf32>
    %143 = vector.multi_reduction <add>, %142, %cst_68 [1] : vector<16x16xf32> to vector<16xf32>
    %144 = vector.shape_cast %143 : vector<16xf32> to vector<16x1xf32>
    %145 = math.absf %144 : vector<16x1xf32>
    %cst_69 = arith.constant 0.000000e+00 : f32
    %146 = vector.broadcast %cst_69 : f32 to vector<16x1xf32>
    %147 = arith.subf %146, %135 : vector<16x1xf32>
    %148 = math.exp %147 : vector<16x1xf32>
    %149 = arith.maximumf %145, %148 : vector<16x1xf32>
    %cst_70 = arith.constant 9.99999997E-7 : f32
    %150 = vector.broadcast %cst_70 : f32 to vector<16x1xf32>
    %151 = arith.addf %149, %150 : vector<16x1xf32>
    %152 = tpu.reciprocal %151 {approx = true} : vector<16x1xf32> -> vector<16x1xf32>
    %153 = vector.broadcast %152 : vector<16x1xf32> to vector<16x16xf32>
    %154 = arith.mulf %142, %153 : vector<16x16xf32>
    %cst_71 = arith.constant dense<0.000000e+00> : vector<16x4xf32>
    %155 = tpu.matmul %154, %122, %cst_71 {dimension_numbers = #tpu.dot_dimension_numbers<[1], [0], [0], [1], [0, 0, 1, 1], [], []>} : vector<16x16xf32>, vector<16x4xf32>, vector<16x4xf32> -> vector<16x4xf32>
    %cst_72 = arith.constant dense<0.000000e+00> : vector<16xf32>
    %156 = vector.multi_reduction <add>, %155, %cst_72 [1] : vector<16x4xf32> to vector<16xf32>
    %157 = vector.shape_cast %156 : vector<16xf32> to vector<16x1xf32>
    %cst_73 = arith.constant 4.000000e+00 : f32
    %158 = vector.broadcast %cst_73 : f32 to vector<16x1xf32>
    %159 = arith.divf %157, %158 : vector<16x1xf32>
    %160 = vector.broadcast %159 : vector<16x1xf32> to vector<16x4xf32>
    %161 = arith.subf %155, %160 : vector<16x4xf32>
    %162 = arith.mulf %161, %161 : vector<16x4xf32>
    %cst_74 = arith.constant dense<0.000000e+00> : vector<16xf32>
    %163 = vector.multi_reduction <add>, %162, %cst_74 [1] : vector<16x4xf32> to vector<16xf32>
    %164 = vector.shape_cast %163 : vector<16xf32> to vector<16x1xf32>
    %cst_75 = arith.constant 4.000000e+00 : f32
    %165 = vector.broadcast %cst_75 : f32 to vector<16x1xf32>
    %166 = arith.divf %164, %165 : vector<16x1xf32>
    %167 = vector.broadcast %159 : vector<16x1xf32> to vector<16x4xf32>
    %168 = arith.subf %155, %167 : vector<16x4xf32>
    %cst_76 = arith.constant 9.99999974E-6 : f32
    %169 = vector.broadcast %cst_76 : f32 to vector<16x1xf32>
    %170 = arith.addf %166, %169 : vector<16x1xf32>
    %171 = math.rsqrt %170 : vector<16x1xf32>
    %172 = vector.broadcast %171 : vector<16x1xf32> to vector<16x4xf32>
    %173 = arith.mulf %168, %172 : vector<16x4xf32>
    %174 = vector.extract_strided_slice %118 {offsets = [0, 0], sizes = [1, 4], strides = [1, 1]} : vector<1x16xf32> to vector<1x4xf32>
    %175 = vector.broadcast %174 : vector<1x4xf32> to vector<16x4xf32>
    %176 = arith.mulf %173, %175 : vector<16x4xf32>
    %177 = vector.extract_strided_slice %119 {offsets = [0, 0], sizes = [1, 4], strides = [1, 1]} : vector<1x16xf32> to vector<1x4xf32>
    %178 = vector.broadcast %177 : vector<1x4xf32> to vector<16x4xf32>
    %179 = arith.addf %176, %178 : vector<16x4xf32>
    %c0_77 = arith.constant 0 : index
    %c0_78 = arith.constant 0 : index
    %180 = vector.load %arg23[%c0_77, %c0_78] : memref<16x16xf32, #tpu.memory_space<vmem>>, vector<16x4xf32>
    tpu.vector_store %arg23[%c0_77, %c0_78], %179 {strides = array<i32>} : memref<16x16xf32, #tpu.memory_space<vmem>>, vector<16x4xf32>,
    %181 = vector.extract_strided_slice %81 {offsets = [0, 4], sizes = [16, 4], strides = [1, 1]} : vector<16x16xf32> to vector<16x4xf32>
    %182 = vector.extract_strided_slice %82 {offsets = [0, 4], sizes = [16, 4], strides = [1, 1]} : vector<16x16xf32> to vector<16x4xf32>
    %183 = vector.extract_strided_slice %87 {offsets = [0, 4], sizes = [16, 4], strides = [1, 1]} : vector<16x16xf32> to vector<16x4xf32>
    %184 = vector.extract_strided_slice %117 {offsets = [0, 1], sizes = [16, 1], strides = [1, 1]} : vector<16x4xf32> to vector<16x1xf32>
    %185 = vector.extract_strided_slice %100 {offsets = [0, 1], sizes = [16, 1], strides = [1, 1]} : vector<16x4xf32> to vector<16x1xf32>
    %186 = tpu.transpose %184, [1, 0] : vector<16x1xf32> -> vector<1x16xf32>
    %187 = vector.broadcast %184 : vector<16x1xf32> to vector<16x16xf32>
    %188 = vector.broadcast %186 : vector<1x16xf32> to vector<16x16xf32>
    %189 = arith.subf %187, %188 : vector<16x16xf32>
    %190 = tpu.transpose %185, [1, 0] : vector<16x1xf32> -> vector<1x16xf32>
    %191 = vector.broadcast %190 : vector<1x16xf32> to vector<16x16xf32>
    %192 = arith.addf %189, %191 : vector<16x16xf32>
    %cst_79 = arith.constant -1.000000e+30 : f32
    %193 = vector.broadcast %cst_79 : f32 to vector<16x16xf32>
    %194 = arith.select %114, %192, %193 : vector<16x16xi1>, vector<16x16xf32>
    %cst_80 = arith.constant dense<0xFF800000> : vector<16xf32>
    %195 = vector.multi_reduction <maximumf>, %194, %cst_80 [1] : vector<16x16xf32> to vector<16xf32>
    %196 = vector.shape_cast %195 : vector<16xf32> to vector<16x1xf32>
    %197 = vector.broadcast %196 : vector<16x1xf32> to vector<16x16xf32>
    %198 = arith.subf %194, %197 : vector<16x16xf32>
    %199 = math.exp %198 : vector<16x16xf32>
    %cst_81 = arith.constant dense<0.000000e+00> : vector<16x16xf32>
    %200 = tpu.matmul %181, %182, %cst_81 {dimension_numbers = #tpu.dot_dimension_numbers<[1], [1], [0], [0], [0, 0, 1, 0], [], []>} : vector<16x4xf32>, vector<16x4xf32>, vector<16x16xf32> -> vector<16x16xf32>
    %cst_82 = arith.constant 5.000000e-01 : f32
    %201 = vector.broadcast %cst_82 : f32 to vector<16x16xf32>
    %202 = arith.mulf %200, %201 : vector<16x16xf32>
    %203 = arith.mulf %202, %199 : vector<16x16xf32>
    %cst_83 = arith.constant dense<0.000000e+00> : vector<16xf32>
    %204 = vector.multi_reduction <add>, %203, %cst_83 [1] : vector<16x16xf32> to vector<16xf32>
    %205 = vector.shape_cast %204 : vector<16xf32> to vector<16x1xf32>
    %206 = math.absf %205 : vector<16x1xf32>
    %cst_84 = arith.constant 0.000000e+00 : f32
    %207 = vector.broadcast %cst_84 : f32 to vector<16x1xf32>
    %208 = arith.subf %207, %196 : vector<16x1xf32>
    %209 = math.exp %208 : vector<16x1xf32>
    %210 = arith.maximumf %206, %209 : vector<16x1xf32>
    %cst_85 = arith.constant 9.99999997E-7 : f32
    %211 = vector.broadcast %cst_85 : f32 to vector<16x1xf32>
    %212 = arith.addf %210, %211 : vector<16x1xf32>
    %213 = tpu.reciprocal %212 {approx = true} : vector<16x1xf32> -> vector<16x1xf32>
    %214 = vector.broadcast %213 : vector<16x1xf32> to vector<16x16xf32>
    %215 = arith.mulf %203, %214 : vector<16x16xf32>
    %cst_86 = arith.constant dense<0.000000e+00> : vector<16x4xf32>
    %216 = tpu.matmul %215, %183, %cst_86 {dimension_numbers = #tpu.dot_dimension_numbers<[1], [0], [0], [1], [0, 0, 1, 1], [], []>} : vector<16x16xf32>, vector<16x4xf32>, vector<16x4xf32> -> vector<16x4xf32>
    %cst_87 = arith.constant dense<0.000000e+00> : vector<16xf32>
    %217 = vector.multi_reduction <add>, %216, %cst_87 [1] : vector<16x4xf32> to vector<16xf32>
    %218 = vector.shape_cast %217 : vector<16xf32> to vector<16x1xf32>
    %cst_88 = arith.constant 4.000000e+00 : f32
    %219 = vector.broadcast %cst_88 : f32 to vector<16x1xf32>
    %220 = arith.divf %218, %219 : vector<16x1xf32>
    %221 = vector.broadcast %220 : vector<16x1xf32> to vector<16x4xf32>
    %222 = arith.subf %216, %221 : vector<16x4xf32>
    %223 = arith.mulf %222, %222 : vector<16x4xf32>
    %cst_89 = arith.constant dense<0.000000e+00> : vector<16xf32>
    %224 = vector.multi_reduction <add>, %223, %cst_89 [1] : vector<16x4xf32> to vector<16xf32>
    %225 = vector.shape_cast %224 : vector<16xf32> to vector<16x1xf32>
    %cst_90 = arith.constant 4.000000e+00 : f32
    %226 = vector.broadcast %cst_90 : f32 to vector<16x1xf32>
    %227 = arith.divf %225, %226 : vector<16x1xf32>
    %228 = vector.broadcast %220 : vector<16x1xf32> to vector<16x4xf32>
    %229 = arith.subf %216, %228 : vector<16x4xf32>
    %cst_91 = arith.constant 9.99999974E-6 : f32
    %230 = vector.broadcast %cst_91 : f32 to vector<16x1xf32>
    %231 = arith.addf %227, %230 : vector<16x1xf32>
    %232 = math.rsqrt %231 : vector<16x1xf32>
    %233 = vector.broadcast %232 : vector<16x1xf32> to vector<16x4xf32>
    %234 = arith.mulf %229, %233 : vector<16x4xf32>
    %235 = vector.extract_strided_slice %118 {offsets = [0, 4], sizes = [1, 4], strides = [1, 1]} : vector<1x16xf32> to vector<1x4xf32>
    %236 = vector.broadcast %235 : vector<1x4xf32> to vector<16x4xf32>
    %237 = arith.mulf %234, %236 : vector<16x4xf32>
    %238 = vector.extract_strided_slice %119 {offsets = [0, 4], sizes = [1, 4], strides = [1, 1]} : vector<1x16xf32> to vector<1x4xf32>
    %239 = vector.broadcast %238 : vector<1x4xf32> to vector<16x4xf32>
    %240 = arith.addf %237, %239 : vector<16x4xf32>
    %c0_92 = arith.constant 0 : index
    %c4 = arith.constant 4 : index
    %241 = vector.load %arg23[%c0_92, %c4] : memref<16x16xf32, #tpu.memory_space<vmem>>, vector<16x4xf32>
    tpu.vector_store %arg23[%c0_92, %c4], %240 {strides = array<i32>} : memref<16x16xf32, #tpu.memory_space<vmem>>, vector<16x4xf32>,
    %242 = vector.extract_strided_slice %81 {offsets = [0, 8], sizes = [16, 4], strides = [1, 1]} : vector<16x16xf32> to vector<16x4xf32>
    %243 = vector.extract_strided_slice %82 {offsets = [0, 8], sizes = [16, 4], strides = [1, 1]} : vector<16x16xf32> to vector<16x4xf32>
    %244 = vector.extract_strided_slice %87 {offsets = [0, 8], sizes = [16, 4], strides = [1, 1]} : vector<16x16xf32> to vector<16x4xf32>
    %245 = vector.extract_strided_slice %117 {offsets = [0, 2], sizes = [16, 1], strides = [1, 1]} : vector<16x4xf32> to vector<16x1xf32>
    %246 = vector.extract_strided_slice %100 {offsets = [0, 2], sizes = [16, 1], strides = [1, 1]} : vector<16x4xf32> to vector<16x1xf32>
    %247 = tpu.transpose %245, [1, 0] : vector<16x1xf32> -> vector<1x16xf32>
    %248 = vector.broadcast %245 : vector<16x1xf32> to vector<16x16xf32>
    %249 = vector.broadcast %247 : vector<1x16xf32> to vector<16x16xf32>
    %250 = arith.subf %248, %249 : vector<16x16xf32>
    %251 = tpu.transpose %246, [1, 0] : vector<16x1xf32> -> vector<1x16xf32>
    %252 = vector.broadcast %251 : vector<1x16xf32> to vector<16x16xf32>
    %253 = arith.addf %250, %252 : vector<16x16xf32>
    %cst_93 = arith.constant -1.000000e+30 : f32
    %254 = vector.broadcast %cst_93 : f32 to vector<16x16xf32>
    %255 = arith.select %114, %253, %254 : vector<16x16xi1>, vector<16x16xf32>
    %cst_94 = arith.constant dense<0xFF800000> : vector<16xf32>
    %256 = vector.multi_reduction <maximumf>, %255, %cst_94 [1] : vector<16x16xf32> to vector<16xf32>
    %257 = vector.shape_cast %256 : vector<16xf32> to vector<16x1xf32>
    %258 = vector.broadcast %257 : vector<16x1xf32> to vector<16x16xf32>
    %259 = arith.subf %255, %258 : vector<16x16xf32>
    %260 = math.exp %259 : vector<16x16xf32>
    %cst_95 = arith.constant dense<0.000000e+00> : vector<16x16xf32>
    %261 = tpu.matmul %242, %243, %cst_95 {dimension_numbers = #tpu.dot_dimension_numbers<[1], [1], [0], [0], [0, 0, 1, 0], [], []>} : vector<16x4xf32>, vector<16x4xf32>, vector<16x16xf32> -> vector<16x16xf32>
    %cst_96 = arith.constant 5.000000e-01 : f32
    %262 = vector.broadcast %cst_96 : f32 to vector<16x16xf32>
    %263 = arith.mulf %261, %262 : vector<16x16xf32>
    %264 = arith.mulf %263, %260 : vector<16x16xf32>
    %cst_97 = arith.constant dense<0.000000e+00> : vector<16xf32>
    %265 = vector.multi_reduction <add>, %264, %cst_97 [1] : vector<16x16xf32> to vector<16xf32>
    %266 = vector.shape_cast %265 : vector<16xf32> to vector<16x1xf32>
    %267 = math.absf %266 : vector<16x1xf32>
    %cst_98 = arith.constant 0.000000e+00 : f32
    %268 = vector.broadcast %cst_98 : f32 to vector<16x1xf32>
    %269 = arith.subf %268, %257 : vector<16x1xf32>
    %270 = math.exp %269 : vector<16x1xf32>
    %271 = arith.maximumf %267, %270 : vector<16x1xf32>
    %cst_99 = arith.constant 9.99999997E-7 : f32
    %272 = vector.broadcast %cst_99 : f32 to vector<16x1xf32>
    %273 = arith.addf %271, %272 : vector<16x1xf32>
    %274 = tpu.reciprocal %273 {approx = true} : vector<16x1xf32> -> vector<16x1xf32>
    %275 = vector.broadcast %274 : vector<16x1xf32> to vector<16x16xf32>
    %276 = arith.mulf %264, %275 : vector<16x16xf32>
    %cst_100 = arith.constant dense<0.000000e+00> : vector<16x4xf32>
    %277 = tpu.matmul %276, %244, %cst_100 {dimension_numbers = #tpu.dot_dimension_numbers<[1], [0], [0], [1], [0, 0, 1, 1], [], []>} : vector<16x16xf32>, vector<16x4xf32>, vector<16x4xf32> -> vector<16x4xf32>
    %cst_101 = arith.constant dense<0.000000e+00> : vector<16xf32>
    %278 = vector.multi_reduction <add>, %277, %cst_101 [1] : vector<16x4xf32> to vector<16xf32>
    %279 = vector.shape_cast %278 : vector<16xf32> to vector<16x1xf32>
    %cst_102 = arith.constant 4.000000e+00 : f32
    %280 = vector.broadcast %cst_102 : f32 to vector<16x1xf32>
    %281 = arith.divf %279, %280 : vector<16x1xf32>
    %282 = vector.broadcast %281 : vector<16x1xf32> to vector<16x4xf32>
    %283 = arith.subf %277, %282 : vector<16x4xf32>
    %284 = arith.mulf %283, %283 : vector<16x4xf32>
    %cst_103 = arith.constant dense<0.000000e+00> : vector<16xf32>
    %285 = vector.multi_reduction <add>, %284, %cst_103 [1] : vector<16x4xf32> to vector<16xf32>
    %286 = vector.shape_cast %285 : vector<16xf32> to vector<16x1xf32>
    %cst_104 = arith.constant 4.000000e+00 : f32
    %287 = vector.broadcast %cst_104 : f32 to vector<16x1xf32>
    %288 = arith.divf %286, %287 : vector<16x1xf32>
    %289 = vector.broadcast %281 : vector<16x1xf32> to vector<16x4xf32>
    %290 = arith.subf %277, %289 : vector<16x4xf32>
    %cst_105 = arith.constant 9.99999974E-6 : f32
    %291 = vector.broadcast %cst_105 : f32 to vector<16x1xf32>
    %292 = arith.addf %288, %291 : vector<16x1xf32>
    %293 = math.rsqrt %292 : vector<16x1xf32>
    %294 = vector.broadcast %293 : vector<16x1xf32> to vector<16x4xf32>
    %295 = arith.mulf %290, %294 : vector<16x4xf32>
    %296 = vector.extract_strided_slice %118 {offsets = [0, 8], sizes = [1, 4], strides = [1, 1]} : vector<1x16xf32> to vector<1x4xf32>
    %297 = vector.broadcast %296 : vector<1x4xf32> to vector<16x4xf32>
    %298 = arith.mulf %295, %297 : vector<16x4xf32>
    %299 = vector.extract_strided_slice %119 {offsets = [0, 8], sizes = [1, 4], strides = [1, 1]} : vector<1x16xf32> to vector<1x4xf32>
    %300 = vector.broadcast %299 : vector<1x4xf32> to vector<16x4xf32>
    %301 = arith.addf %298, %300 : vector<16x4xf32>
    %c0_106 = arith.constant 0 : index
    %c8 = arith.constant 8 : index
    %302 = vector.load %arg23[%c0_106, %c8] : memref<16x16xf32, #tpu.memory_space<vmem>>, vector<16x4xf32>
    tpu.vector_store %arg23[%c0_106, %c8], %301 {strides = array<i32>} : memref<16x16xf32, #tpu.memory_space<vmem>>, vector<16x4xf32>,
    %303 = vector.extract_strided_slice %81 {offsets = [0, 12], sizes = [16, 4], strides = [1, 1]} : vector<16x16xf32> to vector<16x4xf32>
    %304 = vector.extract_strided_slice %82 {offsets = [0, 12], sizes = [16, 4], strides = [1, 1]} : vector<16x16xf32> to vector<16x4xf32>
    %305 = vector.extract_strided_slice %87 {offsets = [0, 12], sizes = [16, 4], strides = [1, 1]} : vector<16x16xf32> to vector<16x4xf32>
    %306 = vector.extract_strided_slice %117 {offsets = [0, 3], sizes = [16, 1], strides = [1, 1]} : vector<16x4xf32> to vector<16x1xf32>
    %307 = vector.extract_strided_slice %100 {offsets = [0, 3], sizes = [16, 1], strides = [1, 1]} : vector<16x4xf32> to vector<16x1xf32>
    %308 = tpu.transpose %306, [1, 0] : vector<16x1xf32> -> vector<1x16xf32>
    %309 = vector.broadcast %306 : vector<16x1xf32> to vector<16x16xf32>
    %310 = vector.broadcast %308 : vector<1x16xf32> to vector<16x16xf32>
    %311 = arith.subf %309, %310 : vector<16x16xf32>
    %312 = tpu.transpose %307, [1, 0] : vector<16x1xf32> -> vector<1x16xf32>
    %313 = vector.broadcast %312 : vector<1x16xf32> to vector<16x16xf32>
    %314 = arith.addf %311, %313 : vector<16x16xf32>
    %cst_107 = arith.constant -1.000000e+30 : f32
    %315 = vector.broadcast %cst_107 : f32 to vector<16x16xf32>
    %316 = arith.select %114, %314, %315 : vector<16x16xi1>, vector<16x16xf32>
    %cst_108 = arith.constant dense<0xFF800000> : vector<16xf32>
    %317 = vector.multi_reduction <maximumf>, %316, %cst_108 [1] : vector<16x16xf32> to vector<16xf32>
    %318 = vector.shape_cast %317 : vector<16xf32> to vector<16x1xf32>
    %319 = vector.broadcast %318 : vector<16x1xf32> to vector<16x16xf32>
    %320 = arith.subf %316, %319 : vector<16x16xf32>
    %321 = math.exp %320 : vector<16x16xf32>
    %cst_109 = arith.constant dense<0.000000e+00> : vector<16x16xf32>
    %322 = tpu.matmul %303, %304, %cst_109 {dimension_numbers = #tpu.dot_dimension_numbers<[1], [1], [0], [0], [0, 0, 1, 0], [], []>} : vector<16x4xf32>, vector<16x4xf32>, vector<16x16xf32> -> vector<16x16xf32>
    %cst_110 = arith.constant 5.000000e-01 : f32
    %323 = vector.broadcast %cst_110 : f32 to vector<16x16xf32>
    %324 = arith.mulf %322, %323 : vector<16x16xf32>
    %325 = arith.mulf %324, %321 : vector<16x16xf32>
    %cst_111 = arith.constant dense<0.000000e+00> : vector<16xf32>
    %326 = vector.multi_reduction <add>, %325, %cst_111 [1] : vector<16x16xf32> to vector<16xf32>
    %327 = vector.shape_cast %326 : vector<16xf32> to vector<16x1xf32>
    %328 = math.absf %327 : vector<16x1xf32>
    %cst_112 = arith.constant 0.000000e+00 : f32
    %329 = vector.broadcast %cst_112 : f32 to vector<16x1xf32>
    %330 = arith.subf %329, %318 : vector<16x1xf32>
    %331 = math.exp %330 : vector<16x1xf32>
    %332 = arith.maximumf %328, %331 : vector<16x1xf32>
    %cst_113 = arith.constant 9.99999997E-7 : f32
    %333 = vector.broadcast %cst_113 : f32 to vector<16x1xf32>
    %334 = arith.addf %332, %333 : vector<16x1xf32>
    %335 = tpu.reciprocal %334 {approx = true} : vector<16x1xf32> -> vector<16x1xf32>
    %336 = vector.broadcast %335 : vector<16x1xf32> to vector<16x16xf32>
    %337 = arith.mulf %325, %336 : vector<16x16xf32>
    %cst_114 = arith.constant dense<0.000000e+00> : vector<16x4xf32>
    %338 = tpu.matmul %337, %305, %cst_114 {dimension_numbers = #tpu.dot_dimension_numbers<[1], [0], [0], [1], [0, 0, 1, 1], [], []>} : vector<16x16xf32>, vector<16x4xf32>, vector<16x4xf32> -> vector<16x4xf32>
    %cst_115 = arith.constant dense<0.000000e+00> : vector<16xf32>
    %339 = vector.multi_reduction <add>, %338, %cst_115 [1] : vector<16x4xf32> to vector<16xf32>
    %340 = vector.shape_cast %339 : vector<16xf32> to vector<16x1xf32>
    %cst_116 = arith.constant 4.000000e+00 : f32
    %341 = vector.broadcast %cst_116 : f32 to vector<16x1xf32>
    %342 = arith.divf %340, %341 : vector<16x1xf32>
    %343 = vector.broadcast %342 : vector<16x1xf32> to vector<16x4xf32>
    %344 = arith.subf %338, %343 : vector<16x4xf32>
    %345 = arith.mulf %344, %344 : vector<16x4xf32>
    %cst_117 = arith.constant dense<0.000000e+00> : vector<16xf32>
    %346 = vector.multi_reduction <add>, %345, %cst_117 [1] : vector<16x4xf32> to vector<16xf32>
    %347 = vector.shape_cast %346 : vector<16xf32> to vector<16x1xf32>
    %cst_118 = arith.constant 4.000000e+00 : f32
    %348 = vector.broadcast %cst_118 : f32 to vector<16x1xf32>
    %349 = arith.divf %347, %348 : vector<16x1xf32>
    %350 = vector.broadcast %342 : vector<16x1xf32> to vector<16x4xf32>
    %351 = arith.subf %338, %350 : vector<16x4xf32>
    %cst_119 = arith.constant 9.99999974E-6 : f32
    %352 = vector.broadcast %cst_119 : f32 to vector<16x1xf32>
    %353 = arith.addf %349, %352 : vector<16x1xf32>
    %354 = math.rsqrt %353 : vector<16x1xf32>
    %355 = vector.broadcast %354 : vector<16x1xf32> to vector<16x4xf32>
    %356 = arith.mulf %351, %355 : vector<16x4xf32>
    %357 = vector.extract_strided_slice %118 {offsets = [0, 12], sizes = [1, 4], strides = [1, 1]} : vector<1x16xf32> to vector<1x4xf32>
    %358 = vector.broadcast %357 : vector<1x4xf32> to vector<16x4xf32>
    %359 = arith.mulf %356, %358 : vector<16x4xf32>
    %360 = vector.extract_strided_slice %119 {offsets = [0, 12], sizes = [1, 4], strides = [1, 1]} : vector<1x16xf32> to vector<1x4xf32>
    %361 = vector.broadcast %360 : vector<1x4xf32> to vector<16x4xf32>
    %362 = arith.addf %359, %361 : vector<16x4xf32>
    %c0_120 = arith.constant 0 : index
    %c12 = arith.constant 12 : index
    %363 = vector.load %arg23[%c0_120, %c12] : memref<16x16xf32, #tpu.memory_space<vmem>>, vector<16x4xf32>
    tpu.vector_store %arg23[%c0_120, %c12], %362 {strides = array<i32>} : memref<16x16xf32, #tpu.memory_space<vmem>>, vector<16x4xf32>,
    %c0_121 = arith.constant 0 : index
    %c0_122 = arith.constant 0 : index
    %364 = vector.load %arg23[%c0_121, %c0_122] : memref<16x16xf32, #tpu.memory_space<vmem>>, vector<16x16xf32>
    %c0_123 = arith.constant 0 : index
    %c0_124 = arith.constant 0 : index
    %365 = vector.load %arg19[%c0_123, %c0_124] : memref<1x16xf32, #tpu.memory_space<vmem>>, vector<1x16xf32>
    %366 = vector.broadcast %365 : vector<1x16xf32> to vector<16x16xf32>
    %367 = arith.mulf %366, %75 : vector<16x16xf32>
    %368 = arith.addf %364, %367 : vector<16x16xf32>
    %cst_125 = arith.constant 0.000000e+00 : f32
    %369 = vector.broadcast %cst_125 : f32 to vector<16x16xf32>
    %370 = arith.subf %369, %35 : vector<16x16xf32>
    %371 = math.exp %370 : vector<16x16xf32>
    %cst_126 = arith.constant 1.000000e+00 : f32
    %372 = vector.broadcast %cst_126 : f32 to vector<16x16xf32>
    %373 = arith.addf %372, %371 : vector<16x16xf32>
    %374 = tpu.reciprocal %373 {approx = true} : vector<16x16xf32> -> vector<16x16xf32>
    %375 = arith.mulf %35, %374 : vector<16x16xf32>
    %376 = arith.mulf %368, %375 : vector<16x16xf32>
    %c0_127 = arith.constant 0 : index
    %c0_128 = arith.constant 0 : index
    %377 = vector.load %arg20[%c0_127, %c0_128] : memref<16x8xf32, #tpu.memory_space<vmem>>, vector<16x8xf32>
    %cst_129 = arith.constant dense<0.000000e+00> : vector<16x8xf32>
    %378 = tpu.matmul %376, %377, %cst_129 {dimension_numbers = #tpu.dot_dimension_numbers<[1], [0], [0], [1], [0, 0, 1, 1], [], []>} : vector<16x16xf32>, vector<16x8xf32>, vector<16x8xf32> -> vector<16x8xf32>
    %c0_130 = arith.constant 0 : index
    %c0_131 = arith.constant 0 : index
    %379 = vector.load %arg21[%c0_130, %c0_131] : memref<1x8xf32, #tpu.memory_space<vmem>>, vector<1x8xf32>
    %380 = vector.broadcast %379 : vector<1x8xf32> to vector<16x8xf32>
    %381 = arith.addf %378, %380 : vector<16x8xf32>
    %cst_132 = arith.constant dense<0.000000e+00> : vector<16x8xf32>
    %382 = tpu.matmul %27, %381, %cst_132 {dimension_numbers = #tpu.dot_dimension_numbers<[1], [0], [0], [1], [0, 0, 1, 1], [], []>} : vector<16x16xf32>, vector<16x8xf32>, vector<16x8xf32> -> vector<16x8xf32>
    %383 = arith.addf %1, %382 : vector<16x8xf32>
    %c0_i32 = arith.constant 0 : i32
    %384 = arith.cmpi eq, %arg1, %c0_i32 : i32
    %385 = arith.extui %384 : i1 to i32
    %c0_i32_133 = arith.constant 0 : i32
    %386 = arith.cmpi ne, %385, %c0_i32_133 : i32
    scf.if %386 {
      %cst_140 = arith.constant 0.000000e+00 : f32
      %393 = vector.broadcast %cst_140 : f32 to vector<1x16x8xf32>
      %c0_141 = arith.constant 0 : index
      %c0_142 = arith.constant 0 : index
      %c0_143 = arith.constant 0 : index
      %394 = vector.load %arg22[%c0_141, %c0_142, %c0_143] : memref<1x16x8xf32, #tpu.memory_space<vmem>>, vector<1x16x8xf32>
      tpu.vector_store %arg22[%c0_141, %c0_142, %c0_143], %393 {strides = array<i32>} : memref<1x16x8xf32, #tpu.memory_space<vmem>>, vector<1x16x8xf32>,
    } else {
    }
    %c0_134 = arith.constant 0 : index
    %c0_135 = arith.constant 0 : index
    %c0_136 = arith.constant 0 : index
    %387 = vector.load %arg22[%c0_134, %c0_135, %c0_136] : memref<1x16x8xf32, #tpu.memory_space<vmem>>, vector<1x16x8xf32>
    %388 = vector.shape_cast %387 : vector<1x16x8xf32> to vector<16x8xf32>
    %389 = arith.addf %388, %383 : vector<16x8xf32>
    %c0_137 = arith.constant 0 : index
    %c0_138 = arith.constant 0 : index
    %c0_139 = arith.constant 0 : index
    %390 = vector.load %arg22[%c0_137, %c0_138, %c0_139] : memref<1x16x8xf32, #tpu.memory_space<vmem>>, vector<1x16x8xf32>
    %391 = vector.shape_cast %390 : vector<1x16x8xf32> to vector<16x8xf32>
    %392 = vector.shape_cast %389 : vector<16x8xf32> to vector<1x16x8xf32>
    tpu.vector_store %arg22[%c0_137, %c0_138, %c0_139], %392 {strides = array<i32>} : memref<1x16x8xf32, #tpu.memory_space<vmem>>, vector<1x16x8xf32>,
    return
  }
  func.func @transform_0(%arg0: i32, %arg1: i32) -> (i32, i32, i32) {
    %c0_i32 = arith.constant 0 : i32
    %c0_i32_0 = arith.constant 0 : i32
    %c0_i32_1 = arith.constant 0 : i32
    return %arg0, %c0_i32, %c0_i32_0 : i32, i32, i32
  }
  func.func @transform_1(%arg0: i32, %arg1: i32) -> (i32, i32, i32) {
    %c0_i32 = arith.constant 0 : i32
    %c0_i32_0 = arith.constant 0 : i32
    %c0_i32_1 = arith.constant 0 : i32
    return %arg1, %c0_i32, %c0_i32_0 : i32, i32, i32
  }
  func.func @transform_2(%arg0: i32, %arg1: i32) -> (i32, i32, i32) {
    %c0_i32 = arith.constant 0 : i32
    %c0_i32_0 = arith.constant 0 : i32
    %c0_i32_1 = arith.constant 0 : i32
    %c0_i32_2 = arith.constant 0 : i32
    return %c0_i32, %c0_i32_0, %c0_i32_1 : i32, i32, i32
  }
  func.func @transform_3(%arg0: i32, %arg1: i32) -> (i32, i32) {
    %c0_i32 = arith.constant 0 : i32
    %c0_i32_0 = arith.constant 0 : i32
    %c0_i32_1 = arith.constant 0 : i32
    return %c0_i32, %c0_i32_0 : i32, i32
  }
  func.func @transform_4(%arg0: i32, %arg1: i32) -> (i32, i32) {
    %c0_i32 = arith.constant 0 : i32
    %c0_i32_0 = arith.constant 0 : i32
    %c0_i32_1 = arith.constant 0 : i32
    return %c0_i32, %c0_i32_0 : i32, i32
  }
  func.func @transform_5(%arg0: i32, %arg1: i32) -> (i32, i32) {
    %c0_i32 = arith.constant 0 : i32
    %c0_i32_0 = arith.constant 0 : i32
    %c0_i32_1 = arith.constant 0 : i32
    return %c0_i32, %c0_i32_0 : i32, i32
  }
  func.func @transform_6(%arg0: i32, %arg1: i32) -> (i32, i32) {
    %c0_i32 = arith.constant 0 : i32
    %c0_i32_0 = arith.constant 0 : i32
    %c0_i32_1 = arith.constant 0 : i32
    return %c0_i32, %c0_i32_0 : i32, i32
  }
  func.func @transform_7(%arg0: i32, %arg1: i32) -> (i32, i32) {
    %c0_i32 = arith.constant 0 : i32
    %c0_i32_0 = arith.constant 0 : i32
    %c0_i32_1 = arith.constant 0 : i32
    return %c0_i32, %c0_i32_0 : i32, i32
  }
  func.func @transform_8(%arg0: i32, %arg1: i32) -> (i32, i32) {
    %c0_i32 = arith.constant 0 : i32
    %c0_i32_0 = arith.constant 0 : i32
    %c0_i32_1 = arith.constant 0 : i32
    return %c0_i32, %c0_i32_0 : i32, i32
  }
  func.func @transform_9(%arg0: i32, %arg1: i32) -> (i32, i32) {
    %c0_i32 = arith.constant 0 : i32
    %c0_i32_0 = arith.constant 0 : i32
    %c0_i32_1 = arith.constant 0 : i32
    return %c0_i32, %c0_i32_0 : i32, i32
  }
  func.func @transform_10(%arg0: i32, %arg1: i32) -> (i32, i32) {
    %c0_i32 = arith.constant 0 : i32
    %c0_i32_0 = arith.constant 0 : i32
    %c0_i32_1 = arith.constant 0 : i32
    return %c0_i32, %c0_i32_0 : i32, i32
  }
  func.func @transform_11(%arg0: i32, %arg1: i32) -> (i32, i32) {
    %c0_i32 = arith.constant 0 : i32
    %c0_i32_0 = arith.constant 0 : i32
    %c0_i32_1 = arith.constant 0 : i32
    return %c0_i32, %c0_i32_0 : i32, i32
  }
  func.func @transform_12(%arg0: i32, %arg1: i32) -> (i32, i32) {
    %c0_i32 = arith.constant 0 : i32
    %c0_i32_0 = arith.constant 0 : i32
    %c0_i32_1 = arith.constant 0 : i32
    return %c0_i32, %c0_i32_0 : i32, i32
  }
  func.func @transform_13(%arg0: i32, %arg1: i32) -> (i32, i32) {
    %c0_i32 = arith.constant 0 : i32
    %c0_i32_0 = arith.constant 0 : i32
    %c0_i32_1 = arith.constant 0 : i32
    return %c0_i32, %c0_i32_0 : i32, i32
  }
  func.func @transform_14(%arg0: i32, %arg1: i32) -> (i32, i32) {
    %c0_i32 = arith.constant 0 : i32
    %c0_i32_0 = arith.constant 0 : i32
    %c0_i32_1 = arith.constant 0 : i32
    return %c0_i32, %c0_i32_0 : i32, i32
  }
  func.func @transform_15(%arg0: i32, %arg1: i32) -> (i32, i32) {
    %c0_i32 = arith.constant 0 : i32
    %c0_i32_0 = arith.constant 0 : i32
    %c0_i32_1 = arith.constant 0 : i32
    return %c0_i32, %c0_i32_0 : i32, i32
  }
  func.func @transform_16(%arg0: i32, %arg1: i32) -> (i32, i32) {
    %c0_i32 = arith.constant 0 : i32
    %c0_i32_0 = arith.constant 0 : i32
    %c0_i32_1 = arith.constant 0 : i32
    return %c0_i32, %c0_i32_0 : i32, i32
  }
  func.func @transform_17(%arg0: i32, %arg1: i32) -> (i32, i32) {
    %c0_i32 = arith.constant 0 : i32
    %c0_i32_0 = arith.constant 0 : i32
    %c0_i32_1 = arith.constant 0 : i32
    return %c0_i32, %c0_i32_0 : i32, i32
  }
  func.func @transform_18(%arg0: i32, %arg1: i32) -> (i32, i32) {
    %c0_i32 = arith.constant 0 : i32
    %c0_i32_0 = arith.constant 0 : i32
    %c0_i32_1 = arith.constant 0 : i32
    return %c0_i32, %c0_i32_0 : i32, i32
  }
  func.func @transform_19(%arg0: i32, %arg1: i32) -> (i32, i32) {
    %c0_i32 = arith.constant 0 : i32
    %c0_i32_0 = arith.constant 0 : i32
    %c0_i32_1 = arith.constant 0 : i32
    return %c0_i32, %c0_i32_0 : i32, i32
  }
  func.func @transform_20(%arg0: i32, %arg1: i32) -> (i32, i32, i32) {
    %c0_i32 = arith.constant 0 : i32
    %c0_i32_0 = arith.constant 0 : i32
    %c0_i32_1 = arith.constant 0 : i32
    return %arg0, %c0_i32, %c0_i32_0 : i32, i32, i32
  }
}

module attributes {stable_mosaic.version = 11 : i64} {
  func.func @_spatial_gate_kernel(%arg0: i32, %arg1: memref<1x8x256xf32, #tpu.memory_space<vmem>>, %arg2: memref<1x72x256xf32, #tpu.memory_space<vmem>>, %arg3: memref<1x72x256xf32, #tpu.memory_space<vmem>>, %arg4: memref<1x72x256xf32, #tpu.memory_space<vmem>>, %arg5: memref<1x8x256xf32, #tpu.memory_space<vmem>>, %arg6: memref<1x8x256xf32, #tpu.memory_space<vmem>>, %arg7: memref<8x8xf32, #tpu.memory_space<vmem>>, %arg8: memref<8x1xf32, #tpu.memory_space<vmem>>, %arg9: memref<8x72xf32, #tpu.memory_space<vmem>>, %arg10: memref<8x72xf32, #tpu.memory_space<vmem>>, %arg11: memref<8x1xf32, #tpu.memory_space<vmem>>, %arg12: memref<8x72xf32, #tpu.memory_space<vmem>>, %arg13: memref<8x72xf32, #tpu.memory_space<vmem>>, %arg14: memref<8x1xf32, #tpu.memory_space<vmem>>, %arg15: memref<1x8xf32, #tpu.memory_space<vmem>>, %arg16: memref<1x1xf32, #tpu.memory_space<vmem>>, %arg17: memref<1x8xf32, #tpu.memory_space<vmem>>, %arg18: memref<1x1xf32, #tpu.memory_space<vmem>>, %arg19: memref<1x16x256xf32, #tpu.memory_space<vmem>>) attributes {dimension_semantics = [#tpu.dimension_semantics<parallel>], iteration_bounds = array<i64: 2>, scalar_prefetch = 0 : i64, scratch_operands = 0 : i64, tpu.core_type = #tpu.core_type<tc>, window_params = [{transform_indices = @transform_0, window_bounds = array<i64: 1, 8, 256>}, {transform_indices = @transform_1, window_bounds = array<i64: 1, 72, 256>}, {transform_indices = @transform_2, window_bounds = array<i64: 1, 72, 256>}, {transform_indices = @transform_3, window_bounds = array<i64: 1, 72, 256>}, {transform_indices = @transform_4, window_bounds = array<i64: 1, 8, 256>}, {transform_indices = @transform_5, window_bounds = array<i64: 1, 8, 256>}, {pipeline_mode = #tpu.pipeline_mode<synchronous>, transform_indices = @transform_6, window_bounds = array<i64: 8, 8>}, {pipeline_mode = #tpu.pipeline_mode<synchronous>, transform_indices = @transform_7, window_bounds = array<i64: 8, 1>}, {pipeline_mode = #tpu.pipeline_mode<synchronous>, transform_indices = @transform_8, window_bounds = array<i64: 8, 72>}, {pipeline_mode = #tpu.pipeline_mode<synchronous>, transform_indices = @transform_9, window_bounds = array<i64: 8, 72>}, {pipeline_mode = #tpu.pipeline_mode<synchronous>, transform_indices = @transform_10, window_bounds = array<i64: 8, 1>}, {pipeline_mode = #tpu.pipeline_mode<synchronous>, transform_indices = @transform_11, window_bounds = array<i64: 8, 72>}, {pipeline_mode = #tpu.pipeline_mode<synchronous>, transform_indices = @transform_12, window_bounds = array<i64: 8, 72>}, {pipeline_mode = #tpu.pipeline_mode<synchronous>, transform_indices = @transform_13, window_bounds = array<i64: 8, 1>}, {pipeline_mode = #tpu.pipeline_mode<synchronous>, transform_indices = @transform_14, window_bounds = array<i64: 1, 8>}, {pipeline_mode = #tpu.pipeline_mode<synchronous>, transform_indices = @transform_15, window_bounds = array<i64: 1, 1>}, {pipeline_mode = #tpu.pipeline_mode<synchronous>, transform_indices = @transform_16, window_bounds = array<i64: 1, 8>}, {pipeline_mode = #tpu.pipeline_mode<synchronous>, transform_indices = @transform_17, window_bounds = array<i64: 1, 1>}, {transform_indices = @transform_18, window_bounds = array<i64: 1, 16, 256>}]} {
    %c0 = arith.constant 0 : index
    %c0_0 = arith.constant 0 : index
    %0 = vector.load %arg7[%c0, %c0_0] : memref<8x8xf32, #tpu.memory_space<vmem>>, vector<8x8xf32>
    %c0_1 = arith.constant 0 : index
    %c0_2 = arith.constant 0 : index
    %c0_3 = arith.constant 0 : index
    %1 = vector.load %arg1[%c0_1, %c0_2, %c0_3] : memref<1x8x256xf32, #tpu.memory_space<vmem>>, vector<1x8x256xf32>
    %2 = vector.shape_cast %1 : vector<1x8x256xf32> to vector<8x256xf32>
    %cst = arith.constant dense<0.000000e+00> : vector<8x256xf32>
    %3 = tpu.matmul %0, %2, %cst {dimension_numbers = #tpu.dot_dimension_numbers<[1], [0], [0], [1], [0, 0, 1, 1], [], []>} : vector<8x8xf32>, vector<8x256xf32>, vector<8x256xf32> -> vector<8x256xf32>
    %c0_4 = arith.constant 0 : index
    %c0_5 = arith.constant 0 : index
    %4 = vector.load %arg8[%c0_4, %c0_5] : memref<8x1xf32, #tpu.memory_space<vmem>>, vector<8x1xf32>
    %5 = vector.broadcast %4 : vector<8x1xf32> to vector<8x256xf32>
    %6 = arith.addf %3, %5 : vector<8x256xf32>
    %cst_6 = arith.constant 0.000000e+00 : f32
    %7 = vector.broadcast %cst_6 : f32 to vector<8x256xf32>
    %8 = arith.maximumf %6, %7 : vector<8x256xf32>
    %cst_7 = arith.constant 0.000000e+00 : f32
    %9 = vector.broadcast %cst_7 : f32 to vector<8x256xf32>
    %10 = arith.subf %9, %8 : vector<8x256xf32>
    %11 = math.exp %10 : vector<8x256xf32>
    %cst_8 = arith.constant 1.000000e+00 : f32
    %12 = vector.broadcast %cst_8 : f32 to vector<8x256xf32>
    %13 = arith.addf %12, %11 : vector<8x256xf32>
    %14 = tpu.reciprocal %13 {approx = true} : vector<8x256xf32> -> vector<8x256xf32>
    %c0_9 = arith.constant 0 : index
    %c0_10 = arith.constant 0 : index
    %15 = vector.load %arg9[%c0_9, %c0_10] : memref<8x72xf32, #tpu.memory_space<vmem>>, vector<8x72xf32>
    %c0_11 = arith.constant 0 : index
    %c0_12 = arith.constant 0 : index
    %c0_13 = arith.constant 0 : index
    %16 = vector.load %arg2[%c0_11, %c0_12, %c0_13] : memref<1x72x256xf32, #tpu.memory_space<vmem>>, vector<1x72x256xf32>
    %17 = vector.shape_cast %16 : vector<1x72x256xf32> to vector<72x256xf32>
    %cst_14 = arith.constant dense<0.000000e+00> : vector<8x256xf32>
    %18 = tpu.matmul %15, %17, %cst_14 {dimension_numbers = #tpu.dot_dimension_numbers<[1], [0], [0], [1], [0, 0, 1, 1], [], []>} : vector<8x72xf32>, vector<72x256xf32>, vector<8x256xf32> -> vector<8x256xf32>
    %c0_15 = arith.constant 0 : index
    %c0_16 = arith.constant 0 : index
    %19 = vector.load %arg10[%c0_15, %c0_16] : memref<8x72xf32, #tpu.memory_space<vmem>>, vector<8x72xf32>
    %c0_17 = arith.constant 0 : index
    %c0_18 = arith.constant 0 : index
    %c0_19 = arith.constant 0 : index
    %20 = vector.load %arg3[%c0_17, %c0_18, %c0_19] : memref<1x72x256xf32, #tpu.memory_space<vmem>>, vector<1x72x256xf32>
    %21 = vector.shape_cast %20 : vector<1x72x256xf32> to vector<72x256xf32>
    %cst_20 = arith.constant dense<0.000000e+00> : vector<8x256xf32>
    %22 = tpu.matmul %19, %21, %cst_20 {dimension_numbers = #tpu.dot_dimension_numbers<[1], [0], [0], [1], [0, 0, 1, 1], [], []>} : vector<8x72xf32>, vector<72x256xf32>, vector<8x256xf32> -> vector<8x256xf32>
    %23 = arith.addf %18, %22 : vector<8x256xf32>
    %c0_21 = arith.constant 0 : index
    %c0_22 = arith.constant 0 : index
    %24 = vector.load %arg11[%c0_21, %c0_22] : memref<8x1xf32, #tpu.memory_space<vmem>>, vector<8x1xf32>
    %25 = vector.broadcast %24 : vector<8x1xf32> to vector<8x256xf32>
    %26 = arith.addf %23, %25 : vector<8x256xf32>
    %cst_23 = arith.constant 0.000000e+00 : f32
    %27 = vector.broadcast %cst_23 : f32 to vector<8x256xf32>
    %28 = arith.maximumf %26, %27 : vector<8x256xf32>
    %c0_24 = arith.constant 0 : index
    %c0_25 = arith.constant 0 : index
    %29 = vector.load %arg12[%c0_24, %c0_25] : memref<8x72xf32, #tpu.memory_space<vmem>>, vector<8x72xf32>
    %c0_26 = arith.constant 0 : index
    %c0_27 = arith.constant 0 : index
    %c0_28 = arith.constant 0 : index
    %30 = vector.load %arg2[%c0_26, %c0_27, %c0_28] : memref<1x72x256xf32, #tpu.memory_space<vmem>>, vector<1x72x256xf32>
    %31 = vector.shape_cast %30 : vector<1x72x256xf32> to vector<72x256xf32>
    %cst_29 = arith.constant dense<0.000000e+00> : vector<8x256xf32>
    %32 = tpu.matmul %29, %31, %cst_29 {dimension_numbers = #tpu.dot_dimension_numbers<[1], [0], [0], [1], [0, 0, 1, 1], [], []>} : vector<8x72xf32>, vector<72x256xf32>, vector<8x256xf32> -> vector<8x256xf32>
    %c0_30 = arith.constant 0 : index
    %c0_31 = arith.constant 0 : index
    %33 = vector.load %arg13[%c0_30, %c0_31] : memref<8x72xf32, #tpu.memory_space<vmem>>, vector<8x72xf32>
    %c0_32 = arith.constant 0 : index
    %c0_33 = arith.constant 0 : index
    %c0_34 = arith.constant 0 : index
    %34 = vector.load %arg4[%c0_32, %c0_33, %c0_34] : memref<1x72x256xf32, #tpu.memory_space<vmem>>, vector<1x72x256xf32>
    %35 = vector.shape_cast %34 : vector<1x72x256xf32> to vector<72x256xf32>
    %cst_35 = arith.constant dense<0.000000e+00> : vector<8x256xf32>
    %36 = tpu.matmul %33, %35, %cst_35 {dimension_numbers = #tpu.dot_dimension_numbers<[1], [0], [0], [1], [0, 0, 1, 1], [], []>} : vector<8x72xf32>, vector<72x256xf32>, vector<8x256xf32> -> vector<8x256xf32>
    %37 = arith.addf %32, %36 : vector<8x256xf32>
    %c0_36 = arith.constant 0 : index
    %c0_37 = arith.constant 0 : index
    %38 = vector.load %arg14[%c0_36, %c0_37] : memref<8x1xf32, #tpu.memory_space<vmem>>, vector<8x1xf32>
    %39 = vector.broadcast %38 : vector<8x1xf32> to vector<8x256xf32>
    %40 = arith.addf %37, %39 : vector<8x256xf32>
    %cst_38 = arith.constant 0.000000e+00 : f32
    %41 = vector.broadcast %cst_38 : f32 to vector<8x256xf32>
    %42 = arith.maximumf %40, %41 : vector<8x256xf32>
    %c0_39 = arith.constant 0 : index
    %c0_40 = arith.constant 0 : index
    %43 = vector.load %arg15[%c0_39, %c0_40] : memref<1x8xf32, #tpu.memory_space<vmem>>, vector<1x8xf32>
    %cst_41 = arith.constant dense<0.000000e+00> : vector<1x256xf32>
    %44 = tpu.matmul %43, %28, %cst_41 {dimension_numbers = #tpu.dot_dimension_numbers<[1], [0], [0], [1], [0, 0, 1, 1], [], []>} : vector<1x8xf32>, vector<8x256xf32>, vector<1x256xf32> -> vector<1x256xf32>
    %c0_42 = arith.constant 0 : index
    %c0_43 = arith.constant 0 : index
    %45 = vector.load %arg16[%c0_42, %c0_43] : memref<1x1xf32, #tpu.memory_space<vmem>>, vector<1x1xf32>
    %46 = vector.broadcast %45 : vector<1x1xf32> to vector<1x256xf32>
    %47 = arith.addf %44, %46 : vector<1x256xf32>
    %cst_44 = arith.constant 0.000000e+00 : f32
    %48 = vector.broadcast %cst_44 : f32 to vector<1x256xf32>
    %49 = arith.subf %48, %47 : vector<1x256xf32>
    %50 = math.exp %49 : vector<1x256xf32>
    %cst_45 = arith.constant 1.000000e+00 : f32
    %51 = vector.broadcast %cst_45 : f32 to vector<1x256xf32>
    %52 = arith.addf %51, %50 : vector<1x256xf32>
    %53 = tpu.reciprocal %52 {approx = true} : vector<1x256xf32> -> vector<1x256xf32>
    %c0_46 = arith.constant 0 : index
    %c0_47 = arith.constant 0 : index
    %54 = vector.load %arg17[%c0_46, %c0_47] : memref<1x8xf32, #tpu.memory_space<vmem>>, vector<1x8xf32>
    %cst_48 = arith.constant dense<0.000000e+00> : vector<1x256xf32>
    %55 = tpu.matmul %54, %42, %cst_48 {dimension_numbers = #tpu.dot_dimension_numbers<[1], [0], [0], [1], [0, 0, 1, 1], [], []>} : vector<1x8xf32>, vector<8x256xf32>, vector<1x256xf32> -> vector<1x256xf32>
    %c0_49 = arith.constant 0 : index
    %c0_50 = arith.constant 0 : index
    %56 = vector.load %arg18[%c0_49, %c0_50] : memref<1x1xf32, #tpu.memory_space<vmem>>, vector<1x1xf32>
    %57 = vector.broadcast %56 : vector<1x1xf32> to vector<1x256xf32>
    %58 = arith.addf %55, %57 : vector<1x256xf32>
    %cst_51 = arith.constant 0.000000e+00 : f32
    %59 = vector.broadcast %cst_51 : f32 to vector<1x256xf32>
    %60 = arith.subf %59, %58 : vector<1x256xf32>
    %61 = math.exp %60 : vector<1x256xf32>
    %cst_52 = arith.constant 1.000000e+00 : f32
    %62 = vector.broadcast %cst_52 : f32 to vector<1x256xf32>
    %63 = arith.addf %62, %61 : vector<1x256xf32>
    %64 = tpu.reciprocal %63 {approx = true} : vector<1x256xf32> -> vector<1x256xf32>
    %65 = vector.broadcast %53 : vector<1x256xf32> to vector<8x256xf32>
    %66 = arith.mulf %65, %14 : vector<8x256xf32>
    %c0_53 = arith.constant 0 : index
    %c0_54 = arith.constant 0 : index
    %c0_55 = arith.constant 0 : index
    %67 = vector.load %arg5[%c0_53, %c0_54, %c0_55] : memref<1x8x256xf32, #tpu.memory_space<vmem>>, vector<1x8x256xf32>
    %68 = vector.shape_cast %67 : vector<1x8x256xf32> to vector<8x256xf32>
    %69 = arith.mulf %66, %68 : vector<8x256xf32>
    %c0_56 = arith.constant 0 : index
    %c0_57 = arith.constant 0 : index
    %c0_58 = arith.constant 0 : index
    %70 = vector.load %arg19[%c0_56, %c0_57, %c0_58] : memref<1x16x256xf32, #tpu.memory_space<vmem>>, vector<1x8x256xf32>
    %71 = vector.shape_cast %70 : vector<1x8x256xf32> to vector<8x256xf32>
    %72 = vector.shape_cast %69 : vector<8x256xf32> to vector<1x8x256xf32>
    tpu.vector_store %arg19[%c0_56, %c0_57, %c0_58], %72 {strides = array<i32>} : memref<1x16x256xf32, #tpu.memory_space<vmem>>, vector<1x8x256xf32>,
    %73 = vector.broadcast %64 : vector<1x256xf32> to vector<8x256xf32>
    %74 = arith.mulf %73, %14 : vector<8x256xf32>
    %c0_59 = arith.constant 0 : index
    %c0_60 = arith.constant 0 : index
    %c0_61 = arith.constant 0 : index
    %75 = vector.load %arg6[%c0_59, %c0_60, %c0_61] : memref<1x8x256xf32, #tpu.memory_space<vmem>>, vector<1x8x256xf32>
    %76 = vector.shape_cast %75 : vector<1x8x256xf32> to vector<8x256xf32>
    %77 = arith.mulf %74, %76 : vector<8x256xf32>
    %c0_62 = arith.constant 0 : index
    %c8 = arith.constant 8 : index
    %c0_63 = arith.constant 0 : index
    %78 = vector.load %arg19[%c0_62, %c8, %c0_63] : memref<1x16x256xf32, #tpu.memory_space<vmem>>, vector<1x8x256xf32>
    %79 = vector.shape_cast %78 : vector<1x8x256xf32> to vector<8x256xf32>
    %80 = vector.shape_cast %77 : vector<8x256xf32> to vector<1x8x256xf32>
    tpu.vector_store %arg19[%c0_62, %c8, %c0_63], %80 {strides = array<i32>} : memref<1x16x256xf32, #tpu.memory_space<vmem>>, vector<1x8x256xf32>,
    return
  }
  func.func @transform_0(%arg0: i32) -> (i32, i32, i32) {
    %c0_i32 = arith.constant 0 : i32
    %c0_i32_0 = arith.constant 0 : i32
    %c0_i32_1 = arith.constant 0 : i32
    return %arg0, %c0_i32, %c0_i32_0 : i32, i32, i32
  }
  func.func @transform_1(%arg0: i32) -> (i32, i32, i32) {
    %c0_i32 = arith.constant 0 : i32
    %c0_i32_0 = arith.constant 0 : i32
    %c0_i32_1 = arith.constant 0 : i32
    return %arg0, %c0_i32, %c0_i32_0 : i32, i32, i32
  }
  func.func @transform_2(%arg0: i32) -> (i32, i32, i32) {
    %c0_i32 = arith.constant 0 : i32
    %c0_i32_0 = arith.constant 0 : i32
    %c0_i32_1 = arith.constant 0 : i32
    return %arg0, %c0_i32, %c0_i32_0 : i32, i32, i32
  }
  func.func @transform_3(%arg0: i32) -> (i32, i32, i32) {
    %c0_i32 = arith.constant 0 : i32
    %c0_i32_0 = arith.constant 0 : i32
    %c0_i32_1 = arith.constant 0 : i32
    return %arg0, %c0_i32, %c0_i32_0 : i32, i32, i32
  }
  func.func @transform_4(%arg0: i32) -> (i32, i32, i32) {
    %c0_i32 = arith.constant 0 : i32
    %c0_i32_0 = arith.constant 0 : i32
    %c0_i32_1 = arith.constant 0 : i32
    return %arg0, %c0_i32, %c0_i32_0 : i32, i32, i32
  }
  func.func @transform_5(%arg0: i32) -> (i32, i32, i32) {
    %c0_i32 = arith.constant 0 : i32
    %c0_i32_0 = arith.constant 0 : i32
    %c0_i32_1 = arith.constant 0 : i32
    return %arg0, %c0_i32, %c0_i32_0 : i32, i32, i32
  }
  func.func @transform_6(%arg0: i32) -> (i32, i32) {
    %c0_i32 = arith.constant 0 : i32
    %c0_i32_0 = arith.constant 0 : i32
    %c0_i32_1 = arith.constant 0 : i32
    return %c0_i32, %c0_i32_0 : i32, i32
  }
  func.func @transform_7(%arg0: i32) -> (i32, i32) {
    %c0_i32 = arith.constant 0 : i32
    %c0_i32_0 = arith.constant 0 : i32
    %c0_i32_1 = arith.constant 0 : i32
    return %c0_i32, %c0_i32_0 : i32, i32
  }
  func.func @transform_8(%arg0: i32) -> (i32, i32) {
    %c0_i32 = arith.constant 0 : i32
    %c0_i32_0 = arith.constant 0 : i32
    %c0_i32_1 = arith.constant 0 : i32
    return %c0_i32, %c0_i32_0 : i32, i32
  }
  func.func @transform_9(%arg0: i32) -> (i32, i32) {
    %c0_i32 = arith.constant 0 : i32
    %c0_i32_0 = arith.constant 0 : i32
    %c0_i32_1 = arith.constant 0 : i32
    return %c0_i32, %c0_i32_0 : i32, i32
  }
  func.func @transform_10(%arg0: i32) -> (i32, i32) {
    %c0_i32 = arith.constant 0 : i32
    %c0_i32_0 = arith.constant 0 : i32
    %c0_i32_1 = arith.constant 0 : i32
    return %c0_i32, %c0_i32_0 : i32, i32
  }
  func.func @transform_11(%arg0: i32) -> (i32, i32) {
    %c0_i32 = arith.constant 0 : i32
    %c0_i32_0 = arith.constant 0 : i32
    %c0_i32_1 = arith.constant 0 : i32
    return %c0_i32, %c0_i32_0 : i32, i32
  }
  func.func @transform_12(%arg0: i32) -> (i32, i32) {
    %c0_i32 = arith.constant 0 : i32
    %c0_i32_0 = arith.constant 0 : i32
    %c0_i32_1 = arith.constant 0 : i32
    return %c0_i32, %c0_i32_0 : i32, i32
  }
  func.func @transform_13(%arg0: i32) -> (i32, i32) {
    %c0_i32 = arith.constant 0 : i32
    %c0_i32_0 = arith.constant 0 : i32
    %c0_i32_1 = arith.constant 0 : i32
    return %c0_i32, %c0_i32_0 : i32, i32
  }
  func.func @transform_14(%arg0: i32) -> (i32, i32) {
    %c0_i32 = arith.constant 0 : i32
    %c0_i32_0 = arith.constant 0 : i32
    %c0_i32_1 = arith.constant 0 : i32
    return %c0_i32, %c0_i32_0 : i32, i32
  }
  func.func @transform_15(%arg0: i32) -> (i32, i32) {
    %c0_i32 = arith.constant 0 : i32
    %c0_i32_0 = arith.constant 0 : i32
    %c0_i32_1 = arith.constant 0 : i32
    return %c0_i32, %c0_i32_0 : i32, i32
  }
  func.func @transform_16(%arg0: i32) -> (i32, i32) {
    %c0_i32 = arith.constant 0 : i32
    %c0_i32_0 = arith.constant 0 : i32
    %c0_i32_1 = arith.constant 0 : i32
    return %c0_i32, %c0_i32_0 : i32, i32
  }
  func.func @transform_17(%arg0: i32) -> (i32, i32) {
    %c0_i32 = arith.constant 0 : i32
    %c0_i32_0 = arith.constant 0 : i32
    %c0_i32_1 = arith.constant 0 : i32
    return %c0_i32, %c0_i32_0 : i32, i32
  }
  func.func @transform_18(%arg0: i32) -> (i32, i32, i32) {
    %c0_i32 = arith.constant 0 : i32
    %c0_i32_0 = arith.constant 0 : i32
    %c0_i32_1 = arith.constant 0 : i32
    return %arg0, %c0_i32, %c0_i32_0 : i32, i32, i32
  }
}

module attributes {stable_mosaic.version = 11 : i64} {
  func.func @_final_conv_kernel(%arg0: i32, %arg1: memref<1x144x256xf32, #tpu.memory_space<vmem>>, %arg2: memref<8x144xf32, #tpu.memory_space<vmem>>, %arg3: memref<8x1xf32, #tpu.memory_space<vmem>>, %arg4: memref<1x8x256xf32, #tpu.memory_space<vmem>>) attributes {dimension_semantics = [#tpu.dimension_semantics<parallel>], iteration_bounds = array<i64: 2>, scalar_prefetch = 0 : i64, scratch_operands = 0 : i64, tpu.core_type = #tpu.core_type<tc>, window_params = [{transform_indices = @transform_0, window_bounds = array<i64: 1, 144, 256>}, {pipeline_mode = #tpu.pipeline_mode<synchronous>, transform_indices = @transform_1, window_bounds = array<i64: 8, 144>}, {pipeline_mode = #tpu.pipeline_mode<synchronous>, transform_indices = @transform_2, window_bounds = array<i64: 8, 1>}, {transform_indices = @transform_3, window_bounds = array<i64: 1, 8, 256>}]} {
    %c0 = arith.constant 0 : index
    %c0_0 = arith.constant 0 : index
    %0 = vector.load %arg2[%c0, %c0_0] : memref<8x144xf32, #tpu.memory_space<vmem>>, vector<8x144xf32>
    %c0_1 = arith.constant 0 : index
    %c0_2 = arith.constant 0 : index
    %c0_3 = arith.constant 0 : index
    %1 = vector.load %arg1[%c0_1, %c0_2, %c0_3] : memref<1x144x256xf32, #tpu.memory_space<vmem>>, vector<1x144x256xf32>
    %2 = vector.shape_cast %1 : vector<1x144x256xf32> to vector<144x256xf32>
    %cst = arith.constant dense<0.000000e+00> : vector<8x256xf32>
    %3 = tpu.matmul %0, %2, %cst {dimension_numbers = #tpu.dot_dimension_numbers<[1], [0], [0], [1], [0, 0, 1, 1], [], []>} : vector<8x144xf32>, vector<144x256xf32>, vector<8x256xf32> -> vector<8x256xf32>
    %c0_4 = arith.constant 0 : index
    %c0_5 = arith.constant 0 : index
    %4 = vector.load %arg3[%c0_4, %c0_5] : memref<8x1xf32, #tpu.memory_space<vmem>>, vector<8x1xf32>
    %5 = vector.broadcast %4 : vector<8x1xf32> to vector<8x256xf32>
    %6 = arith.addf %3, %5 : vector<8x256xf32>
    %cst_6 = arith.constant 0.000000e+00 : f32
    %7 = vector.broadcast %cst_6 : f32 to vector<8x256xf32>
    %8 = arith.maximumf %6, %7 : vector<8x256xf32>
    %c0_7 = arith.constant 0 : index
    %c0_8 = arith.constant 0 : index
    %c0_9 = arith.constant 0 : index
    %9 = vector.load %arg4[%c0_7, %c0_8, %c0_9] : memref<1x8x256xf32, #tpu.memory_space<vmem>>, vector<1x8x256xf32>
    %10 = vector.shape_cast %9 : vector<1x8x256xf32> to vector<8x256xf32>
    %11 = vector.shape_cast %8 : vector<8x256xf32> to vector<1x8x256xf32>
    tpu.vector_store %arg4[%c0_7, %c0_8, %c0_9], %11 {strides = array<i32>} : memref<1x8x256xf32, #tpu.memory_space<vmem>>, vector<1x8x256xf32>,
    return
  }
  func.func @transform_0(%arg0: i32) -> (i32, i32, i32) {
    %c0_i32 = arith.constant 0 : i32
    %c0_i32_0 = arith.constant 0 : i32
    %c0_i32_1 = arith.constant 0 : i32
    return %arg0, %c0_i32, %c0_i32_0 : i32, i32, i32
  }
  func.func @transform_1(%arg0: i32) -> (i32, i32) {
    %c0_i32 = arith.constant 0 : i32
    %c0_i32_0 = arith.constant 0 : i32
    %c0_i32_1 = arith.constant 0 : i32
    return %c0_i32, %c0_i32_0 : i32, i32
  }
  func.func @transform_2(%arg0: i32) -> (i32, i32) {
    %c0_i32 = arith.constant 0 : i32
    %c0_i32_0 = arith.constant 0 : i32
    %c0_i32_1 = arith.constant 0 : i32
    return %c0_i32, %c0_i32_0 : i32, i32
  }
  func.func @transform_3(%arg0: i32) -> (i32, i32, i32) {
    %c0_i32 = arith.constant 0 : i32
    %c0_i32_0 = arith.constant 0 : i32
    %c0_i32_1 = arith.constant 0 : i32
    return %arg0, %c0_i32, %c0_i32_0 : i32, i32, i32
  }
}

</mosaic_0001>

<llo_original>
// kernel: xlstm_axial_forward.6
$region0: #{xlstm_axial_forward.6}
  #allocation0 [shape = 'u32[]', space=smem, size = 0x4, offset = 0x4, fixed_abs, tag = 'smem constant byte address 0x4 - core index']
  #allocation1 [shape = 'u32[144,128]{1,0:T(1,128)}', space=vmem, size = 0x12000, scoped, tag = 'internal scratch']
  #allocation2 [shape = 'f32[1,1]{1,0:T(1,128)S(1)}', space=vmem, size = 0x200, scoped, tag = 'scoped memory for xlstm_axial_forward.6']
  #allocation3 [shape = 'f32[1,1]{1,0:T(1,128)S(1)}', space=vmem, size = 0x200, scoped, tag = 'scoped memory for xlstm_axial_forward.6']
  %s0 = inlined_call_operand.vmem [shape: f32[2,8,256], index: 0, kind: input, shape index: {}]
  %s1 = inlined_call_operand.vmem [shape: f32[2,72,256], index: 1, kind: input, shape index: {}]
  %s2 = inlined_call_operand.vmem [shape: f32[2,72,256], index: 2, kind: input, shape index: {}]
  %s3 = inlined_call_operand.vmem [shape: f32[2,72,256], index: 3, kind: input, shape index: {}]
  %s4 = inlined_call_operand.vmem [shape: f32[2,8,256], index: 4, kind: input, shape index: {}]
  %s5 = inlined_call_operand.vmem [shape: f32[2,8,256], index: 5, kind: input, shape index: {}]
  %s6 = inlined_call_operand.vmem [shape: f32[8,8], index: 6, kind: input, shape index: {}]
  %s7 = inlined_call_operand.vmem [shape: f32[8,1], index: 7, kind: input, shape index: {}]
  %s8 = inlined_call_operand.vmem [shape: f32[8,72], index: 8, kind: input, shape index: {}]
  %s9 = inlined_call_operand.vmem [shape: f32[8,72], index: 9, kind: input, shape index: {}]
  %s10 = inlined_call_operand.vmem [shape: f32[8,1], index: 10, kind: input, shape index: {}]
  %s11 = inlined_call_operand.vmem [shape: f32[8,72], index: 11, kind: input, shape index: {}]
  %s12 = inlined_call_operand.vmem [shape: f32[8,72], index: 12, kind: input, shape index: {}]
  %s13 = inlined_call_operand.vmem [shape: f32[8,1], index: 13, kind: input, shape index: {}]
  %s14 = inlined_call_operand.vmem [shape: f32[1,8], index: 14, kind: input, shape index: {}]
  %s15 = inlined_call_operand.<no memory space> [shape: f32[1,1], index: 15, kind: input, shape index: {}]
  %s16 = inlined_call_operand.vmem [shape: f32[1,8], index: 16, kind: input, shape index: {}]
  %s17 = inlined_call_operand.<no memory space> [shape: f32[1,1], index: 17, kind: input, shape index: {}]
  %s18 = inlined_call_operand.vmem [shape: f32[2,16,256], index: 18, kind: output, shape index: {}]
  %s19 = sld [smem:[#allocation0]]
  $region105: #{xlstm_axial_forward.6} parent=0
    _
  %s21 = ssub.s32 1, %s19
  %s22 = scalar_select 0, %s21, %s19
  %v23 = vstv %s15
  %24 = vst [vmem:[#allocation2] sm:$0x1] %v23
  %v25 = vstv %s17
  %26 = vst [vmem:[#allocation3] sm:$0x1] %v25
  loop: start=0, step=1, limit=4
  $region2: #{xlstm_axial_forward.6} parent=0 // loop_pre_header
    _
  $region3: #{xlstm_axial_forward.6} parent=0 // loop_header
    %s28 = sphi 0, %s32
    %p29 = scmp.ge.s32.totalorder %s28, 4
    %s38 = sphi 0, %s40
    %s41 = sphi 0, %s38
    %s42 = sphi 0, %s41
    %s58 = sphi 0, %s42
    %s64 = sphi 0, %s66
    %s67 = sphi 0, %s64
    %s68 = sphi 0, %s67
    %s84 = sphi 0, %s68
    %s90 = sphi 0, %s92
    %s93 = sphi 0, %s90
    %s94 = sphi 0, %s93
    %s110 = sphi 0, %s94
    %s116 = sphi 0, %s118
    %s119 = sphi 0, %s116
    %s120 = sphi 0, %s119
    %s136 = sphi 0, %s120
    %s142 = sphi 0, %s144
    %s145 = sphi 0, %s142
    %s146 = sphi 0, %s145
    %s162 = sphi 0, %s146
    %s168 = sphi 0, %s170
    %s171 = sphi 0, %s168
    %s172 = sphi 0, %s171
    %s188 = sphi 0, %s172
    %s192 = sphi 0, %s192
    %s194 = sphi 0, %s192
    %s195 = sphi 0, %s194
    %s209 = sphi 0, %s195
    %s213 = sphi 0, %s213
    %s215 = sphi 0, %s213
    %s216 = sphi 0, %s215
    %s230 = sphi 0, %s216
    %s234 = sphi 0, %s234
    %s236 = sphi 0, %s234
    %s237 = sphi 0, %s236
    %s251 = sphi 0, %s237
    %s255 = sphi 0, %s255
    %s257 = sphi 0, %s255
    %s258 = sphi 0, %s257
    %s272 = sphi 0, %s258
    %s276 = sphi 0, %s276
    %s278 = sphi 0, %s276
    %s279 = sphi 0, %s278
    %s293 = sphi 0, %s279
    %s297 = sphi 0, %s297
    %s299 = sphi 0, %s297
    %s300 = sphi 0, %s299
    %s314 = sphi 0, %s300
    %s318 = sphi 0, %s318
    %s320 = sphi 0, %s318
    %s321 = sphi 0, %s320
    %s335 = sphi 0, %s321
    %s339 = sphi 0, %s339
    %s341 = sphi 0, %s339
    %s342 = sphi 0, %s341
    %s356 = sphi 0, %s342
    %s360 = sphi 0, %s360
    %s362 = sphi 0, %s360
    %s363 = sphi 0, %s362
    %s377 = sphi 0, %s363
    %s381 = sphi 0, %s381
    %s383 = sphi 0, %s381
    %s384 = sphi 0, %s383
    %s398 = sphi 0, %s384
    %s402 = sphi 0, %s402
    %s404 = sphi 0, %s402
    %s405 = sphi 0, %s404
    %s419 = sphi 0, %s405
    %s423 = sphi 0, %s423
    %s425 = sphi 0, %s423
    %s426 = sphi 0, %s425
    %s440 = sphi 0, %s426
    %s446 = sphi 0, %s448
    %s449 = sphi 0, %s446
    %s450 = sphi 0, %s449
    %s466 = sphi 0, %s450
  $region4: #{xlstm_axial_forward.6} parent=0 // loop_header_branch
    %31 = sbr.rel (%p29) target = $region8
  $region5: #{xlstm_axial_forward.6} parent=0 // loop_body
    %s33 = ssub.s32 %s28, 1
    %s34 = ssub.s32 %s28, 2
    %s35 = sadd.s32 %s28, 1
    %s36 = ssub.s32 %s28, %s35
    %p37 = scmp.eq.s32.totalorder %s36, 0
    %s39 = sadd.s32 %s38, 1
    %s40 = scalar_select %p37, %s38, %s39
    %p43 = pneg %p37
    %p44 = scmp.eq.s32.totalorder %s28, 1
    %p45 = por %p43, %p44
    %p46 = scmp.ne.s32.totalorder %s38, %s41
    %p47 = scmp.eq.s32.totalorder %s28, 0
    %p48 = por %p46, %p47
    %p49 = scmp.ne.s32.totalorder %s38, %s41
    %p50 = scmp.eq.s32.totalorder %s33, 1
    %p51 = por %p49, %p50
    %p52 = scmp.ne.s32.totalorder %s41, %s42
    %p53 = scmp.eq.s32.totalorder %s33, 0
    %p54 = por %p52, %p53
    %p55 = scmp.ne.s32.totalorder %s41, %s42
    %p56 = scmp.eq.s32.totalorder %s34, 1
    %p57 = por %p55, %p56
    %p59 = scmp.ne.s32.totalorder %s42, %s58
    %p60 = scmp.eq.s32.totalorder %s34, 0
    %p61 = por %p59, %p60
    %s62 = ssub.s32 %s28, %s35
    %p63 = scmp.eq.s32.totalorder %s62, 0
    %s65 = sadd.s32 %s64, 1
    %s66 = scalar_select %p63, %s64, %s65
    %p69 = pneg %p63
    %p70 = scmp.eq.s32.totalorder %s28, 1
    %p71 = por %p69, %p70
    %p72 = scmp.ne.s32.totalorder %s64, %s67
    %p73 = scmp.eq.s32.totalorder %s28, 0
    %p74 = por %p72, %p73
    %p75 = scmp.ne.s32.totalorder %s64, %s67
    %p76 = scmp.eq.s32.totalorder %s33, 1
    %p77 = por %p75, %p76
    %p78 = scmp.ne.s32.totalorder %s67, %s68
    %p79 = scmp.eq.s32.totalorder %s33, 0
    %p80 = por %p78, %p79
    %p81 = scmp.ne.s32.totalorder %s67, %s68
    %p82 = scmp.eq.s32.totalorder %s34, 1
    %p83 = por %p81, %p82
    %p85 = scmp.ne.s32.totalorder %s68, %s84
    %p86 = scmp.eq.s32.totalorder %s34, 0
    %p87 = por %p85, %p86
    %s88 = ssub.s32 %s28, %s35
    %p89 = scmp.eq.s32.totalorder %s88, 0
    %s91 = sadd.s32 %s90, 1
    %s92 = scalar_select %p89, %s90, %s91
    %p95 = pneg %p89
    %p96 = scmp.eq.s32.totalorder %s28, 1
    %p97 = por %p95, %p96
    %p98 = scmp.ne.s32.totalorder %s90, %s93
    %p99 = scmp.eq.s32.totalorder %s28, 0
    %p100 = por %p98, %p99
    %p101 = scmp.ne.s32.totalorder %s90, %s93
    %p102 = scmp.eq.s32.totalorder %s33, 1
    %p103 = por %p101, %p102
    %p104 = scmp.ne.s32.totalorder %s93, %s94
    %p105 = scmp.eq.s32.totalorder %s33, 0
    %p106 = por %p104, %p105
    %p107 = scmp.ne.s32.totalorder %s93, %s94
    %p108 = scmp.eq.s32.totalorder %s34, 1
    %p109 = por %p107, %p108
    %p111 = scmp.ne.s32.totalorder %s94, %s110
    %p112 = scmp.eq.s32.totalorder %s34, 0
    %p113 = por %p111, %p112
    %s114 = ssub.s32 %s28, %s35
    %p115 = scmp.eq.s32.totalorder %s114, 0
    %s117 = sadd.s32 %s116, 1
    %s118 = scalar_select %p115, %s116, %s117
    %p121 = pneg %p115
    %p122 = scmp.eq.s32.totalorder %s28, 1
    %p123 = por %p121, %p122
    %p124 = scmp.ne.s32.totalorder %s116, %s119
    %p125 = scmp.eq.s32.totalorder %s28, 0
    %p126 = por %p124, %p125
    %p127 = scmp.ne.s32.totalorder %s116, %s119
    %p128 = scmp.eq.s32.totalorder %s33, 1
    %p129 = por %p127, %p128
    %p130 = scmp.ne.s32.totalorder %s119, %s120
    %p131 = scmp.eq.s32.totalorder %s33, 0
    %p132 = por %p130, %p131
    %p133 = scmp.ne.s32.totalorder %s119, %s120
    %p134 = scmp.eq.s32.totalorder %s34, 1
    %p135 = por %p133, %p134
    %p137 = scmp.ne.s32.totalorder %s120, %s136
    %p138 = scmp.eq.s32.totalorder %s34, 0
    %p139 = por %p137, %p138
    %s140 = ssub.s32 %s28, %s35
    %p141 = scmp.eq.s32.totalorder %s140, 0
    %s143 = sadd.s32 %s142, 1
    %s144 = scalar_select %p141, %s142, %s143
    %p147 = pneg %p141
    %p148 = scmp.eq.s32.totalorder %s28, 1
    %p149 = por %p147, %p148
    %p150 = scmp.ne.s32.totalorder %s142, %s145
    %p151 = scmp.eq.s32.totalorder %s28, 0
    %p152 = por %p150, %p151
    %p153 = scmp.ne.s32.totalorder %s142, %s145
    %p154 = scmp.eq.s32.totalorder %s33, 1
    %p155 = por %p153, %p154
    %p156 = scmp.ne.s32.totalorder %s145, %s146
    %p157 = scmp.eq.s32.totalorder %s33, 0
    %p158 = por %p156, %p157
    %p159 = scmp.ne.s32.totalorder %s145, %s146
    %p160 = scmp.eq.s32.totalorder %s34, 1
    %p161 = por %p159, %p160
    %p163 = scmp.ne.s32.totalorder %s146, %s162
    %p164 = scmp.eq.s32.totalorder %s34, 0
    %p165 = por %p163, %p164
    %s166 = ssub.s32 %s28, %s35
    %p167 = scmp.eq.s32.totalorder %s166, 0
    %s169 = sadd.s32 %s168, 1
    %s170 = scalar_select %p167, %s168, %s169
    %p173 = pneg %p167
    %p174 = scmp.eq.s32.totalorder %s28, 1
    %p175 = por %p173, %p174
    %p176 = scmp.ne.s32.totalorder %s168, %s171
    %p177 = scmp.eq.s32.totalorder %s28, 0
    %p178 = por %p176, %p177
    %p179 = scmp.ne.s32.totalorder %s168, %s171
    %p180 = scmp.eq.s32.totalorder %s33, 1
    %p181 = por %p179, %p180
    %p182 = scmp.ne.s32.totalorder %s171, %s172
    %p183 = scmp.eq.s32.totalorder %s33, 0
    %p184 = por %p182, %p183
    %p185 = scmp.ne.s32.totalorder %s171, %s172
    %p186 = scmp.eq.s32.totalorder %s34, 1
    %p187 = por %p185, %p186
    %p189 = scmp.ne.s32.totalorder %s172, %s188
    %p190 = scmp.eq.s32.totalorder %s34, 0
    %p191 = por %p189, %p190
    %s193 = sadd.s32 %s192, 1
    %p196 = scmp.eq.s32.totalorder %s28, 1
    %p197 = scmp.ne.s32.totalorder %s192, %s194
    %p198 = scmp.eq.s32.totalorder %s28, 0
    %p199 = por %p197, %p198
    %p200 = scmp.ne.s32.totalorder %s192, %s194
    %p201 = scmp.eq.s32.totalorder %s33, 1
    %p202 = por %p200, %p201
    %p203 = scmp.ne.s32.totalorder %s194, %s195
    %p204 = scmp.eq.s32.totalorder %s33, 0
    %p205 = por %p203, %p204
    %p206 = scmp.ne.s32.totalorder %s194, %s195
    %p207 = scmp.eq.s32.totalorder %s34, 1
    %p208 = por %p206, %p207
    %p210 = scmp.ne.s32.totalorder %s195, %s209
    %p211 = scmp.eq.s32.totalorder %s34, 0
    %p212 = por %p210, %p211
    %s214 = sadd.s32 %s213, 1
    %p217 = scmp.eq.s32.totalorder %s28, 1
    %p218 = scmp.ne.s32.totalorder %s213, %s215
    %p219 = scmp.eq.s32.totalorder %s28, 0
    %p220 = por %p218, %p219
    %p221 = scmp.ne.s32.totalorder %s213, %s215
    %p222 = scmp.eq.s32.totalorder %s33, 1
    %p223 = por %p221, %p222
    %p224 = scmp.ne.s32.totalorder %s215, %s216
    %p225 = scmp.eq.s32.totalorder %s33, 0
    %p226 = por %p224, %p225
    %p227 = scmp.ne.s32.totalorder %s215, %s216
    %p228 = scmp.eq.s32.totalorder %s34, 1
    %p229 = por %p227, %p228
    %p231 = scmp.ne.s32.totalorder %s216, %s230
    %p232 = scmp.eq.s32.totalorder %s34, 0
    %p233 = por %p231, %p232
    %s235 = sadd.s32 %s234, 1
    %p238 = scmp.eq.s32.totalorder %s28, 1
    %p239 = scmp.ne.s32.totalorder %s234, %s236
    %p240 = scmp.eq.s32.totalorder %s28, 0
    %p241 = por %p239, %p240
    %p242 = scmp.ne.s32.totalorder %s234, %s236
    %p243 = scmp.eq.s32.totalorder %s33, 1
    %p244 = por %p242, %p243
    %p245 = scmp.ne.s32.totalorder %s236, %s237
    %p246 = scmp.eq.s32.totalorder %s33, 0
    %p247 = por %p245, %p246
    %p248 = scmp.ne.s32.totalorder %s236, %s237
    %p249 = scmp.eq.s32.totalorder %s34, 1
    %p250 = por %p248, %p249
    %p252 = scmp.ne.s32.totalorder %s237, %s251
    %p253 = scmp.eq.s32.totalorder %s34, 0
    %p254 = por %p252, %p253
    %s256 = sadd.s32 %s255, 1
    %p259 = scmp.eq.s32.totalorder %s28, 1
    %p260 = scmp.ne.s32.totalorder %s255, %s257
    %p261 = scmp.eq.s32.totalorder %s28, 0
    %p262 = por %p260, %p261
    %p263 = scmp.ne.s32.totalorder %s255, %s257
    %p264 = scmp.eq.s32.totalorder %s33, 1
    %p265 = por %p263, %p264
    %p266 = scmp.ne.s32.totalorder %s257, %s258
    %p267 = scmp.eq.s32.totalorder %s33, 0
    %p268 = por %p266, %p267
    %p269 = scmp.ne.s32.totalorder %s257, %s258
    %p270 = scmp.eq.s32.totalorder %s34, 1
    %p271 = por %p269, %p270
    %p273 = scmp.ne.s32.totalorder %s258, %s272
    %p274 = scmp.eq.s32.totalorder %s34, 0
    %p275 = por %p273, %p274
    %s277 = sadd.s32 %s276, 1
    %p280 = scmp.eq.s32.totalorder %s28, 1
    %p281 = scmp.ne.s32.totalorder %s276, %s278
    %p282 = scmp.eq.s32.totalorder %s28, 0
    %p283 = por %p281, %p282
    %p284 = scmp.ne.s32.totalorder %s276, %s278
    %p285 = scmp.eq.s32.totalorder %s33, 1
    %p286 = por %p284, %p285
    %p287 = scmp.ne.s32.totalorder %s278, %s279
    %p288 = scmp.eq.s32.totalorder %s33, 0
    %p289 = por %p287, %p288
    %p290 = scmp.ne.s32.totalorder %s278, %s279
    %p291 = scmp.eq.s32.totalorder %s34, 1
    %p292 = por %p290, %p291
    %p294 = scmp.ne.s32.totalorder %s279, %s293
    %p295 = scmp.eq.s32.totalorder %s34, 0
    %p296 = por %p294, %p295
    %s298 = sadd.s32 %s297, 1
    %p301 = scmp.eq.s32.totalorder %s28, 1
    %p302 = scmp.ne.s32.totalorder %s297, %s299
    %p303 = scmp.eq.s32.totalorder %s28, 0
    %p304 = por %p302, %p303
    %p305 = scmp.ne.s32.totalorder %s297, %s299
    %p306 = scmp.eq.s32.totalorder %s33, 1
    %p307 = por %p305, %p306
    %p308 = scmp.ne.s32.totalorder %s299, %s300
    %p309 = scmp.eq.s32.totalorder %s33, 0
    %p310 = por %p308, %p309
    %p311 = scmp.ne.s32.totalorder %s299, %s300
    %p312 = scmp.eq.s32.totalorder %s34, 1
    %p313 = por %p311, %p312
    %p315 = scmp.ne.s32.totalorder %s300, %s314
    %p316 = scmp.eq.s32.totalorder %s34, 0
    %p317 = por %p315, %p316
    %s319 = sadd.s32 %s318, 1
    %p322 = scmp.eq.s32.totalorder %s28, 1
    %p323 = scmp.ne.s32.totalorder %s318, %s320
    %p324 = scmp.eq.s32.totalorder %s28, 0
    %p325 = por %p323, %p324
    %p326 = scmp.ne.s32.totalorder %s318, %s320
    %p327 = scmp.eq.s32.totalorder %s33, 1
    %p328 = por %p326, %p327
    %p329 = scmp.ne.s32.totalorder %s320, %s321
    %p330 = scmp.eq.s32.totalorder %s33, 0
    %p331 = por %p329, %p330
    %p332 = scmp.ne.s32.totalorder %s320, %s321
    %p333 = scmp.eq.s32.totalorder %s34, 1
    %p334 = por %p332, %p333
    %p336 = scmp.ne.s32.totalorder %s321, %s335
    %p337 = scmp.eq.s32.totalorder %s34, 0
    %p338 = por %p336, %p337
    %s340 = sadd.s32 %s339, 1
    %p343 = scmp.eq.s32.totalorder %s28, 1
    %p344 = scmp.ne.s32.totalorder %s339, %s341
    %p345 = scmp.eq.s32.totalorder %s28, 0
    %p346 = por %p344, %p345
    %p347 = scmp.ne.s32.totalorder %s339, %s341
    %p348 = scmp.eq.s32.totalorder %s33, 1
    %p349 = por %p347, %p348
    %p350 = scmp.ne.s32.totalorder %s341, %s342
    %p351 = scmp.eq.s32.totalorder %s33, 0
    %p352 = por %p350, %p351
    %p353 = scmp.ne.s32.totalorder %s341, %s342
    %p354 = scmp.eq.s32.totalorder %s34, 1
    %p355 = por %p353, %p354
    %p357 = scmp.ne.s32.totalorder %s342, %s356
    %p358 = scmp.eq.s32.totalorder %s34, 0
    %p359 = por %p357, %p358
    %s361 = sadd.s32 %s360, 1
    %p364 = scmp.eq.s32.totalorder %s28, 1
    %p365 = scmp.ne.s32.totalorder %s360, %s362
    %p366 = scmp.eq.s32.totalorder %s28, 0
    %p367 = por %p365, %p366
    %p368 = scmp.ne.s32.totalorder %s360, %s362
    %p369 = scmp.eq.s32.totalorder %s33, 1
    %p370 = por %p368, %p369
    %p371 = scmp.ne.s32.totalorder %s362, %s363
    %p372 = scmp.eq.s32.totalorder %s33, 0
    %p373 = por %p371, %p372
    %p374 = scmp.ne.s32.totalorder %s362, %s363
    %p375 = scmp.eq.s32.totalorder %s34, 1
    %p376 = por %p374, %p375
    %p378 = scmp.ne.s32.totalorder %s363, %s377
    %p379 = scmp.eq.s32.totalorder %s34, 0
    %p380 = por %p378, %p379
    %s382 = sadd.s32 %s381, 1
    %p385 = scmp.eq.s32.totalorder %s28, 1
    %p386 = scmp.ne.s32.totalorder %s381, %s383
    %p387 = scmp.eq.s32.totalorder %s28, 0
    %p388 = por %p386, %p387
    %p389 = scmp.ne.s32.totalorder %s381, %s383
    %p390 = scmp.eq.s32.totalorder %s33, 1
    %p391 = por %p389, %p390
    %p392 = scmp.ne.s32.totalorder %s383, %s384
    %p393 = scmp.eq.s32.totalorder %s33, 0
    %p394 = por %p392, %p393
    %p395 = scmp.ne.s32.totalorder %s383, %s384
    %p396 = scmp.eq.s32.totalorder %s34, 1
    %p397 = por %p395, %p396
    %p399 = scmp.ne.s32.totalorder %s384, %s398
    %p400 = scmp.eq.s32.totalorder %s34, 0
    %p401 = por %p399, %p400
    %s403 = sadd.s32 %s402, 1
    %p406 = scmp.eq.s32.totalorder %s28, 1
    %p407 = scmp.ne.s32.totalorder %s402, %s404
    %p408 = scmp.eq.s32.totalorder %s28, 0
    %p409 = por %p407, %p408
    %p410 = scmp.ne.s32.totalorder %s402, %s404
    %p411 = scmp.eq.s32.totalorder %s33, 1
    %p412 = por %p410, %p411
    %p413 = scmp.ne.s32.totalorder %s404, %s405
    %p414 = scmp.eq.s32.totalorder %s33, 0
    %p415 = por %p413, %p414
    %p416 = scmp.ne.s32.totalorder %s404, %s405
    %p417 = scmp.eq.s32.totalorder %s34, 1
    %p418 = por %p416, %p417
    %p420 = scmp.ne.s32.totalorder %s405, %s419
    %p421 = scmp.eq.s32.totalorder %s34, 0
    %p422 = por %p420, %p421
    %s424 = sadd.s32 %s423, 1
    %p427 = scmp.eq.s32.totalorder %s28, 1
    %p428 = scmp.ne.s32.totalorder %s423, %s425
    %p429 = scmp.eq.s32.totalorder %s28, 0
    %p430 = por %p428, %p429
    %p431 = scmp.ne.s32.totalorder %s423, %s425
    %p432 = scmp.eq.s32.totalorder %s33, 1
    %p433 = por %p431, %p432
    %p434 = scmp.ne.s32.totalorder %s425, %s426
    %p435 = scmp.eq.s32.totalorder %s33, 0
    %p436 = por %p434, %p435
    %p437 = scmp.ne.s32.totalorder %s425, %s426
    %p438 = scmp.eq.s32.totalorder %s34, 1
    %p439 = por %p437, %p438
    %p441 = scmp.ne.s32.totalorder %s426, %s440
    %p442 = scmp.eq.s32.totalorder %s34, 0
    %p443 = por %p441, %p442
    %s444 = ssub.s32 %s28, %s35
    %p445 = scmp.eq.s32.totalorder %s444, 0
    %s447 = sadd.s32 %s446, 1
    %s448 = scalar_select %p445, %s446, %s447
    %p451 = pneg %p445
    %p452 = scmp.eq.s32.totalorder %s28, 1
    %p453 = por %p451, %p452
    %p454 = scmp.ne.s32.totalorder %s446, %s449
    %p455 = scmp.eq.s32.totalorder %s28, 0
    %p456 = por %p454, %p455
    %p457 = scmp.ne.s32.totalorder %s446, %s449
    %p458 = scmp.eq.s32.totalorder %s33, 1
    %p459 = por %p457, %p458
    %p460 = scmp.ne.s32.totalorder %s449, %s450
    %p461 = scmp.eq.s32.totalorder %s33, 0
    %p462 = por %p460, %p461
    %p463 = scmp.ne.s32.totalorder %s449, %s450
    %p464 = scmp.eq.s32.totalorder %s34, 1
    %p465 = por %p463, %p464
    %p467 = scmp.ne.s32.totalorder %s450, %s466
    %p468 = scmp.eq.s32.totalorder %s34, 0
    %p469 = por %p467, %p468
    %p470 = scmp.le.s32.totalorder 1, %s28
    %p471 = scmp.lt.s32.totalorder %s28, 3
    %p472 = pnand %p470, %p471
    %p473 = pneg %p472
    // Predicated region
    $region9: #{xlstm_axial_forward.6} parent=5 // pred_check
      _
    $region10: #{xlstm_axial_forward.6} parent=5 // pred_check_branch
      %475 = sbr.rel (%p472) target = $region12
    $region11: #{xlstm_axial_forward.6} parent=5 // pred_region
      %s476 = ssub.s32 %s28, 1
      // Predicated region
      $region13: #{xlstm_axial_forward.6} parent=11 // pred_check
        %p477 = pneg %p205
      $region14: #{xlstm_axial_forward.6} parent=11 // pred_check_branch
        %479 = sbr.rel (%p477) target = $region16
      $region15: #{xlstm_axial_forward.6} parent=11 // pred_region
        _
      $region16: #{xlstm_axial_forward.6} parent=11 // pred_fallthru
        _
      // Predicated region
      $region17: #{xlstm_axial_forward.6} parent=11 // pred_check
        %p480 = pneg %p226
      $region18: #{xlstm_axial_forward.6} parent=11 // pred_check_branch
        %482 = sbr.rel (%p480) target = $region20
      $region19: #{xlstm_axial_forward.6} parent=11 // pred_region
        _
      $region20: #{xlstm_axial_forward.6} parent=11 // pred_fallthru
        _
      // Predicated region
      $region21: #{xlstm_axial_forward.6} parent=11 // pred_check
        %p483 = pneg %p247
      $region22: #{xlstm_axial_forward.6} parent=11 // pred_check_branch
        %485 = sbr.rel (%p483) target = $region24
      $region23: #{xlstm_axial_forward.6} parent=11 // pred_region
        _
      $region24: #{xlstm_axial_forward.6} parent=11 // pred_fallthru
        _
      // Predicated region
      $region25: #{xlstm_axial_forward.6} parent=11 // pred_check
        %p486 = pneg %p268
      $region26: #{xlstm_axial_forward.6} parent=11 // pred_check_branch
        %488 = sbr.rel (%p486) target = $region28
      $region27: #{xlstm_axial_forward.6} parent=11 // pred_region
        _
      $region28: #{xlstm_axial_forward.6} parent=11 // pred_fallthru
        _
      // Predicated region
      $region29: #{xlstm_axial_forward.6} parent=11 // pred_check
        %p489 = pneg %p289
      $region30: #{xlstm_axial_forward.6} parent=11 // pred_check_branch
        %491 = sbr.rel (%p489) target = $region32
      $region31: #{xlstm_axial_forward.6} parent=11 // pred_region
        _
      $region32: #{xlstm_axial_forward.6} parent=11 // pred_fallthru
        _
      // Predicated region
      $region33: #{xlstm_axial_forward.6} parent=11 // pred_check
        %p492 = pneg %p310
      $region34: #{xlstm_axial_forward.6} parent=11 // pred_check_branch
        %494 = sbr.rel (%p492) target = $region36
      $region35: #{xlstm_axial_forward.6} parent=11 // pred_region
        _
      $region36: #{xlstm_axial_forward.6} parent=11 // pred_fallthru
        _
      // Predicated region
      $region37: #{xlstm_axial_forward.6} parent=11 // pred_check
        %p495 = pneg %p331
      $region38: #{xlstm_axial_forward.6} parent=11 // pred_check_branch
        %497 = sbr.rel (%p495) target = $region40
      $region39: #{xlstm_axial_forward.6} parent=11 // pred_region
        _
      $region40: #{xlstm_axial_forward.6} parent=11 // pred_fallthru
        _
      // Predicated region
      $region41: #{xlstm_axial_forward.6} parent=11 // pred_check
        %p498 = pneg %p352
      $region42: #{xlstm_axial_forward.6} parent=11 // pred_check_branch
        %500 = sbr.rel (%p498) target = $region44
      $region43: #{xlstm_axial_forward.6} parent=11 // pred_region
        _
      $region44: #{xlstm_axial_forward.6} parent=11 // pred_fallthru
        _
      // Predicated region
      $region45: #{xlstm_axial_forward.6} parent=11 // pred_check
        %p501 = pneg %p373
      $region46: #{xlstm_axial_forward.6} parent=11 // pred_check_branch
        %503 = sbr.rel (%p501) target = $region48
      $region47: #{xlstm_axial_forward.6} parent=11 // pred_region
        _
      $region48: #{xlstm_axial_forward.6} parent=11 // pred_fallthru
        _
      // Predicated region
      $region49: #{xlstm_axial_forward.6} parent=11 // pred_check
        %p504 = pneg %p394
      $region50: #{xlstm_axial_forward.6} parent=11 // pred_check_branch
        %506 = sbr.rel (%p504) target = $region52
      $region51: #{xlstm_axial_forward.6} parent=11 // pred_region
        _
      $region52: #{xlstm_axial_forward.6} parent=11 // pred_fallthru
        _
      // Predicated region
      $region53: #{xlstm_axial_forward.6} parent=11 // pred_check
        %p507 = pneg %p415
      $region54: #{xlstm_axial_forward.6} parent=11 // pred_check_branch
        %509 = sbr.rel (%p507) target = $region56
      $region55: #{xlstm_axial_forward.6} parent=11 // pred_region
        _
      $region56: #{xlstm_axial_forward.6} parent=11 // pred_fallthru
        _
      // Predicated region
      $region57: #{xlstm_axial_forward.6} parent=11 // pred_check
        %p510 = pneg %p436
      $region58: #{xlstm_axial_forward.6} parent=11 // pred_check_branch
        %512 = sbr.rel (%p510) target = $region60
      $region59: #{xlstm_axial_forward.6} parent=11 // pred_region
        _
      $region60: #{xlstm_axial_forward.6} parent=11 // pred_fallthru
        _
    $region12: #{xlstm_axial_forward.6} parent=5 // pred_fallthru
      _
    %p513 = scmp.lt.s32.totalorder %s28, 2
    // Predicated region
    $region61: #{xlstm_axial_forward.6} parent=5 // pred_check
      %p514 = pneg %p513
    $region62: #{xlstm_axial_forward.6} parent=5 // pred_check_branch
      %516 = sbr.rel (%p514) target = $region64
    $region63: #{xlstm_axial_forward.6} parent=5 // pred_region
      // Predicated region
      $region65: #{xlstm_axial_forward.6} parent=63 // pred_check
        %p517 = pneg %p48
      $region66: #{xlstm_axial_forward.6} parent=63 // pred_check_branch
        %519 = sbr.rel (%p517) target = $region68
      $region67: #{xlstm_axial_forward.6} parent=63 // pred_region
        %p520 = scmp.lt.s32.totalorder %s28, 1
        %s521 = scalar_select %p520, %s28, 1
        %s522 = smul.addr %s521, 2
        %s523 = smul.addr %s522, 8
        %s524 = scalar_lea.vmem %s0, %s523
      $region68: #{xlstm_axial_forward.6} parent=63 // pred_fallthru
        _
      // Predicated region
      $region69: #{xlstm_axial_forward.6} parent=63 // pred_check
        %p525 = pneg %p74
      $region70: #{xlstm_axial_forward.6} parent=63 // pred_check_branch
        %527 = sbr.rel (%p525) target = $region72
      $region71: #{xlstm_axial_forward.6} parent=63 // pred_region
        %p528 = scmp.lt.s32.totalorder %s28, 1
        %s529 = scalar_select %p528, %s28, 1
        %s530 = smul.addr %s529, 18
        %s531 = smul.addr %s530, 8
        %s532 = scalar_lea.vmem %s1, %s531
      $region72: #{xlstm_axial_forward.6} parent=63 // pred_fallthru
        _
      // Predicated region
      $region73: #{xlstm_axial_forward.6} parent=63 // pred_check
        %p533 = pneg %p100
      $region74: #{xlstm_axial_forward.6} parent=63 // pred_check_branch
        %535 = sbr.rel (%p533) target = $region76
      $region75: #{xlstm_axial_forward.6} parent=63 // pred_region
        %p536 = scmp.lt.s32.totalorder %s28, 1
        %s537 = scalar_select %p536, %s28, 1
        %s538 = smul.addr %s537, 18
        %s539 = smul.addr %s538, 8
        %s540 = scalar_lea.vmem %s2, %s539
      $region76: #{xlstm_axial_forward.6} parent=63 // pred_fallthru
        _
      // Predicated region
      $region77: #{xlstm_axial_forward.6} parent=63 // pred_check
        %p541 = pneg %p126
      $region78: #{xlstm_axial_forward.6} parent=63 // pred_check_branch
        %543 = sbr.rel (%p541) target = $region80
      $region79: #{xlstm_axial_forward.6} parent=63 // pred_region
        %p544 = scmp.lt.s32.totalorder %s28, 1
        %s545 = scalar_select %p544, %s28, 1
        %s546 = smul.addr %s545, 18
        %s547 = smul.addr %s546, 8
        %s548 = scalar_lea.vmem %s3, %s547
      $region80: #{xlstm_axial_forward.6} parent=63 // pred_fallthru
        _
      // Predicated region
      $region81: #{xlstm_axial_forward.6} parent=63 // pred_check
        %p549 = pneg %p152
      $region82: #{xlstm_axial_forward.6} parent=63 // pred_check_branch
        %551 = sbr.rel (%p549) target = $region84
      $region83: #{xlstm_axial_forward.6} parent=63 // pred_region
        %p552 = scmp.lt.s32.totalorder %s28, 1
        %s553 = scalar_select %p552, %s28, 1
        %s554 = smul.addr %s553, 2
        %s555 = smul.addr %s554, 8
        %s556 = scalar_lea.vmem %s4, %s555
      $region84: #{xlstm_axial_forward.6} parent=63 // pred_fallthru
        _
      // Predicated region
      $region85: #{xlstm_axial_forward.6} parent=63 // pred_check
        %p557 = pneg %p178
      $region86: #{xlstm_axial_forward.6} parent=63 // pred_check_branch
        %559 = sbr.rel (%p557) target = $region88
      $region87: #{xlstm_axial_forward.6} parent=63 // pred_region
        %p560 = scmp.lt.s32.totalorder %s28, 1
        %s561 = scalar_select %p560, %s28, 1
        %s562 = smul.addr %s561, 2
        %s563 = smul.addr %s562, 8
        %s564 = scalar_lea.vmem %s5, %s563
      $region88: #{xlstm_axial_forward.6} parent=63 // pred_fallthru
        _
    $region64: #{xlstm_axial_forward.6} parent=5 // pred_fallthru
      _
    %p565 = scmp.le.s32.totalorder 1, %s28
    %p566 = scmp.lt.s32.totalorder %s28, 3
    %p567 = pnand %p565, %p566
    %p568 = pneg %p567
    // Predicated region
    $region89: #{xlstm_axial_forward.6} parent=5 // pred_check
      _
    $region90: #{xlstm_axial_forward.6} parent=5 // pred_check_branch
      %570 = sbr.rel (%p567) target = $region92
    $region91: #{xlstm_axial_forward.6} parent=5 // pred_region
      %s571 = ssub.s32 %s28, 1
      %p572 = scmp.lt.s32.totalorder %s33, 1
      %s573 = scalar_select %p572, %s33, 1
      %s574 = smul.addr %s573, 2
      %s575 = smul.addr %s574, 8
      %s576 = scalar_lea.vmem %s0, %s575
      %p577 = pneg %p54
      %p578 = pneg %p51
      %p579 = scmp.lt.s32.totalorder %s33, 1
      %s580 = scalar_select %p579, %s33, 1
      %s581 = smul.addr %s580, 18
      %s582 = smul.addr %s581, 8
      %s583 = scalar_lea.vmem %s1, %s582
      %p584 = pneg %p80
      %p585 = pneg %p77
      %p586 = scmp.lt.s32.totalorder %s33, 1
      %s587 = scalar_select %p586, %s33, 1
      %s588 = smul.addr %s587, 18
      %s589 = smul.addr %s588, 8
      %s590 = scalar_lea.vmem %s2, %s589
      %p591 = pneg %p106
      %p592 = pneg %p103
      %p593 = scmp.lt.s32.totalorder %s33, 1
      %s594 = scalar_select %p593, %s33, 1
      %s595 = smul.addr %s594, 18
      %s596 = smul.addr %s595, 8
      %s597 = scalar_lea.vmem %s3, %s596
      %p598 = pneg %p132
      %p599 = pneg %p129
      %p600 = scmp.lt.s32.totalorder %s33, 1
      %s601 = scalar_select %p600, %s33, 1
      %s602 = smul.addr %s601, 2
      %s603 = smul.addr %s602, 8
      %s604 = scalar_lea.vmem %s4, %s603
      %p605 = pneg %p158
      %p606 = pneg %p155
      %p607 = scmp.lt.s32.totalorder %s33, 1
      %s608 = scalar_select %p607, %s33, 1
      %s609 = smul.addr %s608, 2
      %s610 = smul.addr %s609, 8
      %s611 = scalar_lea.vmem %s5, %s610
      %p612 = pneg %p184
      %p613 = pneg %p181
      %p614 = pneg %p205
      %p615 = pneg %p202
      %p616 = pneg %p226
      %p617 = pneg %p223
      %p618 = pneg %p247
      %p619 = pneg %p244
      %p620 = pneg %p268
      %p621 = pneg %p265
      %p622 = pneg %p289
      %p623 = pneg %p286
      %p624 = pneg %p310
      %p625 = pneg %p307
      %p626 = pneg %p331
      %p627 = pneg %p328
      %p628 = pneg %p352
      %p629 = pneg %p349
      %p630 = pneg %p373
      %p631 = pneg %p370
      %p632 = pneg %p394
      %p633 = pneg %p391
      %p634 = pneg %p415
      %p635 = pneg %p412
      %p636 = pneg %p436
      %p637 = pneg %p433
      %p638 = pneg %p462
      %p639 = pneg %p459
      %p640 = scmp.lt.s32.totalorder %s33, 1
      %s641 = scalar_select %p640, %s33, 1
      %s642 = smul.addr %s641, 4
      %s643 = smul.addr %s642, 8
      %s644 = scalar_lea.vmem %s18, %s643
      %p645 = scmp.lt.s32.totalorder %s33, 1
      %s646 = scalar_select %p645, %s33, 1
      %s647 = smul.addr %s646, 2
      %s648 = smul.addr %s647, 8
      %s649 = scalar_lea.vmem %s0, %s648
      %p650 = scmp.lt.s32.totalorder %s33, 1
      %s651 = scalar_select %p650, %s33, 1
      %s652 = smul.addr %s651, 18
      %s653 = smul.addr %s652, 8
      %s654 = scalar_lea.vmem %s1, %s653
      %p655 = scmp.lt.s32.totalorder %s33, 1
      %s656 = scalar_select %p655, %s33, 1
      %s657 = smul.addr %s656, 18
      %s658 = smul.addr %s657, 8
      %s659 = scalar_lea.vmem %s2, %s658
      %p660 = scmp.lt.s32.totalorder %s33, 1
      %s661 = scalar_select %p660, %s33, 1
      %s662 = smul.addr %s661, 18
      %s663 = smul.addr %s662, 8
      %s664 = scalar_lea.vmem %s3, %s663
      %p665 = scmp.lt.s32.totalorder %s33, 1
      %s666 = scalar_select %p665, %s33, 1
      %s667 = smul.addr %s666, 2
      %s668 = smul.addr %s667, 8
      %s669 = scalar_lea.vmem %s4, %s668
      %p670 = scmp.lt.s32.totalorder %s33, 1
      %s671 = scalar_select %p670, %s33, 1
      %s672 = smul.addr %s671, 2
      %s673 = smul.addr %s672, 8
      %s674 = scalar_lea.vmem %s5, %s673
      %p675 = scmp.lt.s32.totalorder %s33, 1
      %s676 = scalar_select %p675, %s33, 1
      %s677 = smul.addr %s676, 4
      %s678 = smul.addr %s677, 8
      %s679 = scalar_lea.vmem %s18, %s678
      %v680 = vld [vmem:[%s6] sm:$0xff]
      %v681 = vld [vmem:[%s649] sm:$0xff]
      %v682 = vld [vmem:[%s649 + $0x8] sm:$0xff]
      %v683 = vld [vmem:[%s7] sm:$0xff]
      %685 = vset.pattern.permute.xlu0 0
      %686 = vperm.xlu0 %685, %v683
      %v687 = vpop.permute.xlu0 %686
      %vm689 = vcmask 64512
      %v691 = vsel %vm689, %v680, 0
      %693 = vmatprep.subr.mxu0 %v682
      %694 = vmatpush1.msra.mxu0 %v681
      %695 = vmatprep.subr.mxu0 0.0
      %696 = vmatpush1.msra.mxu0 0.0
      %697 = vmatprep.subr.mxu0 0.0
      %698 = vmatpush1.msra.mxu0 0.0
      %699 = vmatprep.subr.mxu0 0.0
      %700 = vmatpush1.msra.mxu0 0.0
      %701 = vmatprep.subr.mxu0 0.0
      %702 = vmatpush1.msra.mxu0 0.0
      %703 = vmatprep.subr.mxu0 0.0
      %704 = vmatpush1.msra.mxu0 0.0
      %705 = vmatprep.subr.mxu0 0.0
      %706 = vmatpush1.msra.mxu0 0.0
      %707 = vmatprep.subr.mxu0 0.0
      %708 = vmatpush1.msra.mxu0 0.0
      %709 = vmatprep.subr.mxu0 0.0
      %710 = vmatpush1.msra.mxu0 0.0
      %711 = vmatprep.subr.mxu0 0.0
      %712 = vmatpush1.msra.mxu0 0.0
      %713 = vmatprep.subr.mxu0 0.0
      %714 = vmatpush1.msra.mxu0 0.0
      %715 = vmatprep.subr.mxu0 0.0
      %716 = vmatpush1.msra.mxu0 0.0
      %717 = vmatprep.subr.mxu0 0.0
      %718 = vmatpush1.msra.mxu0 0.0
      %719 = vmatprep.subr.mxu0 0.0
      %720 = vmatpush1.msra.mxu0 0.0
      %721 = vmatprep.subr.mxu0 0.0
      %722 = vmatpush1.msra.mxu0 0.0
      %723 = vmatprep.subr.mxu0 0.0
      %724 = vmatpush1.msra.mxu0 0.0
      %725 = vmatprep.subr.mxu0 0.0
      %726 = vmatpush1.msra.mxu0 0.0
      %727 = vmatprep.subr.mxu0 0.0
      %728 = vmatpush1.msra.mxu0 0.0
      %729 = vmatprep.subr.mxu0 0.0
      %730 = vmatpush1.msra.mxu0 0.0
      %731 = vmatprep.subr.mxu0 0.0
      %732 = vmatpush1.msra.mxu0 0.0
      %733 = vmatprep.subr.mxu0 0.0
      %734 = vmatpush1.msra.mxu0 0.0
      %735 = vmatprep.subr.mxu0 0.0
      %736 = vmatpush1.msra.mxu0 0.0
      %737 = vmatprep.subr.mxu0 0.0
      %738 = vmatpush1.msra.mxu0 0.0
      %739 = vmatprep.subr.mxu0 0.0
      %740 = vmatpush1.msra.mxu0 0.0
      %741 = vmatprep.subr.mxu0 0.0
      %742 = vmatpush1.msra.mxu0 0.0
      %743 = vmatprep.subr.mxu0 0.0
      %744 = vmatpush1.msra.mxu0 0.0
      %745 = vmatprep.subr.mxu0 0.0
      %746 = vmatpush1.msra.mxu0 0.0
      %747 = vmatprep.subr.mxu0 0.0
      %748 = vmatpush1.msra.mxu0 0.0
      %749 = vmatprep.subr.mxu0 0.0
      %750 = vmatpush1.msra.mxu0 0.0
      %751 = vmatprep.subr.mxu0 0.0
      %752 = vmatpush1.msra.mxu0 0.0
      %753 = vmatprep.subr.mxu0 0.0
      %754 = vmatpush1.msra.mxu0 0.0
      %755 = vmatprep.subr.mxu0 0.0
      %756 = vmatpush1.msra.mxu0 0.0
      %757 = vmatprep.mubr.f32.mxu0 0.0
      %758 = vmatmul.mubr.f32.gmra.mrb[0].mxu0 %v691
      %v759 = vpop.f32.mrb[0].mxu0
      %v760 = vadd.f32 %v687, %v759
      %v761 = vpop.f32.mrb[0].mxu0
      %v762 = vadd.f32 %v687, %v761
      %763 = vdwg.mxu0
      %v764 = vmax.f32 %v760, 0.0
      %v765 = vmax.f32 %v762, 0.0
      %v766 = vsub.f32 0.0, %v764
      %v767 = vsub.f32 0.0, %v765
      %v768 = vmul.f32 %v766, 1.442695
      %v769 = vpow.pop %v768
      %v770 = vmul.f32 %v767, 1.442695
      %v771 = vpow.pop %v770
      %v772 = vadd.f32 %v769, 1.0
      %v773 = vadd.f32 %v771, 1.0
      %v774 = vrcp.pop %v772
      %v775 = vrcp.pop %v773
      %v776 = vld [vmem:[%s8] sm:$0xff]
      %v777 = vld [vmem:[%s654] sm:$0xff]
      %v778 = vld [vmem:[%s654 + $0x8] sm:$0xff]
      %v779 = vld [vmem:[%s654 + $0x10] sm:$0xff]
      %v780 = vld [vmem:[%s654 + $0x18] sm:$0xff]
      %v781 = vld [vmem:[%s654 + $0x20] sm:$0xff]
      %v782 = vld [vmem:[%s654 + $0x28] sm:$0xff]
      %v783 = vld [vmem:[%s654 + $0x30] sm:$0xff]
      %v784 = vld [vmem:[%s654 + $0x38] sm:$0xff]
      %v785 = vld [vmem:[%s654 + $0x40] sm:$0xff]
      %v786 = vld [vmem:[%s654 + $0x48] sm:$0xff]
      %v787 = vld [vmem:[%s654 + $0x50] sm:$0xff]
      %v788 = vld [vmem:[%s654 + $0x58] sm:$0xff]
      %v789 = vld [vmem:[%s654 + $0x60] sm:$0xff]
      %v790 = vld [vmem:[%s654 + $0x68] sm:$0xff]
      %v791 = vld [vmem:[%s654 + $0x70] sm:$0xff]
      %v792 = vld [vmem:[%s654 + $0x78] sm:$0xff]
      %v793 = vld [vmem:[%s654 + $0x80] sm:$0xff]
      %v794 = vld [vmem:[%s654 + $0x88] sm:$0xff]
      %v795 = vld [vmem:[%s9] sm:$0xff]
      %v796 = vld [vmem:[%s659] sm:$0xff]
      %v797 = vld [vmem:[%s659 + $0x8] sm:$0xff]
      %v798 = vld [vmem:[%s659 + $0x10] sm:$0xff]
      %v799 = vld [vmem:[%s659 + $0x18] sm:$0xff]
      %v800 = vld [vmem:[%s659 + $0x20] sm:$0xff]
      %v801 = vld [vmem:[%s659 + $0x28] sm:$0xff]
      %v802 = vld [vmem:[%s659 + $0x30] sm:$0xff]
      %v803 = vld [vmem:[%s659 + $0x38] sm:$0xff]
      %v804 = vld [vmem:[%s659 + $0x40] sm:$0xff]
      %v805 = vld [vmem:[%s659 + $0x48] sm:$0xff]
      %v806 = vld [vmem:[%s659 + $0x50] sm:$0xff]
      %v807 = vld [vmem:[%s659 + $0x58] sm:$0xff]
      %v808 = vld [vmem:[%s659 + $0x60] sm:$0xff]
      %v809 = vld [vmem:[%s659 + $0x68] sm:$0xff]
      %v810 = vld [vmem:[%s659 + $0x70] sm:$0xff]
      %v811 = vld [vmem:[%s659 + $0x78] sm:$0xff]
      %v812 = vld [vmem:[%s659 + $0x80] sm:$0xff]
      %v813 = vld [vmem:[%s659 + $0x88] sm:$0xff]
      %vm814 = vcmask 588800
      %v816 = vsel %vm814, %v795, 0
      %818 = vmatprep.subr.mxu0 %v797
      %819 = vmatpush1.msra.mxu0 %v796
      %820 = vmatprep.subr.mxu0 %v799
      %821 = vmatpush1.msra.mxu0 %v798
      %822 = vmatprep.subr.mxu0 %v801
      %823 = vmatpush1.msra.mxu0 %v800
      %824 = vmatprep.subr.mxu0 %v803
      %825 = vmatpush1.msra.mxu0 %v802
      %826 = vmatprep.subr.mxu0 %v805
      %827 = vmatpush1.msra.mxu0 %v804
      %828 = vmatprep.subr.mxu0 %v807
      %829 = vmatpush1.msra.mxu0 %v806
      %830 = vmatprep.subr.mxu0 %v809
      %831 = vmatpush1.msra.mxu0 %v808
      %832 = vmatprep.subr.mxu0 %v811
      %833 = vmatpush1.msra.mxu0 %v810
      %834 = vmatprep.subr.mxu0 %v813
      %835 = vmatpush1.msra.mxu0 %v812
      %836 = vmatprep.subr.mxu0 0.0
      %837 = vmatpush1.msra.mxu0 0.0
      %838 = vmatprep.subr.mxu0 0.0
      %839 = vmatpush1.msra.mxu0 0.0
      %840 = vmatprep.subr.mxu0 0.0
      %841 = vmatpush1.msra.mxu0 0.0
      %842 = vmatprep.subr.mxu0 0.0
      %843 = vmatpush1.msra.mxu0 0.0
      %844 = vmatprep.subr.mxu0 0.0
      %845 = vmatpush1.msra.mxu0 0.0
      %846 = vmatprep.subr.mxu0 0.0
      %847 = vmatpush1.msra.mxu0 0.0
      %848 = vmatprep.subr.mxu0 0.0
      %849 = vmatpush1.msra.mxu0 0.0
      %850 = vmatprep.subr.mxu0 0.0
      %851 = vmatpush1.msra.mxu0 0.0
      %852 = vmatprep.subr.mxu0 0.0
      %853 = vmatpush1.msra.mxu0 0.0
      %854 = vmatprep.subr.mxu0 0.0
      %855 = vmatpush1.msra.mxu0 0.0
      %856 = vmatprep.subr.mxu0 0.0
      %857 = vmatpush1.msra.mxu0 0.0
      %858 = vmatprep.subr.mxu0 0.0
      %859 = vmatpush1.msra.mxu0 0.0
      %860 = vmatprep.subr.mxu0 0.0
      %861 = vmatpush1.msra.mxu0 0.0
      %862 = vmatprep.subr.mxu0 0.0
      %863 = vmatpush1.msra.mxu0 0.0
      %864 = vmatprep.subr.mxu0 0.0
      %865 = vmatpush1.msra.mxu0 0.0
      %866 = vmatprep.subr.mxu0 0.0
      %867 = vmatpush1.msra.mxu0 0.0
      %868 = vmatprep.subr.mxu0 0.0
      %869 = vmatpush1.msra.mxu0 0.0
      %870 = vmatprep.subr.mxu0 0.0
      %871 = vmatpush1.msra.mxu0 0.0
      %872 = vmatprep.subr.mxu0 0.0
      %873 = vmatpush1.msra.mxu0 0.0
      %874 = vmatprep.subr.mxu0 0.0
      %875 = vmatpush1.msra.mxu0 0.0
      %876 = vmatprep.subr.mxu0 0.0
      %877 = vmatpush1.msra.mxu0 0.0
      %878 = vmatprep.subr.mxu0 0.0
      %879 = vmatpush1.msra.mxu0 0.0
      %880 = vmatprep.subr.mxu0 0.0
      %881 = vmatpush1.msra.mxu0 0.0
      %882 = vmatprep.mubr.f32.mxu0 0.0
      %883 = vmatmul.mubr.f32.gmra.mrb[0].mxu0 %v816
      %v884 = vpop.f32.mrb[0].mxu0
      %v885 = vadd.f32 0.0, %v884
      %v886 = vpop.f32.mrb[0].mxu0
      %v887 = vadd.f32 0.0, %v886
      %888 = vdwg.mxu0
      %v890 = vsel %vm814, %v776, 0
      %892 = vmatprep.subr.mxu0 %v778
      %893 = vmatpush1.msra.mxu0 %v777
      %894 = vmatprep.subr.mxu0 %v780
      %895 = vmatpush1.msra.mxu0 %v779
      %896 = vmatprep.subr.mxu0 %v782
      %897 = vmatpush1.msra.mxu0 %v781
      %898 = vmatprep.subr.mxu0 %v784
      %899 = vmatpush1.msra.mxu0 %v783
      %900 = vmatprep.subr.mxu0 %v786
      %901 = vmatpush1.msra.mxu0 %v785
      %902 = vmatprep.subr.mxu0 %v788
      %903 = vmatpush1.msra.mxu0 %v787
      %904 = vmatprep.subr.mxu0 %v790
      %905 = vmatpush1.msra.mxu0 %v789
      %906 = vmatprep.subr.mxu0 %v792
      %907 = vmatpush1.msra.mxu0 %v791
      %908 = vmatprep.subr.mxu0 %v794
      %909 = vmatpush1.msra.mxu0 %v793
      %910 = vmatprep.subr.mxu0 0.0
      %911 = vmatpush1.msra.mxu0 0.0
      %912 = vmatprep.subr.mxu0 0.0
      %913 = vmatpush1.msra.mxu0 0.0
      %914 = vmatprep.subr.mxu0 0.0
      %915 = vmatpush1.msra.mxu0 0.0
      %916 = vmatprep.subr.mxu0 0.0
      %917 = vmatpush1.msra.mxu0 0.0
      %918 = vmatprep.subr.mxu0 0.0
      %919 = vmatpush1.msra.mxu0 0.0
      %920 = vmatprep.subr.mxu0 0.0
      %921 = vmatpush1.msra.mxu0 0.0
      %922 = vmatprep.subr.mxu0 0.0
      %923 = vmatpush1.msra.mxu0 0.0
      %924 = vmatprep.subr.mxu0 0.0
      %925 = vmatpush1.msra.mxu0 0.0
      %926 = vmatprep.subr.mxu0 0.0
      %927 = vmatpush1.msra.mxu0 0.0
      %928 = vmatprep.subr.mxu0 0.0
      %929 = vmatpush1.msra.mxu0 0.0
      %930 = vmatprep.subr.mxu0 0.0
      %931 = vmatpush1.msra.mxu0 0.0
      %932 = vmatprep.subr.mxu0 0.0
      %933 = vmatpush1.msra.mxu0 0.0
      %934 = vmatprep.subr.mxu0 0.0
      %935 = vmatpush1.msra.mxu0 0.0
      %936 = vmatprep.subr.mxu0 0.0
      %937 = vmatpush1.msra.mxu0 0.0
      %938 = vmatprep.subr.mxu0 0.0
      %939 = vmatpush1.msra.mxu0 0.0
      %940 = vmatprep.subr.mxu0 0.0
      %941 = vmatpush1.msra.mxu0 0.0
      %942 = vmatprep.subr.mxu0 0.0
      %943 = vmatpush1.msra.mxu0 0.0
      %944 = vmatprep.subr.mxu0 0.0
      %945 = vmatpush1.msra.mxu0 0.0
      %946 = vmatprep.subr.mxu0 0.0
      %947 = vmatpush1.msra.mxu0 0.0
      %948 = vmatprep.subr.mxu0 0.0
      %949 = vmatpush1.msra.mxu0 0.0
      %950 = vmatprep.subr.mxu0 0.0
      %951 = vmatpush1.msra.mxu0 0.0
      %952 = vmatprep.subr.mxu0 0.0
      %953 = vmatpush1.msra.mxu0 0.0
      %954 = vmatprep.subr.mxu0 0.0
      %955 = vmatpush1.msra.mxu0 0.0
      %956 = vmatprep.mubr.f32.mxu0 0.0
      %957 = vmatmul.mubr.f32.gmra.mrb[0].mxu0 %v890
      %v958 = vpop.f32.mrb[0].mxu0
      %v959 = vadd.f32 %v885, %v958
      %v960 = vpop.f32.mrb[0].mxu0
      %v961 = vadd.f32 %v887, %v960
      %962 = vdwg.mxu0
      %v963 = vld [vmem:[%s10] sm:$0xff]
      %965 = vset.pattern.permute.xlu0 0
      %966 = vperm.xlu0 %965, %v963
      %v967 = vpop.permute.xlu0 %966
      %v969 = vadd.f32 %v959, %v967
      %v970 = vadd.f32 %v961, %v967
      %v971 = vmax.f32 %v969, 0.0
      %v972 = vmax.f32 %v970, 0.0
      %v973 = vld [vmem:[%s11] sm:$0xff]
      %v974 = vld [vmem:[%s12] sm:$0xff]
      %v975 = vld [vmem:[%s664] sm:$0xff]
      %v976 = vld [vmem:[%s664 + $0x8] sm:$0xff]
      %v977 = vld [vmem:[%s664 + $0x10] sm:$0xff]
      %v978 = vld [vmem:[%s664 + $0x18] sm:$0xff]
      %v979 = vld [vmem:[%s664 + $0x20] sm:$0xff]
      %v980 = vld [vmem:[%s664 + $0x28] sm:$0xff]
      %v981 = vld [vmem:[%s664 + $0x30] sm:$0xff]
      %v982 = vld [vmem:[%s664 + $0x38] sm:$0xff]
      %v983 = vld [vmem:[%s664 + $0x40] sm:$0xff]
      %v984 = vld [vmem:[%s664 + $0x48] sm:$0xff]
      %v985 = vld [vmem:[%s664 + $0x50] sm:$0xff]
      %v986 = vld [vmem:[%s664 + $0x58] sm:$0xff]
      %v987 = vld [vmem:[%s664 + $0x60] sm:$0xff]
      %v988 = vld [vmem:[%s664 + $0x68] sm:$0xff]
      %v989 = vld [vmem:[%s664 + $0x70] sm:$0xff]
      %v990 = vld [vmem:[%s664 + $0x78] sm:$0xff]
      %v991 = vld [vmem:[%s664 + $0x80] sm:$0xff]
      %v992 = vld [vmem:[%s664 + $0x88] sm:$0xff]
      %v994 = vsel %vm814, %v974, 0
      %996 = vmatprep.subr.mxu0 %v976
      %997 = vmatpush1.msra.mxu0 %v975
      %998 = vmatprep.subr.mxu0 %v978
      %999 = vmatpush1.msra.mxu0 %v977
      %1000 = vmatprep.subr.mxu0 %v980
      %1001 = vmatpush1.msra.mxu0 %v979
      %1002 = vmatprep.subr.mxu0 %v982
      %1003 = vmatpush1.msra.mxu0 %v981
      %1004 = vmatprep.subr.mxu0 %v984
      %1005 = vmatpush1.msra.mxu0 %v983
      %1006 = vmatprep.subr.mxu0 %v986
      %1007 = vmatpush1.msra.mxu0 %v985
      %1008 = vmatprep.subr.mxu0 %v988
      %1009 = vmatpush1.msra.mxu0 %v987
      %1010 = vmatprep.subr.mxu0 %v990
      %1011 = vmatpush1.msra.mxu0 %v989
      %1012 = vmatprep.subr.mxu0 %v992
      %1013 = vmatpush1.msra.mxu0 %v991
      %1014 = vmatprep.subr.mxu0 0.0
      %1015 = vmatpush1.msra.mxu0 0.0
      %1016 = vmatprep.subr.mxu0 0.0
      %1017 = vmatpush1.msra.mxu0 0.0
      %1018 = vmatprep.subr.mxu0 0.0
      %1019 = vmatpush1.msra.mxu0 0.0
      %1020 = vmatprep.subr.mxu0 0.0
      %1021 = vmatpush1.msra.mxu0 0.0
      %1022 = vmatprep.subr.mxu0 0.0
      %1023 = vmatpush1.msra.mxu0 0.0
      %1024 = vmatprep.subr.mxu0 0.0
      %1025 = vmatpush1.msra.mxu0 0.0
      %1026 = vmatprep.subr.mxu0 0.0
      %1027 = vmatpush1.msra.mxu0 0.0
      %1028 = vmatprep.subr.mxu0 0.0
      %1029 = vmatpush1.msra.mxu0 0.0
      %1030 = vmatprep.subr.mxu0 0.0
      %1031 = vmatpush1.msra.mxu0 0.0
      %1032 = vmatprep.subr.mxu0 0.0
      %1033 = vmatpush1.msra.mxu0 0.0
      %1034 = vmatprep.subr.mxu0 0.0
      %1035 = vmatpush1.msra.mxu0 0.0
      %1036 = vmatprep.subr.mxu0 0.0
      %1037 = vmatpush1.msra.mxu0 0.0
      %1038 = vmatprep.subr.mxu0 0.0
      %1039 = vmatpush1.msra.mxu0 0.0
      %1040 = vmatprep.subr.mxu0 0.0
      %1041 = vmatpush1.msra.mxu0 0.0
      %1042 = vmatprep.subr.mxu0 0.0
      %1043 = vmatpush1.msra.mxu0 0.0
      %1044 = vmatprep.subr.mxu0 0.0
      %1045 = vmatpush1.msra.mxu0 0.0
      %1046 = vmatprep.subr.mxu0 0.0
      %1047 = vmatpush1.msra.mxu0 0.0
      %1048 = vmatprep.subr.mxu0 0.0
      %1049 = vmatpush1.msra.mxu0 0.0
      %1050 = vmatprep.subr.mxu0 0.0
      %1051 = vmatpush1.msra.mxu0 0.0
      %1052 = vmatprep.subr.mxu0 0.0
      %1053 = vmatpush1.msra.mxu0 0.0
      %1054 = vmatprep.subr.mxu0 0.0
      %1055 = vmatpush1.msra.mxu0 0.0
      %1056 = vmatprep.subr.mxu0 0.0
      %1057 = vmatpush1.msra.mxu0 0.0
      %1058 = vmatprep.subr.mxu0 0.0
      %1059 = vmatpush1.msra.mxu0 0.0
      %1060 = vmatprep.mubr.f32.mxu0 0.0
      %1061 = vmatmul.mubr.f32.gmra.mrb[0].mxu0 %v994
      %v1062 = vpop.f32.mrb[0].mxu0
      %v1063 = vadd.f32 0.0, %v1062
      %v1064 = vpop.f32.mrb[0].mxu0
      %v1065 = vadd.f32 0.0, %v1064
      %1066 = vdwg.mxu0
      %v1068 = vsel %vm814, %v973, 0
      %1070 = vmatprep.subr.mxu0 %v778
      %1071 = vmatpush1.msra.mxu0 %v777
      %1072 = vmatprep.subr.mxu0 %v780
      %1073 = vmatpush1.msra.mxu0 %v779
      %1074 = vmatprep.subr.mxu0 %v782
      %1075 = vmatpush1.msra.mxu0 %v781
      %1076 = vmatprep.subr.mxu0 %v784
      %1077 = vmatpush1.msra.mxu0 %v783
      %1078 = vmatprep.subr.mxu0 %v786
      %1079 = vmatpush1.msra.mxu0 %v785
      %1080 = vmatprep.subr.mxu0 %v788
      %1081 = vmatpush1.msra.mxu0 %v787
      %1082 = vmatprep.subr.mxu0 %v790
      %1083 = vmatpush1.msra.mxu0 %v789
      %1084 = vmatprep.subr.mxu0 %v792
      %1085 = vmatpush1.msra.mxu0 %v791
      %1086 = vmatprep.subr.mxu0 %v794
      %1087 = vmatpush1.msra.mxu0 %v793
      %1088 = vmatprep.subr.mxu0 0.0
      %1089 = vmatpush1.msra.mxu0 0.0
      %1090 = vmatprep.subr.mxu0 0.0
      %1091 = vmatpush1.msra.mxu0 0.0
      %1092 = vmatprep.subr.mxu0 0.0
      %1093 = vmatpush1.msra.mxu0 0.0
      %1094 = vmatprep.subr.mxu0 0.0
      %1095 = vmatpush1.msra.mxu0 0.0
      %1096 = vmatprep.subr.mxu0 0.0
      %1097 = vmatpush1.msra.mxu0 0.0
      %1098 = vmatprep.subr.mxu0 0.0
      %1099 = vmatpush1.msra.mxu0 0.0
      %1100 = vmatprep.subr.mxu0 0.0
      %1101 = vmatpush1.msra.mxu0 0.0
      %1102 = vmatprep.subr.mxu0 0.0
      %1103 = vmatpush1.msra.mxu0 0.0
      %1104 = vmatprep.subr.mxu0 0.0
      %1105 = vmatpush1.msra.mxu0 0.0
      %1106 = vmatprep.subr.mxu0 0.0
      %1107 = vmatpush1.msra.mxu0 0.0
      %1108 = vmatprep.subr.mxu0 0.0
      %1109 = vmatpush1.msra.mxu0 0.0
      %1110 = vmatprep.subr.mxu0 0.0
      %1111 = vmatpush1.msra.mxu0 0.0
      %1112 = vmatprep.subr.mxu0 0.0
      %1113 = vmatpush1.msra.mxu0 0.0
      %1114 = vmatprep.subr.mxu0 0.0
      %1115 = vmatpush1.msra.mxu0 0.0
      %1116 = vmatprep.subr.mxu0 0.0
      %1117 = vmatpush1.msra.mxu0 0.0
      %1118 = vmatprep.subr.mxu0 0.0
      %1119 = vmatpush1.msra.mxu0 0.0
      %1120 = vmatprep.subr.mxu0 0.0
      %1121 = vmatpush1.msra.mxu0 0.0
      %1122 = vmatprep.subr.mxu0 0.0
      %1123 = vmatpush1.msra.mxu0 0.0
      %1124 = vmatprep.subr.mxu0 0.0
      %1125 = vmatpush1.msra.mxu0 0.0
      %1126 = vmatprep.subr.mxu0 0.0
      %1127 = vmatpush1.msra.mxu0 0.0
      %1128 = vmatprep.subr.mxu0 0.0
      %1129 = vmatpush1.msra.mxu0 0.0
      %1130 = vmatprep.subr.mxu0 0.0
      %1131 = vmatpush1.msra.mxu0 0.0
      %1132 = vmatprep.subr.mxu0 0.0
      %1133 = vmatpush1.msra.mxu0 0.0
      %1134 = vmatprep.mubr.f32.mxu0 0.0
      %1135 = vmatmul.mubr.f32.gmra.mrb[0].mxu0 %v1068
      %v1136 = vpop.f32.mrb[0].mxu0
      %v1137 = vadd.f32 %v1063, %v1136
      %v1138 = vpop.f32.mrb[0].mxu0
      %v1139 = vadd.f32 %v1065, %v1138
      %1140 = vdwg.mxu0
      %v1141 = vld [vmem:[%s13] sm:$0xff]
      %1143 = vset.pattern.permute.xlu0 0
      %1144 = vperm.xlu0 %1143, %v1141
      %v1145 = vpop.permute.xlu0 %1144
      %v1147 = vadd.f32 %v1137, %v1145
      %v1148 = vadd.f32 %v1139, %v1145
      %v1149 = vmax.f32 %v1147, 0.0
      %v1150 = vmax.f32 %v1148, 0.0
      %v1151 = vld [vmem:[%s14] sm:$0x1]
      %v1152 = vld [vmem:[#allocation2] sm:$0x1]
      %1154 = vset.pattern.permute.xlu0 0
      %1155 = vperm.xlu0 %1154, %v1152
      %v1156 = vpop.permute.xlu0 %1155
      %v1158 = vlaneseq
      %v1159 = vshrl.u32 %v1158, 7
      %v1160 = vsub.s32 0, %v1159
      %v1161 = vrot.slane %v1156, %v1160
      %v1163 = vsel %vm689, %v1151, 0
      %1165 = vmatprep.subr.mxu0 %v972
      %1166 = vmatpush1.msra.mxu0 %v971
      %1167 = vmatprep.subr.mxu0 0.0
      %1168 = vmatpush1.msra.mxu0 0.0
      %1169 = vmatprep.subr.mxu0 0.0
      %1170 = vmatpush1.msra.mxu0 0.0
      %1171 = vmatprep.subr.mxu0 0.0
      %1172 = vmatpush1.msra.mxu0 0.0
      %1173 = vmatprep.subr.mxu0 0.0
      %1174 = vmatpush1.msra.mxu0 0.0
      %1175 = vmatprep.subr.mxu0 0.0
      %1176 = vmatpush1.msra.mxu0 0.0
      %1177 = vmatprep.subr.mxu0 0.0
      %1178 = vmatpush1.msra.mxu0 0.0
      %1179 = vmatprep.subr.mxu0 0.0
      %1180 = vmatpush1.msra.mxu0 0.0
      %1181 = vmatprep.subr.mxu0 0.0
      %1182 = vmatpush1.msra.mxu0 0.0
      %1183 = vmatprep.subr.mxu0 0.0
      %1184 = vmatpush1.msra.mxu0 0.0
      %1185 = vmatprep.subr.mxu0 0.0
      %1186 = vmatpush1.msra.mxu0 0.0
      %1187 = vmatprep.subr.mxu0 0.0
      %1188 = vmatpush1.msra.mxu0 0.0
      %1189 = vmatprep.subr.mxu0 0.0
      %1190 = vmatpush1.msra.mxu0 0.0
      %1191 = vmatprep.subr.mxu0 0.0
      %1192 = vmatpush1.msra.mxu0 0.0
      %1193 = vmatprep.subr.mxu0 0.0
      %1194 = vmatpush1.msra.mxu0 0.0
      %1195 = vmatprep.subr.mxu0 0.0
      %1196 = vmatpush1.msra.mxu0 0.0
      %1197 = vmatprep.subr.mxu0 0.0
      %1198 = vmatpush1.msra.mxu0 0.0
      %1199 = vmatprep.subr.mxu0 0.0
      %1200 = vmatpush1.msra.mxu0 0.0
      %1201 = vmatprep.subr.mxu0 0.0
      %1202 = vmatpush1.msra.mxu0 0.0
      %1203 = vmatprep.subr.mxu0 0.0
      %1204 = vmatpush1.msra.mxu0 0.0
      %1205 = vmatprep.subr.mxu0 0.0
      %1206 = vmatpush1.msra.mxu0 0.0
      %1207 = vmatprep.subr.mxu0 0.0
      %1208 = vmatpush1.msra.mxu0 0.0
      %1209 = vmatprep.subr.mxu0 0.0
      %1210 = vmatpush1.msra.mxu0 0.0
      %1211 = vmatprep.subr.mxu0 0.0
      %1212 = vmatpush1.msra.mxu0 0.0
      %1213 = vmatprep.subr.mxu0 0.0
      %1214 = vmatpush1.msra.mxu0 0.0
      %1215 = vmatprep.subr.mxu0 0.0
      %1216 = vmatpush1.msra.mxu0 0.0
      %1217 = vmatprep.subr.mxu0 0.0
      %1218 = vmatpush1.msra.mxu0 0.0
      %1219 = vmatprep.subr.mxu0 0.0
      %1220 = vmatpush1.msra.mxu0 0.0
      %1221 = vmatprep.subr.mxu0 0.0
      %1222 = vmatpush1.msra.mxu0 0.0
      %1223 = vmatprep.subr.mxu0 0.0
      %1224 = vmatpush1.msra.mxu0 0.0
      %1225 = vmatprep.subr.mxu0 0.0
      %1226 = vmatpush1.msra.mxu0 0.0
      %1227 = vmatprep.subr.mxu0 0.0
      %1228 = vmatpush1.msra.mxu0 0.0
      %1229 = vmatprep.mubr.f32.mxu0 0.0
      %1230 = vmatmul.mubr.f32.gmra.mrb[0].mxu0 %v1163
      %v1231 = vpop.f32.mrb[0].mxu0
      %v1232 = vadd.f32 %v1161, %v1231
      %v1233 = vpop.f32.mrb[0].mxu0
      %v1234 = vadd.f32 %v1161, %v1233
      %1235 = vdwg.mxu0
      %v1236 = vsub.f32 0.0, %v1232
      %v1237 = vsub.f32 0.0, %v1234
      %v1238 = vmul.f32 %v1236, 1.442695
      %v1239 = vpow.pop %v1238
      %v1240 = vmul.f32 %v1237, 1.442695
      %v1241 = vpow.pop %v1240
      %v1242 = vadd.f32 %v1239, 1.0
      %v1243 = vadd.f32 %v1241, 1.0
      %v1244 = vrcp.pop %v1242
      %v1245 = vrcp.pop %v1243
      %v1246 = vld [vmem:[%s16] sm:$0x1]
      %v1247 = vld [vmem:[#allocation3] sm:$0x1]
      %1249 = vset.pattern.permute.xlu0 0
      %1250 = vperm.xlu0 %1249, %v1247
      %v1251 = vpop.permute.xlu0 %1250
      %v1253 = vlaneseq
      %v1254 = vshrl.u32 %v1253, 7
      %v1255 = vsub.s32 0, %v1254
      %v1256 = vrot.slane %v1251, %v1255
      %v1258 = vsel %vm689, %v1246, 0
      %1260 = vmatprep.subr.mxu0 %v1150
      %1261 = vmatpush1.msra.mxu0 %v1149
      %1262 = vmatprep.subr.mxu0 0.0
      %1263 = vmatpush1.msra.mxu0 0.0
      %1264 = vmatprep.subr.mxu0 0.0
      %1265 = vmatpush1.msra.mxu0 0.0
      %1266 = vmatprep.subr.mxu0 0.0
      %1267 = vmatpush1.msra.mxu0 0.0
      %1268 = vmatprep.subr.mxu0 0.0
      %1269 = vmatpush1.msra.mxu0 0.0
      %1270 = vmatprep.subr.mxu0 0.0
      %1271 = vmatpush1.msra.mxu0 0.0
      %1272 = vmatprep.subr.mxu0 0.0
      %1273 = vmatpush1.msra.mxu0 0.0
      %1274 = vmatprep.subr.mxu0 0.0
      %1275 = vmatpush1.msra.mxu0 0.0
      %1276 = vmatprep.subr.mxu0 0.0
      %1277 = vmatpush1.msra.mxu0 0.0
      %1278 = vmatprep.subr.mxu0 0.0
      %1279 = vmatpush1.msra.mxu0 0.0
      %1280 = vmatprep.subr.mxu0 0.0
      %1281 = vmatpush1.msra.mxu0 0.0
      %1282 = vmatprep.subr.mxu0 0.0
      %1283 = vmatpush1.msra.mxu0 0.0
      %1284 = vmatprep.subr.mxu0 0.0
      %1285 = vmatpush1.msra.mxu0 0.0
      %1286 = vmatprep.subr.mxu0 0.0
      %1287 = vmatpush1.msra.mxu0 0.0
      %1288 = vmatprep.subr.mxu0 0.0
      %1289 = vmatpush1.msra.mxu0 0.0
      %1290 = vmatprep.subr.mxu0 0.0
      %1291 = vmatpush1.msra.mxu0 0.0
      %1292 = vmatprep.subr.mxu0 0.0
      %1293 = vmatpush1.msra.mxu0 0.0
      %1294 = vmatprep.subr.mxu0 0.0
      %1295 = vmatpush1.msra.mxu0 0.0
      %1296 = vmatprep.subr.mxu0 0.0
      %1297 = vmatpush1.msra.mxu0 0.0
      %1298 = vmatprep.subr.mxu0 0.0
      %1299 = vmatpush1.msra.mxu0 0.0
      %1300 = vmatprep.subr.mxu0 0.0
      %1301 = vmatpush1.msra.mxu0 0.0
      %1302 = vmatprep.subr.mxu0 0.0
      %1303 = vmatpush1.msra.mxu0 0.0
      %1304 = vmatprep.subr.mxu0 0.0
      %1305 = vmatpush1.msra.mxu0 0.0
      %1306 = vmatprep.subr.mxu0 0.0
      %1307 = vmatpush1.msra.mxu0 0.0
      %1308 = vmatprep.subr.mxu0 0.0
      %1309 = vmatpush1.msra.mxu0 0.0
      %1310 = vmatprep.subr.mxu0 0.0
      %1311 = vmatpush1.msra.mxu0 0.0
      %1312 = vmatprep.subr.mxu0 0.0
      %1313 = vmatpush1.msra.mxu0 0.0
      %1314 = vmatprep.subr.mxu0 0.0
      %1315 = vmatpush1.msra.mxu0 0.0
      %1316 = vmatprep.subr.mxu0 0.0
      %1317 = vmatpush1.msra.mxu0 0.0
      %1318 = vmatprep.subr.mxu0 0.0
      %1319 = vmatpush1.msra.mxu0 0.0
      %1320 = vmatprep.subr.mxu0 0.0
      %1321 = vmatpush1.msra.mxu0 0.0
      %1322 = vmatprep.subr.mxu0 0.0
      %1323 = vmatpush1.msra.mxu0 0.0
      %1324 = vmatprep.mubr.f32.mxu0 0.0
      %1325 = vmatmul.mubr.f32.gmra.mrb[0].mxu0 %v1258
      %v1326 = vpop.f32.mrb[0].mxu0
      %v1327 = vadd.f32 %v1256, %v1326
      %v1328 = vpop.f32.mrb[0].mxu0
      %v1329 = vadd.f32 %v1256, %v1328
      %1330 = vdwg.mxu0
      %v1331 = vsub.f32 0.0, %v1327
      %v1332 = vsub.f32 0.0, %v1329
      %v1333 = vmul.f32 %v1331, 1.442695
      %v1334 = vpow.pop %v1333
      %v1335 = vmul.f32 %v1332, 1.442695
      %v1336 = vpow.pop %v1335
      %v1337 = vadd.f32 %v1334, 1.0
      %v1338 = vadd.f32 %v1336, 1.0
      %v1339 = vrcp.pop %v1337
      %v1340 = vrcp.pop %v1338
      %v1341 = vlaneseq
      %v1342 = vshrl.u32 %v1341, 7
      %v1343 = vsub.s32 0, %v1342
      %v1344 = vrot.slane %v1244, %v1343
      %v1345 = vlaneseq
      %v1346 = vshrl.u32 %v1345, 7
      %v1347 = vsub.s32 0, %v1346
      %v1348 = vrot.slane %v1245, %v1347
      %v1349 = vmul.f32 %v1344, %v774
      %v1350 = vmul.f32 %v1348, %v775
      %v1351 = vld [vmem:[%s669] sm:$0xff]
      %v1352 = vld [vmem:[%s669 + $0x8] sm:$0xff]
      %v1353 = vmul.f32 %v1349, %v1351
      %v1354 = vmul.f32 %v1350, %v1352
      %1355 = vst [vmem:[%s679] sm:$0xff] %v1353
      %1356 = vst [vmem:[%s679 + $0x8] sm:$0xff] %v1354
      %v1357 = vlaneseq
      %v1358 = vshrl.u32 %v1357, 7
      %v1359 = vsub.s32 0, %v1358
      %v1360 = vrot.slane %v1339, %v1359
      %v1361 = vlaneseq
      %v1362 = vshrl.u32 %v1361, 7
      %v1363 = vsub.s32 0, %v1362
      %v1364 = vrot.slane %v1340, %v1363
      %v1365 = vmul.f32 %v1360, %v774
      %v1366 = vmul.f32 %v1364, %v775
      %v1367 = vld [vmem:[%s674] sm:$0xff]
      %v1368 = vld [vmem:[%s674 + $0x8] sm:$0xff]
      %v1369 = vmul.f32 %v1365, %v1367
      %v1370 = vmul.f32 %v1366, %v1368
      %1371 = vst [vmem:[%s679 + $0x10] sm:$0xff] %v1369
      %1372 = vst [vmem:[%s679 + $0x18] sm:$0xff] %v1370
      %p1373 = scmp.lt.s32.totalorder %s33, 1
      %s1374 = scalar_select %p1373, %s33, 1
      %s1375 = smul.addr %s1374, 4
      %s1376 = smul.addr %s1375, 8
      %s1377 = scalar_lea.vmem %s18, %s1376
      // Predicated region
      $region93: #{xlstm_axial_forward.6} parent=91 // pred_check
        %p1378 = pneg %p459
      $region94: #{xlstm_axial_forward.6} parent=91 // pred_check_branch
        %1380 = sbr.rel (%p1378) target = $region96
      $region95: #{xlstm_axial_forward.6} parent=91 // pred_region
        _
      $region96: #{xlstm_axial_forward.6} parent=91 // pred_fallthru
        _
    $region92: #{xlstm_axial_forward.6} parent=5 // pred_fallthru
      _
    %p1381 = scmp.le.s32.totalorder 2, %s28
    // Predicated region
    $region97: #{xlstm_axial_forward.6} parent=5 // pred_check
      %p1382 = pneg %p1381
    $region98: #{xlstm_axial_forward.6} parent=5 // pred_check_branch
      %1384 = sbr.rel (%p1382) target = $region100
    $region99: #{xlstm_axial_forward.6} parent=5 // pred_region
      %s1385 = ssub.s32 %s28, 2
      // Predicated region
      $region101: #{xlstm_axial_forward.6} parent=99 // pred_check
        %p1386 = pneg %p465
      $region102: #{xlstm_axial_forward.6} parent=99 // pred_check_branch
        %1388 = sbr.rel (%p1386) target = $region104
      $region103: #{xlstm_axial_forward.6} parent=99 // pred_region
        %p1389 = scmp.lt.s32.totalorder %s34, 1
        %s1390 = scalar_select %p1389, %s34, 1
        %s1391 = smul.addr %s1390, 4
        %s1392 = smul.addr %s1391, 8
        %s1393 = scalar_lea.vmem %s18, %s1392
      $region104: #{xlstm_axial_forward.6} parent=99 // pred_fallthru
        _
    $region100: #{xlstm_axial_forward.6} parent=5 // pred_fallthru
      _
  $region6: #{xlstm_axial_forward.6} parent=0 // loop_footer
    %s32 = sadd.s32 1, %s28
  $region7: #{xlstm_axial_forward.6} parent=0 // loop_footer_branch
    %27 = sbr.rel target = $region3
  $region8: #{xlstm_axial_forward.6} parent=0 // loop_exit
    _

// kernel: xlstm_axial_forward.4
$region0: #{xlstm_axial_forward.4}
  #allocation0 [shape = 'u32[]', space=smem, size = 0x4, offset = 0x4, fixed_abs, tag = 'smem constant byte address 0x4 - core index']
  #allocation1 [shape = 'u32[144,128]{1,0:T(1,128)}', space=vmem, size = 0x12000, scoped, tag = 'internal scratch']
  #allocation2 [shape = 'f32[16,16]{1,0:T(8,128)}', space=vmem, size = 0x2000, scoped, tag = 'scratch operand']
  %s0 = inlined_call_operand.vmem [shape: f32[2,16,8], index: 0, kind: input, shape index: {}]
  %s1 = inlined_call_operand.vmem [shape: f32[2,16,16], index: 1, kind: input, shape index: {}]
  %s2 = inlined_call_operand.vmem [shape: f32[4,16,16], index: 2, kind: input, shape index: {}]
  %s3 = inlined_call_operand.vmem [shape: f32[1,8], index: 3, kind: input, shape index: {}]
  %s4 = inlined_call_operand.vmem [shape: f32[1,8], index: 4, kind: input, shape index: {}]
  %s5 = inlined_call_operand.vmem [shape: f32[8,32], index: 5, kind: input, shape index: {}]
  %s6 = inlined_call_operand.vmem [shape: f32[1,32], index: 6, kind: input, shape index: {}]
  %s7 = inlined_call_operand.vmem [shape: f32[4,16], index: 7, kind: input, shape index: {}]
  %s8 = inlined_call_operand.vmem [shape: f32[1,16], index: 8, kind: input, shape index: {}]
  %s9 = inlined_call_operand.vmem [shape: f32[16,32], index: 9, kind: input, shape index: {}]
  %s10 = inlined_call_operand.vmem [shape: f32[1,32], index: 10, kind: input, shape index: {}]
  %s11 = inlined_call_operand.vmem [shape: f32[16,16], index: 11, kind: input, shape index: {}]
  %s12 = inlined_call_operand.vmem [shape: f32[1,16], index: 12, kind: input, shape index: {}]
  %s13 = inlined_call_operand.vmem [shape: f32[48,8], index: 13, kind: input, shape index: {}]
  %s14 = inlined_call_operand.vmem [shape: f32[1,8], index: 14, kind: input, shape index: {}]
  %s15 = inlined_call_operand.vmem [shape: f32[1,16], index: 15, kind: input, shape index: {}]
  %s16 = inlined_call_operand.vmem [shape: f32[1,16], index: 16, kind: input, shape index: {}]
  %s17 = inlined_call_operand.vmem [shape: f32[1,16], index: 17, kind: input, shape index: {}]
  %s18 = inlined_call_operand.vmem [shape: f32[16,8], index: 18, kind: input, shape index: {}]
  %s19 = inlined_call_operand.vmem [shape: f32[1,8], index: 19, kind: input, shape index: {}]
  %s20 = inlined_call_operand.vmem [shape: f32[2,16,8], index: 20, kind: output, shape index: {}]
  %s21 = sld [smem:[#allocation0]]
  $region117: #{xlstm_axial_forward.4} parent=0
    _
  %s23 = ssub.s32 1, %s21
  %s24 = scalar_select 0, %s23, %s21
  loop: start=0, step=1, limit=6
  $region2: #{xlstm_axial_forward.4} parent=0 // loop_pre_header
    _
  $region3: #{xlstm_axial_forward.4} parent=0 // loop_header
    %s26 = sphi 0, %s30
    %p27 = scmp.ge.s32.totalorder %s26, 6
    %s33 = sphi 0, %s45
    %s34 = sphi 0, %s41
    %s35 = sphi 0, %s33
    %s36 = sphi 0, %s34
    %s37 = sphi 0, %s35
    %s38 = sphi 0, %s36
    %s48 = sphi 0, %s50
    %s51 = sphi 0, %s48
    %s52 = sphi 0, %s51
    %s68 = sphi 0, %s52
    %s74 = sphi 0, %s76
    %s77 = sphi 0, %s74
    %s78 = sphi 0, %s77
    %s94 = sphi 0, %s78
    %s98 = sphi 0, %s98
    %s100 = sphi 0, %s98
    %s101 = sphi 0, %s100
    %s115 = sphi 0, %s101
    %s119 = sphi 0, %s119
    %s121 = sphi 0, %s119
    %s122 = sphi 0, %s121
    %s136 = sphi 0, %s122
    %s140 = sphi 0, %s140
    %s142 = sphi 0, %s140
    %s143 = sphi 0, %s142
    %s157 = sphi 0, %s143
    %s161 = sphi 0, %s161
    %s163 = sphi 0, %s161
    %s164 = sphi 0, %s163
    %s178 = sphi 0, %s164
    %s182 = sphi 0, %s182
    %s184 = sphi 0, %s182
    %s185 = sphi 0, %s184
    %s199 = sphi 0, %s185
    %s203 = sphi 0, %s203
    %s205 = sphi 0, %s203
    %s206 = sphi 0, %s205
    %s220 = sphi 0, %s206
    %s224 = sphi 0, %s224
    %s226 = sphi 0, %s224
    %s227 = sphi 0, %s226
    %s241 = sphi 0, %s227
    %s245 = sphi 0, %s245
    %s247 = sphi 0, %s245
    %s248 = sphi 0, %s247
    %s262 = sphi 0, %s248
    %s266 = sphi 0, %s266
    %s268 = sphi 0, %s266
    %s269 = sphi 0, %s268
    %s283 = sphi 0, %s269
    %s287 = sphi 0, %s287
    %s289 = sphi 0, %s287
    %s290 = sphi 0, %s289
    %s304 = sphi 0, %s290
    %s308 = sphi 0, %s308
    %s310 = sphi 0, %s308
    %s311 = sphi 0, %s310
    %s325 = sphi 0, %s311
    %s329 = sphi 0, %s329
    %s331 = sphi 0, %s329
    %s332 = sphi 0, %s331
    %s346 = sphi 0, %s332
    %s350 = sphi 0, %s350
    %s352 = sphi 0, %s350
    %s353 = sphi 0, %s352
    %s367 = sphi 0, %s353
    %s371 = sphi 0, %s371
    %s373 = sphi 0, %s371
    %s374 = sphi 0, %s373
    %s388 = sphi 0, %s374
    %s392 = sphi 0, %s392
    %s394 = sphi 0, %s392
    %s395 = sphi 0, %s394
    %s409 = sphi 0, %s395
    %s413 = sphi 0, %s413
    %s415 = sphi 0, %s413
    %s416 = sphi 0, %s415
    %s430 = sphi 0, %s416
    %s434 = sphi 0, %s434
    %s436 = sphi 0, %s434
    %s437 = sphi 0, %s436
    %s451 = sphi 0, %s437
    %s455 = sphi 0, %s455
    %s457 = sphi 0, %s455
    %s458 = sphi 0, %s457
    %s472 = sphi 0, %s458
    %s478 = sphi 0, %s480
    %s481 = sphi 0, %s478
    %s482 = sphi 0, %s481
    %s498 = sphi 0, %s482
  $region4: #{xlstm_axial_forward.4} parent=0 // loop_header_branch
    %29 = sbr.rel (%p27) target = $region8
  $region5: #{xlstm_axial_forward.4} parent=0 // loop_body
    %s31 = ssub.s32 %s26, 1
    %s32 = ssub.s32 %s26, 2
    %s39 = sadd.s32 1, %s34
    %p40 = scmp.ge.s32.totalorder %s39, 2
    %s41 = scalar_select %p40, 0, %s39
    %s42 = sadd.s32 1, %s33
    %s43 = scalar_select %p40, %s42, %s33
    %p44 = scmp.ge.s32.totalorder %s43, 2
    %s45 = scalar_select %p44, 0, %s43
    %s46 = ssub.s32 %s33, %s45
    %p47 = scmp.eq.s32.totalorder %s46, 0
    %s49 = sadd.s32 %s48, 1
    %s50 = scalar_select %p47, %s48, %s49
    %p53 = pneg %p47
    %p54 = scmp.eq.s32.totalorder %s26, 3
    %p55 = por %p53, %p54
    %p56 = scmp.ne.s32.totalorder %s48, %s51
    %p57 = scmp.eq.s32.totalorder %s26, 0
    %p58 = por %p56, %p57
    %p59 = scmp.ne.s32.totalorder %s48, %s51
    %p60 = scmp.eq.s32.totalorder %s31, 3
    %p61 = por %p59, %p60
    %p62 = scmp.ne.s32.totalorder %s51, %s52
    %p63 = scmp.eq.s32.totalorder %s31, 0
    %p64 = por %p62, %p63
    %p65 = scmp.ne.s32.totalorder %s51, %s52
    %p66 = scmp.eq.s32.totalorder %s32, 3
    %p67 = por %p65, %p66
    %p69 = scmp.ne.s32.totalorder %s52, %s68
    %p70 = scmp.eq.s32.totalorder %s32, 0
    %p71 = por %p69, %p70
    %s72 = ssub.s32 %s34, %s41
    %p73 = scmp.eq.s32.totalorder %s72, 0
    %s75 = sadd.s32 %s74, 1
    %s76 = scalar_select %p73, %s74, %s75
    %p79 = pneg %p73
    %p80 = scmp.eq.s32.totalorder %s26, 3
    %p81 = por %p79, %p80
    %p82 = scmp.ne.s32.totalorder %s74, %s77
    %p83 = scmp.eq.s32.totalorder %s26, 0
    %p84 = por %p82, %p83
    %p85 = scmp.ne.s32.totalorder %s74, %s77
    %p86 = scmp.eq.s32.totalorder %s31, 3
    %p87 = por %p85, %p86
    %p88 = scmp.ne.s32.totalorder %s77, %s78
    %p89 = scmp.eq.s32.totalorder %s31, 0
    %p90 = por %p88, %p89
    %p91 = scmp.ne.s32.totalorder %s77, %s78
    %p92 = scmp.eq.s32.totalorder %s32, 3
    %p93 = por %p91, %p92
    %p95 = scmp.ne.s32.totalorder %s78, %s94
    %p96 = scmp.eq.s32.totalorder %s32, 0
    %p97 = por %p95, %p96
    %s99 = sadd.s32 %s98, 1
    %p102 = scmp.eq.s32.totalorder %s26, 3
    %p103 = scmp.ne.s32.totalorder %s98, %s100
    %p104 = scmp.eq.s32.totalorder %s26, 0
    %p105 = por %p103, %p104
    %p106 = scmp.ne.s32.totalorder %s98, %s100
    %p107 = scmp.eq.s32.totalorder %s31, 3
    %p108 = por %p106, %p107
    %p109 = scmp.ne.s32.totalorder %s100, %s101
    %p110 = scmp.eq.s32.totalorder %s31, 0
    %p111 = por %p109, %p110
    %p112 = scmp.ne.s32.totalorder %s100, %s101
    %p113 = scmp.eq.s32.totalorder %s32, 3
    %p114 = por %p112, %p113
    %p116 = scmp.ne.s32.totalorder %s101, %s115
    %p117 = scmp.eq.s32.totalorder %s32, 0
    %p118 = por %p116, %p117
    %s120 = sadd.s32 %s119, 1
    %p123 = scmp.eq.s32.totalorder %s26, 3
    %p124 = scmp.ne.s32.totalorder %s119, %s121
    %p125 = scmp.eq.s32.totalorder %s26, 0
    %p126 = por %p124, %p125
    %p127 = scmp.ne.s32.totalorder %s119, %s121
    %p128 = scmp.eq.s32.totalorder %s31, 3
    %p129 = por %p127, %p128
    %p130 = scmp.ne.s32.totalorder %s121, %s122
    %p131 = scmp.eq.s32.totalorder %s31, 0
    %p132 = por %p130, %p131
    %p133 = scmp.ne.s32.totalorder %s121, %s122
    %p134 = scmp.eq.s32.totalorder %s32, 3
    %p135 = por %p133, %p134
    %p137 = scmp.ne.s32.totalorder %s122, %s136
    %p138 = scmp.eq.s32.totalorder %s32, 0
    %p139 = por %p137, %p138
    %s141 = sadd.s32 %s140, 1
    %p144 = scmp.eq.s32.totalorder %s26, 3
    %p145 = scmp.ne.s32.totalorder %s140, %s142
    %p146 = scmp.eq.s32.totalorder %s26, 0
    %p147 = por %p145, %p146
    %p148 = scmp.ne.s32.totalorder %s140, %s142
    %p149 = scmp.eq.s32.totalorder %s31, 3
    %p150 = por %p148, %p149
    %p151 = scmp.ne.s32.totalorder %s142, %s143
    %p152 = scmp.eq.s32.totalorder %s31, 0
    %p153 = por %p151, %p152
    %p154 = scmp.ne.s32.totalorder %s142, %s143
    %p155 = scmp.eq.s32.totalorder %s32, 3
    %p156 = por %p154, %p155
    %p158 = scmp.ne.s32.totalorder %s143, %s157
    %p159 = scmp.eq.s32.totalorder %s32, 0
    %p160 = por %p158, %p159
    %s162 = sadd.s32 %s161, 1
    %p165 = scmp.eq.s32.totalorder %s26, 3
    %p166 = scmp.ne.s32.totalorder %s161, %s163
    %p167 = scmp.eq.s32.totalorder %s26, 0
    %p168 = por %p166, %p167
    %p169 = scmp.ne.s32.totalorder %s161, %s163
    %p170 = scmp.eq.s32.totalorder %s31, 3
    %p171 = por %p169, %p170
    %p172 = scmp.ne.s32.totalorder %s163, %s164
    %p173 = scmp.eq.s32.totalorder %s31, 0
    %p174 = por %p172, %p173
    %p175 = scmp.ne.s32.totalorder %s163, %s164
    %p176 = scmp.eq.s32.totalorder %s32, 3
    %p177 = por %p175, %p176
    %p179 = scmp.ne.s32.totalorder %s164, %s178
    %p180 = scmp.eq.s32.totalorder %s32, 0
    %p181 = por %p179, %p180
    %s183 = sadd.s32 %s182, 1
    %p186 = scmp.eq.s32.totalorder %s26, 3
    %p187 = scmp.ne.s32.totalorder %s182, %s184
    %p188 = scmp.eq.s32.totalorder %s26, 0
    %p189 = por %p187, %p188
    %p190 = scmp.ne.s32.totalorder %s182, %s184
    %p191 = scmp.eq.s32.totalorder %s31, 3
    %p192 = por %p190, %p191
    %p193 = scmp.ne.s32.totalorder %s184, %s185
    %p194 = scmp.eq.s32.totalorder %s31, 0
    %p195 = por %p193, %p194
    %p196 = scmp.ne.s32.totalorder %s184, %s185
    %p197 = scmp.eq.s32.totalorder %s32, 3
    %p198 = por %p196, %p197
    %p200 = scmp.ne.s32.totalorder %s185, %s199
    %p201 = scmp.eq.s32.totalorder %s32, 0
    %p202 = por %p200, %p201
    %s204 = sadd.s32 %s203, 1
    %p207 = scmp.eq.s32.totalorder %s26, 3
    %p208 = scmp.ne.s32.totalorder %s203, %s205
    %p209 = scmp.eq.s32.totalorder %s26, 0
    %p210 = por %p208, %p209
    %p211 = scmp.ne.s32.totalorder %s203, %s205
    %p212 = scmp.eq.s32.totalorder %s31, 3
    %p213 = por %p211, %p212
    %p214 = scmp.ne.s32.totalorder %s205, %s206
    %p215 = scmp.eq.s32.totalorder %s31, 0
    %p216 = por %p214, %p215
    %p217 = scmp.ne.s32.totalorder %s205, %s206
    %p218 = scmp.eq.s32.totalorder %s32, 3
    %p219 = por %p217, %p218
    %p221 = scmp.ne.s32.totalorder %s206, %s220
    %p222 = scmp.eq.s32.totalorder %s32, 0
    %p223 = por %p221, %p222
    %s225 = sadd.s32 %s224, 1
    %p228 = scmp.eq.s32.totalorder %s26, 3
    %p229 = scmp.ne.s32.totalorder %s224, %s226
    %p230 = scmp.eq.s32.totalorder %s26, 0
    %p231 = por %p229, %p230
    %p232 = scmp.ne.s32.totalorder %s224, %s226
    %p233 = scmp.eq.s32.totalorder %s31, 3
    %p234 = por %p232, %p233
    %p235 = scmp.ne.s32.totalorder %s226, %s227
    %p236 = scmp.eq.s32.totalorder %s31, 0
    %p237 = por %p235, %p236
    %p238 = scmp.ne.s32.totalorder %s226, %s227
    %p239 = scmp.eq.s32.totalorder %s32, 3
    %p240 = por %p238, %p239
    %p242 = scmp.ne.s32.totalorder %s227, %s241
    %p243 = scmp.eq.s32.totalorder %s32, 0
    %p244 = por %p242, %p243
    %s246 = sadd.s32 %s245, 1
    %p249 = scmp.eq.s32.totalorder %s26, 3
    %p250 = scmp.ne.s32.totalorder %s245, %s247
    %p251 = scmp.eq.s32.totalorder %s26, 0
    %p252 = por %p250, %p251
    %p253 = scmp.ne.s32.totalorder %s245, %s247
    %p254 = scmp.eq.s32.totalorder %s31, 3
    %p255 = por %p253, %p254
    %p256 = scmp.ne.s32.totalorder %s247, %s248
    %p257 = scmp.eq.s32.totalorder %s31, 0
    %p258 = por %p256, %p257
    %p259 = scmp.ne.s32.totalorder %s247, %s248
    %p260 = scmp.eq.s32.totalorder %s32, 3
    %p261 = por %p259, %p260
    %p263 = scmp.ne.s32.totalorder %s248, %s262
    %p264 = scmp.eq.s32.totalorder %s32, 0
    %p265 = por %p263, %p264
    %s267 = sadd.s32 %s266, 1
    %p270 = scmp.eq.s32.totalorder %s26, 3
    %p271 = scmp.ne.s32.totalorder %s266, %s268
    %p272 = scmp.eq.s32.totalorder %s26, 0
    %p273 = por %p271, %p272
    %p274 = scmp.ne.s32.totalorder %s266, %s268
    %p275 = scmp.eq.s32.totalorder %s31, 3
    %p276 = por %p274, %p275
    %p277 = scmp.ne.s32.totalorder %s268, %s269
    %p278 = scmp.eq.s32.totalorder %s31, 0
    %p279 = por %p277, %p278
    %p280 = scmp.ne.s32.totalorder %s268, %s269
    %p281 = scmp.eq.s32.totalorder %s32, 3
    %p282 = por %p280, %p281
    %p284 = scmp.ne.s32.totalorder %s269, %s283
    %p285 = scmp.eq.s32.totalorder %s32, 0
    %p286 = por %p284, %p285
    %s288 = sadd.s32 %s287, 1
    %p291 = scmp.eq.s32.totalorder %s26, 3
    %p292 = scmp.ne.s32.totalorder %s287, %s289
    %p293 = scmp.eq.s32.totalorder %s26, 0
    %p294 = por %p292, %p293
    %p295 = scmp.ne.s32.totalorder %s287, %s289
    %p296 = scmp.eq.s32.totalorder %s31, 3
    %p297 = por %p295, %p296
    %p298 = scmp.ne.s32.totalorder %s289, %s290
    %p299 = scmp.eq.s32.totalorder %s31, 0
    %p300 = por %p298, %p299
    %p301 = scmp.ne.s32.totalorder %s289, %s290
    %p302 = scmp.eq.s32.totalorder %s32, 3
    %p303 = por %p301, %p302
    %p305 = scmp.ne.s32.totalorder %s290, %s304
    %p306 = scmp.eq.s32.totalorder %s32, 0
    %p307 = por %p305, %p306
    %s309 = sadd.s32 %s308, 1
    %p312 = scmp.eq.s32.totalorder %s26, 3
    %p313 = scmp.ne.s32.totalorder %s308, %s310
    %p314 = scmp.eq.s32.totalorder %s26, 0
    %p315 = por %p313, %p314
    %p316 = scmp.ne.s32.totalorder %s308, %s310
    %p317 = scmp.eq.s32.totalorder %s31, 3
    %p318 = por %p316, %p317
    %p319 = scmp.ne.s32.totalorder %s310, %s311
    %p320 = scmp.eq.s32.totalorder %s31, 0
    %p321 = por %p319, %p320
    %p322 = scmp.ne.s32.totalorder %s310, %s311
    %p323 = scmp.eq.s32.totalorder %s32, 3
    %p324 = por %p322, %p323
    %p326 = scmp.ne.s32.totalorder %s311, %s325
    %p327 = scmp.eq.s32.totalorder %s32, 0
    %p328 = por %p326, %p327
    %s330 = sadd.s32 %s329, 1
    %p333 = scmp.eq.s32.totalorder %s26, 3
    %p334 = scmp.ne.s32.totalorder %s329, %s331
    %p335 = scmp.eq.s32.totalorder %s26, 0
    %p336 = por %p334, %p335
    %p337 = scmp.ne.s32.totalorder %s329, %s331
    %p338 = scmp.eq.s32.totalorder %s31, 3
    %p339 = por %p337, %p338
    %p340 = scmp.ne.s32.totalorder %s331, %s332
    %p341 = scmp.eq.s32.totalorder %s31, 0
    %p342 = por %p340, %p341
    %p343 = scmp.ne.s32.totalorder %s331, %s332
    %p344 = scmp.eq.s32.totalorder %s32, 3
    %p345 = por %p343, %p344
    %p347 = scmp.ne.s32.totalorder %s332, %s346
    %p348 = scmp.eq.s32.totalorder %s32, 0
    %p349 = por %p347, %p348
    %s351 = sadd.s32 %s350, 1
    %p354 = scmp.eq.s32.totalorder %s26, 3
    %p355 = scmp.ne.s32.totalorder %s350, %s352
    %p356 = scmp.eq.s32.totalorder %s26, 0
    %p357 = por %p355, %p356
    %p358 = scmp.ne.s32.totalorder %s350, %s352
    %p359 = scmp.eq.s32.totalorder %s31, 3
    %p360 = por %p358, %p359
    %p361 = scmp.ne.s32.totalorder %s352, %s353
    %p362 = scmp.eq.s32.totalorder %s31, 0
    %p363 = por %p361, %p362
    %p364 = scmp.ne.s32.totalorder %s352, %s353
    %p365 = scmp.eq.s32.totalorder %s32, 3
    %p366 = por %p364, %p365
    %p368 = scmp.ne.s32.totalorder %s353, %s367
    %p369 = scmp.eq.s32.totalorder %s32, 0
    %p370 = por %p368, %p369
    %s372 = sadd.s32 %s371, 1
    %p375 = scmp.eq.s32.totalorder %s26, 3
    %p376 = scmp.ne.s32.totalorder %s371, %s373
    %p377 = scmp.eq.s32.totalorder %s26, 0
    %p378 = por %p376, %p377
    %p379 = scmp.ne.s32.totalorder %s371, %s373
    %p380 = scmp.eq.s32.totalorder %s31, 3
    %p381 = por %p379, %p380
    %p382 = scmp.ne.s32.totalorder %s373, %s374
    %p383 = scmp.eq.s32.totalorder %s31, 0
    %p384 = por %p382, %p383
    %p385 = scmp.ne.s32.totalorder %s373, %s374
    %p386 = scmp.eq.s32.totalorder %s32, 3
    %p387 = por %p385, %p386
    %p389 = scmp.ne.s32.totalorder %s374, %s388
    %p390 = scmp.eq.s32.totalorder %s32, 0
    %p391 = por %p389, %p390
    %s393 = sadd.s32 %s392, 1
    %p396 = scmp.eq.s32.totalorder %s26, 3
    %p397 = scmp.ne.s32.totalorder %s392, %s394
    %p398 = scmp.eq.s32.totalorder %s26, 0
    %p399 = por %p397, %p398
    %p400 = scmp.ne.s32.totalorder %s392, %s394
    %p401 = scmp.eq.s32.totalorder %s31, 3
    %p402 = por %p400, %p401
    %p403 = scmp.ne.s32.totalorder %s394, %s395
    %p404 = scmp.eq.s32.totalorder %s31, 0
    %p405 = por %p403, %p404
    %p406 = scmp.ne.s32.totalorder %s394, %s395
    %p407 = scmp.eq.s32.totalorder %s32, 3
    %p408 = por %p406, %p407
    %p410 = scmp.ne.s32.totalorder %s395, %s409
    %p411 = scmp.eq.s32.totalorder %s32, 0
    %p412 = por %p410, %p411
    %s414 = sadd.s32 %s413, 1
    %p417 = scmp.eq.s32.totalorder %s26, 3
    %p418 = scmp.ne.s32.totalorder %s413, %s415
    %p419 = scmp.eq.s32.totalorder %s26, 0
    %p420 = por %p418, %p419
    %p421 = scmp.ne.s32.totalorder %s413, %s415
    %p422 = scmp.eq.s32.totalorder %s31, 3
    %p423 = por %p421, %p422
    %p424 = scmp.ne.s32.totalorder %s415, %s416
    %p425 = scmp.eq.s32.totalorder %s31, 0
    %p426 = por %p424, %p425
    %p427 = scmp.ne.s32.totalorder %s415, %s416
    %p428 = scmp.eq.s32.totalorder %s32, 3
    %p429 = por %p427, %p428
    %p431 = scmp.ne.s32.totalorder %s416, %s430
    %p432 = scmp.eq.s32.totalorder %s32, 0
    %p433 = por %p431, %p432
    %s435 = sadd.s32 %s434, 1
    %p438 = scmp.eq.s32.totalorder %s26, 3
    %p439 = scmp.ne.s32.totalorder %s434, %s436
    %p440 = scmp.eq.s32.totalorder %s26, 0
    %p441 = por %p439, %p440
    %p442 = scmp.ne.s32.totalorder %s434, %s436
    %p443 = scmp.eq.s32.totalorder %s31, 3
    %p444 = por %p442, %p443
    %p445 = scmp.ne.s32.totalorder %s436, %s437
    %p446 = scmp.eq.s32.totalorder %s31, 0
    %p447 = por %p445, %p446
    %p448 = scmp.ne.s32.totalorder %s436, %s437
    %p449 = scmp.eq.s32.totalorder %s32, 3
    %p450 = por %p448, %p449
    %p452 = scmp.ne.s32.totalorder %s437, %s451
    %p453 = scmp.eq.s32.totalorder %s32, 0
    %p454 = por %p452, %p453
    %s456 = sadd.s32 %s455, 1
    %p459 = scmp.eq.s32.totalorder %s26, 3
    %p460 = scmp.ne.s32.totalorder %s455, %s457
    %p461 = scmp.eq.s32.totalorder %s26, 0
    %p462 = por %p460, %p461
    %p463 = scmp.ne.s32.totalorder %s455, %s457
    %p464 = scmp.eq.s32.totalorder %s31, 3
    %p465 = por %p463, %p464
    %p466 = scmp.ne.s32.totalorder %s457, %s458
    %p467 = scmp.eq.s32.totalorder %s31, 0
    %p468 = por %p466, %p467
    %p469 = scmp.ne.s32.totalorder %s457, %s458
    %p470 = scmp.eq.s32.totalorder %s32, 3
    %p471 = por %p469, %p470
    %p473 = scmp.ne.s32.totalorder %s458, %s472
    %p474 = scmp.eq.s32.totalorder %s32, 0
    %p475 = por %p473, %p474
    %s476 = ssub.s32 %s33, %s45
    %p477 = scmp.eq.s32.totalorder %s476, 0
    %s479 = sadd.s32 %s478, 1
    %s480 = scalar_select %p477, %s478, %s479
    %p483 = pneg %p477
    %p484 = scmp.eq.s32.totalorder %s26, 3
    %p485 = por %p483, %p484
    %p486 = scmp.ne.s32.totalorder %s478, %s481
    %p487 = scmp.eq.s32.totalorder %s26, 0
    %p488 = por %p486, %p487
    %p489 = scmp.ne.s32.totalorder %s478, %s481
    %p490 = scmp.eq.s32.totalorder %s31, 3
    %p491 = por %p489, %p490
    %p492 = scmp.ne.s32.totalorder %s481, %s482
    %p493 = scmp.eq.s32.totalorder %s31, 0
    %p494 = por %p492, %p493
    %p495 = scmp.ne.s32.totalorder %s481, %s482
    %p496 = scmp.eq.s32.totalorder %s32, 3
    %p497 = por %p495, %p496
    %p499 = scmp.ne.s32.totalorder %s482, %s498
    %p500 = scmp.eq.s32.totalorder %s32, 0
    %p501 = por %p499, %p500
    %p502 = scmp.le.s32.totalorder 1, %s26
    %p503 = scmp.lt.s32.totalorder %s26, 5
    %p504 = pnand %p502, %p503
    %p505 = pneg %p504
    // Predicated region
    $region9: #{xlstm_axial_forward.4} parent=5 // pred_check
      _
    $region10: #{xlstm_axial_forward.4} parent=5 // pred_check_branch
      %507 = sbr.rel (%p504) target = $region12
    $region11: #{xlstm_axial_forward.4} parent=5 // pred_region
      %s508 = ssub.s32 %s26, 1
      // Predicated region
      $region13: #{xlstm_axial_forward.4} parent=11 // pred_check
        %p509 = pneg %p111
      $region14: #{xlstm_axial_forward.4} parent=11 // pred_check_branch
        %511 = sbr.rel (%p509) target = $region16
      $region15: #{xlstm_axial_forward.4} parent=11 // pred_region
        _
      $region16: #{xlstm_axial_forward.4} parent=11 // pred_fallthru
        _
      // Predicated region
      $region17: #{xlstm_axial_forward.4} parent=11 // pred_check
        %p512 = pneg %p132
      $region18: #{xlstm_axial_forward.4} parent=11 // pred_check_branch
        %514 = sbr.rel (%p512) target = $region20
      $region19: #{xlstm_axial_forward.4} parent=11 // pred_region
        _
      $region20: #{xlstm_axial_forward.4} parent=11 // pred_fallthru
        _
      // Predicated region
      $region21: #{xlstm_axial_forward.4} parent=11 // pred_check
        %p515 = pneg %p153
      $region22: #{xlstm_axial_forward.4} parent=11 // pred_check_branch
        %517 = sbr.rel (%p515) target = $region24
      $region23: #{xlstm_axial_forward.4} parent=11 // pred_region
        _
      $region24: #{xlstm_axial_forward.4} parent=11 // pred_fallthru
        _
      // Predicated region
      $region25: #{xlstm_axial_forward.4} parent=11 // pred_check
        %p518 = pneg %p174
      $region26: #{xlstm_axial_forward.4} parent=11 // pred_check_branch
        %520 = sbr.rel (%p518) target = $region28
      $region27: #{xlstm_axial_forward.4} parent=11 // pred_region
        _
      $region28: #{xlstm_axial_forward.4} parent=11 // pred_fallthru
        _
      // Predicated region
      $region29: #{xlstm_axial_forward.4} parent=11 // pred_check
        %p521 = pneg %p195
      $region30: #{xlstm_axial_forward.4} parent=11 // pred_check_branch
        %523 = sbr.rel (%p521) target = $region32
      $region31: #{xlstm_axial_forward.4} parent=11 // pred_region
        _
      $region32: #{xlstm_axial_forward.4} parent=11 // pred_fallthru
        _
      // Predicated region
      $region33: #{xlstm_axial_forward.4} parent=11 // pred_check
        %p524 = pneg %p216
      $region34: #{xlstm_axial_forward.4} parent=11 // pred_check_branch
        %526 = sbr.rel (%p524) target = $region36
      $region35: #{xlstm_axial_forward.4} parent=11 // pred_region
        _
      $region36: #{xlstm_axial_forward.4} parent=11 // pred_fallthru
        _
      // Predicated region
      $region37: #{xlstm_axial_forward.4} parent=11 // pred_check
        %p527 = pneg %p237
      $region38: #{xlstm_axial_forward.4} parent=11 // pred_check_branch
        %529 = sbr.rel (%p527) target = $region40
      $region39: #{xlstm_axial_forward.4} parent=11 // pred_region
        _
      $region40: #{xlstm_axial_forward.4} parent=11 // pred_fallthru
        _
      // Predicated region
      $region41: #{xlstm_axial_forward.4} parent=11 // pred_check
        %p530 = pneg %p258
      $region42: #{xlstm_axial_forward.4} parent=11 // pred_check_branch
        %532 = sbr.rel (%p530) target = $region44
      $region43: #{xlstm_axial_forward.4} parent=11 // pred_region
        _
      $region44: #{xlstm_axial_forward.4} parent=11 // pred_fallthru
        _
      // Predicated region
      $region45: #{xlstm_axial_forward.4} parent=11 // pred_check
        %p533 = pneg %p279
      $region46: #{xlstm_axial_forward.4} parent=11 // pred_check_branch
        %535 = sbr.rel (%p533) target = $region48
      $region47: #{xlstm_axial_forward.4} parent=11 // pred_region
        _
      $region48: #{xlstm_axial_forward.4} parent=11 // pred_fallthru
        _
      // Predicated region
      $region49: #{xlstm_axial_forward.4} parent=11 // pred_check
        %p536 = pneg %p300
      $region50: #{xlstm_axial_forward.4} parent=11 // pred_check_branch
        %538 = sbr.rel (%p536) target = $region52
      $region51: #{xlstm_axial_forward.4} parent=11 // pred_region
        _
      $region52: #{xlstm_axial_forward.4} parent=11 // pred_fallthru
        _
      // Predicated region
      $region53: #{xlstm_axial_forward.4} parent=11 // pred_check
        %p539 = pneg %p321
      $region54: #{xlstm_axial_forward.4} parent=11 // pred_check_branch
        %541 = sbr.rel (%p539) target = $region56
      $region55: #{xlstm_axial_forward.4} parent=11 // pred_region
        _
      $region56: #{xlstm_axial_forward.4} parent=11 // pred_fallthru
        _
      // Predicated region
      $region57: #{xlstm_axial_forward.4} parent=11 // pred_check
        %p542 = pneg %p342
      $region58: #{xlstm_axial_forward.4} parent=11 // pred_check_branch
        %544 = sbr.rel (%p542) target = $region60
      $region59: #{xlstm_axial_forward.4} parent=11 // pred_region
        _
      $region60: #{xlstm_axial_forward.4} parent=11 // pred_fallthru
        _
      // Predicated region
      $region61: #{xlstm_axial_forward.4} parent=11 // pred_check
        %p545 = pneg %p363
      $region62: #{xlstm_axial_forward.4} parent=11 // pred_check_branch
        %547 = sbr.rel (%p545) target = $region64
      $region63: #{xlstm_axial_forward.4} parent=11 // pred_region
        _
      $region64: #{xlstm_axial_forward.4} parent=11 // pred_fallthru
        _
      // Predicated region
      $region65: #{xlstm_axial_forward.4} parent=11 // pred_check
        %p548 = pneg %p384
      $region66: #{xlstm_axial_forward.4} parent=11 // pred_check_branch
        %550 = sbr.rel (%p548) target = $region68
      $region67: #{xlstm_axial_forward.4} parent=11 // pred_region
        _
      $region68: #{xlstm_axial_forward.4} parent=11 // pred_fallthru
        _
      // Predicated region
      $region69: #{xlstm_axial_forward.4} parent=11 // pred_check
        %p551 = pneg %p405
      $region70: #{xlstm_axial_forward.4} parent=11 // pred_check_branch
        %553 = sbr.rel (%p551) target = $region72
      $region71: #{xlstm_axial_forward.4} parent=11 // pred_region
        _
      $region72: #{xlstm_axial_forward.4} parent=11 // pred_fallthru
        _
      // Predicated region
      $region73: #{xlstm_axial_forward.4} parent=11 // pred_check
        %p554 = pneg %p426
      $region74: #{xlstm_axial_forward.4} parent=11 // pred_check_branch
        %556 = sbr.rel (%p554) target = $region76
      $region75: #{xlstm_axial_forward.4} parent=11 // pred_region
        _
      $region76: #{xlstm_axial_forward.4} parent=11 // pred_fallthru
        _
      // Predicated region
      $region77: #{xlstm_axial_forward.4} parent=11 // pred_check
        %p557 = pneg %p447
      $region78: #{xlstm_axial_forward.4} parent=11 // pred_check_branch
        %559 = sbr.rel (%p557) target = $region80
      $region79: #{xlstm_axial_forward.4} parent=11 // pred_region
        _
      $region80: #{xlstm_axial_forward.4} parent=11 // pred_fallthru
        _
      // Predicated region
      $region81: #{xlstm_axial_forward.4} parent=11 // pred_check
        %p560 = pneg %p468
      $region82: #{xlstm_axial_forward.4} parent=11 // pred_check_branch
        %562 = sbr.rel (%p560) target = $region84
      $region83: #{xlstm_axial_forward.4} parent=11 // pred_region
        _
      $region84: #{xlstm_axial_forward.4} parent=11 // pred_fallthru
        _
    $region12: #{xlstm_axial_forward.4} parent=5 // pred_fallthru
      _
    %p563 = scmp.lt.s32.totalorder %s26, 4
    // Predicated region
    $region85: #{xlstm_axial_forward.4} parent=5 // pred_check
      %p564 = pneg %p563
    $region86: #{xlstm_axial_forward.4} parent=5 // pred_check_branch
      %566 = sbr.rel (%p564) target = $region88
    $region87: #{xlstm_axial_forward.4} parent=5 // pred_region
      // Predicated region
      $region89: #{xlstm_axial_forward.4} parent=87 // pred_check
        %p567 = pneg %p58
      $region90: #{xlstm_axial_forward.4} parent=87 // pred_check_branch
        %569 = sbr.rel (%p567) target = $region92
      $region91: #{xlstm_axial_forward.4} parent=87 // pred_region
        %p570 = scmp.lt.s32.totalorder %s33, 1
        %s571 = scalar_select %p570, %s33, 1
        %s572 = smul.addr %s571, 2
        %s573 = smul.addr %s572, 8
        %s574 = scalar_lea.vmem %s0, %s573
      $region92: #{xlstm_axial_forward.4} parent=87 // pred_fallthru
        _
      // Predicated region
      $region93: #{xlstm_axial_forward.4} parent=87 // pred_check
        %p575 = pneg %p84
      $region94: #{xlstm_axial_forward.4} parent=87 // pred_check_branch
        %577 = sbr.rel (%p575) target = $region96
      $region95: #{xlstm_axial_forward.4} parent=87 // pred_region
        %p578 = scmp.lt.s32.totalorder %s34, 1
        %s579 = scalar_select %p578, %s34, 1
        %s580 = smul.addr %s579, 2
        %s581 = smul.addr %s580, 8
        %s582 = scalar_lea.vmem %s1, %s581
      $region96: #{xlstm_axial_forward.4} parent=87 // pred_fallthru
        _
    $region88: #{xlstm_axial_forward.4} parent=5 // pred_fallthru
      _
    %p583 = scmp.le.s32.totalorder 1, %s26
    %p584 = scmp.lt.s32.totalorder %s26, 5
    %p585 = pnand %p583, %p584
    %p586 = pneg %p585
    // Predicated region
    $region97: #{xlstm_axial_forward.4} parent=5 // pred_check
      _
    $region98: #{xlstm_axial_forward.4} parent=5 // pred_check_branch
      %588 = sbr.rel (%p585) target = $region100
    $region99: #{xlstm_axial_forward.4} parent=5 // pred_region
      %s589 = ssub.s32 %s26, 1
      %p590 = scmp.lt.s32.totalorder %s35, 1
      %s591 = scalar_select %p590, %s35, 1
      %s592 = smul.addr %s591, 2
      %s593 = smul.addr %s592, 8
      %s594 = scalar_lea.vmem %s0, %s593
      %p595 = pneg %p64
      %p596 = pneg %p61
      %p597 = scmp.lt.s32.totalorder %s36, 1
      %s598 = scalar_select %p597, %s36, 1
      %s599 = smul.addr %s598, 2
      %s600 = smul.addr %s599, 8
      %s601 = scalar_lea.vmem %s1, %s600
      %p602 = pneg %p90
      %p603 = pneg %p87
      %p604 = pneg %p111
      %p605 = pneg %p108
      %p606 = pneg %p132
      %p607 = pneg %p129
      %p608 = pneg %p153
      %p609 = pneg %p150
      %p610 = pneg %p174
      %p611 = pneg %p171
      %p612 = pneg %p195
      %p613 = pneg %p192
      %p614 = pneg %p216
      %p615 = pneg %p213
      %p616 = pneg %p237
      %p617 = pneg %p234
      %p618 = pneg %p258
      %p619 = pneg %p255
      %p620 = pneg %p279
      %p621 = pneg %p276
      %p622 = pneg %p300
      %p623 = pneg %p297
      %p624 = pneg %p321
      %p625 = pneg %p318
      %p626 = pneg %p342
      %p627 = pneg %p339
      %p628 = pneg %p363
      %p629 = pneg %p360
      %p630 = pneg %p384
      %p631 = pneg %p381
      %p632 = pneg %p405
      %p633 = pneg %p402
      %p634 = pneg %p426
      %p635 = pneg %p423
      %p636 = pneg %p447
      %p637 = pneg %p444
      %p638 = pneg %p468
      %p639 = pneg %p465
      %p640 = pneg %p494
      %p641 = pneg %p491
      %p642 = scmp.lt.s32.totalorder %s35, 1
      %s643 = scalar_select %p642, %s35, 1
      %s644 = smul.addr %s643, 2
      %s645 = smul.addr %s644, 8
      %s646 = scalar_lea.vmem %s20, %s645
      %p647 = scmp.lt.s32.totalorder %s35, 1
      %s648 = scalar_select %p647, %s35, 1
      %s649 = smul.addr %s648, 2
      %s650 = smul.addr %s649, 8
      %s651 = scalar_lea.vmem %s0, %s650
      %p652 = scmp.lt.s32.totalorder %s36, 1
      %s653 = scalar_select %p652, %s36, 1
      %s654 = smul.addr %s653, 2
      %s655 = smul.addr %s654, 8
      %s656 = scalar_lea.vmem %s1, %s655
      %p657 = scmp.lt.s32.totalorder %s35, 1
      %s658 = scalar_select %p657, %s35, 1
      %s659 = smul.addr %s658, 2
      %s660 = smul.addr %s659, 8
      %s661 = scalar_lea.vmem %s20, %s660
      %v662 = vld [vmem:[%s651] sm:$0xff]
      %v663 = vld [vmem:[%s651 + $0x8] sm:$0xff]
      %vm664 = vcmask 64512
      %v665 = vsel %vm664, %v662, 0.0
      %666 = vadd.xlane.f32.xlu0 %v665
      %v667 = vpop.xlane.xlu0 %666
      %v668 = vsel %vm664, %v663, 0.0
      %669 = vadd.xlane.f32.xlu0 %v668
      %v670 = vpop.xlane.xlu0 %669
      %v671 = vrcp.pop 8.0
      %v672 = vmul.f32 %v667, %v671
      %v673 = vmul.f32 %v670, %v671
      %v674 = vsub.f32 %v662, %v672
      %v675 = vsub.f32 %v663, %v673
      %v676 = vmul.f32 %v674, %v674
      %v677 = vmul.f32 %v675, %v675
      %v678 = vsel %vm664, %v676, 0.0
      %679 = vadd.xlane.f32.xlu0 %v678
      %v680 = vpop.xlane.xlu0 %679
      %v681 = vsel %vm664, %v677, 0.0
      %682 = vadd.xlane.f32.xlu0 %v681
      %v683 = vpop.xlane.xlu0 %682
      %v684 = vmul.f32 %v680, %v671
      %v685 = vmul.f32 %v683, %v671
      %v686 = vadd.f32 %v684, 1e-05
      %v687 = vadd.f32 %v685, 1e-05
      %v688 = vrsqrt.pop %v686
      %v689 = vrsqrt.pop %v687
      %v690 = vmul.f32 %v674, %v688
      %v691 = vmul.f32 %v675, %v689
      %v692 = vld [vmem:[%s3] sm:$0x1]
      %v694 = vlaneseq
      %v695 = vshrl.u32 %v694, 7
      %v696 = vsub.s32 0, %v695
      %v697 = vrot.slane %v692, %v696
      %v699 = vmul.f32 %v690, %v697
      %v700 = vmul.f32 %v691, %v697
      %v701 = vld [vmem:[%s4] sm:$0x1]
      %v703 = vlaneseq
      %v704 = vshrl.u32 %v703, 7
      %v705 = vsub.s32 0, %v704
      %v706 = vrot.slane %v701, %v705
      %v708 = vadd.f32 %v699, %v706
      %v709 = vadd.f32 %v700, %v706
      %v710 = vld [vmem:[%s656] sm:$0xff]
      %v711 = vld [vmem:[%s656 + $0x8] sm:$0xff]
      %vm712 = vcmask 130048
      %v714 = vsel %vm712, %v710, 0
      %v717 = vsel %vm712, %v711, 0
      %719 = vmatprep.subr.mxu0 0.0
      %720 = vmatpush1.msra.mxu0 %v708
      %721 = vmatprep.subr.mxu0 0.0
      %722 = vmatpush1.msra.mxu0 %v709
      %723 = vmatprep.subr.mxu0 0.0
      %724 = vmatpush1.msra.mxu0 0.0
      %725 = vmatprep.subr.mxu0 0.0
      %726 = vmatpush1.msra.mxu0 0.0
      %727 = vmatprep.subr.mxu0 0.0
      %728 = vmatpush1.msra.mxu0 0.0
      %729 = vmatprep.subr.mxu0 0.0
      %730 = vmatpush1.msra.mxu0 0.0
      %731 = vmatprep.subr.mxu0 0.0
      %732 = vmatpush1.msra.mxu0 0.0
      %733 = vmatprep.subr.mxu0 0.0
      %734 = vmatpush1.msra.mxu0 0.0
      %735 = vmatprep.subr.mxu0 0.0
      %736 = vmatpush1.msra.mxu0 0.0
      %737 = vmatprep.subr.mxu0 0.0
      %738 = vmatpush1.msra.mxu0 0.0
      %739 = vmatprep.subr.mxu0 0.0
      %740 = vmatpush1.msra.mxu0 0.0
      %741 = vmatprep.subr.mxu0 0.0
      %742 = vmatpush1.msra.mxu0 0.0
      %743 = vmatprep.subr.mxu0 0.0
      %744 = vmatpush1.msra.mxu0 0.0
      %745 = vmatprep.subr.mxu0 0.0
      %746 = vmatpush1.msra.mxu0 0.0
      %747 = vmatprep.subr.mxu0 0.0
      %748 = vmatpush1.msra.mxu0 0.0
      %749 = vmatprep.subr.mxu0 0.0
      %750 = vmatpush1.msra.mxu0 0.0
      %751 = vmatprep.subr.mxu0 0.0
      %752 = vmatpush1.msra.mxu0 0.0
      %753 = vmatprep.subr.mxu0 0.0
      %754 = vmatpush1.msra.mxu0 0.0
      %755 = vmatprep.subr.mxu0 0.0
      %756 = vmatpush1.msra.mxu0 0.0
      %757 = vmatprep.subr.mxu0 0.0
      %758 = vmatpush1.msra.mxu0 0.0
      %759 = vmatprep.subr.mxu0 0.0
      %760 = vmatpush1.msra.mxu0 0.0
      %761 = vmatprep.subr.mxu0 0.0
      %762 = vmatpush1.msra.mxu0 0.0
      %763 = vmatprep.subr.mxu0 0.0
      %764 = vmatpush1.msra.mxu0 0.0
      %765 = vmatprep.subr.mxu0 0.0
      %766 = vmatpush1.msra.mxu0 0.0
      %767 = vmatprep.subr.mxu0 0.0
      %768 = vmatpush1.msra.mxu0 0.0
      %769 = vmatprep.subr.mxu0 0.0
      %770 = vmatpush1.msra.mxu0 0.0
      %771 = vmatprep.subr.mxu0 0.0
      %772 = vmatpush1.msra.mxu0 0.0
      %773 = vmatprep.subr.mxu0 0.0
      %774 = vmatpush1.msra.mxu0 0.0
      %775 = vmatprep.subr.mxu0 0.0
      %776 = vmatpush1.msra.mxu0 0.0
      %777 = vmatprep.subr.mxu0 0.0
      %778 = vmatpush1.msra.mxu0 0.0
      %779 = vmatprep.subr.mxu0 0.0
      %780 = vmatpush1.msra.mxu0 0.0
      %781 = vmatprep.subr.mxu0 0.0
      %782 = vmatpush1.msra.mxu0 0.0
      %783 = vmatprep.mubr.f32.mxu0 0.0
      %784 = vmatmul.mubr.f32.gmra.mrb[0].mxu0 %v714
      %v785 = vpop.f32.mrb[0].mxu0
      %v786 = vadd.f32 0.0, %v785
      %v787 = vpop.f32.mrb[0].mxu0
      %788 = vmatprep.mubr.f32.mxu0 0.0
      %789 = vmatmul.mubr.f32.gmra.mrb[0].mxu0 %v717
      %v790 = vpop.f32.mrb[0].mxu0
      %v791 = vadd.f32 0.0, %v790
      %v792 = vpop.f32.mrb[0].mxu0
      %793 = vdwg.mxu0
      %v794 = vld [vmem:[%s5] sm:$0xff]
      %v795 = vld [vmem:[%s6] sm:$0x1]
      %v797 = vlaneseq
      %v798 = vshrl.u32 %v797, 7
      %v799 = vsub.s32 0, %v798
      %v800 = vrot.slane %v795, %v799
      %v803 = vsel %vm664, %v786, 0
      %v806 = vsel %vm664, %v791, 0
      %808 = vmatprep.subr.mxu0 0.0
      %809 = vmatpush1.msra.mxu0 %v794
      %810 = vmatprep.subr.mxu0 0.0
      %811 = vmatpush1.msra.mxu0 0.0
      %812 = vmatprep.subr.mxu0 0.0
      %813 = vmatpush1.msra.mxu0 0.0
      %814 = vmatprep.subr.mxu0 0.0
      %815 = vmatpush1.msra.mxu0 0.0
      %816 = vmatprep.subr.mxu0 0.0
      %817 = vmatpush1.msra.mxu0 0.0
      %818 = vmatprep.subr.mxu0 0.0
      %819 = vmatpush1.msra.mxu0 0.0
      %820 = vmatprep.subr.mxu0 0.0
      %821 = vmatpush1.msra.mxu0 0.0
      %822 = vmatprep.subr.mxu0 0.0
      %823 = vmatpush1.msra.mxu0 0.0
      %824 = vmatprep.subr.mxu0 0.0
      %825 = vmatpush1.msra.mxu0 0.0
      %826 = vmatprep.subr.mxu0 0.0
      %827 = vmatpush1.msra.mxu0 0.0
      %828 = vmatprep.subr.mxu0 0.0
      %829 = vmatpush1.msra.mxu0 0.0
      %830 = vmatprep.subr.mxu0 0.0
      %831 = vmatpush1.msra.mxu0 0.0
      %832 = vmatprep.subr.mxu0 0.0
      %833 = vmatpush1.msra.mxu0 0.0
      %834 = vmatprep.subr.mxu0 0.0
      %835 = vmatpush1.msra.mxu0 0.0
      %836 = vmatprep.subr.mxu0 0.0
      %837 = vmatpush1.msra.mxu0 0.0
      %838 = vmatprep.subr.mxu0 0.0
      %839 = vmatpush1.msra.mxu0 0.0
      %840 = vmatprep.subr.mxu0 0.0
      %841 = vmatpush1.msra.mxu0 0.0
      %842 = vmatprep.subr.mxu0 0.0
      %843 = vmatpush1.msra.mxu0 0.0
      %844 = vmatprep.subr.mxu0 0.0
      %845 = vmatpush1.msra.mxu0 0.0
      %846 = vmatprep.subr.mxu0 0.0
      %847 = vmatpush1.msra.mxu0 0.0
      %848 = vmatprep.subr.mxu0 0.0
      %849 = vmatpush1.msra.mxu0 0.0
      %850 = vmatprep.subr.mxu0 0.0
      %851 = vmatpush1.msra.mxu0 0.0
      %852 = vmatprep.subr.mxu0 0.0
      %853 = vmatpush1.msra.mxu0 0.0
      %854 = vmatprep.subr.mxu0 0.0
      %855 = vmatpush1.msra.mxu0 0.0
      %856 = vmatprep.subr.mxu0 0.0
      %857 = vmatpush1.msra.mxu0 0.0
      %858 = vmatprep.subr.mxu0 0.0
      %859 = vmatpush1.msra.mxu0 0.0
      %860 = vmatprep.subr.mxu0 0.0
      %861 = vmatpush1.msra.mxu0 0.0
      %862 = vmatprep.subr.mxu0 0.0
      %863 = vmatpush1.msra.mxu0 0.0
      %864 = vmatprep.subr.mxu0 0.0
      %865 = vmatpush1.msra.mxu0 0.0
      %866 = vmatprep.subr.mxu0 0.0
      %867 = vmatpush1.msra.mxu0 0.0
      %868 = vmatprep.subr.mxu0 0.0
      %869 = vmatpush1.msra.mxu0 0.0
      %870 = vmatprep.subr.mxu0 0.0
      %871 = vmatpush1.msra.mxu0 0.0
      %872 = vmatprep.mubr.f32.mxu0 0.0
      %873 = vmatmul.mubr.f32.gmra.mrb[0].mxu0 %v803
      %v874 = vpop.f32.mrb[0].mxu0
      %v875 = vadd.f32 %v800, %v874
      %v876 = vpop.f32.mrb[0].mxu0
      %877 = vmatprep.mubr.f32.mxu0 0.0
      %878 = vmatmul.mubr.f32.gmra.mrb[0].mxu0 %v806
      %v879 = vpop.f32.mrb[0].mxu0
      %v880 = vadd.f32 %v800, %v879
      %v881 = vpop.f32.mrb[0].mxu0
      %882 = vdwg.mxu0
      %v883 = vld [vmem:[%s7] sm:$0xf]
      %v884 = vld [vmem:[%s8] sm:$0x1]
      %v886 = vlaneseq
      %v887 = vshrl.u32 %v886, 7
      %v888 = vsub.s32 0, %v887
      %v889 = vrot.slane %v884, %v888
      %v891 = vadd.f32 %v889, 0.0
      %v892 = vld [vmem:[%s2] sm:$0xff]
      %v893 = vld [vmem:[%s2 + $0x8] sm:$0xff]
      %v895 = vsel %vm712, %v892, 0
      %v898 = vsel %vm712, %v893, 0
      %900 = vmatprep.subr.mxu0 0.0
      %901 = vmatpush1.msra.mxu0 %v875
      %902 = vmatprep.subr.mxu0 0.0
      %903 = vmatpush1.msra.mxu0 %v880
      %904 = vmatprep.subr.mxu0 0.0
      %905 = vmatpush1.msra.mxu0 0.0
      %906 = vmatprep.subr.mxu0 0.0
      %907 = vmatpush1.msra.mxu0 0.0
      %908 = vmatprep.subr.mxu0 0.0
      %909 = vmatpush1.msra.mxu0 0.0
      %910 = vmatprep.subr.mxu0 0.0
      %911 = vmatpush1.msra.mxu0 0.0
      %912 = vmatprep.subr.mxu0 0.0
      %913 = vmatpush1.msra.mxu0 0.0
      %914 = vmatprep.subr.mxu0 0.0
      %915 = vmatpush1.msra.mxu0 0.0
      %916 = vmatprep.subr.mxu0 0.0
      %917 = vmatpush1.msra.mxu0 0.0
      %918 = vmatprep.subr.mxu0 0.0
      %919 = vmatpush1.msra.mxu0 0.0
      %920 = vmatprep.subr.mxu0 0.0
      %921 = vmatpush1.msra.mxu0 0.0
      %922 = vmatprep.subr.mxu0 0.0
      %923 = vmatpush1.msra.mxu0 0.0
      %924 = vmatprep.subr.mxu0 0.0
      %925 = vmatpush1.msra.mxu0 0.0
      %926 = vmatprep.subr.mxu0 0.0
      %927 = vmatpush1.msra.mxu0 0.0
      %928 = vmatprep.subr.mxu0 0.0
      %929 = vmatpush1.msra.mxu0 0.0
      %930 = vmatprep.subr.mxu0 0.0
      %931 = vmatpush1.msra.mxu0 0.0
      %932 = vmatprep.subr.mxu0 0.0
      %933 = vmatpush1.msra.mxu0 0.0
      %934 = vmatprep.subr.mxu0 0.0
      %935 = vmatpush1.msra.mxu0 0.0
      %936 = vmatprep.subr.mxu0 0.0
      %937 = vmatpush1.msra.mxu0 0.0
      %938 = vmatprep.subr.mxu0 0.0
      %939 = vmatpush1.msra.mxu0 0.0
      %940 = vmatprep.subr.mxu0 0.0
      %941 = vmatpush1.msra.mxu0 0.0
      %942 = vmatprep.subr.mxu0 0.0
      %943 = vmatpush1.msra.mxu0 0.0
      %944 = vmatprep.subr.mxu0 0.0
      %945 = vmatpush1.msra.mxu0 0.0
      %946 = vmatprep.subr.mxu0 0.0
      %947 = vmatpush1.msra.mxu0 0.0
      %948 = vmatprep.subr.mxu0 0.0
      %949 = vmatpush1.msra.mxu0 0.0
      %950 = vmatprep.subr.mxu0 0.0
      %951 = vmatpush1.msra.mxu0 0.0
      %952 = vmatprep.subr.mxu0 0.0
      %953 = vmatpush1.msra.mxu0 0.0
      %954 = vmatprep.subr.mxu0 0.0
      %955 = vmatpush1.msra.mxu0 0.0
      %956 = vmatprep.subr.mxu0 0.0
      %957 = vmatpush1.msra.mxu0 0.0
      %958 = vmatprep.subr.mxu0 0.0
      %959 = vmatpush1.msra.mxu0 0.0
      %960 = vmatprep.subr.mxu0 0.0
      %961 = vmatpush1.msra.mxu0 0.0
      %962 = vmatprep.subr.mxu0 0.0
      %963 = vmatpush1.msra.mxu0 0.0
      %964 = vmatprep.mubr.f32.mxu0 0.0
      %965 = vmatmul.mubr.f32.gmra.mrb[0].mxu0 %v895
      %v966 = vpop.f32.mrb[0].mxu0
      %v967 = vadd.f32 0.0, %v966
      %v968 = vpop.f32.mrb[0].mxu0
      %969 = vmatprep.mubr.f32.mxu0 0.0
      %970 = vmatmul.mubr.f32.gmra.mrb[0].mxu0 %v898
      %v971 = vpop.f32.mrb[0].mxu0
      %v972 = vadd.f32 0.0, %v971
      %v973 = vpop.f32.mrb[0].mxu0
      %974 = vdwg.mxu0
      %v975 = vlaneseq
      %v976 = vshrl.u32 %v975, 7
      %v977 = vsub.s32 0, %v976
      %v978 = vrot.slane %v883, %v977
      %v979 = vmul.f32 %v967, %v978
      %v980 = vmul.f32 %v972, %v978
      %v981 = vadd.f32 %v891, %v979
      %v982 = vadd.f32 %v891, %v980
      %s983 = scalar_lea.vmem %s2, 16
      %v984 = vld [vmem:[%s983] sm:$0xff]
      %v985 = vld [vmem:[%s983 + $0x8] sm:$0xff]
      %v987 = vsel %vm712, %v984, 0
      %v990 = vsel %vm712, %v985, 0
      %992 = vmatprep.subr.mxu0 0.0
      %993 = vmatpush1.msra.mxu0 %v875
      %994 = vmatprep.subr.mxu0 0.0
      %995 = vmatpush1.msra.mxu0 %v880
      %996 = vmatprep.subr.mxu0 0.0
      %997 = vmatpush1.msra.mxu0 0.0
      %998 = vmatprep.subr.mxu0 0.0
      %999 = vmatpush1.msra.mxu0 0.0
      %1000 = vmatprep.subr.mxu0 0.0
      %1001 = vmatpush1.msra.mxu0 0.0
      %1002 = vmatprep.subr.mxu0 0.0
      %1003 = vmatpush1.msra.mxu0 0.0
      %1004 = vmatprep.subr.mxu0 0.0
      %1005 = vmatpush1.msra.mxu0 0.0
      %1006 = vmatprep.subr.mxu0 0.0
      %1007 = vmatpush1.msra.mxu0 0.0
      %1008 = vmatprep.subr.mxu0 0.0
      %1009 = vmatpush1.msra.mxu0 0.0
      %1010 = vmatprep.subr.mxu0 0.0
      %1011 = vmatpush1.msra.mxu0 0.0
      %1012 = vmatprep.subr.mxu0 0.0
      %1013 = vmatpush1.msra.mxu0 0.0
      %1014 = vmatprep.subr.mxu0 0.0
      %1015 = vmatpush1.msra.mxu0 0.0
      %1016 = vmatprep.subr.mxu0 0.0
      %1017 = vmatpush1.msra.mxu0 0.0
      %1018 = vmatprep.subr.mxu0 0.0
      %1019 = vmatpush1.msra.mxu0 0.0
      %1020 = vmatprep.subr.mxu0 0.0
      %1021 = vmatpush1.msra.mxu0 0.0
      %1022 = vmatprep.subr.mxu0 0.0
      %1023 = vmatpush1.msra.mxu0 0.0
      %1024 = vmatprep.subr.mxu0 0.0
      %1025 = vmatpush1.msra.mxu0 0.0
      %1026 = vmatprep.subr.mxu0 0.0
      %1027 = vmatpush1.msra.mxu0 0.0
      %1028 = vmatprep.subr.mxu0 0.0
      %1029 = vmatpush1.msra.mxu0 0.0
      %1030 = vmatprep.subr.mxu0 0.0
      %1031 = vmatpush1.msra.mxu0 0.0
      %1032 = vmatprep.subr.mxu0 0.0
      %1033 = vmatpush1.msra.mxu0 0.0
      %1034 = vmatprep.subr.mxu0 0.0
      %1035 = vmatpush1.msra.mxu0 0.0
      %1036 = vmatprep.subr.mxu0 0.0
      %1037 = vmatpush1.msra.mxu0 0.0
      %1038 = vmatprep.subr.mxu0 0.0
      %1039 = vmatpush1.msra.mxu0 0.0
      %1040 = vmatprep.subr.mxu0 0.0
      %1041 = vmatpush1.msra.mxu0 0.0
      %1042 = vmatprep.subr.mxu0 0.0
      %1043 = vmatpush1.msra.mxu0 0.0
      %1044 = vmatprep.subr.mxu0 0.0
      %1045 = vmatpush1.msra.mxu0 0.0
      %1046 = vmatprep.subr.mxu0 0.0
      %1047 = vmatpush1.msra.mxu0 0.0
      %1048 = vmatprep.subr.mxu0 0.0
      %1049 = vmatpush1.msra.mxu0 0.0
      %1050 = vmatprep.subr.mxu0 0.0
      %1051 = vmatpush1.msra.mxu0 0.0
      %1052 = vmatprep.subr.mxu0 0.0
      %1053 = vmatpush1.msra.mxu0 0.0
      %1054 = vmatprep.subr.mxu0 0.0
      %1055 = vmatpush1.msra.mxu0 0.0
      %1056 = vmatprep.mubr.f32.mxu0 0.0
      %1057 = vmatmul.mubr.f32.gmra.mrb[0].mxu0 %v987
      %v1058 = vpop.f32.mrb[0].mxu0
      %v1059 = vadd.f32 0.0, %v1058
      %v1060 = vpop.f32.mrb[0].mxu0
      %1061 = vmatprep.mubr.f32.mxu0 0.0
      %1062 = vmatmul.mubr.f32.gmra.mrb[0].mxu0 %v990
      %v1063 = vpop.f32.mrb[0].mxu0
      %v1064 = vadd.f32 0.0, %v1063
      %v1065 = vpop.f32.mrb[0].mxu0
      %1066 = vdwg.mxu0
      %v1067 = vlaneseq
      %v1068 = vshrl.u32 %v1067, 7
      %v1069 = vsub.s32 1, %v1068
      %v1070 = vrot.slane %v883, %v1069
      %v1071 = vmul.f32 %v1059, %v1070
      %v1072 = vmul.f32 %v1064, %v1070
      %v1073 = vadd.f32 %v981, %v1071
      %v1074 = vadd.f32 %v982, %v1072
      %s1075 = scalar_lea.vmem %s2, 32
      %v1076 = vld [vmem:[%s1075] sm:$0xff]
      %v1077 = vld [vmem:[%s1075 + $0x8] sm:$0xff]
      %v1079 = vsel %vm712, %v1076, 0
      %v1082 = vsel %vm712, %v1077, 0
      %1084 = vmatprep.subr.mxu0 0.0
      %1085 = vmatpush1.msra.mxu0 %v875
      %1086 = vmatprep.subr.mxu0 0.0
      %1087 = vmatpush1.msra.mxu0 %v880
      %1088 = vmatprep.subr.mxu0 0.0
      %1089 = vmatpush1.msra.mxu0 0.0
      %1090 = vmatprep.subr.mxu0 0.0
      %1091 = vmatpush1.msra.mxu0 0.0
      %1092 = vmatprep.subr.mxu0 0.0
      %1093 = vmatpush1.msra.mxu0 0.0
      %1094 = vmatprep.subr.mxu0 0.0
      %1095 = vmatpush1.msra.mxu0 0.0
      %1096 = vmatprep.subr.mxu0 0.0
      %1097 = vmatpush1.msra.mxu0 0.0
      %1098 = vmatprep.subr.mxu0 0.0
      %1099 = vmatpush1.msra.mxu0 0.0
      %1100 = vmatprep.subr.mxu0 0.0
      %1101 = vmatpush1.msra.mxu0 0.0
      %1102 = vmatprep.subr.mxu0 0.0
      %1103 = vmatpush1.msra.mxu0 0.0
      %1104 = vmatprep.subr.mxu0 0.0
      %1105 = vmatpush1.msra.mxu0 0.0
      %1106 = vmatprep.subr.mxu0 0.0
      %1107 = vmatpush1.msra.mxu0 0.0
      %1108 = vmatprep.subr.mxu0 0.0
      %1109 = vmatpush1.msra.mxu0 0.0
      %1110 = vmatprep.subr.mxu0 0.0
      %1111 = vmatpush1.msra.mxu0 0.0
      %1112 = vmatprep.subr.mxu0 0.0
      %1113 = vmatpush1.msra.mxu0 0.0
      %1114 = vmatprep.subr.mxu0 0.0
      %1115 = vmatpush1.msra.mxu0 0.0
      %1116 = vmatprep.subr.mxu0 0.0
      %1117 = vmatpush1.msra.mxu0 0.0
      %1118 = vmatprep.subr.mxu0 0.0
      %1119 = vmatpush1.msra.mxu0 0.0
      %1120 = vmatprep.subr.mxu0 0.0
      %1121 = vmatpush1.msra.mxu0 0.0
      %1122 = vmatprep.subr.mxu0 0.0
      %1123 = vmatpush1.msra.mxu0 0.0
      %1124 = vmatprep.subr.mxu0 0.0
      %1125 = vmatpush1.msra.mxu0 0.0
      %1126 = vmatprep.subr.mxu0 0.0
      %1127 = vmatpush1.msra.mxu0 0.0
      %1128 = vmatprep.subr.mxu0 0.0
      %1129 = vmatpush1.msra.mxu0 0.0
      %1130 = vmatprep.subr.mxu0 0.0
      %1131 = vmatpush1.msra.mxu0 0.0
      %1132 = vmatprep.subr.mxu0 0.0
      %1133 = vmatpush1.msra.mxu0 0.0
      %1134 = vmatprep.subr.mxu0 0.0
      %1135 = vmatpush1.msra.mxu0 0.0
      %1136 = vmatprep.subr.mxu0 0.0
      %1137 = vmatpush1.msra.mxu0 0.0
      %1138 = vmatprep.subr.mxu0 0.0
      %1139 = vmatpush1.msra.mxu0 0.0
      %1140 = vmatprep.subr.mxu0 0.0
      %1141 = vmatpush1.msra.mxu0 0.0
      %1142 = vmatprep.subr.mxu0 0.0
      %1143 = vmatpush1.msra.mxu0 0.0
      %1144 = vmatprep.subr.mxu0 0.0
      %1145 = vmatpush1.msra.mxu0 0.0
      %1146 = vmatprep.subr.mxu0 0.0
      %1147 = vmatpush1.msra.mxu0 0.0
      %1148 = vmatprep.mubr.f32.mxu0 0.0
      %1149 = vmatmul.mubr.f32.gmra.mrb[0].mxu0 %v1079
      %v1150 = vpop.f32.mrb[0].mxu0
      %v1151 = vadd.f32 0.0, %v1150
      %v1152 = vpop.f32.mrb[0].mxu0
      %1153 = vmatprep.mubr.f32.mxu0 0.0
      %1154 = vmatmul.mubr.f32.gmra.mrb[0].mxu0 %v1082
      %v1155 = vpop.f32.mrb[0].mxu0
      %v1156 = vadd.f32 0.0, %v1155
      %v1157 = vpop.f32.mrb[0].mxu0
      %1158 = vdwg.mxu0
      %v1159 = vlaneseq
      %v1160 = vshrl.u32 %v1159, 7
      %v1161 = vsub.s32 2, %v1160
      %v1162 = vrot.slane %v883, %v1161
      %v1163 = vmul.f32 %v1151, %v1162
      %v1164 = vmul.f32 %v1156, %v1162
      %v1165 = vadd.f32 %v1073, %v1163
      %v1166 = vadd.f32 %v1074, %v1164
      %s1167 = scalar_lea.vmem %s2, 48
      %v1168 = vld [vmem:[%s1167] sm:$0xff]
      %v1169 = vld [vmem:[%s1167 + $0x8] sm:$0xff]
      %v1171 = vsel %vm712, %v1168, 0
      %v1174 = vsel %vm712, %v1169, 0
      %1176 = vmatprep.subr.mxu0 0.0
      %1177 = vmatpush1.msra.mxu0 %v875
      %1178 = vmatprep.subr.mxu0 0.0
      %1179 = vmatpush1.msra.mxu0 %v880
      %1180 = vmatprep.subr.mxu0 0.0
      %1181 = vmatpush1.msra.mxu0 0.0
      %1182 = vmatprep.subr.mxu0 0.0
      %1183 = vmatpush1.msra.mxu0 0.0
      %1184 = vmatprep.subr.mxu0 0.0
      %1185 = vmatpush1.msra.mxu0 0.0
      %1186 = vmatprep.subr.mxu0 0.0
      %1187 = vmatpush1.msra.mxu0 0.0
      %1188 = vmatprep.subr.mxu0 0.0
      %1189 = vmatpush1.msra.mxu0 0.0
      %1190 = vmatprep.subr.mxu0 0.0
      %1191 = vmatpush1.msra.mxu0 0.0
      %1192 = vmatprep.subr.mxu0 0.0
      %1193 = vmatpush1.msra.mxu0 0.0
      %1194 = vmatprep.subr.mxu0 0.0
      %1195 = vmatpush1.msra.mxu0 0.0
      %1196 = vmatprep.subr.mxu0 0.0
      %1197 = vmatpush1.msra.mxu0 0.0
      %1198 = vmatprep.subr.mxu0 0.0
      %1199 = vmatpush1.msra.mxu0 0.0
      %1200 = vmatprep.subr.mxu0 0.0
      %1201 = vmatpush1.msra.mxu0 0.0
      %1202 = vmatprep.subr.mxu0 0.0
      %1203 = vmatpush1.msra.mxu0 0.0
      %1204 = vmatprep.subr.mxu0 0.0
      %1205 = vmatpush1.msra.mxu0 0.0
      %1206 = vmatprep.subr.mxu0 0.0
      %1207 = vmatpush1.msra.mxu0 0.0
      %1208 = vmatprep.subr.mxu0 0.0
      %1209 = vmatpush1.msra.mxu0 0.0
      %1210 = vmatprep.subr.mxu0 0.0
      %1211 = vmatpush1.msra.mxu0 0.0
      %1212 = vmatprep.subr.mxu0 0.0
      %1213 = vmatpush1.msra.mxu0 0.0
      %1214 = vmatprep.subr.mxu0 0.0
      %1215 = vmatpush1.msra.mxu0 0.0
      %1216 = vmatprep.subr.mxu0 0.0
      %1217 = vmatpush1.msra.mxu0 0.0
      %1218 = vmatprep.subr.mxu0 0.0
      %1219 = vmatpush1.msra.mxu0 0.0
      %1220 = vmatprep.subr.mxu0 0.0
      %1221 = vmatpush1.msra.mxu0 0.0
      %1222 = vmatprep.subr.mxu0 0.0
      %1223 = vmatpush1.msra.mxu0 0.0
      %1224 = vmatprep.subr.mxu0 0.0
      %1225 = vmatpush1.msra.mxu0 0.0
      %1226 = vmatprep.subr.mxu0 0.0
      %1227 = vmatpush1.msra.mxu0 0.0
      %1228 = vmatprep.subr.mxu0 0.0
      %1229 = vmatpush1.msra.mxu0 0.0
      %1230 = vmatprep.subr.mxu0 0.0
      %1231 = vmatpush1.msra.mxu0 0.0
      %1232 = vmatprep.subr.mxu0 0.0
      %1233 = vmatpush1.msra.mxu0 0.0
      %1234 = vmatprep.subr.mxu0 0.0
      %1235 = vmatpush1.msra.mxu0 0.0
      %1236 = vmatprep.subr.mxu0 0.0
      %1237 = vmatpush1.msra.mxu0 0.0
      %1238 = vmatprep.subr.mxu0 0.0
      %1239 = vmatpush1.msra.mxu0 0.0
      %1240 = vmatprep.mubr.f32.mxu0 0.0
      %1241 = vmatmul.mubr.f32.gmra.mrb[0].mxu0 %v1171
      %v1242 = vpop.f32.mrb[0].mxu0
      %v1243 = vadd.f32 0.0, %v1242
      %v1244 = vpop.f32.mrb[0].mxu0
      %1245 = vmatprep.mubr.f32.mxu0 0.0
      %1246 = vmatmul.mubr.f32.gmra.mrb[0].mxu0 %v1174
      %v1247 = vpop.f32.mrb[0].mxu0
      %v1248 = vadd.f32 0.0, %v1247
      %v1249 = vpop.f32.mrb[0].mxu0
      %1250 = vdwg.mxu0
      %v1251 = vlaneseq
      %v1252 = vshrl.u32 %v1251, 7
      %v1253 = vsub.s32 3, %v1252
      %v1254 = vrot.slane %v883, %v1253
      %v1255 = vmul.f32 %v1243, %v1254
      %v1256 = vmul.f32 %v1248, %v1254
      %v1257 = vadd.f32 %v1165, %v1255
      %v1258 = vadd.f32 %v1166, %v1256
      %v1259 = vsub.f32 0.0, %v1257
      %v1260 = vsub.f32 0.0, %v1258
      %v1261 = vmul.f32 %v1259, 1.442695
      %v1262 = vpow.pop %v1261
      %v1263 = vmul.f32 %v1260, 1.442695
      %v1264 = vpow.pop %v1263
      %v1265 = vadd.f32 %v1262, 1.0
      %v1266 = vadd.f32 %v1264, 1.0
      %v1267 = vrcp.pop %v1265
      %v1268 = vrcp.pop %v1266
      %v1269 = vmul.f32 %v1257, %v1267
      %v1270 = vmul.f32 %v1258, %v1268
      %v1271 = vld [vmem:[%s9] sm:$0xff]
      %v1272 = vld [vmem:[%s9 + $0x8] sm:$0xff]
      %v1273 = vld [vmem:[%s10] sm:$0x1]
      %v1275 = vlaneseq
      %v1276 = vshrl.u32 %v1275, 7
      %v1277 = vsub.s32 0, %v1276
      %v1278 = vrot.slane %v1273, %v1277
      %v1281 = vsel %vm712, %v1269, 0
      %v1284 = vsel %vm712, %v1270, 0
      %1286 = vmatprep.subr.mxu0 0.0
      %1287 = vmatpush1.msra.mxu0 %v1271
      %1288 = vmatprep.subr.mxu0 0.0
      %1289 = vmatpush1.msra.mxu0 %v1272
      %1290 = vmatprep.subr.mxu0 0.0
      %1291 = vmatpush1.msra.mxu0 0.0
      %1292 = vmatprep.subr.mxu0 0.0
      %1293 = vmatpush1.msra.mxu0 0.0
      %1294 = vmatprep.subr.mxu0 0.0
      %1295 = vmatpush1.msra.mxu0 0.0
      %1296 = vmatprep.subr.mxu0 0.0
      %1297 = vmatpush1.msra.mxu0 0.0
      %1298 = vmatprep.subr.mxu0 0.0
      %1299 = vmatpush1.msra.mxu0 0.0
      %1300 = vmatprep.subr.mxu0 0.0
      %1301 = vmatpush1.msra.mxu0 0.0
      %1302 = vmatprep.subr.mxu0 0.0
      %1303 = vmatpush1.msra.mxu0 0.0
      %1304 = vmatprep.subr.mxu0 0.0
      %1305 = vmatpush1.msra.mxu0 0.0
      %1306 = vmatprep.subr.mxu0 0.0
      %1307 = vmatpush1.msra.mxu0 0.0
      %1308 = vmatprep.subr.mxu0 0.0
      %1309 = vmatpush1.msra.mxu0 0.0
      %1310 = vmatprep.subr.mxu0 0.0
      %1311 = vmatpush1.msra.mxu0 0.0
      %1312 = vmatprep.subr.mxu0 0.0
      %1313 = vmatpush1.msra.mxu0 0.0
      %1314 = vmatprep.subr.mxu0 0.0
      %1315 = vmatpush1.msra.mxu0 0.0
      %1316 = vmatprep.subr.mxu0 0.0
      %1317 = vmatpush1.msra.mxu0 0.0
      %1318 = vmatprep.subr.mxu0 0.0
      %1319 = vmatpush1.msra.mxu0 0.0
      %1320 = vmatprep.subr.mxu0 0.0
      %1321 = vmatpush1.msra.mxu0 0.0
      %1322 = vmatprep.subr.mxu0 0.0
      %1323 = vmatpush1.msra.mxu0 0.0
      %1324 = vmatprep.subr.mxu0 0.0
      %1325 = vmatpush1.msra.mxu0 0.0
      %1326 = vmatprep.subr.mxu0 0.0
      %1327 = vmatpush1.msra.mxu0 0.0
      %1328 = vmatprep.subr.mxu0 0.0
      %1329 = vmatpush1.msra.mxu0 0.0
      %1330 = vmatprep.subr.mxu0 0.0
      %1331 = vmatpush1.msra.mxu0 0.0
      %1332 = vmatprep.subr.mxu0 0.0
      %1333 = vmatpush1.msra.mxu0 0.0
      %1334 = vmatprep.subr.mxu0 0.0
      %1335 = vmatpush1.msra.mxu0 0.0
      %1336 = vmatprep.subr.mxu0 0.0
      %1337 = vmatpush1.msra.mxu0 0.0
      %1338 = vmatprep.subr.mxu0 0.0
      %1339 = vmatpush1.msra.mxu0 0.0
      %1340 = vmatprep.subr.mxu0 0.0
      %1341 = vmatpush1.msra.mxu0 0.0
      %1342 = vmatprep.subr.mxu0 0.0
      %1343 = vmatpush1.msra.mxu0 0.0
      %1344 = vmatprep.subr.mxu0 0.0
      %1345 = vmatpush1.msra.mxu0 0.0
      %1346 = vmatprep.subr.mxu0 0.0
      %1347 = vmatpush1.msra.mxu0 0.0
      %1348 = vmatprep.subr.mxu0 0.0
      %1349 = vmatpush1.msra.mxu0 0.0
      %1350 = vmatprep.mubr.f32.mxu0 0.0
      %1351 = vmatmul.mubr.f32.gmra.mrb[0].mxu0 %v1281
      %v1352 = vpop.f32.mrb[0].mxu0
      %v1353 = vadd.f32 %v1278, %v1352
      %v1354 = vpop.f32.mrb[0].mxu0
      %1355 = vmatprep.mubr.f32.mxu0 0.0
      %1356 = vmatmul.mubr.f32.gmra.mrb[0].mxu0 %v1284
      %v1357 = vpop.f32.mrb[0].mxu0
      %v1358 = vadd.f32 %v1278, %v1357
      %v1359 = vpop.f32.mrb[0].mxu0
      %1360 = vdwg.mxu0
      %v1361 = vld [vmem:[%s11] sm:$0xff]
      %v1362 = vld [vmem:[%s11 + $0x8] sm:$0xff]
      %v1363 = vld [vmem:[%s12] sm:$0x1]
      %v1365 = vlaneseq
      %v1366 = vshrl.u32 %v1365, 7
      %v1367 = vsub.s32 0, %v1366
      %v1368 = vrot.slane %v1363, %v1367
      %v1371 = vsel %vm712, %v875, 0
      %v1374 = vsel %vm712, %v880, 0
      %1376 = vmatprep.subr.mxu0 0.0
      %1377 = vmatpush1.msra.mxu0 %v1361
      %1378 = vmatprep.subr.mxu0 0.0
      %1379 = vmatpush1.msra.mxu0 %v1362
      %1380 = vmatprep.subr.mxu0 0.0
      %1381 = vmatpush1.msra.mxu0 0.0
      %1382 = vmatprep.subr.mxu0 0.0
      %1383 = vmatpush1.msra.mxu0 0.0
      %1384 = vmatprep.subr.mxu0 0.0
      %1385 = vmatpush1.msra.mxu0 0.0
      %1386 = vmatprep.subr.mxu0 0.0
      %1387 = vmatpush1.msra.mxu0 0.0
      %1388 = vmatprep.subr.mxu0 0.0
      %1389 = vmatpush1.msra.mxu0 0.0
      %1390 = vmatprep.subr.mxu0 0.0
      %1391 = vmatpush1.msra.mxu0 0.0
      %1392 = vmatprep.subr.mxu0 0.0
      %1393 = vmatpush1.msra.mxu0 0.0
      %1394 = vmatprep.subr.mxu0 0.0
      %1395 = vmatpush1.msra.mxu0 0.0
      %1396 = vmatprep.subr.mxu0 0.0
      %1397 = vmatpush1.msra.mxu0 0.0
      %1398 = vmatprep.subr.mxu0 0.0
      %1399 = vmatpush1.msra.mxu0 0.0
      %1400 = vmatprep.subr.mxu0 0.0
      %1401 = vmatpush1.msra.mxu0 0.0
      %1402 = vmatprep.subr.mxu0 0.0
      %1403 = vmatpush1.msra.mxu0 0.0
      %1404 = vmatprep.subr.mxu0 0.0
      %1405 = vmatpush1.msra.mxu0 0.0
      %1406 = vmatprep.subr.mxu0 0.0
      %1407 = vmatpush1.msra.mxu0 0.0
      %1408 = vmatprep.subr.mxu0 0.0
      %1409 = vmatpush1.msra.mxu0 0.0
      %1410 = vmatprep.subr.mxu0 0.0
      %1411 = vmatpush1.msra.mxu0 0.0
      %1412 = vmatprep.subr.mxu0 0.0
      %1413 = vmatpush1.msra.mxu0 0.0
      %1414 = vmatprep.subr.mxu0 0.0
      %1415 = vmatpush1.msra.mxu0 0.0
      %1416 = vmatprep.subr.mxu0 0.0
      %1417 = vmatpush1.msra.mxu0 0.0
      %1418 = vmatprep.subr.mxu0 0.0
      %1419 = vmatpush1.msra.mxu0 0.0
      %1420 = vmatprep.subr.mxu0 0.0
      %1421 = vmatpush1.msra.mxu0 0.0
      %1422 = vmatprep.subr.mxu0 0.0
      %1423 = vmatpush1.msra.mxu0 0.0
      %1424 = vmatprep.subr.mxu0 0.0
      %1425 = vmatpush1.msra.mxu0 0.0
      %1426 = vmatprep.subr.mxu0 0.0
      %1427 = vmatpush1.msra.mxu0 0.0
      %1428 = vmatprep.subr.mxu0 0.0
      %1429 = vmatpush1.msra.mxu0 0.0
      %1430 = vmatprep.subr.mxu0 0.0
      %1431 = vmatpush1.msra.mxu0 0.0
      %1432 = vmatprep.subr.mxu0 0.0
      %1433 = vmatpush1.msra.mxu0 0.0
      %1434 = vmatprep.subr.mxu0 0.0
      %1435 = vmatpush1.msra.mxu0 0.0
      %1436 = vmatprep.subr.mxu0 0.0
      %1437 = vmatpush1.msra.mxu0 0.0
      %1438 = vmatprep.subr.mxu0 0.0
      %1439 = vmatpush1.msra.mxu0 0.0
      %1440 = vmatprep.mubr.f32.mxu0 0.0
      %1441 = vmatmul.mubr.f32.gmra.mrb[0].mxu0 %v1371
      %v1442 = vpop.f32.mrb[0].mxu0
      %v1443 = vadd.f32 %v1368, %v1442
      %v1444 = vpop.f32.mrb[0].mxu0
      %1445 = vmatprep.mubr.f32.mxu0 0.0
      %1446 = vmatmul.mubr.f32.gmra.mrb[0].mxu0 %v1374
      %v1447 = vpop.f32.mrb[0].mxu0
      %v1448 = vadd.f32 %v1368, %v1447
      %v1449 = vpop.f32.mrb[0].mxu0
      %1450 = vdwg.mxu0
      %v1451 = vld [vmem:[%s13] sm:$0xff]
      %v1452 = vld [vmem:[%s13 + $0x8] sm:$0xff]
      %v1453 = vld [vmem:[%s13 + $0x10] sm:$0xff]
      %v1454 = vld [vmem:[%s13 + $0x18] sm:$0xff]
      %v1455 = vld [vmem:[%s13 + $0x20] sm:$0xff]
      %v1456 = vld [vmem:[%s13 + $0x28] sm:$0xff]
      %1459 = vrot.lane.b32.xlu0 %v1353, 112
      %v1460 = vpop.permute.xlu0 %1459
      %1461 = vrot.lane.b32.xlu0 %v1358, 112
      %v1462 = vpop.permute.xlu0 %1461
      %v1463 = vsel %vm712, %v1460, 0
      %v1465 = vsel %vm712, %v1462, 0
      %1467 = vmatprep.subr.mxu0 0.0
      %1468 = vmatpush1.msra.mxu0 %v1453
      %1469 = vmatprep.subr.mxu0 0.0
      %1470 = vmatpush1.msra.mxu0 %v1454
      %1471 = vmatprep.subr.mxu0 0.0
      %1472 = vmatpush1.msra.mxu0 0.0
      %1473 = vmatprep.subr.mxu0 0.0
      %1474 = vmatpush1.msra.mxu0 0.0
      %1475 = vmatprep.subr.mxu0 0.0
      %1476 = vmatpush1.msra.mxu0 0.0
      %1477 = vmatprep.subr.mxu0 0.0
      %1478 = vmatpush1.msra.mxu0 0.0
      %1479 = vmatprep.subr.mxu0 0.0
      %1480 = vmatpush1.msra.mxu0 0.0
      %1481 = vmatprep.subr.mxu0 0.0
      %1482 = vmatpush1.msra.mxu0 0.0
      %1483 = vmatprep.subr.mxu0 0.0
      %1484 = vmatpush1.msra.mxu0 0.0
      %1485 = vmatprep.subr.mxu0 0.0
      %1486 = vmatpush1.msra.mxu0 0.0
      %1487 = vmatprep.subr.mxu0 0.0
      %1488 = vmatpush1.msra.mxu0 0.0
      %1489 = vmatprep.subr.mxu0 0.0
      %1490 = vmatpush1.msra.mxu0 0.0
      %1491 = vmatprep.subr.mxu0 0.0
      %1492 = vmatpush1.msra.mxu0 0.0
      %1493 = vmatprep.subr.mxu0 0.0
      %1494 = vmatpush1.msra.mxu0 0.0
      %1495 = vmatprep.subr.mxu0 0.0
      %1496 = vmatpush1.msra.mxu0 0.0
      %1497 = vmatprep.subr.mxu0 0.0
      %1498 = vmatpush1.msra.mxu0 0.0
      %1499 = vmatprep.subr.mxu0 0.0
      %1500 = vmatpush1.msra.mxu0 0.0
      %1501 = vmatprep.subr.mxu0 0.0
      %1502 = vmatpush1.msra.mxu0 0.0
      %1503 = vmatprep.subr.mxu0 0.0
      %1504 = vmatpush1.msra.mxu0 0.0
      %1505 = vmatprep.subr.mxu0 0.0
      %1506 = vmatpush1.msra.mxu0 0.0
      %1507 = vmatprep.subr.mxu0 0.0
      %1508 = vmatpush1.msra.mxu0 0.0
      %1509 = vmatprep.subr.mxu0 0.0
      %1510 = vmatpush1.msra.mxu0 0.0
      %1511 = vmatprep.subr.mxu0 0.0
      %1512 = vmatpush1.msra.mxu0 0.0
      %1513 = vmatprep.subr.mxu0 0.0
      %1514 = vmatpush1.msra.mxu0 0.0
      %1515 = vmatprep.subr.mxu0 0.0
      %1516 = vmatpush1.msra.mxu0 0.0
      %1517 = vmatprep.subr.mxu0 0.0
      %1518 = vmatpush1.msra.mxu0 0.0
      %1519 = vmatprep.subr.mxu0 0.0
      %1520 = vmatpush1.msra.mxu0 0.0
      %1521 = vmatprep.subr.mxu0 0.0
      %1522 = vmatpush1.msra.mxu0 0.0
      %1523 = vmatprep.subr.mxu0 0.0
      %1524 = vmatpush1.msra.mxu0 0.0
      %1525 = vmatprep.subr.mxu0 0.0
      %1526 = vmatpush1.msra.mxu0 0.0
      %1527 = vmatprep.subr.mxu0 0.0
      %1528 = vmatpush1.msra.mxu0 0.0
      %1529 = vmatprep.subr.mxu0 0.0
      %1530 = vmatpush1.msra.mxu0 0.0
      %1531 = vmatprep.mubr.f32.mxu0 0.0
      %1532 = vmatmul.mubr.f32.gmra.mrb[0].mxu0 %v1463
      %v1533 = vpop.f32.mrb[0].mxu0
      %v1534 = vadd.f32 0.0, %v1533
      %v1535 = vpop.f32.mrb[0].mxu0
      %1536 = vmatprep.mubr.f32.mxu0 0.0
      %1537 = vmatmul.mubr.f32.gmra.mrb[0].mxu0 %v1465
      %v1538 = vpop.f32.mrb[0].mxu0
      %v1539 = vadd.f32 0.0, %v1538
      %v1540 = vpop.f32.mrb[0].mxu0
      %1541 = vdwg.mxu0
      %v1542 = vsel %vm712, %v1353, 0
      %v1544 = vsel %vm712, %v1358, 0
      %1546 = vmatprep.subr.mxu0 0.0
      %1547 = vmatpush1.msra.mxu0 %v1451
      %1548 = vmatprep.subr.mxu0 0.0
      %1549 = vmatpush1.msra.mxu0 %v1452
      %1550 = vmatprep.subr.mxu0 0.0
      %1551 = vmatpush1.msra.mxu0 0.0
      %1552 = vmatprep.subr.mxu0 0.0
      %1553 = vmatpush1.msra.mxu0 0.0
      %1554 = vmatprep.subr.mxu0 0.0
      %1555 = vmatpush1.msra.mxu0 0.0
      %1556 = vmatprep.subr.mxu0 0.0
      %1557 = vmatpush1.msra.mxu0 0.0
      %1558 = vmatprep.subr.mxu0 0.0
      %1559 = vmatpush1.msra.mxu0 0.0
      %1560 = vmatprep.subr.mxu0 0.0
      %1561 = vmatpush1.msra.mxu0 0.0
      %1562 = vmatprep.subr.mxu0 0.0
      %1563 = vmatpush1.msra.mxu0 0.0
      %1564 = vmatprep.subr.mxu0 0.0
      %1565 = vmatpush1.msra.mxu0 0.0
      %1566 = vmatprep.subr.mxu0 0.0
      %1567 = vmatpush1.msra.mxu0 0.0
      %1568 = vmatprep.subr.mxu0 0.0
      %1569 = vmatpush1.msra.mxu0 0.0
      %1570 = vmatprep.subr.mxu0 0.0
      %1571 = vmatpush1.msra.mxu0 0.0
      %1572 = vmatprep.subr.mxu0 0.0
      %1573 = vmatpush1.msra.mxu0 0.0
      %1574 = vmatprep.subr.mxu0 0.0
      %1575 = vmatpush1.msra.mxu0 0.0
      %1576 = vmatprep.subr.mxu0 0.0
      %1577 = vmatpush1.msra.mxu0 0.0
      %1578 = vmatprep.subr.mxu0 0.0
      %1579 = vmatpush1.msra.mxu0 0.0
      %1580 = vmatprep.subr.mxu0 0.0
      %1581 = vmatpush1.msra.mxu0 0.0
      %1582 = vmatprep.subr.mxu0 0.0
      %1583 = vmatpush1.msra.mxu0 0.0
      %1584 = vmatprep.subr.mxu0 0.0
      %1585 = vmatpush1.msra.mxu0 0.0
      %1586 = vmatprep.subr.mxu0 0.0
      %1587 = vmatpush1.msra.mxu0 0.0
      %1588 = vmatprep.subr.mxu0 0.0
      %1589 = vmatpush1.msra.mxu0 0.0
      %1590 = vmatprep.subr.mxu0 0.0
      %1591 = vmatpush1.msra.mxu0 0.0
      %1592 = vmatprep.subr.mxu0 0.0
      %1593 = vmatpush1.msra.mxu0 0.0
      %1594 = vmatprep.subr.mxu0 0.0
      %1595 = vmatpush1.msra.mxu0 0.0
      %1596 = vmatprep.subr.mxu0 0.0
      %1597 = vmatpush1.msra.mxu0 0.0
      %1598 = vmatprep.subr.mxu0 0.0
      %1599 = vmatpush1.msra.mxu0 0.0
      %1600 = vmatprep.subr.mxu0 0.0
      %1601 = vmatpush1.msra.mxu0 0.0
      %1602 = vmatprep.subr.mxu0 0.0
      %1603 = vmatpush1.msra.mxu0 0.0
      %1604 = vmatprep.subr.mxu0 0.0
      %1605 = vmatpush1.msra.mxu0 0.0
      %1606 = vmatprep.subr.mxu0 0.0
      %1607 = vmatpush1.msra.mxu0 0.0
      %1608 = vmatprep.subr.mxu0 0.0
      %1609 = vmatpush1.msra.mxu0 0.0
      %1610 = vmatprep.mubr.f32.mxu0 0.0
      %1611 = vmatmul.mubr.f32.gmra.mrb[0].mxu0 %v1542
      %v1612 = vpop.f32.mrb[0].mxu0
      %v1613 = vadd.f32 %v1534, %v1612
      %v1614 = vpop.f32.mrb[0].mxu0
      %1615 = vmatprep.mubr.f32.mxu0 0.0
      %1616 = vmatmul.mubr.f32.gmra.mrb[0].mxu0 %v1544
      %v1617 = vpop.f32.mrb[0].mxu0
      %v1618 = vadd.f32 %v1539, %v1617
      %v1619 = vpop.f32.mrb[0].mxu0
      %1620 = vdwg.mxu0
      %v1622 = vsel %vm712, %v1443, 0
      %v1625 = vsel %vm712, %v1448, 0
      %1627 = vmatprep.subr.mxu0 0.0
      %1628 = vmatpush1.msra.mxu0 %v1455
      %1629 = vmatprep.subr.mxu0 0.0
      %1630 = vmatpush1.msra.mxu0 %v1456
      %1631 = vmatprep.subr.mxu0 0.0
      %1632 = vmatpush1.msra.mxu0 0.0
      %1633 = vmatprep.subr.mxu0 0.0
      %1634 = vmatpush1.msra.mxu0 0.0
      %1635 = vmatprep.subr.mxu0 0.0
      %1636 = vmatpush1.msra.mxu0 0.0
      %1637 = vmatprep.subr.mxu0 0.0
      %1638 = vmatpush1.msra.mxu0 0.0
      %1639 = vmatprep.subr.mxu0 0.0
      %1640 = vmatpush1.msra.mxu0 0.0
      %1641 = vmatprep.subr.mxu0 0.0
      %1642 = vmatpush1.msra.mxu0 0.0
      %1643 = vmatprep.subr.mxu0 0.0
      %1644 = vmatpush1.msra.mxu0 0.0
      %1645 = vmatprep.subr.mxu0 0.0
      %1646 = vmatpush1.msra.mxu0 0.0
      %1647 = vmatprep.subr.mxu0 0.0
      %1648 = vmatpush1.msra.mxu0 0.0
      %1649 = vmatprep.subr.mxu0 0.0
      %1650 = vmatpush1.msra.mxu0 0.0
      %1651 = vmatprep.subr.mxu0 0.0
      %1652 = vmatpush1.msra.mxu0 0.0
      %1653 = vmatprep.subr.mxu0 0.0
      %1654 = vmatpush1.msra.mxu0 0.0
      %1655 = vmatprep.subr.mxu0 0.0
      %1656 = vmatpush1.msra.mxu0 0.0
      %1657 = vmatprep.subr.mxu0 0.0
      %1658 = vmatpush1.msra.mxu0 0.0
      %1659 = vmatprep.subr.mxu0 0.0
      %1660 = vmatpush1.msra.mxu0 0.0
      %1661 = vmatprep.subr.mxu0 0.0
      %1662 = vmatpush1.msra.mxu0 0.0
      %1663 = vmatprep.subr.mxu0 0.0
      %1664 = vmatpush1.msra.mxu0 0.0
      %1665 = vmatprep.subr.mxu0 0.0
      %1666 = vmatpush1.msra.mxu0 0.0
      %1667 = vmatprep.subr.mxu0 0.0
      %1668 = vmatpush1.msra.mxu0 0.0
      %1669 = vmatprep.subr.mxu0 0.0
      %1670 = vmatpush1.msra.mxu0 0.0
      %1671 = vmatprep.subr.mxu0 0.0
      %1672 = vmatpush1.msra.mxu0 0.0
      %1673 = vmatprep.subr.mxu0 0.0
      %1674 = vmatpush1.msra.mxu0 0.0
      %1675 = vmatprep.subr.mxu0 0.0
      %1676 = vmatpush1.msra.mxu0 0.0
      %1677 = vmatprep.subr.mxu0 0.0
      %1678 = vmatpush1.msra.mxu0 0.0
      %1679 = vmatprep.subr.mxu0 0.0
      %1680 = vmatpush1.msra.mxu0 0.0
      %1681 = vmatprep.subr.mxu0 0.0
      %1682 = vmatpush1.msra.mxu0 0.0
      %1683 = vmatprep.subr.mxu0 0.0
      %1684 = vmatpush1.msra.mxu0 0.0
      %1685 = vmatprep.subr.mxu0 0.0
      %1686 = vmatpush1.msra.mxu0 0.0
      %1687 = vmatprep.subr.mxu0 0.0
      %1688 = vmatpush1.msra.mxu0 0.0
      %1689 = vmatprep.subr.mxu0 0.0
      %1690 = vmatpush1.msra.mxu0 0.0
      %1691 = vmatprep.mubr.f32.mxu0 0.0
      %1692 = vmatmul.mubr.f32.gmra.mrb[0].mxu0 %v1622
      %v1693 = vpop.f32.mrb[0].mxu0
      %v1694 = vadd.f32 0.0, %v1693
      %v1695 = vpop.f32.mrb[0].mxu0
      %1696 = vmatprep.mubr.f32.mxu0 0.0
      %1697 = vmatmul.mubr.f32.gmra.mrb[0].mxu0 %v1625
      %v1698 = vpop.f32.mrb[0].mxu0
      %v1699 = vadd.f32 0.0, %v1698
      %v1700 = vpop.f32.mrb[0].mxu0
      %1701 = vdwg.mxu0
      %v1702 = vadd.f32 %v1613, %v1694
      %v1703 = vadd.f32 %v1618, %v1699
      %v1704 = vld [vmem:[%s14] sm:$0x1]
      %v1706 = vlaneseq
      %v1707 = vshrl.u32 %v1706, 7
      %v1708 = vsub.s32 0, %v1707
      %v1709 = vrot.slane %v1704, %v1708
      %v1711 = vadd.f32 %v1702, %v1709
      %v1712 = vadd.f32 %v1703, %v1709
      %v1713 = vmin.f32 %v1711, 0.0
      %v1714 = vmin.f32 %v1712, 0.0
      %v1715 = vand.u32 2147483647, %v1711
      %v1716 = vand.u32 2147483647, %v1712
      %v1717 = vsub.f32 0.0, %v1715
      %v1718 = vsub.f32 0.0, %v1716
      %v1719 = vmul.f32 %v1717, 1.442695
      %v1720 = vpow.pop %v1719
      %v1721 = vmul.f32 %v1718, 1.442695
      %v1722 = vpow.pop %v1721
      %v1723 = vadd.f32 %v1720, 1.0
      %v1724 = vadd.f32 %v1722, 1.0
      %v1725 = vlog2.pop %v1723
      %v1726 = vmul.f32 %v1725, 0.6931472
      %v1727 = vlog2.pop %v1724
      %v1728 = vmul.f32 %v1727, 0.6931472
      %v1729 = vsub.f32 %v1713, %v1726
      %v1730 = vsub.f32 %v1714, %v1728
      %v1731 = vlaneseq
      %v1732 = vshrl.u32 %v1731, 7
      %v1733 = vadd.s32 %v1732, 8
      %v1734 = vlaneseq
      %v1735 = vand.u32 %v1734, 127
      %vm1736 = vcmp.ge.s32.totalorder %v1732, %v1735
      %vm1737 = vcmp.ge.s32.totalorder %v1733, %v1735
      %v1738 = vsel %vm1736, 1, 0
      %v1739 = vsel %vm1737, 1, 0
      %v1740 = vcvt.s32.f32 %v1738
      %v1741 = vcvt.s32.f32 %v1739
      %1744 = vrot.lane.b32.xlu0 %v1729, 124
      %v1745 = vpop.permute.xlu0 %1744
      %1746 = vrot.lane.b32.xlu0 %v1730, 124
      %v1747 = vpop.permute.xlu0 %1746
      %v1751 = vsel %vm712, %v1740, 0
      %v1754 = vsel %vm712, %v1741, 0
      %1756 = vmatprep.subr.mxu0 0.0
      %1757 = vmatpush1.msra.mxu0 %v1745
      %1758 = vmatprep.subr.mxu0 0.0
      %1759 = vmatpush1.msra.mxu0 %v1747
      %1760 = vmatprep.subr.mxu0 0.0
      %1761 = vmatpush1.msra.mxu0 0.0
      %1762 = vmatprep.subr.mxu0 0.0
      %1763 = vmatpush1.msra.mxu0 0.0
      %1764 = vmatprep.subr.mxu0 0.0
      %1765 = vmatpush1.msra.mxu0 0.0
      %1766 = vmatprep.subr.mxu0 0.0
      %1767 = vmatpush1.msra.mxu0 0.0
      %1768 = vmatprep.subr.mxu0 0.0
      %1769 = vmatpush1.msra.mxu0 0.0
      %1770 = vmatprep.subr.mxu0 0.0
      %1771 = vmatpush1.msra.mxu0 0.0
      %1772 = vmatprep.subr.mxu0 0.0
      %1773 = vmatpush1.msra.mxu0 0.0
      %1774 = vmatprep.subr.mxu0 0.0
      %1775 = vmatpush1.msra.mxu0 0.0
      %1776 = vmatprep.subr.mxu0 0.0
      %1777 = vmatpush1.msra.mxu0 0.0
      %1778 = vmatprep.subr.mxu0 0.0
      %1779 = vmatpush1.msra.mxu0 0.0
      %1780 = vmatprep.subr.mxu0 0.0
      %1781 = vmatpush1.msra.mxu0 0.0
      %1782 = vmatprep.subr.mxu0 0.0
      %1783 = vmatpush1.msra.mxu0 0.0
      %1784 = vmatprep.subr.mxu0 0.0
      %1785 = vmatpush1.msra.mxu0 0.0
      %1786 = vmatprep.subr.mxu0 0.0
      %1787 = vmatpush1.msra.mxu0 0.0
      %1788 = vmatprep.subr.mxu0 0.0
      %1789 = vmatpush1.msra.mxu0 0.0
      %1790 = vmatprep.subr.mxu0 0.0
      %1791 = vmatpush1.msra.mxu0 0.0
      %1792 = vmatprep.subr.mxu0 0.0
      %1793 = vmatpush1.msra.mxu0 0.0
      %1794 = vmatprep.subr.mxu0 0.0
      %1795 = vmatpush1.msra.mxu0 0.0
      %1796 = vmatprep.subr.mxu0 0.0
      %1797 = vmatpush1.msra.mxu0 0.0
      %1798 = vmatprep.subr.mxu0 0.0
      %1799 = vmatpush1.msra.mxu0 0.0
      %1800 = vmatprep.subr.mxu0 0.0
      %1801 = vmatpush1.msra.mxu0 0.0
      %1802 = vmatprep.subr.mxu0 0.0
      %1803 = vmatpush1.msra.mxu0 0.0
      %1804 = vmatprep.subr.mxu0 0.0
      %1805 = vmatpush1.msra.mxu0 0.0
      %1806 = vmatprep.subr.mxu0 0.0
      %1807 = vmatpush1.msra.mxu0 0.0
      %1808 = vmatprep.subr.mxu0 0.0
      %1809 = vmatpush1.msra.mxu0 0.0
      %1810 = vmatprep.subr.mxu0 0.0
      %1811 = vmatpush1.msra.mxu0 0.0
      %1812 = vmatprep.subr.mxu0 0.0
      %1813 = vmatpush1.msra.mxu0 0.0
      %1814 = vmatprep.subr.mxu0 0.0
      %1815 = vmatpush1.msra.mxu0 0.0
      %1816 = vmatprep.subr.mxu0 0.0
      %1817 = vmatpush1.msra.mxu0 0.0
      %1818 = vmatprep.subr.mxu0 0.0
      %1819 = vmatpush1.msra.mxu0 0.0
      %1820 = vmatprep.mubr.f32.mxu0 0.0
      %1821 = vmatmul.mubr.f32.gmra.mrb[0].mxu0 %v1751
      %v1822 = vpop.f32.mrb[0].mxu0
      %v1823 = vadd.f32 0.0, %v1822
      %v1824 = vpop.f32.mrb[0].mxu0
      %1825 = vmatprep.mubr.f32.mxu0 0.0
      %1826 = vmatmul.mubr.f32.gmra.mrb[0].mxu0 %v1754
      %v1827 = vpop.f32.mrb[0].mxu0
      %v1828 = vadd.f32 0.0, %v1827
      %v1829 = vpop.f32.mrb[0].mxu0
      %1830 = vdwg.mxu0
      %v1831 = vld [vmem:[%s15] sm:$0x1]
      %v1832 = vld [vmem:[%s16] sm:$0x1]
      %1833 = vxpose.xlu0.b32.start [1/16] %v1823, 128
      %1834 = vxpose.xlu0.b32.cont [2/16] %v1828, 128
      %1835 = vxpose.xlu0.b32.cont [3/16] 0.0, 128
      %1836 = vxpose.xlu0.b32.cont [4/16] 0.0, 128
      %1837 = vxpose.xlu0.b32.cont [5/16] 0.0, 128
      %1838 = vxpose.xlu0.b32.cont [6/16] 0.0, 128
      %1839 = vxpose.xlu0.b32.cont [7/16] 0.0, 128
      %1840 = vxpose.xlu0.b32.cont [8/16] 0.0, 128
      %1841 = vxpose.xlu0.b32.cont [9/16] 0.0, 128
      %1842 = vxpose.xlu0.b32.cont [10/16] 0.0, 128
      %1843 = vxpose.xlu0.b32.cont [11/16] 0.0, 128
      %1844 = vxpose.xlu0.b32.cont [12/16] 0.0, 128
      %1845 = vxpose.xlu0.b32.cont [13/16] 0.0, 128
      %1846 = vxpose.xlu0.b32.cont [14/16] 0.0, 128
      %1847 = vxpose.xlu0.b32.cont [15/16] 0.0, 128
      %1848 = vxpose.xlu0.b32.end [16/16] 0.0, 128
      %v1849 = vpop.trf.xlu0
      %v1850 = vpop.trf.xlu0
      %v1851 = vpop.trf.xlu0
      %v1852 = vpop.trf.xlu0
      %v1853 = vpop.trf.xlu0
      %v1854 = vpop.trf.xlu0
      %v1855 = vpop.trf.xlu0
      %v1856 = vpop.trf.xlu0
      %v1857 = vpop.trf.xlu0
      %v1858 = vpop.trf.xlu0
      %v1859 = vpop.trf.xlu0
      %v1860 = vpop.trf.xlu0
      %v1861 = vpop.trf.xlu0
      %v1862 = vpop.trf.xlu0
      %v1863 = vpop.trf.xlu0
      %v1864 = vpop.trf.xlu0
      %1866 = vset.pattern.permute.xlu0 0
      %1867 = vperm.xlu0 %1866, %v1823
      %v1868 = vpop.permute.xlu0 %1867
      %1871 = vset.pattern.permute.xlu0 0
      %1872 = vperm.xlu0 %1871, %v1828
      %v1873 = vpop.permute.xlu0 %1872
      %v1875 = vlaneseq
      %v1876 = vshrl.u32 %v1875, 7
      %v1877 = vsub.s32 0, %v1876
      %v1878 = vrot.slane %v1849, %v1877
      %v1879 = vsub.f32 %v1868, %v1878
      %v1880 = vsub.f32 %v1873, %v1878
      %1881 = vxpose.xlu0.b32.start [1/16] %v1711, 128
      %1882 = vxpose.xlu0.b32.cont [2/16] %v1712, 128
      %1883 = vxpose.xlu0.b32.cont [3/16] 0.0, 128
      %1884 = vxpose.xlu0.b32.cont [4/16] 0.0, 128
      %1885 = vxpose.xlu0.b32.cont [5/16] 0.0, 128
      %1886 = vxpose.xlu0.b32.cont [6/16] 0.0, 128
      %1887 = vxpose.xlu0.b32.cont [7/16] 0.0, 128
      %1888 = vxpose.xlu0.b32.cont [8/16] 0.0, 128
      %1889 = vxpose.xlu0.b32.cont [9/16] 0.0, 128
      %1890 = vxpose.xlu0.b32.cont [10/16] 0.0, 128
      %1891 = vxpose.xlu0.b32.cont [11/16] 0.0, 128
      %1892 = vxpose.xlu0.b32.cont [12/16] 0.0, 128
      %1893 = vxpose.xlu0.b32.cont [13/16] 0.0, 128
      %1894 = vxpose.xlu0.b32.cont [14/16] 0.0, 128
      %1895 = vxpose.xlu0.b32.cont [15/16] 0.0, 128
      %1896 = vxpose.xlu0.b32.end [16/16] 0.0, 128
      %v1897 = vpop.trf.xlu0
      %v1898 = vpop.trf.xlu0
      %v1899 = vpop.trf.xlu0
      %v1900 = vpop.trf.xlu0
      %v1901 = vpop.trf.xlu0
      %v1902 = vpop.trf.xlu0
      %v1903 = vpop.trf.xlu0
      %v1904 = vpop.trf.xlu0
      %v1905 = vpop.trf.xlu0
      %v1906 = vpop.trf.xlu0
      %v1907 = vpop.trf.xlu0
      %v1908 = vpop.trf.xlu0
      %v1909 = vpop.trf.xlu0
      %v1910 = vpop.trf.xlu0
      %v1911 = vpop.trf.xlu0
      %v1912 = vpop.trf.xlu0
      %v1913 = vlaneseq
      %v1914 = vshrl.u32 %v1913, 7
      %v1915 = vsub.s32 0, %v1914
      %v1916 = vrot.slane %v1897, %v1915
      %v1917 = vadd.f32 %v1879, %v1916
      %v1918 = vadd.f32 %v1880, %v1916
      %v1919 = vsel %vm1736, %v1917, -1e+30
      %v1920 = vsel %vm1737, %v1918, -1e+30
      %v1921 = vsel %vm712, %v1919, -inf
      %1922 = vmax.xlane.f32.xlu0 %v1921
      %v1923 = vpop.xlane.xlu0 %1922
      %v1924 = vsel %vm712, %v1920, -inf
      %1925 = vmax.xlane.f32.xlu0 %v1924
      %v1926 = vpop.xlane.xlu0 %1925
      %v1927 = vsub.f32 %v1919, %v1923
      %v1928 = vsub.f32 %v1920, %v1926
      %v1929 = vmul.f32 %v1927, 1.442695
      %v1930 = vpow.pop %v1929
      %v1931 = vmul.f32 %v1928, 1.442695
      %v1932 = vpow.pop %v1931
      %vm1933 = vcmask 31744
      %v1934 = vsel %vm1933, %v1353, 0
      %v1936 = vsel %vm1933, %v1358, 0
      %v1938 = vsel %vm1933, %v1460, 0
      %v1940 = vsel %vm1933, %v1462, 0
      %1942 = vmatprep.subr.mxu0 0.0
      %1943 = vmatpush1.xpose.msra.mxu0 %v1938
      %1944 = vmatprep.subr.mxu0 0.0
      %1945 = vmatpush1.xpose.msra.mxu0 %v1940
      %1946 = vmatprep.subr.mxu0 0.0
      %1947 = vmatpush1.xpose.msra.mxu0 0.0
      %1948 = vmatprep.subr.mxu0 0.0
      %1949 = vmatpush1.xpose.msra.mxu0 0.0
      %1950 = vmatprep.subr.mxu0 0.0
      %1951 = vmatpush1.xpose.msra.mxu0 0.0
      %1952 = vmatprep.subr.mxu0 0.0
      %1953 = vmatpush1.xpose.msra.mxu0 0.0
      %1954 = vmatprep.subr.mxu0 0.0
      %1955 = vmatpush1.xpose.msra.mxu0 0.0
      %1956 = vmatprep.subr.mxu0 0.0
      %1957 = vmatpush1.xpose.msra.mxu0 0.0
      %1958 = vmatprep.subr.mxu0 0.0
      %1959 = vmatpush1.xpose.msra.mxu0 0.0
      %1960 = vmatprep.subr.mxu0 0.0
      %1961 = vmatpush1.xpose.msra.mxu0 0.0
      %1962 = vmatprep.subr.mxu0 0.0
      %1963 = vmatpush1.xpose.msra.mxu0 0.0
      %1964 = vmatprep.subr.mxu0 0.0
      %1965 = vmatpush1.xpose.msra.mxu0 0.0
      %1966 = vmatprep.subr.mxu0 0.0
      %1967 = vmatpush1.xpose.msra.mxu0 0.0
      %1968 = vmatprep.subr.mxu0 0.0
      %1969 = vmatpush1.xpose.msra.mxu0 0.0
      %1970 = vmatprep.subr.mxu0 0.0
      %1971 = vmatpush1.xpose.msra.mxu0 0.0
      %1972 = vmatprep.subr.mxu0 0.0
      %1973 = vmatpush1.xpose.msra.mxu0 0.0
      %1974 = vmatprep.subr.mxu0 0.0
      %1975 = vmatpush1.xpose.msra.mxu0 0.0
      %1976 = vmatprep.subr.mxu0 0.0
      %1977 = vmatpush1.xpose.msra.mxu0 0.0
      %1978 = vmatprep.subr.mxu0 0.0
      %1979 = vmatpush1.xpose.msra.mxu0 0.0
      %1980 = vmatprep.subr.mxu0 0.0
      %1981 = vmatpush1.xpose.msra.mxu0 0.0
      %1982 = vmatprep.subr.mxu0 0.0
      %1983 = vmatpush1.xpose.msra.mxu0 0.0
      %1984 = vmatprep.subr.mxu0 0.0
      %1985 = vmatpush1.xpose.msra.mxu0 0.0
      %1986 = vmatprep.subr.mxu0 0.0
      %1987 = vmatpush1.xpose.msra.mxu0 0.0
      %1988 = vmatprep.subr.mxu0 0.0
      %1989 = vmatpush1.xpose.msra.mxu0 0.0
      %1990 = vmatprep.subr.mxu0 0.0
      %1991 = vmatpush1.xpose.msra.mxu0 0.0
      %1992 = vmatprep.subr.mxu0 0.0
      %1993 = vmatpush1.xpose.msra.mxu0 0.0
      %1994 = vmatprep.subr.mxu0 0.0
      %1995 = vmatpush1.xpose.msra.mxu0 0.0
      %1996 = vmatprep.subr.mxu0 0.0
      %1997 = vmatpush1.xpose.msra.mxu0 0.0
      %1998 = vmatprep.subr.mxu0 0.0
      %1999 = vmatpush1.xpose.msra.mxu0 0.0
      %2000 = vmatprep.subr.mxu0 0.0
      %2001 = vmatpush1.xpose.msra.mxu0 0.0
      %2002 = vmatprep.subr.mxu0 0.0
      %2003 = vmatpush1.xpose.msra.mxu0 0.0
      %2004 = vmatprep.subr.mxu0 0.0
      %2005 = vmatpush1.xpose.msra.mxu0 0.0
      %2006 = vmatprep.mubr.f32.mxu0 0.0
      %2007 = vmatmul.mubr.f32.gmra.mrb[0].mxu0 %v1934
      %v2008 = vpop.f32.mrb[0].mxu0
      %v2009 = vadd.f32 0.0, %v2008
      %v2010 = vpop.f32.mrb[0].mxu0
      %2011 = vmatprep.mubr.f32.mxu0 0.0
      %2012 = vmatmul.mubr.f32.gmra.mrb[0].mxu0 %v1936
      %v2013 = vpop.f32.mrb[0].mxu0
      %v2014 = vadd.f32 0.0, %v2013
      %v2015 = vpop.f32.mrb[0].mxu0
      %2016 = vdwg.mxu0
      %v2017 = vmul.f32 %v2009, 0.5
      %v2018 = vmul.f32 %v2014, 0.5
      %v2019 = vmul.f32 %v2017, %v1930
      %v2020 = vmul.f32 %v2018, %v1932
      %v2021 = vsel %vm712, %v2019, 0.0
      %2022 = vadd.xlane.f32.xlu0 %v2021
      %v2023 = vpop.xlane.xlu0 %2022
      %v2024 = vsel %vm712, %v2020, 0.0
      %2025 = vadd.xlane.f32.xlu0 %v2024
      %v2026 = vpop.xlane.xlu0 %2025
      %v2027 = vand.u32 2147483647, %v2023
      %v2028 = vand.u32 2147483647, %v2026
      %v2029 = vsub.f32 0.0, %v1923
      %v2030 = vsub.f32 0.0, %v1926
      %v2031 = vmul.f32 %v2029, 1.442695
      %v2032 = vpow.pop %v2031
      %v2033 = vmul.f32 %v2030, 1.442695
      %v2034 = vpow.pop %v2033
      %v2035 = vmax.f32 %v2027, %v2032
      %v2036 = vmax.f32 %v2028, %v2034
      %v2037 = vadd.f32 %v2035, 1e-06
      %v2038 = vadd.f32 %v2036, 1e-06
      %v2039 = vrcp.pop %v2037
      %v2040 = vrcp.pop %v2038
      %v2041 = vmul.f32 %v2019, %v2039
      %v2042 = vmul.f32 %v2020, %v2040
      %v2044 = vsel %vm712, %v2041, 0
      %v2047 = vsel %vm712, %v2042, 0
      %2049 = vmatprep.subr.mxu0 0.0
      %2050 = vmatpush1.msra.mxu0 %v1443
      %2051 = vmatprep.subr.mxu0 0.0
      %2052 = vmatpush1.msra.mxu0 %v1448
      %2053 = vmatprep.subr.mxu0 0.0
      %2054 = vmatpush1.msra.mxu0 0.0
      %2055 = vmatprep.subr.mxu0 0.0
      %2056 = vmatpush1.msra.mxu0 0.0
      %2057 = vmatprep.subr.mxu0 0.0
      %2058 = vmatpush1.msra.mxu0 0.0
      %2059 = vmatprep.subr.mxu0 0.0
      %2060 = vmatpush1.msra.mxu0 0.0
      %2061 = vmatprep.subr.mxu0 0.0
      %2062 = vmatpush1.msra.mxu0 0.0
      %2063 = vmatprep.subr.mxu0 0.0
      %2064 = vmatpush1.msra.mxu0 0.0
      %2065 = vmatprep.subr.mxu0 0.0
      %2066 = vmatpush1.msra.mxu0 0.0
      %2067 = vmatprep.subr.mxu0 0.0
      %2068 = vmatpush1.msra.mxu0 0.0
      %2069 = vmatprep.subr.mxu0 0.0
      %2070 = vmatpush1.msra.mxu0 0.0
      %2071 = vmatprep.subr.mxu0 0.0
      %2072 = vmatpush1.msra.mxu0 0.0
      %2073 = vmatprep.subr.mxu0 0.0
      %2074 = vmatpush1.msra.mxu0 0.0
      %2075 = vmatprep.subr.mxu0 0.0
      %2076 = vmatpush1.msra.mxu0 0.0
      %2077 = vmatprep.subr.mxu0 0.0
      %2078 = vmatpush1.msra.mxu0 0.0
      %2079 = vmatprep.subr.mxu0 0.0
      %2080 = vmatpush1.msra.mxu0 0.0
      %2081 = vmatprep.subr.mxu0 0.0
      %2082 = vmatpush1.msra.mxu0 0.0
      %2083 = vmatprep.subr.mxu0 0.0
      %2084 = vmatpush1.msra.mxu0 0.0
      %2085 = vmatprep.subr.mxu0 0.0
      %2086 = vmatpush1.msra.mxu0 0.0
      %2087 = vmatprep.subr.mxu0 0.0
      %2088 = vmatpush1.msra.mxu0 0.0
      %2089 = vmatprep.subr.mxu0 0.0
      %2090 = vmatpush1.msra.mxu0 0.0
      %2091 = vmatprep.subr.mxu0 0.0
      %2092 = vmatpush1.msra.mxu0 0.0
      %2093 = vmatprep.subr.mxu0 0.0
      %2094 = vmatpush1.msra.mxu0 0.0
      %2095 = vmatprep.subr.mxu0 0.0
      %2096 = vmatpush1.msra.mxu0 0.0
      %2097 = vmatprep.subr.mxu0 0.0
      %2098 = vmatpush1.msra.mxu0 0.0
      %2099 = vmatprep.subr.mxu0 0.0
      %2100 = vmatpush1.msra.mxu0 0.0
      %2101 = vmatprep.subr.mxu0 0.0
      %2102 = vmatpush1.msra.mxu0 0.0
      %2103 = vmatprep.subr.mxu0 0.0
      %2104 = vmatpush1.msra.mxu0 0.0
      %2105 = vmatprep.subr.mxu0 0.0
      %2106 = vmatpush1.msra.mxu0 0.0
      %2107 = vmatprep.subr.mxu0 0.0
      %2108 = vmatpush1.msra.mxu0 0.0
      %2109 = vmatprep.subr.mxu0 0.0
      %2110 = vmatpush1.msra.mxu0 0.0
      %2111 = vmatprep.subr.mxu0 0.0
      %2112 = vmatpush1.msra.mxu0 0.0
      %2113 = vmatprep.mubr.f32.mxu0 0.0
      %2114 = vmatmul.mubr.f32.gmra.mrb[0].mxu0 %v2044
      %v2115 = vpop.f32.mrb[0].mxu0
      %v2116 = vadd.f32 0.0, %v2115
      %v2117 = vpop.f32.mrb[0].mxu0
      %2118 = vmatprep.mubr.f32.mxu0 0.0
      %2119 = vmatmul.mubr.f32.gmra.mrb[0].mxu0 %v2047
      %v2120 = vpop.f32.mrb[0].mxu0
      %v2121 = vadd.f32 0.0, %v2120
      %v2122 = vpop.f32.mrb[0].mxu0
      %2123 = vdwg.mxu0
      %v2124 = vsel %vm1933, %v2116, 0.0
      %2125 = vadd.xlane.f32.xlu0 %v2124
      %v2126 = vpop.xlane.xlu0 %2125
      %v2127 = vsel %vm1933, %v2121, 0.0
      %2128 = vadd.xlane.f32.xlu0 %v2127
      %v2129 = vpop.xlane.xlu0 %2128
      %v2130 = vrcp.pop 4.0
      %v2131 = vmul.f32 %v2126, %v2130
      %v2132 = vmul.f32 %v2129, %v2130
      %v2133 = vsub.f32 %v2116, %v2131
      %v2134 = vsub.f32 %v2121, %v2132
      %v2135 = vmul.f32 %v2133, %v2133
      %v2136 = vmul.f32 %v2134, %v2134
      %v2137 = vsel %vm1933, %v2135, 0.0
      %2138 = vadd.xlane.f32.xlu0 %v2137
      %v2139 = vpop.xlane.xlu0 %2138
      %v2140 = vsel %vm1933, %v2136, 0.0
      %2141 = vadd.xlane.f32.xlu0 %v2140
      %v2142 = vpop.xlane.xlu0 %2141
      %v2143 = vmul.f32 %v2139, %v2130
      %v2144 = vmul.f32 %v2142, %v2130
      %v2145 = vadd.f32 %v2143, 1e-05
      %v2146 = vadd.f32 %v2144, 1e-05
      %v2147 = vrsqrt.pop %v2145
      %v2148 = vrsqrt.pop %v2146
      %v2149 = vmul.f32 %v2133, %v2147
      %v2150 = vmul.f32 %v2134, %v2148
      %v2152 = vlaneseq
      %v2153 = vshrl.u32 %v2152, 7
      %v2154 = vsub.s32 0, %v2153
      %v2155 = vrot.slane %v1831, %v2154
      %v2157 = vmul.f32 %v2149, %v2155
      %v2158 = vmul.f32 %v2150, %v2155
      %v2160 = vlaneseq
      %v2161 = vshrl.u32 %v2160, 7
      %v2162 = vsub.s32 0, %v2161
      %v2163 = vrot.slane %v1832, %v2162
      %v2165 = vadd.f32 %v2157, %v2163
      %v2166 = vadd.f32 %v2158, %v2163
      %2167 = vst.msk [vmem:[#allocation2] sm:$0xff] %vm1933, %v2165
      %2168 = vst.msk [vmem:[#allocation2 + $0x8] sm:$0xff] %vm1933, %v2166
      %2169 = vrot.lane.b32.xlu0 %v1823, 127
      %v2170 = vpop.permute.xlu0 %2169
      %2171 = vrot.lane.b32.xlu0 %v1828, 127
      %v2172 = vpop.permute.xlu0 %2171
      %2175 = vxpose.xlu0.b32.start [1/16] %v2170, 128
      %2176 = vxpose.xlu0.b32.cont [2/16] %v2172, 128
      %2177 = vxpose.xlu0.b32.cont [3/16] 0.0, 128
      %2178 = vxpose.xlu0.b32.cont [4/16] 0.0, 128
      %2179 = vxpose.xlu0.b32.cont [5/16] 0.0, 128
      %2180 = vxpose.xlu0.b32.cont [6/16] 0.0, 128
      %2181 = vxpose.xlu0.b32.cont [7/16] 0.0, 128
      %2182 = vxpose.xlu0.b32.cont [8/16] 0.0, 128
      %2183 = vxpose.xlu0.b32.cont [9/16] 0.0, 128
      %2184 = vxpose.xlu0.b32.cont [10/16] 0.0, 128
      %2185 = vxpose.xlu0.b32.cont [11/16] 0.0, 128
      %2186 = vxpose.xlu0.b32.cont [12/16] 0.0, 128
      %2187 = vxpose.xlu0.b32.cont [13/16] 0.0, 128
      %2188 = vxpose.xlu0.b32.cont [14/16] 0.0, 128
      %2189 = vxpose.xlu0.b32.cont [15/16] 0.0, 128
      %2190 = vxpose.xlu0.b32.end [16/16] 0.0, 128
      %v2191 = vpop.trf.xlu0
      %v2192 = vpop.trf.xlu0
      %v2193 = vpop.trf.xlu0
      %v2194 = vpop.trf.xlu0
      %v2195 = vpop.trf.xlu0
      %v2196 = vpop.trf.xlu0
      %v2197 = vpop.trf.xlu0
      %v2198 = vpop.trf.xlu0
      %v2199 = vpop.trf.xlu0
      %v2200 = vpop.trf.xlu0
      %v2201 = vpop.trf.xlu0
      %v2202 = vpop.trf.xlu0
      %v2203 = vpop.trf.xlu0
      %v2204 = vpop.trf.xlu0
      %v2205 = vpop.trf.xlu0
      %v2206 = vpop.trf.xlu0
      %2207 = vset.pattern.permute.xlu0 1
      %2208 = vperm.xlu0 %2207, %v1823
      %v2209 = vpop.permute.xlu0 %2208
      %2211 = vset.pattern.permute.xlu0 1
      %2212 = vperm.xlu0 %2211, %v1828
      %v2213 = vpop.permute.xlu0 %2212
      %v2215 = vlaneseq
      %v2216 = vshrl.u32 %v2215, 7
      %v2217 = vsub.s32 0, %v2216
      %v2218 = vrot.slane %v2191, %v2217
      %v2219 = vsub.f32 %v2209, %v2218
      %v2220 = vsub.f32 %v2213, %v2218
      %2223 = vrot.lane.b32.xlu0 %v1711, 127
      %v2224 = vpop.permute.xlu0 %2223
      %2225 = vrot.lane.b32.xlu0 %v1712, 127
      %v2226 = vpop.permute.xlu0 %2225
      %2229 = vxpose.xlu0.b32.start [1/16] %v2224, 128
      %2230 = vxpose.xlu0.b32.cont [2/16] %v2226, 128
      %2231 = vxpose.xlu0.b32.cont [3/16] 0.0, 128
      %2232 = vxpose.xlu0.b32.cont [4/16] 0.0, 128
      %2233 = vxpose.xlu0.b32.cont [5/16] 0.0, 128
      %2234 = vxpose.xlu0.b32.cont [6/16] 0.0, 128
      %2235 = vxpose.xlu0.b32.cont [7/16] 0.0, 128
      %2236 = vxpose.xlu0.b32.cont [8/16] 0.0, 128
      %2237 = vxpose.xlu0.b32.cont [9/16] 0.0, 128
      %2238 = vxpose.xlu0.b32.cont [10/16] 0.0, 128
      %2239 = vxpose.xlu0.b32.cont [11/16] 0.0, 128
      %2240 = vxpose.xlu0.b32.cont [12/16] 0.0, 128
      %2241 = vxpose.xlu0.b32.cont [13/16] 0.0, 128
      %2242 = vxpose.xlu0.b32.cont [14/16] 0.0, 128
      %2243 = vxpose.xlu0.b32.cont [15/16] 0.0, 128
      %2244 = vxpose.xlu0.b32.end [16/16] 0.0, 128
      %v2245 = vpop.trf.xlu0
      %v2246 = vpop.trf.xlu0
      %v2247 = vpop.trf.xlu0
      %v2248 = vpop.trf.xlu0
      %v2249 = vpop.trf.xlu0
      %v2250 = vpop.trf.xlu0
      %v2251 = vpop.trf.xlu0
      %v2252 = vpop.trf.xlu0
      %v2253 = vpop.trf.xlu0
      %v2254 = vpop.trf.xlu0
      %v2255 = vpop.trf.xlu0
      %v2256 = vpop.trf.xlu0
      %v2257 = vpop.trf.xlu0
      %v2258 = vpop.trf.xlu0
      %v2259 = vpop.trf.xlu0
      %v2260 = vpop.trf.xlu0
      %v2261 = vlaneseq
      %v2262 = vshrl.u32 %v2261, 7
      %v2263 = vsub.s32 0, %v2262
      %v2264 = vrot.slane %v2245, %v2263
      %v2265 = vadd.f32 %v2219, %v2264
      %v2266 = vadd.f32 %v2220, %v2264
      %v2267 = vsel %vm1736, %v2265, -1e+30
      %v2268 = vsel %vm1737, %v2266, -1e+30
      %v2269 = vsel %vm712, %v2267, -inf
      %2270 = vmax.xlane.f32.xlu0 %v2269
      %v2271 = vpop.xlane.xlu0 %2270
      %v2272 = vsel %vm712, %v2268, -inf
      %2273 = vmax.xlane.f32.xlu0 %v2272
      %v2274 = vpop.xlane.xlu0 %2273
      %v2275 = vsub.f32 %v2267, %v2271
      %v2276 = vsub.f32 %v2268, %v2274
      %v2277 = vmul.f32 %v2275, 1.442695
      %v2278 = vpow.pop %v2277
      %v2279 = vmul.f32 %v2276, 1.442695
      %v2280 = vpow.pop %v2279
      %2281 = vrot.lane.b32.xlu0 %v1353, 124
      %v2282 = vpop.permute.xlu0 %2281
      %2283 = vrot.lane.b32.xlu0 %v1358, 124
      %v2284 = vpop.permute.xlu0 %2283
      %2285 = vrot.lane.b32.xlu0 %v1353, 108
      %v2286 = vpop.permute.xlu0 %2285
      %2287 = vrot.lane.b32.xlu0 %v1358, 108
      %v2288 = vpop.permute.xlu0 %2287
      %v2289 = vsel %vm1933, %v2282, 0
      %v2291 = vsel %vm1933, %v2284, 0
      %v2293 = vsel %vm1933, %v2286, 0
      %v2295 = vsel %vm1933, %v2288, 0
      %2297 = vmatprep.subr.mxu0 0.0
      %2298 = vmatpush1.xpose.msra.mxu0 %v2293
      %2299 = vmatprep.subr.mxu0 0.0
      %2300 = vmatpush1.xpose.msra.mxu0 %v2295
      %2301 = vmatprep.subr.mxu0 0.0
      %2302 = vmatpush1.xpose.msra.mxu0 0.0
      %2303 = vmatprep.subr.mxu0 0.0
      %2304 = vmatpush1.xpose.msra.mxu0 0.0
      %2305 = vmatprep.subr.mxu0 0.0
      %2306 = vmatpush1.xpose.msra.mxu0 0.0
      %2307 = vmatprep.subr.mxu0 0.0
      %2308 = vmatpush1.xpose.msra.mxu0 0.0
      %2309 = vmatprep.subr.mxu0 0.0
      %2310 = vmatpush1.xpose.msra.mxu0 0.0
      %2311 = vmatprep.subr.mxu0 0.0
      %2312 = vmatpush1.xpose.msra.mxu0 0.0
      %2313 = vmatprep.subr.mxu0 0.0
      %2314 = vmatpush1.xpose.msra.mxu0 0.0
      %2315 = vmatprep.subr.mxu0 0.0
      %2316 = vmatpush1.xpose.msra.mxu0 0.0
      %2317 = vmatprep.subr.mxu0 0.0
      %2318 = vmatpush1.xpose.msra.mxu0 0.0
      %2319 = vmatprep.subr.mxu0 0.0
      %2320 = vmatpush1.xpose.msra.mxu0 0.0
      %2321 = vmatprep.subr.mxu0 0.0
      %2322 = vmatpush1.xpose.msra.mxu0 0.0
      %2323 = vmatprep.subr.mxu0 0.0
      %2324 = vmatpush1.xpose.msra.mxu0 0.0
      %2325 = vmatprep.subr.mxu0 0.0
      %2326 = vmatpush1.xpose.msra.mxu0 0.0
      %2327 = vmatprep.subr.mxu0 0.0
      %2328 = vmatpush1.xpose.msra.mxu0 0.0
      %2329 = vmatprep.subr.mxu0 0.0
      %2330 = vmatpush1.xpose.msra.mxu0 0.0
      %2331 = vmatprep.subr.mxu0 0.0
      %2332 = vmatpush1.xpose.msra.mxu0 0.0
      %2333 = vmatprep.subr.mxu0 0.0
      %2334 = vmatpush1.xpose.msra.mxu0 0.0
      %2335 = vmatprep.subr.mxu0 0.0
      %2336 = vmatpush1.xpose.msra.mxu0 0.0
      %2337 = vmatprep.subr.mxu0 0.0
      %2338 = vmatpush1.xpose.msra.mxu0 0.0
      %2339 = vmatprep.subr.mxu0 0.0
      %2340 = vmatpush1.xpose.msra.mxu0 0.0
      %2341 = vmatprep.subr.mxu0 0.0
      %2342 = vmatpush1.xpose.msra.mxu0 0.0
      %2343 = vmatprep.subr.mxu0 0.0
      %2344 = vmatpush1.xpose.msra.mxu0 0.0
      %2345 = vmatprep.subr.mxu0 0.0
      %2346 = vmatpush1.xpose.msra.mxu0 0.0
      %2347 = vmatprep.subr.mxu0 0.0
      %2348 = vmatpush1.xpose.msra.mxu0 0.0
      %2349 = vmatprep.subr.mxu0 0.0
      %2350 = vmatpush1.xpose.msra.mxu0 0.0
      %2351 = vmatprep.subr.mxu0 0.0
      %2352 = vmatpush1.xpose.msra.mxu0 0.0
      %2353 = vmatprep.subr.mxu0 0.0
      %2354 = vmatpush1.xpose.msra.mxu0 0.0
      %2355 = vmatprep.subr.mxu0 0.0
      %2356 = vmatpush1.xpose.msra.mxu0 0.0
      %2357 = vmatprep.subr.mxu0 0.0
      %2358 = vmatpush1.xpose.msra.mxu0 0.0
      %2359 = vmatprep.subr.mxu0 0.0
      %2360 = vmatpush1.xpose.msra.mxu0 0.0
      %2361 = vmatprep.mubr.f32.mxu0 0.0
      %2362 = vmatmul.mubr.f32.gmra.mrb[0].mxu0 %v2289
      %v2363 = vpop.f32.mrb[0].mxu0
      %v2364 = vadd.f32 0.0, %v2363
      %v2365 = vpop.f32.mrb[0].mxu0
      %2366 = vmatprep.mubr.f32.mxu0 0.0
      %2367 = vmatmul.mubr.f32.gmra.mrb[0].mxu0 %v2291
      %v2368 = vpop.f32.mrb[0].mxu0
      %v2369 = vadd.f32 0.0, %v2368
      %v2370 = vpop.f32.mrb[0].mxu0
      %2371 = vdwg.mxu0
      %v2372 = vmul.f32 %v2364, 0.5
      %v2373 = vmul.f32 %v2369, 0.5
      %v2374 = vmul.f32 %v2372, %v2278
      %v2375 = vmul.f32 %v2373, %v2280
      %v2376 = vsel %vm712, %v2374, 0.0
      %2377 = vadd.xlane.f32.xlu0 %v2376
      %v2378 = vpop.xlane.xlu0 %2377
      %v2379 = vsel %vm712, %v2375, 0.0
      %2380 = vadd.xlane.f32.xlu0 %v2379
      %v2381 = vpop.xlane.xlu0 %2380
      %v2382 = vand.u32 2147483647, %v2378
      %v2383 = vand.u32 2147483647, %v2381
      %v2384 = vsub.f32 0.0, %v2271
      %v2385 = vsub.f32 0.0, %v2274
      %v2386 = vmul.f32 %v2384, 1.442695
      %v2387 = vpow.pop %v2386
      %v2388 = vmul.f32 %v2385, 1.442695
      %v2389 = vpow.pop %v2388
      %v2390 = vmax.f32 %v2382, %v2387
      %v2391 = vmax.f32 %v2383, %v2389
      %v2392 = vadd.f32 %v2390, 1e-06
      %v2393 = vadd.f32 %v2391, 1e-06
      %v2394 = vrcp.pop %v2392
      %v2395 = vrcp.pop %v2393
      %v2396 = vmul.f32 %v2374, %v2394
      %v2397 = vmul.f32 %v2375, %v2395
      %2398 = vrot.lane.b32.xlu0 %v1443, 124
      %v2399 = vpop.permute.xlu0 %2398
      %2400 = vrot.lane.b32.xlu0 %v1448, 124
      %v2401 = vpop.permute.xlu0 %2400
      %v2405 = vsel %vm712, %v2396, 0
      %v2408 = vsel %vm712, %v2397, 0
      %2410 = vmatprep.subr.mxu0 0.0
      %2411 = vmatpush1.msra.mxu0 %v2399
      %2412 = vmatprep.subr.mxu0 0.0
      %2413 = vmatpush1.msra.mxu0 %v2401
      %2414 = vmatprep.subr.mxu0 0.0
      %2415 = vmatpush1.msra.mxu0 0.0
      %2416 = vmatprep.subr.mxu0 0.0
      %2417 = vmatpush1.msra.mxu0 0.0
      %2418 = vmatprep.subr.mxu0 0.0
      %2419 = vmatpush1.msra.mxu0 0.0
      %2420 = vmatprep.subr.mxu0 0.0
      %2421 = vmatpush1.msra.mxu0 0.0
      %2422 = vmatprep.subr.mxu0 0.0
      %2423 = vmatpush1.msra.mxu0 0.0
      %2424 = vmatprep.subr.mxu0 0.0
      %2425 = vmatpush1.msra.mxu0 0.0
      %2426 = vmatprep.subr.mxu0 0.0
      %2427 = vmatpush1.msra.mxu0 0.0
      %2428 = vmatprep.subr.mxu0 0.0
      %2429 = vmatpush1.msra.mxu0 0.0
      %2430 = vmatprep.subr.mxu0 0.0
      %2431 = vmatpush1.msra.mxu0 0.0
      %2432 = vmatprep.subr.mxu0 0.0
      %2433 = vmatpush1.msra.mxu0 0.0
      %2434 = vmatprep.subr.mxu0 0.0
      %2435 = vmatpush1.msra.mxu0 0.0
      %2436 = vmatprep.subr.mxu0 0.0
      %2437 = vmatpush1.msra.mxu0 0.0
      %2438 = vmatprep.subr.mxu0 0.0
      %2439 = vmatpush1.msra.mxu0 0.0
      %2440 = vmatprep.subr.mxu0 0.0
      %2441 = vmatpush1.msra.mxu0 0.0
      %2442 = vmatprep.subr.mxu0 0.0
      %2443 = vmatpush1.msra.mxu0 0.0
      %2444 = vmatprep.subr.mxu0 0.0
      %2445 = vmatpush1.msra.mxu0 0.0
      %2446 = vmatprep.subr.mxu0 0.0
      %2447 = vmatpush1.msra.mxu0 0.0
      %2448 = vmatprep.subr.mxu0 0.0
      %2449 = vmatpush1.msra.mxu0 0.0
      %2450 = vmatprep.subr.mxu0 0.0
      %2451 = vmatpush1.msra.mxu0 0.0
      %2452 = vmatprep.subr.mxu0 0.0
      %2453 = vmatpush1.msra.mxu0 0.0
      %2454 = vmatprep.subr.mxu0 0.0
      %2455 = vmatpush1.msra.mxu0 0.0
      %2456 = vmatprep.subr.mxu0 0.0
      %2457 = vmatpush1.msra.mxu0 0.0
      %2458 = vmatprep.subr.mxu0 0.0
      %2459 = vmatpush1.msra.mxu0 0.0
      %2460 = vmatprep.subr.mxu0 0.0
      %2461 = vmatpush1.msra.mxu0 0.0
      %2462 = vmatprep.subr.mxu0 0.0
      %2463 = vmatpush1.msra.mxu0 0.0
      %2464 = vmatprep.subr.mxu0 0.0
      %2465 = vmatpush1.msra.mxu0 0.0
      %2466 = vmatprep.subr.mxu0 0.0
      %2467 = vmatpush1.msra.mxu0 0.0
      %2468 = vmatprep.subr.mxu0 0.0
      %2469 = vmatpush1.msra.mxu0 0.0
      %2470 = vmatprep.subr.mxu0 0.0
      %2471 = vmatpush1.msra.mxu0 0.0
      %2472 = vmatprep.subr.mxu0 0.0
      %2473 = vmatpush1.msra.mxu0 0.0
      %2474 = vmatprep.mubr.f32.mxu0 0.0
      %2475 = vmatmul.mubr.f32.gmra.mrb[0].mxu0 %v2405
      %v2476 = vpop.f32.mrb[0].mxu0
      %v2477 = vadd.f32 0.0, %v2476
      %v2478 = vpop.f32.mrb[0].mxu0
      %2479 = vmatprep.mubr.f32.mxu0 0.0
      %2480 = vmatmul.mubr.f32.gmra.mrb[0].mxu0 %v2408
      %v2481 = vpop.f32.mrb[0].mxu0
      %v2482 = vadd.f32 0.0, %v2481
      %v2483 = vpop.f32.mrb[0].mxu0
      %2484 = vdwg.mxu0
      %v2485 = vsel %vm1933, %v2477, 0.0
      %2486 = vadd.xlane.f32.xlu0 %v2485
      %v2487 = vpop.xlane.xlu0 %2486
      %v2488 = vsel %vm1933, %v2482, 0.0
      %2489 = vadd.xlane.f32.xlu0 %v2488
      %v2490 = vpop.xlane.xlu0 %2489
      %v2491 = vmul.f32 %v2487, %v2130
      %v2492 = vmul.f32 %v2490, %v2130
      %v2493 = vsub.f32 %v2477, %v2491
      %v2494 = vsub.f32 %v2482, %v2492
      %v2495 = vmul.f32 %v2493, %v2493
      %v2496 = vmul.f32 %v2494, %v2494
      %v2497 = vsel %vm1933, %v2495, 0.0
      %2498 = vadd.xlane.f32.xlu0 %v2497
      %v2499 = vpop.xlane.xlu0 %2498
      %v2500 = vsel %vm1933, %v2496, 0.0
      %2501 = vadd.xlane.f32.xlu0 %v2500
      %v2502 = vpop.xlane.xlu0 %2501
      %v2503 = vmul.f32 %v2499, %v2130
      %v2504 = vmul.f32 %v2502, %v2130
      %v2505 = vadd.f32 %v2503, 1e-05
      %v2506 = vadd.f32 %v2504, 1e-05
      %v2507 = vrsqrt.pop %v2505
      %v2508 = vrsqrt.pop %v2506
      %v2509 = vmul.f32 %v2493, %v2507
      %v2510 = vmul.f32 %v2494, %v2508
      %2511 = vrot.lane.b32.xlu0 %v2155, 124
      %v2512 = vpop.permute.xlu0 %2511
      %v2514 = vmul.f32 %v2509, %v2512
      %v2515 = vmul.f32 %v2510, %v2512
      %2516 = vrot.lane.b32.xlu0 %v2163, 124
      %v2517 = vpop.permute.xlu0 %2516
      %v2519 = vadd.f32 %v2514, %v2517
      %v2520 = vadd.f32 %v2515, %v2517
      %2523 = vrot.lane.b32.xlu0 %v2519, 4
      %v2524 = vpop.permute.xlu0 %2523
      %2525 = vrot.lane.b32.xlu0 %v2520, 4
      %v2526 = vpop.permute.xlu0 %2525
      %vm2529 = vcmask 64544
      %2530 = vst.msk [vmem:[#allocation2] sm:$0xff] %vm2529, %v2524
      %2531 = vst.msk [vmem:[#allocation2 + $0x8] sm:$0xff] %vm2529, %v2526
      %2532 = vrot.lane.b32.xlu0 %v1823, 126
      %v2533 = vpop.permute.xlu0 %2532
      %2534 = vrot.lane.b32.xlu0 %v1828, 126
      %v2535 = vpop.permute.xlu0 %2534
      %2538 = vxpose.xlu0.b32.start [1/16] %v2533, 128
      %2539 = vxpose.xlu0.b32.cont [2/16] %v2535, 128
      %2540 = vxpose.xlu0.b32.cont [3/16] 0.0, 128
      %2541 = vxpose.xlu0.b32.cont [4/16] 0.0, 128
      %2542 = vxpose.xlu0.b32.cont [5/16] 0.0, 128
      %2543 = vxpose.xlu0.b32.cont [6/16] 0.0, 128
      %2544 = vxpose.xlu0.b32.cont [7/16] 0.0, 128
      %2545 = vxpose.xlu0.b32.cont [8/16] 0.0, 128
      %2546 = vxpose.xlu0.b32.cont [9/16] 0.0, 128
      %2547 = vxpose.xlu0.b32.cont [10/16] 0.0, 128
      %2548 = vxpose.xlu0.b32.cont [11/16] 0.0, 128
      %2549 = vxpose.xlu0.b32.cont [12/16] 0.0, 128
      %2550 = vxpose.xlu0.b32.cont [13/16] 0.0, 128
      %2551 = vxpose.xlu0.b32.cont [14/16] 0.0, 128
      %2552 = vxpose.xlu0.b32.cont [15/16] 0.0, 128
      %2553 = vxpose.xlu0.b32.end [16/16] 0.0, 128
      %v2554 = vpop.trf.xlu0
      %v2555 = vpop.trf.xlu0
      %v2556 = vpop.trf.xlu0
      %v2557 = vpop.trf.xlu0
      %v2558 = vpop.trf.xlu0
      %v2559 = vpop.trf.xlu0
      %v2560 = vpop.trf.xlu0
      %v2561 = vpop.trf.xlu0
      %v2562 = vpop.trf.xlu0
      %v2563 = vpop.trf.xlu0
      %v2564 = vpop.trf.xlu0
      %v2565 = vpop.trf.xlu0
      %v2566 = vpop.trf.xlu0
      %v2567 = vpop.trf.xlu0
      %v2568 = vpop.trf.xlu0
      %v2569 = vpop.trf.xlu0
      %2570 = vset.pattern.permute.xlu0 2
      %2571 = vperm.xlu0 %2570, %v1823
      %v2572 = vpop.permute.xlu0 %2571
      %2574 = vset.pattern.permute.xlu0 2
      %2575 = vperm.xlu0 %2574, %v1828
      %v2576 = vpop.permute.xlu0 %2575
      %v2578 = vlaneseq
      %v2579 = vshrl.u32 %v2578, 7
      %v2580 = vsub.s32 0, %v2579
      %v2581 = vrot.slane %v2554, %v2580
      %v2582 = vsub.f32 %v2572, %v2581
      %v2583 = vsub.f32 %v2576, %v2581
      %2584 = vrot.lane.b32.xlu0 %v1711, 126
      %v2585 = vpop.permute.xlu0 %2584
      %2586 = vrot.lane.b32.xlu0 %v1712, 126
      %v2587 = vpop.permute.xlu0 %2586
      %2590 = vxpose.xlu0.b32.start [1/16] %v2585, 128
      %2591 = vxpose.xlu0.b32.cont [2/16] %v2587, 128
      %2592 = vxpose.xlu0.b32.cont [3/16] 0.0, 128
      %2593 = vxpose.xlu0.b32.cont [4/16] 0.0, 128
      %2594 = vxpose.xlu0.b32.cont [5/16] 0.0, 128
      %2595 = vxpose.xlu0.b32.cont [6/16] 0.0, 128
      %2596 = vxpose.xlu0.b32.cont [7/16] 0.0, 128
      %2597 = vxpose.xlu0.b32.cont [8/16] 0.0, 128
      %2598 = vxpose.xlu0.b32.cont [9/16] 0.0, 128
      %2599 = vxpose.xlu0.b32.cont [10/16] 0.0, 128
      %2600 = vxpose.xlu0.b32.cont [11/16] 0.0, 128
      %2601 = vxpose.xlu0.b32.cont [12/16] 0.0, 128
      %2602 = vxpose.xlu0.b32.cont [13/16] 0.0, 128
      %2603 = vxpose.xlu0.b32.cont [14/16] 0.0, 128
      %2604 = vxpose.xlu0.b32.cont [15/16] 0.0, 128
      %2605 = vxpose.xlu0.b32.end [16/16] 0.0, 128
      %v2606 = vpop.trf.xlu0
      %v2607 = vpop.trf.xlu0
      %v2608 = vpop.trf.xlu0
      %v2609 = vpop.trf.xlu0
      %v2610 = vpop.trf.xlu0
      %v2611 = vpop.trf.xlu0
      %v2612 = vpop.trf.xlu0
      %v2613 = vpop.trf.xlu0
      %v2614 = vpop.trf.xlu0
      %v2615 = vpop.trf.xlu0
      %v2616 = vpop.trf.xlu0
      %v2617 = vpop.trf.xlu0
      %v2618 = vpop.trf.xlu0
      %v2619 = vpop.trf.xlu0
      %v2620 = vpop.trf.xlu0
      %v2621 = vpop.trf.xlu0
      %v2622 = vlaneseq
      %v2623 = vshrl.u32 %v2622, 7
      %v2624 = vsub.s32 0, %v2623
      %v2625 = vrot.slane %v2606, %v2624
      %v2626 = vadd.f32 %v2582, %v2625
      %v2627 = vadd.f32 %v2583, %v2625
      %v2628 = vsel %vm1736, %v2626, -1e+30
      %v2629 = vsel %vm1737, %v2627, -1e+30
      %v2630 = vsel %vm712, %v2628, -inf
      %2631 = vmax.xlane.f32.xlu0 %v2630
      %v2632 = vpop.xlane.xlu0 %2631
      %v2633 = vsel %vm712, %v2629, -inf
      %2634 = vmax.xlane.f32.xlu0 %v2633
      %v2635 = vpop.xlane.xlu0 %2634
      %v2636 = vsub.f32 %v2628, %v2632
      %v2637 = vsub.f32 %v2629, %v2635
      %v2638 = vmul.f32 %v2636, 1.442695
      %v2639 = vpow.pop %v2638
      %v2640 = vmul.f32 %v2637, 1.442695
      %v2641 = vpow.pop %v2640
      %2642 = vrot.lane.b32.xlu0 %v1353, 120
      %v2643 = vpop.permute.xlu0 %2642
      %2644 = vrot.lane.b32.xlu0 %v1358, 120
      %v2645 = vpop.permute.xlu0 %2644
      %2646 = vrot.lane.b32.xlu0 %v1353, 104
      %v2647 = vpop.permute.xlu0 %2646
      %2648 = vrot.lane.b32.xlu0 %v1358, 104
      %v2649 = vpop.permute.xlu0 %2648
      %v2650 = vsel %vm1933, %v2643, 0
      %v2652 = vsel %vm1933, %v2645, 0
      %v2654 = vsel %vm1933, %v2647, 0
      %v2656 = vsel %vm1933, %v2649, 0
      %2658 = vmatprep.subr.mxu0 0.0
      %2659 = vmatpush1.xpose.msra.mxu0 %v2654
      %2660 = vmatprep.subr.mxu0 0.0
      %2661 = vmatpush1.xpose.msra.mxu0 %v2656
      %2662 = vmatprep.subr.mxu0 0.0
      %2663 = vmatpush1.xpose.msra.mxu0 0.0
      %2664 = vmatprep.subr.mxu0 0.0
      %2665 = vmatpush1.xpose.msra.mxu0 0.0
      %2666 = vmatprep.subr.mxu0 0.0
      %2667 = vmatpush1.xpose.msra.mxu0 0.0
      %2668 = vmatprep.subr.mxu0 0.0
      %2669 = vmatpush1.xpose.msra.mxu0 0.0
      %2670 = vmatprep.subr.mxu0 0.0
      %2671 = vmatpush1.xpose.msra.mxu0 0.0
      %2672 = vmatprep.subr.mxu0 0.0
      %2673 = vmatpush1.xpose.msra.mxu0 0.0
      %2674 = vmatprep.subr.mxu0 0.0
      %2675 = vmatpush1.xpose.msra.mxu0 0.0
      %2676 = vmatprep.subr.mxu0 0.0
      %2677 = vmatpush1.xpose.msra.mxu0 0.0
      %2678 = vmatprep.subr.mxu0 0.0
      %2679 = vmatpush1.xpose.msra.mxu0 0.0
      %2680 = vmatprep.subr.mxu0 0.0
      %2681 = vmatpush1.xpose.msra.mxu0 0.0
      %2682 = vmatprep.subr.mxu0 0.0
      %2683 = vmatpush1.xpose.msra.mxu0 0.0
      %2684 = vmatprep.subr.mxu0 0.0
      %2685 = vmatpush1.xpose.msra.mxu0 0.0
      %2686 = vmatprep.subr.mxu0 0.0
      %2687 = vmatpush1.xpose.msra.mxu0 0.0
      %2688 = vmatprep.subr.mxu0 0.0
      %2689 = vmatpush1.xpose.msra.mxu0 0.0
      %2690 = vmatprep.subr.mxu0 0.0
      %2691 = vmatpush1.xpose.msra.mxu0 0.0
      %2692 = vmatprep.subr.mxu0 0.0
      %2693 = vmatpush1.xpose.msra.mxu0 0.0
      %2694 = vmatprep.subr.mxu0 0.0
      %2695 = vmatpush1.xpose.msra.mxu0 0.0
      %2696 = vmatprep.subr.mxu0 0.0
      %2697 = vmatpush1.xpose.msra.mxu0 0.0
      %2698 = vmatprep.subr.mxu0 0.0
      %2699 = vmatpush1.xpose.msra.mxu0 0.0
      %2700 = vmatprep.subr.mxu0 0.0
      %2701 = vmatpush1.xpose.msra.mxu0 0.0
      %2702 = vmatprep.subr.mxu0 0.0
      %2703 = vmatpush1.xpose.msra.mxu0 0.0
      %2704 = vmatprep.subr.mxu0 0.0
      %2705 = vmatpush1.xpose.msra.mxu0 0.0
      %2706 = vmatprep.subr.mxu0 0.0
      %2707 = vmatpush1.xpose.msra.mxu0 0.0
      %2708 = vmatprep.subr.mxu0 0.0
      %2709 = vmatpush1.xpose.msra.mxu0 0.0
      %2710 = vmatprep.subr.mxu0 0.0
      %2711 = vmatpush1.xpose.msra.mxu0 0.0
      %2712 = vmatprep.subr.mxu0 0.0
      %2713 = vmatpush1.xpose.msra.mxu0 0.0
      %2714 = vmatprep.subr.mxu0 0.0
      %2715 = vmatpush1.xpose.msra.mxu0 0.0
      %2716 = vmatprep.subr.mxu0 0.0
      %2717 = vmatpush1.xpose.msra.mxu0 0.0
      %2718 = vmatprep.subr.mxu0 0.0
      %2719 = vmatpush1.xpose.msra.mxu0 0.0
      %2720 = vmatprep.subr.mxu0 0.0
      %2721 = vmatpush1.xpose.msra.mxu0 0.0
      %2722 = vmatprep.mubr.f32.mxu0 0.0
      %2723 = vmatmul.mubr.f32.gmra.mrb[0].mxu0 %v2650
      %v2724 = vpop.f32.mrb[0].mxu0
      %v2725 = vadd.f32 0.0, %v2724
      %v2726 = vpop.f32.mrb[0].mxu0
      %2727 = vmatprep.mubr.f32.mxu0 0.0
      %2728 = vmatmul.mubr.f32.gmra.mrb[0].mxu0 %v2652
      %v2729 = vpop.f32.mrb[0].mxu0
      %v2730 = vadd.f32 0.0, %v2729
      %v2731 = vpop.f32.mrb[0].mxu0
      %2732 = vdwg.mxu0
      %v2733 = vmul.f32 %v2725, 0.5
      %v2734 = vmul.f32 %v2730, 0.5
      %v2735 = vmul.f32 %v2733, %v2639
      %v2736 = vmul.f32 %v2734, %v2641
      %v2737 = vsel %vm712, %v2735, 0.0
      %2738 = vadd.xlane.f32.xlu0 %v2737
      %v2739 = vpop.xlane.xlu0 %2738
      %v2740 = vsel %vm712, %v2736, 0.0
      %2741 = vadd.xlane.f32.xlu0 %v2740
      %v2742 = vpop.xlane.xlu0 %2741
      %v2743 = vand.u32 2147483647, %v2739
      %v2744 = vand.u32 2147483647, %v2742
      %v2745 = vsub.f32 0.0, %v2632
      %v2746 = vsub.f32 0.0, %v2635
      %v2747 = vmul.f32 %v2745, 1.442695
      %v2748 = vpow.pop %v2747
      %v2749 = vmul.f32 %v2746, 1.442695
      %v2750 = vpow.pop %v2749
      %v2751 = vmax.f32 %v2743, %v2748
      %v2752 = vmax.f32 %v2744, %v2750
      %v2753 = vadd.f32 %v2751, 1e-06
      %v2754 = vadd.f32 %v2752, 1e-06
      %v2755 = vrcp.pop %v2753
      %v2756 = vrcp.pop %v2754
      %v2757 = vmul.f32 %v2735, %v2755
      %v2758 = vmul.f32 %v2736, %v2756
      %2759 = vrot.lane.b32.xlu0 %v1443, 120
      %v2760 = vpop.permute.xlu0 %2759
      %2761 = vrot.lane.b32.xlu0 %v1448, 120
      %v2762 = vpop.permute.xlu0 %2761
      %v2766 = vsel %vm712, %v2757, 0
      %v2769 = vsel %vm712, %v2758, 0
      %2771 = vmatprep.subr.mxu0 0.0
      %2772 = vmatpush1.msra.mxu0 %v2760
      %2773 = vmatprep.subr.mxu0 0.0
      %2774 = vmatpush1.msra.mxu0 %v2762
      %2775 = vmatprep.subr.mxu0 0.0
      %2776 = vmatpush1.msra.mxu0 0.0
      %2777 = vmatprep.subr.mxu0 0.0
      %2778 = vmatpush1.msra.mxu0 0.0
      %2779 = vmatprep.subr.mxu0 0.0
      %2780 = vmatpush1.msra.mxu0 0.0
      %2781 = vmatprep.subr.mxu0 0.0
      %2782 = vmatpush1.msra.mxu0 0.0
      %2783 = vmatprep.subr.mxu0 0.0
      %2784 = vmatpush1.msra.mxu0 0.0
      %2785 = vmatprep.subr.mxu0 0.0
      %2786 = vmatpush1.msra.mxu0 0.0
      %2787 = vmatprep.subr.mxu0 0.0
      %2788 = vmatpush1.msra.mxu0 0.0
      %2789 = vmatprep.subr.mxu0 0.0
      %2790 = vmatpush1.msra.mxu0 0.0
      %2791 = vmatprep.subr.mxu0 0.0
      %2792 = vmatpush1.msra.mxu0 0.0
      %2793 = vmatprep.subr.mxu0 0.0
      %2794 = vmatpush1.msra.mxu0 0.0
      %2795 = vmatprep.subr.mxu0 0.0
      %2796 = vmatpush1.msra.mxu0 0.0
      %2797 = vmatprep.subr.mxu0 0.0
      %2798 = vmatpush1.msra.mxu0 0.0
      %2799 = vmatprep.subr.mxu0 0.0
      %2800 = vmatpush1.msra.mxu0 0.0
      %2801 = vmatprep.subr.mxu0 0.0
      %2802 = vmatpush1.msra.mxu0 0.0
      %2803 = vmatprep.subr.mxu0 0.0
      %2804 = vmatpush1.msra.mxu0 0.0
      %2805 = vmatprep.subr.mxu0 0.0
      %2806 = vmatpush1.msra.mxu0 0.0
      %2807 = vmatprep.subr.mxu0 0.0
      %2808 = vmatpush1.msra.mxu0 0.0
      %2809 = vmatprep.subr.mxu0 0.0
      %2810 = vmatpush1.msra.mxu0 0.0
      %2811 = vmatprep.subr.mxu0 0.0
      %2812 = vmatpush1.msra.mxu0 0.0
      %2813 = vmatprep.subr.mxu0 0.0
      %2814 = vmatpush1.msra.mxu0 0.0
      %2815 = vmatprep.subr.mxu0 0.0
      %2816 = vmatpush1.msra.mxu0 0.0
      %2817 = vmatprep.subr.mxu0 0.0
      %2818 = vmatpush1.msra.mxu0 0.0
      %2819 = vmatprep.subr.mxu0 0.0
      %2820 = vmatpush1.msra.mxu0 0.0
      %2821 = vmatprep.subr.mxu0 0.0
      %2822 = vmatpush1.msra.mxu0 0.0
      %2823 = vmatprep.subr.mxu0 0.0
      %2824 = vmatpush1.msra.mxu0 0.0
      %2825 = vmatprep.subr.mxu0 0.0
      %2826 = vmatpush1.msra.mxu0 0.0
      %2827 = vmatprep.subr.mxu0 0.0
      %2828 = vmatpush1.msra.mxu0 0.0
      %2829 = vmatprep.subr.mxu0 0.0
      %2830 = vmatpush1.msra.mxu0 0.0
      %2831 = vmatprep.subr.mxu0 0.0
      %2832 = vmatpush1.msra.mxu0 0.0
      %2833 = vmatprep.subr.mxu0 0.0
      %2834 = vmatpush1.msra.mxu0 0.0
      %2835 = vmatprep.mubr.f32.mxu0 0.0
      %2836 = vmatmul.mubr.f32.gmra.mrb[0].mxu0 %v2766
      %v2837 = vpop.f32.mrb[0].mxu0
      %v2838 = vadd.f32 0.0, %v2837
      %v2839 = vpop.f32.mrb[0].mxu0
      %2840 = vmatprep.mubr.f32.mxu0 0.0
      %2841 = vmatmul.mubr.f32.gmra.mrb[0].mxu0 %v2769
      %v2842 = vpop.f32.mrb[0].mxu0
      %v2843 = vadd.f32 0.0, %v2842
      %v2844 = vpop.f32.mrb[0].mxu0
      %2845 = vdwg.mxu0
      %v2846 = vsel %vm1933, %v2838, 0.0
      %2847 = vadd.xlane.f32.xlu0 %v2846
      %v2848 = vpop.xlane.xlu0 %2847
      %v2849 = vsel %vm1933, %v2843, 0.0
      %2850 = vadd.xlane.f32.xlu0 %v2849
      %v2851 = vpop.xlane.xlu0 %2850
      %v2852 = vmul.f32 %v2848, %v2130
      %v2853 = vmul.f32 %v2851, %v2130
      %v2854 = vsub.f32 %v2838, %v2852
      %v2855 = vsub.f32 %v2843, %v2853
      %v2856 = vmul.f32 %v2854, %v2854
      %v2857 = vmul.f32 %v2855, %v2855
      %v2858 = vsel %vm1933, %v2856, 0.0
      %2859 = vadd.xlane.f32.xlu0 %v2858
      %v2860 = vpop.xlane.xlu0 %2859
      %v2861 = vsel %vm1933, %v2857, 0.0
      %2862 = vadd.xlane.f32.xlu0 %v2861
      %v2863 = vpop.xlane.xlu0 %2862
      %v2864 = vmul.f32 %v2860, %v2130
      %v2865 = vmul.f32 %v2863, %v2130
      %v2866 = vadd.f32 %v2864, 1e-05
      %v2867 = vadd.f32 %v2865, 1e-05
      %v2868 = vrsqrt.pop %v2866
      %v2869 = vrsqrt.pop %v2867
      %v2870 = vmul.f32 %v2854, %v2868
      %v2871 = vmul.f32 %v2855, %v2869
      %2872 = vrot.lane.b32.xlu0 %v2155, 120
      %v2873 = vpop.permute.xlu0 %2872
      %v2875 = vmul.f32 %v2870, %v2873
      %v2876 = vmul.f32 %v2871, %v2873
      %2877 = vrot.lane.b32.xlu0 %v2163, 120
      %v2878 = vpop.permute.xlu0 %2877
      %v2880 = vadd.f32 %v2875, %v2878
      %v2881 = vadd.f32 %v2876, %v2878
      %2884 = vrot.lane.b32.xlu0 %v2880, 8
      %v2885 = vpop.permute.xlu0 %2884
      %2886 = vrot.lane.b32.xlu0 %v2881, 8
      %v2887 = vpop.permute.xlu0 %2886
      %vm2890 = vcmask 97344
      %2891 = vst.msk [vmem:[#allocation2] sm:$0xff] %vm2890, %v2885
      %2892 = vst.msk [vmem:[#allocation2 + $0x8] sm:$0xff] %vm2890, %v2887
      %2893 = vrot.lane.b32.xlu0 %v1823, 125
      %v2894 = vpop.permute.xlu0 %2893
      %2895 = vrot.lane.b32.xlu0 %v1828, 125
      %v2896 = vpop.permute.xlu0 %2895
      %2899 = vxpose.xlu0.b32.start [1/16] %v2894, 128
      %2900 = vxpose.xlu0.b32.cont [2/16] %v2896, 128
      %2901 = vxpose.xlu0.b32.cont [3/16] 0.0, 128
      %2902 = vxpose.xlu0.b32.cont [4/16] 0.0, 128
      %2903 = vxpose.xlu0.b32.cont [5/16] 0.0, 128
      %2904 = vxpose.xlu0.b32.cont [6/16] 0.0, 128
      %2905 = vxpose.xlu0.b32.cont [7/16] 0.0, 128
      %2906 = vxpose.xlu0.b32.cont [8/16] 0.0, 128
      %2907 = vxpose.xlu0.b32.cont [9/16] 0.0, 128
      %2908 = vxpose.xlu0.b32.cont [10/16] 0.0, 128
      %2909 = vxpose.xlu0.b32.cont [11/16] 0.0, 128
      %2910 = vxpose.xlu0.b32.cont [12/16] 0.0, 128
      %2911 = vxpose.xlu0.b32.cont [13/16] 0.0, 128
      %2912 = vxpose.xlu0.b32.cont [14/16] 0.0, 128
      %2913 = vxpose.xlu0.b32.cont [15/16] 0.0, 128
      %2914 = vxpose.xlu0.b32.end [16/16] 0.0, 128
      %v2915 = vpop.trf.xlu0
      %v2916 = vpop.trf.xlu0
      %v2917 = vpop.trf.xlu0
      %v2918 = vpop.trf.xlu0
      %v2919 = vpop.trf.xlu0
      %v2920 = vpop.trf.xlu0
      %v2921 = vpop.trf.xlu0
      %v2922 = vpop.trf.xlu0
      %v2923 = vpop.trf.xlu0
      %v2924 = vpop.trf.xlu0
      %v2925 = vpop.trf.xlu0
      %v2926 = vpop.trf.xlu0
      %v2927 = vpop.trf.xlu0
      %v2928 = vpop.trf.xlu0
      %v2929 = vpop.trf.xlu0
      %v2930 = vpop.trf.xlu0
      %2931 = vset.pattern.permute.xlu0 3
      %2932 = vperm.xlu0 %2931, %v1823
      %v2933 = vpop.permute.xlu0 %2932
      %2935 = vset.pattern.permute.xlu0 3
      %2936 = vperm.xlu0 %2935, %v1828
      %v2937 = vpop.permute.xlu0 %2936
      %v2939 = vlaneseq
      %v2940 = vshrl.u32 %v2939, 7
      %v2941 = vsub.s32 0, %v2940
      %v2942 = vrot.slane %v2915, %v2941
      %v2943 = vsub.f32 %v2933, %v2942
      %v2944 = vsub.f32 %v2937, %v2942
      %2945 = vrot.lane.b32.xlu0 %v1711, 125
      %v2946 = vpop.permute.xlu0 %2945
      %2947 = vrot.lane.b32.xlu0 %v1712, 125
      %v2948 = vpop.permute.xlu0 %2947
      %2951 = vxpose.xlu0.b32.start [1/16] %v2946, 128
      %2952 = vxpose.xlu0.b32.cont [2/16] %v2948, 128
      %2953 = vxpose.xlu0.b32.cont [3/16] 0.0, 128
      %2954 = vxpose.xlu0.b32.cont [4/16] 0.0, 128
      %2955 = vxpose.xlu0.b32.cont [5/16] 0.0, 128
      %2956 = vxpose.xlu0.b32.cont [6/16] 0.0, 128
      %2957 = vxpose.xlu0.b32.cont [7/16] 0.0, 128
      %2958 = vxpose.xlu0.b32.cont [8/16] 0.0, 128
      %2959 = vxpose.xlu0.b32.cont [9/16] 0.0, 128
      %2960 = vxpose.xlu0.b32.cont [10/16] 0.0, 128
      %2961 = vxpose.xlu0.b32.cont [11/16] 0.0, 128
      %2962 = vxpose.xlu0.b32.cont [12/16] 0.0, 128
      %2963 = vxpose.xlu0.b32.cont [13/16] 0.0, 128
      %2964 = vxpose.xlu0.b32.cont [14/16] 0.0, 128
      %2965 = vxpose.xlu0.b32.cont [15/16] 0.0, 128
      %2966 = vxpose.xlu0.b32.end [16/16] 0.0, 128
      %v2967 = vpop.trf.xlu0
      %v2968 = vpop.trf.xlu0
      %v2969 = vpop.trf.xlu0
      %v2970 = vpop.trf.xlu0
      %v2971 = vpop.trf.xlu0
      %v2972 = vpop.trf.xlu0
      %v2973 = vpop.trf.xlu0
      %v2974 = vpop.trf.xlu0
      %v2975 = vpop.trf.xlu0
      %v2976 = vpop.trf.xlu0
      %v2977 = vpop.trf.xlu0
      %v2978 = vpop.trf.xlu0
      %v2979 = vpop.trf.xlu0
      %v2980 = vpop.trf.xlu0
      %v2981 = vpop.trf.xlu0
      %v2982 = vpop.trf.xlu0
      %v2983 = vlaneseq
      %v2984 = vshrl.u32 %v2983, 7
      %v2985 = vsub.s32 0, %v2984
      %v2986 = vrot.slane %v2967, %v2985
      %v2987 = vadd.f32 %v2943, %v2986
      %v2988 = vadd.f32 %v2944, %v2986
      %v2989 = vsel %vm1736, %v2987, -1e+30
      %v2990 = vsel %vm1737, %v2988, -1e+30
      %v2991 = vsel %vm712, %v2989, -inf
      %2992 = vmax.xlane.f32.xlu0 %v2991
      %v2993 = vpop.xlane.xlu0 %2992
      %v2994 = vsel %vm712, %v2990, -inf
      %2995 = vmax.xlane.f32.xlu0 %v2994
      %v2996 = vpop.xlane.xlu0 %2995
      %v2997 = vsub.f32 %v2989, %v2993
      %v2998 = vsub.f32 %v2990, %v2996
      %v2999 = vmul.f32 %v2997, 1.442695
      %v3000 = vpow.pop %v2999
      %v3001 = vmul.f32 %v2998, 1.442695
      %v3002 = vpow.pop %v3001
      %3003 = vrot.lane.b32.xlu0 %v1353, 116
      %v3004 = vpop.permute.xlu0 %3003
      %3005 = vrot.lane.b32.xlu0 %v1358, 116
      %v3006 = vpop.permute.xlu0 %3005
      %3007 = vrot.lane.b32.xlu0 %v1353, 100
      %v3008 = vpop.permute.xlu0 %3007
      %3009 = vrot.lane.b32.xlu0 %v1358, 100
      %v3010 = vpop.permute.xlu0 %3009
      %v3011 = vsel %vm1933, %v3004, 0
      %v3013 = vsel %vm1933, %v3006, 0
      %v3015 = vsel %vm1933, %v3008, 0
      %v3017 = vsel %vm1933, %v3010, 0
      %3019 = vmatprep.subr.mxu0 0.0
      %3020 = vmatpush1.xpose.msra.mxu0 %v3015
      %3021 = vmatprep.subr.mxu0 0.0
      %3022 = vmatpush1.xpose.msra.mxu0 %v3017
      %3023 = vmatprep.subr.mxu0 0.0
      %3024 = vmatpush1.xpose.msra.mxu0 0.0
      %3025 = vmatprep.subr.mxu0 0.0
      %3026 = vmatpush1.xpose.msra.mxu0 0.0
      %3027 = vmatprep.subr.mxu0 0.0
      %3028 = vmatpush1.xpose.msra.mxu0 0.0
      %3029 = vmatprep.subr.mxu0 0.0
      %3030 = vmatpush1.xpose.msra.mxu0 0.0
      %3031 = vmatprep.subr.mxu0 0.0
      %3032 = vmatpush1.xpose.msra.mxu0 0.0
      %3033 = vmatprep.subr.mxu0 0.0
      %3034 = vmatpush1.xpose.msra.mxu0 0.0
      %3035 = vmatprep.subr.mxu0 0.0
      %3036 = vmatpush1.xpose.msra.mxu0 0.0
      %3037 = vmatprep.subr.mxu0 0.0
      %3038 = vmatpush1.xpose.msra.mxu0 0.0
      %3039 = vmatprep.subr.mxu0 0.0
      %3040 = vmatpush1.xpose.msra.mxu0 0.0
      %3041 = vmatprep.subr.mxu0 0.0
      %3042 = vmatpush1.xpose.msra.mxu0 0.0
      %3043 = vmatprep.subr.mxu0 0.0
      %3044 = vmatpush1.xpose.msra.mxu0 0.0
      %3045 = vmatprep.subr.mxu0 0.0
      %3046 = vmatpush1.xpose.msra.mxu0 0.0
      %3047 = vmatprep.subr.mxu0 0.0
      %3048 = vmatpush1.xpose.msra.mxu0 0.0
      %3049 = vmatprep.subr.mxu0 0.0
      %3050 = vmatpush1.xpose.msra.mxu0 0.0
      %3051 = vmatprep.subr.mxu0 0.0
      %3052 = vmatpush1.xpose.msra.mxu0 0.0
      %3053 = vmatprep.subr.mxu0 0.0
      %3054 = vmatpush1.xpose.msra.mxu0 0.0
      %3055 = vmatprep.subr.mxu0 0.0
      %3056 = vmatpush1.xpose.msra.mxu0 0.0
      %3057 = vmatprep.subr.mxu0 0.0
      %3058 = vmatpush1.xpose.msra.mxu0 0.0
      %3059 = vmatprep.subr.mxu0 0.0
      %3060 = vmatpush1.xpose.msra.mxu0 0.0
      %3061 = vmatprep.subr.mxu0 0.0
      %3062 = vmatpush1.xpose.msra.mxu0 0.0
      %3063 = vmatprep.subr.mxu0 0.0
      %3064 = vmatpush1.xpose.msra.mxu0 0.0
      %3065 = vmatprep.subr.mxu0 0.0
      %3066 = vmatpush1.xpose.msra.mxu0 0.0
      %3067 = vmatprep.subr.mxu0 0.0
      %3068 = vmatpush1.xpose.msra.mxu0 0.0
      %3069 = vmatprep.subr.mxu0 0.0
      %3070 = vmatpush1.xpose.msra.mxu0 0.0
      %3071 = vmatprep.subr.mxu0 0.0
      %3072 = vmatpush1.xpose.msra.mxu0 0.0
      %3073 = vmatprep.subr.mxu0 0.0
      %3074 = vmatpush1.xpose.msra.mxu0 0.0
      %3075 = vmatprep.subr.mxu0 0.0
      %3076 = vmatpush1.xpose.msra.mxu0 0.0
      %3077 = vmatprep.subr.mxu0 0.0
      %3078 = vmatpush1.xpose.msra.mxu0 0.0
      %3079 = vmatprep.subr.mxu0 0.0
      %3080 = vmatpush1.xpose.msra.mxu0 0.0
      %3081 = vmatprep.subr.mxu0 0.0
      %3082 = vmatpush1.xpose.msra.mxu0 0.0
      %3083 = vmatprep.mubr.f32.mxu0 0.0
      %3084 = vmatmul.mubr.f32.gmra.mrb[0].mxu0 %v3011
      %v3085 = vpop.f32.mrb[0].mxu0
      %v3086 = vadd.f32 0.0, %v3085
      %v3087 = vpop.f32.mrb[0].mxu0
      %3088 = vmatprep.mubr.f32.mxu0 0.0
      %3089 = vmatmul.mubr.f32.gmra.mrb[0].mxu0 %v3013
      %v3090 = vpop.f32.mrb[0].mxu0
      %v3091 = vadd.f32 0.0, %v3090
      %v3092 = vpop.f32.mrb[0].mxu0
      %3093 = vdwg.mxu0
      %v3094 = vmul.f32 %v3086, 0.5
      %v3095 = vmul.f32 %v3091, 0.5
      %v3096 = vmul.f32 %v3094, %v3000
      %v3097 = vmul.f32 %v3095, %v3002
      %v3098 = vsel %vm712, %v3096, 0.0
      %3099 = vadd.xlane.f32.xlu0 %v3098
      %v3100 = vpop.xlane.xlu0 %3099
      %v3101 = vsel %vm712, %v3097, 0.0
      %3102 = vadd.xlane.f32.xlu0 %v3101
      %v3103 = vpop.xlane.xlu0 %3102
      %v3104 = vand.u32 2147483647, %v3100
      %v3105 = vand.u32 2147483647, %v3103
      %v3106 = vsub.f32 0.0, %v2993
      %v3107 = vsub.f32 0.0, %v2996
      %v3108 = vmul.f32 %v3106, 1.442695
      %v3109 = vpow.pop %v3108
      %v3110 = vmul.f32 %v3107, 1.442695
      %v3111 = vpow.pop %v3110
      %v3112 = vmax.f32 %v3104, %v3109
      %v3113 = vmax.f32 %v3105, %v3111
      %v3114 = vadd.f32 %v3112, 1e-06
      %v3115 = vadd.f32 %v3113, 1e-06
      %v3116 = vrcp.pop %v3114
      %v3117 = vrcp.pop %v3115
      %v3118 = vmul.f32 %v3096, %v3116
      %v3119 = vmul.f32 %v3097, %v3117
      %3120 = vrot.lane.b32.xlu0 %v1443, 116
      %v3121 = vpop.permute.xlu0 %3120
      %3122 = vrot.lane.b32.xlu0 %v1448, 116
      %v3123 = vpop.permute.xlu0 %3122
      %v3127 = vsel %vm712, %v3118, 0
      %v3130 = vsel %vm712, %v3119, 0
      %3132 = vmatprep.subr.mxu0 0.0
      %3133 = vmatpush1.msra.mxu0 %v3121
      %3134 = vmatprep.subr.mxu0 0.0
      %3135 = vmatpush1.msra.mxu0 %v3123
      %3136 = vmatprep.subr.mxu0 0.0
      %3137 = vmatpush1.msra.mxu0 0.0
      %3138 = vmatprep.subr.mxu0 0.0
      %3139 = vmatpush1.msra.mxu0 0.0
      %3140 = vmatprep.subr.mxu0 0.0
      %3141 = vmatpush1.msra.mxu0 0.0
      %3142 = vmatprep.subr.mxu0 0.0
      %3143 = vmatpush1.msra.mxu0 0.0
      %3144 = vmatprep.subr.mxu0 0.0
      %3145 = vmatpush1.msra.mxu0 0.0
      %3146 = vmatprep.subr.mxu0 0.0
      %3147 = vmatpush1.msra.mxu0 0.0
      %3148 = vmatprep.subr.mxu0 0.0
      %3149 = vmatpush1.msra.mxu0 0.0
      %3150 = vmatprep.subr.mxu0 0.0
      %3151 = vmatpush1.msra.mxu0 0.0
      %3152 = vmatprep.subr.mxu0 0.0
      %3153 = vmatpush1.msra.mxu0 0.0
      %3154 = vmatprep.subr.mxu0 0.0
      %3155 = vmatpush1.msra.mxu0 0.0
      %3156 = vmatprep.subr.mxu0 0.0
      %3157 = vmatpush1.msra.mxu0 0.0
      %3158 = vmatprep.subr.mxu0 0.0
      %3159 = vmatpush1.msra.mxu0 0.0
      %3160 = vmatprep.subr.mxu0 0.0
      %3161 = vmatpush1.msra.mxu0 0.0
      %3162 = vmatprep.subr.mxu0 0.0
      %3163 = vmatpush1.msra.mxu0 0.0
      %3164 = vmatprep.subr.mxu0 0.0
      %3165 = vmatpush1.msra.mxu0 0.0
      %3166 = vmatprep.subr.mxu0 0.0
      %3167 = vmatpush1.msra.mxu0 0.0
      %3168 = vmatprep.subr.mxu0 0.0
      %3169 = vmatpush1.msra.mxu0 0.0
      %3170 = vmatprep.subr.mxu0 0.0
      %3171 = vmatpush1.msra.mxu0 0.0
      %3172 = vmatprep.subr.mxu0 0.0
      %3173 = vmatpush1.msra.mxu0 0.0
      %3174 = vmatprep.subr.mxu0 0.0
      %3175 = vmatpush1.msra.mxu0 0.0
      %3176 = vmatprep.subr.mxu0 0.0
      %3177 = vmatpush1.msra.mxu0 0.0
      %3178 = vmatprep.subr.mxu0 0.0
      %3179 = vmatpush1.msra.mxu0 0.0
      %3180 = vmatprep.subr.mxu0 0.0
      %3181 = vmatpush1.msra.mxu0 0.0
      %3182 = vmatprep.subr.mxu0 0.0
      %3183 = vmatpush1.msra.mxu0 0.0
      %3184 = vmatprep.subr.mxu0 0.0
      %3185 = vmatpush1.msra.mxu0 0.0
      %3186 = vmatprep.subr.mxu0 0.0
      %3187 = vmatpush1.msra.mxu0 0.0
      %3188 = vmatprep.subr.mxu0 0.0
      %3189 = vmatpush1.msra.mxu0 0.0
      %3190 = vmatprep.subr.mxu0 0.0
      %3191 = vmatpush1.msra.mxu0 0.0
      %3192 = vmatprep.subr.mxu0 0.0
      %3193 = vmatpush1.msra.mxu0 0.0
      %3194 = vmatprep.subr.mxu0 0.0
      %3195 = vmatpush1.msra.mxu0 0.0
      %3196 = vmatprep.mubr.f32.mxu0 0.0
      %3197 = vmatmul.mubr.f32.gmra.mrb[0].mxu0 %v3127
      %v3198 = vpop.f32.mrb[0].mxu0
      %v3199 = vadd.f32 0.0, %v3198
      %v3200 = vpop.f32.mrb[0].mxu0
      %3201 = vmatprep.mubr.f32.mxu0 0.0
      %3202 = vmatmul.mubr.f32.gmra.mrb[0].mxu0 %v3130
      %v3203 = vpop.f32.mrb[0].mxu0
      %v3204 = vadd.f32 0.0, %v3203
      %v3205 = vpop.f32.mrb[0].mxu0
      %3206 = vdwg.mxu0
      %v3207 = vsel %vm1933, %v3199, 0.0
      %3208 = vadd.xlane.f32.xlu0 %v3207
      %v3209 = vpop.xlane.xlu0 %3208
      %v3210 = vsel %vm1933, %v3204, 0.0
      %3211 = vadd.xlane.f32.xlu0 %v3210
      %v3212 = vpop.xlane.xlu0 %3211
      %v3213 = vmul.f32 %v3209, %v2130
      %v3214 = vmul.f32 %v3212, %v2130
      %v3215 = vsub.f32 %v3199, %v3213
      %v3216 = vsub.f32 %v3204, %v3214
      %v3217 = vmul.f32 %v3215, %v3215
      %v3218 = vmul.f32 %v3216, %v3216
      %v3219 = vsel %vm1933, %v3217, 0.0
      %3220 = vadd.xlane.f32.xlu0 %v3219
      %v3221 = vpop.xlane.xlu0 %3220
      %v3222 = vsel %vm1933, %v3218, 0.0
      %3223 = vadd.xlane.f32.xlu0 %v3222
      %v3224 = vpop.xlane.xlu0 %3223
      %v3225 = vmul.f32 %v3221, %v2130
      %v3226 = vmul.f32 %v3224, %v2130
      %v3227 = vadd.f32 %v3225, 1e-05
      %v3228 = vadd.f32 %v3226, 1e-05
      %v3229 = vrsqrt.pop %v3227
      %v3230 = vrsqrt.pop %v3228
      %v3231 = vmul.f32 %v3215, %v3229
      %v3232 = vmul.f32 %v3216, %v3230
      %3233 = vrot.lane.b32.xlu0 %v2155, 116
      %v3234 = vpop.permute.xlu0 %3233
      %v3236 = vmul.f32 %v3231, %v3234
      %v3237 = vmul.f32 %v3232, %v3234
      %3238 = vrot.lane.b32.xlu0 %v2163, 116
      %v3239 = vpop.permute.xlu0 %3238
      %v3241 = vadd.f32 %v3236, %v3239
      %v3242 = vadd.f32 %v3237, %v3239
      %3245 = vrot.lane.b32.xlu0 %v3241, 12
      %v3246 = vpop.permute.xlu0 %3245
      %3247 = vrot.lane.b32.xlu0 %v3242, 12
      %v3248 = vpop.permute.xlu0 %3247
      %vm3251 = vcmask 130144
      %3252 = vst.msk [vmem:[#allocation2] sm:$0xff] %vm3251, %v3246
      %3253 = vst.msk [vmem:[#allocation2 + $0x8] sm:$0xff] %vm3251, %v3248
      %v3254 = vld [vmem:[#allocation2] sm:$0xff]
      %v3255 = vld [vmem:[#allocation2 + $0x8] sm:$0xff]
      %v3256 = vld [vmem:[%s17] sm:$0x1]
      %v3258 = vlaneseq
      %v3259 = vshrl.u32 %v3258, 7
      %v3260 = vsub.s32 0, %v3259
      %v3261 = vrot.slane %v3256, %v3260
      %v3263 = vmul.f32 %v3261, %v1269
      %v3264 = vmul.f32 %v3261, %v1270
      %v3265 = vadd.f32 %v3254, %v3263
      %v3266 = vadd.f32 %v3255, %v3264
      %v3267 = vsub.f32 0.0, %v875
      %v3268 = vsub.f32 0.0, %v880
      %v3269 = vmul.f32 %v3267, 1.442695
      %v3270 = vpow.pop %v3269
      %v3271 = vmul.f32 %v3268, 1.442695
      %v3272 = vpow.pop %v3271
      %v3273 = vadd.f32 %v3270, 1.0
      %v3274 = vadd.f32 %v3272, 1.0
      %v3275 = vrcp.pop %v3273
      %v3276 = vrcp.pop %v3274
      %v3277 = vmul.f32 %v875, %v3275
      %v3278 = vmul.f32 %v880, %v3276
      %3281 = vrot.lane.b32.xlu0 %v3277, 112
      %v3282 = vpop.permute.xlu0 %3281
      %3283 = vrot.lane.b32.xlu0 %v3278, 112
      %v3284 = vpop.permute.xlu0 %3283
      %v3287 = vmul.f32 %v3265, %v3282
      %v3288 = vmul.f32 %v3266, %v3284
      %v3289 = vld [vmem:[%s18] sm:$0xff]
      %v3290 = vld [vmem:[%s18 + $0x8] sm:$0xff]
      %v3291 = vld [vmem:[%s19] sm:$0x1]
      %v3293 = vlaneseq
      %v3294 = vshrl.u32 %v3293, 7
      %v3295 = vsub.s32 0, %v3294
      %v3296 = vrot.slane %v3291, %v3295
      %v3299 = vsel %vm712, %v3287, 0
      %v3302 = vsel %vm712, %v3288, 0
      %3304 = vmatprep.subr.mxu0 0.0
      %3305 = vmatpush1.msra.mxu0 %v3289
      %3306 = vmatprep.subr.mxu0 0.0
      %3307 = vmatpush1.msra.mxu0 %v3290
      %3308 = vmatprep.subr.mxu0 0.0
      %3309 = vmatpush1.msra.mxu0 0.0
      %3310 = vmatprep.subr.mxu0 0.0
      %3311 = vmatpush1.msra.mxu0 0.0
      %3312 = vmatprep.subr.mxu0 0.0
      %3313 = vmatpush1.msra.mxu0 0.0
      %3314 = vmatprep.subr.mxu0 0.0
      %3315 = vmatpush1.msra.mxu0 0.0
      %3316 = vmatprep.subr.mxu0 0.0
      %3317 = vmatpush1.msra.mxu0 0.0
      %3318 = vmatprep.subr.mxu0 0.0
      %3319 = vmatpush1.msra.mxu0 0.0
      %3320 = vmatprep.subr.mxu0 0.0
      %3321 = vmatpush1.msra.mxu0 0.0
      %3322 = vmatprep.subr.mxu0 0.0
      %3323 = vmatpush1.msra.mxu0 0.0
      %3324 = vmatprep.subr.mxu0 0.0
      %3325 = vmatpush1.msra.mxu0 0.0
      %3326 = vmatprep.subr.mxu0 0.0
      %3327 = vmatpush1.msra.mxu0 0.0
      %3328 = vmatprep.subr.mxu0 0.0
      %3329 = vmatpush1.msra.mxu0 0.0
      %3330 = vmatprep.subr.mxu0 0.0
      %3331 = vmatpush1.msra.mxu0 0.0
      %3332 = vmatprep.subr.mxu0 0.0
      %3333 = vmatpush1.msra.mxu0 0.0
      %3334 = vmatprep.subr.mxu0 0.0
      %3335 = vmatpush1.msra.mxu0 0.0
      %3336 = vmatprep.subr.mxu0 0.0
      %3337 = vmatpush1.msra.mxu0 0.0
      %3338 = vmatprep.subr.mxu0 0.0
      %3339 = vmatpush1.msra.mxu0 0.0
      %3340 = vmatprep.subr.mxu0 0.0
      %3341 = vmatpush1.msra.mxu0 0.0
      %3342 = vmatprep.subr.mxu0 0.0
      %3343 = vmatpush1.msra.mxu0 0.0
      %3344 = vmatprep.subr.mxu0 0.0
      %3345 = vmatpush1.msra.mxu0 0.0
      %3346 = vmatprep.subr.mxu0 0.0
      %3347 = vmatpush1.msra.mxu0 0.0
      %3348 = vmatprep.subr.mxu0 0.0
      %3349 = vmatpush1.msra.mxu0 0.0
      %3350 = vmatprep.subr.mxu0 0.0
      %3351 = vmatpush1.msra.mxu0 0.0
      %3352 = vmatprep.subr.mxu0 0.0
      %3353 = vmatpush1.msra.mxu0 0.0
      %3354 = vmatprep.subr.mxu0 0.0
      %3355 = vmatpush1.msra.mxu0 0.0
      %3356 = vmatprep.subr.mxu0 0.0
      %3357 = vmatpush1.msra.mxu0 0.0
      %3358 = vmatprep.subr.mxu0 0.0
      %3359 = vmatpush1.msra.mxu0 0.0
      %3360 = vmatprep.subr.mxu0 0.0
      %3361 = vmatpush1.msra.mxu0 0.0
      %3362 = vmatprep.subr.mxu0 0.0
      %3363 = vmatpush1.msra.mxu0 0.0
      %3364 = vmatprep.subr.mxu0 0.0
      %3365 = vmatpush1.msra.mxu0 0.0
      %3366 = vmatprep.subr.mxu0 0.0
      %3367 = vmatpush1.msra.mxu0 0.0
      %3368 = vmatprep.mubr.f32.mxu0 0.0
      %3369 = vmatmul.mubr.f32.gmra.mrb[0].mxu0 %v3299
      %v3370 = vpop.f32.mrb[0].mxu0
      %v3371 = vadd.f32 %v3296, %v3370
      %v3372 = vpop.f32.mrb[0].mxu0
      %3373 = vmatprep.mubr.f32.mxu0 0.0
      %3374 = vmatmul.mubr.f32.gmra.mrb[0].mxu0 %v3302
      %v3375 = vpop.f32.mrb[0].mxu0
      %v3376 = vadd.f32 %v3296, %v3375
      %v3377 = vpop.f32.mrb[0].mxu0
      %3378 = vdwg.mxu0
      %3379 = vmatprep.subr.mxu0 0.0
      %3380 = vmatpush1.msra.mxu0 %v3371
      %3381 = vmatprep.subr.mxu0 0.0
      %3382 = vmatpush1.msra.mxu0 %v3376
      %3383 = vmatprep.subr.mxu0 0.0
      %3384 = vmatpush1.msra.mxu0 0.0
      %3385 = vmatprep.subr.mxu0 0.0
      %3386 = vmatpush1.msra.mxu0 0.0
      %3387 = vmatprep.subr.mxu0 0.0
      %3388 = vmatpush1.msra.mxu0 0.0
      %3389 = vmatprep.subr.mxu0 0.0
      %3390 = vmatpush1.msra.mxu0 0.0
      %3391 = vmatprep.subr.mxu0 0.0
      %3392 = vmatpush1.msra.mxu0 0.0
      %3393 = vmatprep.subr.mxu0 0.0
      %3394 = vmatpush1.msra.mxu0 0.0
      %3395 = vmatprep.subr.mxu0 0.0
      %3396 = vmatpush1.msra.mxu0 0.0
      %3397 = vmatprep.subr.mxu0 0.0
      %3398 = vmatpush1.msra.mxu0 0.0
      %3399 = vmatprep.subr.mxu0 0.0
      %3400 = vmatpush1.msra.mxu0 0.0
      %3401 = vmatprep.subr.mxu0 0.0
      %3402 = vmatpush1.msra.mxu0 0.0
      %3403 = vmatprep.subr.mxu0 0.0
      %3404 = vmatpush1.msra.mxu0 0.0
      %3405 = vmatprep.subr.mxu0 0.0
      %3406 = vmatpush1.msra.mxu0 0.0
      %3407 = vmatprep.subr.mxu0 0.0
      %3408 = vmatpush1.msra.mxu0 0.0
      %3409 = vmatprep.subr.mxu0 0.0
      %3410 = vmatpush1.msra.mxu0 0.0
      %3411 = vmatprep.subr.mxu0 0.0
      %3412 = vmatpush1.msra.mxu0 0.0
      %3413 = vmatprep.subr.mxu0 0.0
      %3414 = vmatpush1.msra.mxu0 0.0
      %3415 = vmatprep.subr.mxu0 0.0
      %3416 = vmatpush1.msra.mxu0 0.0
      %3417 = vmatprep.subr.mxu0 0.0
      %3418 = vmatpush1.msra.mxu0 0.0
      %3419 = vmatprep.subr.mxu0 0.0
      %3420 = vmatpush1.msra.mxu0 0.0
      %3421 = vmatprep.subr.mxu0 0.0
      %3422 = vmatpush1.msra.mxu0 0.0
      %3423 = vmatprep.subr.mxu0 0.0
      %3424 = vmatpush1.msra.mxu0 0.0
      %3425 = vmatprep.subr.mxu0 0.0
      %3426 = vmatpush1.msra.mxu0 0.0
      %3427 = vmatprep.subr.mxu0 0.0
      %3428 = vmatpush1.msra.mxu0 0.0
      %3429 = vmatprep.subr.mxu0 0.0
      %3430 = vmatpush1.msra.mxu0 0.0
      %3431 = vmatprep.subr.mxu0 0.0
      %3432 = vmatpush1.msra.mxu0 0.0
      %3433 = vmatprep.subr.mxu0 0.0
      %3434 = vmatpush1.msra.mxu0 0.0
      %3435 = vmatprep.subr.mxu0 0.0
      %3436 = vmatpush1.msra.mxu0 0.0
      %3437 = vmatprep.subr.mxu0 0.0
      %3438 = vmatpush1.msra.mxu0 0.0
      %3439 = vmatprep.subr.mxu0 0.0
      %3440 = vmatpush1.msra.mxu0 0.0
      %3441 = vmatprep.subr.mxu0 0.0
      %3442 = vmatpush1.msra.mxu0 0.0
      %3443 = vmatprep.mubr.f32.mxu0 0.0
      %3444 = vmatmul.mubr.f32.gmra.mrb[0].mxu0 %v714
      %v3445 = vpop.f32.mrb[0].mxu0
      %v3446 = vadd.f32 0.0, %v3445
      %v3447 = vpop.f32.mrb[0].mxu0
      %3448 = vmatprep.mubr.f32.mxu0 0.0
      %3449 = vmatmul.mubr.f32.gmra.mrb[0].mxu0 %v717
      %v3450 = vpop.f32.mrb[0].mxu0
      %v3451 = vadd.f32 0.0, %v3450
      %v3452 = vpop.f32.mrb[0].mxu0
      %3453 = vdwg.mxu0
      %v3454 = vadd.f32 %v662, %v3446
      %v3455 = vadd.f32 %v663, %v3451
      %p3456 = scmp.eq.s32.totalorder %s36, 0
      // Predicated region
      $region101: #{xlstm_axial_forward.4} parent=99 // pred_check
        %p3457 = pneg %p3456
      $region102: #{xlstm_axial_forward.4} parent=99 // pred_check_branch
        %3459 = sbr.rel (%p3457) target = $region104
      $region103: #{xlstm_axial_forward.4} parent=99 // pred_region
        %3460 = vst.msk [vmem:[%s661] sm:$0xff] %vm664, 0.0
        %3461 = vst.msk [vmem:[%s661 + $0x8] sm:$0xff] %vm664, 0.0
      $region104: #{xlstm_axial_forward.4} parent=99 // pred_fallthru
        _
      %v3462 = vld [vmem:[%s661] sm:$0xff]
      %v3463 = vld [vmem:[%s661 + $0x8] sm:$0xff]
      %v3464 = vadd.f32 %v3462, %v3454
      %v3465 = vadd.f32 %v3463, %v3455
      %3466 = vst.msk [vmem:[%s661] sm:$0xff] %vm664, %v3464
      %3467 = vst.msk [vmem:[%s661 + $0x8] sm:$0xff] %vm664, %v3465
      %p3468 = scmp.lt.s32.totalorder %s35, 1
      %s3469 = scalar_select %p3468, %s35, 1
      %s3470 = smul.addr %s3469, 2
      %s3471 = smul.addr %s3470, 8
      %s3472 = scalar_lea.vmem %s20, %s3471
      // Predicated region
      $region105: #{xlstm_axial_forward.4} parent=99 // pred_check
        %p3473 = pneg %p491
      $region106: #{xlstm_axial_forward.4} parent=99 // pred_check_branch
        %3475 = sbr.rel (%p3473) target = $region108
      $region107: #{xlstm_axial_forward.4} parent=99 // pred_region
        _
      $region108: #{xlstm_axial_forward.4} parent=99 // pred_fallthru
        _
    $region100: #{xlstm_axial_forward.4} parent=5 // pred_fallthru
      _
    %p3476 = scmp.le.s32.totalorder 2, %s26
    // Predicated region
    $region109: #{xlstm_axial_forward.4} parent=5 // pred_check
      %p3477 = pneg %p3476
    $region110: #{xlstm_axial_forward.4} parent=5 // pred_check_branch
      %3479 = sbr.rel (%p3477) target = $region112
    $region111: #{xlstm_axial_forward.4} parent=5 // pred_region
      %s3480 = ssub.s32 %s26, 2
      // Predicated region
      $region113: #{xlstm_axial_forward.4} parent=111 // pred_check
        %p3481 = pneg %p497
      $region114: #{xlstm_axial_forward.4} parent=111 // pred_check_branch
        %3483 = sbr.rel (%p3481) target = $region116
      $region115: #{xlstm_axial_forward.4} parent=111 // pred_region
        %p3484 = scmp.lt.s32.totalorder %s37, 1
        %s3485 = scalar_select %p3484, %s37, 1
        %s3486 = smul.addr %s3485, 2
        %s3487 = smul.addr %s3486, 8
        %s3488 = scalar_lea.vmem %s20, %s3487
      $region116: #{xlstm_axial_forward.4} parent=111 // pred_fallthru
        _
    $region112: #{xlstm_axial_forward.4} parent=5 // pred_fallthru
      _
  $region6: #{xlstm_axial_forward.4} parent=0 // loop_footer
    %s30 = sadd.s32 1, %s26
  $region7: #{xlstm_axial_forward.4} parent=0 // loop_footer_branch
    %25 = sbr.rel target = $region3
  $region8: #{xlstm_axial_forward.4} parent=0 // loop_exit
    _

// kernel: xlstm_axial_forward.7
$region0: #{xlstm_axial_forward.7}
  #allocation0 [shape = 'u32[]', space=smem, size = 0x4, offset = 0x4, fixed_abs, tag = 'smem constant byte address 0x4 - core index']
  #allocation1 [shape = 'u32[144,128]{1,0:T(1,128)}', space=vmem, size = 0x12000, scoped, tag = 'internal scratch']
  %s0 = inlined_call_operand.vmem [shape: f32[2,144,256], index: 0, kind: input, shape index: {}]
  %s1 = inlined_call_operand.vmem [shape: f32[8,144], index: 1, kind: input, shape index: {}]
  %s2 = inlined_call_operand.vmem [shape: f32[8,1], index: 2, kind: input, shape index: {}]
  %s3 = inlined_call_operand.vmem [shape: f32[2,8,256], index: 3, kind: output, shape index: {}]
  %s4 = sld [smem:[#allocation0]]
  $region45: #{xlstm_axial_forward.7} parent=0
    _
  %s6 = ssub.s32 1, %s4
  %s7 = scalar_select 0, %s6, %s4
  loop: start=0, step=1, limit=4
  $region2: #{xlstm_axial_forward.7} parent=0 // loop_pre_header
    _
  $region3: #{xlstm_axial_forward.7} parent=0 // loop_header
    %s9 = sphi 0, %s13
    %p10 = scmp.ge.s32.totalorder %s9, 4
    %s19 = sphi 0, %s21
    %s22 = sphi 0, %s19
    %s23 = sphi 0, %s22
    %s39 = sphi 0, %s23
    %s43 = sphi 0, %s43
    %s45 = sphi 0, %s43
    %s46 = sphi 0, %s45
    %s60 = sphi 0, %s46
    %s64 = sphi 0, %s64
    %s66 = sphi 0, %s64
    %s67 = sphi 0, %s66
    %s81 = sphi 0, %s67
    %s87 = sphi 0, %s89
    %s90 = sphi 0, %s87
    %s91 = sphi 0, %s90
    %s107 = sphi 0, %s91
  $region4: #{xlstm_axial_forward.7} parent=0 // loop_header_branch
    %12 = sbr.rel (%p10) target = $region8
  $region5: #{xlstm_axial_forward.7} parent=0 // loop_body
    %s14 = ssub.s32 %s9, 1
    %s15 = ssub.s32 %s9, 2
    %s16 = sadd.s32 %s9, 1
    %s17 = ssub.s32 %s9, %s16
    %p18 = scmp.eq.s32.totalorder %s17, 0
    %s20 = sadd.s32 %s19, 1
    %s21 = scalar_select %p18, %s19, %s20
    %p24 = pneg %p18
    %p25 = scmp.eq.s32.totalorder %s9, 1
    %p26 = por %p24, %p25
    %p27 = scmp.ne.s32.totalorder %s19, %s22
    %p28 = scmp.eq.s32.totalorder %s9, 0
    %p29 = por %p27, %p28
    %p30 = scmp.ne.s32.totalorder %s19, %s22
    %p31 = scmp.eq.s32.totalorder %s14, 1
    %p32 = por %p30, %p31
    %p33 = scmp.ne.s32.totalorder %s22, %s23
    %p34 = scmp.eq.s32.totalorder %s14, 0
    %p35 = por %p33, %p34
    %p36 = scmp.ne.s32.totalorder %s22, %s23
    %p37 = scmp.eq.s32.totalorder %s15, 1
    %p38 = por %p36, %p37
    %p40 = scmp.ne.s32.totalorder %s23, %s39
    %p41 = scmp.eq.s32.totalorder %s15, 0
    %p42 = por %p40, %p41
    %s44 = sadd.s32 %s43, 1
    %p47 = scmp.eq.s32.totalorder %s9, 1
    %p48 = scmp.ne.s32.totalorder %s43, %s45
    %p49 = scmp.eq.s32.totalorder %s9, 0
    %p50 = por %p48, %p49
    %p51 = scmp.ne.s32.totalorder %s43, %s45
    %p52 = scmp.eq.s32.totalorder %s14, 1
    %p53 = por %p51, %p52
    %p54 = scmp.ne.s32.totalorder %s45, %s46
    %p55 = scmp.eq.s32.totalorder %s14, 0
    %p56 = por %p54, %p55
    %p57 = scmp.ne.s32.totalorder %s45, %s46
    %p58 = scmp.eq.s32.totalorder %s15, 1
    %p59 = por %p57, %p58
    %p61 = scmp.ne.s32.totalorder %s46, %s60
    %p62 = scmp.eq.s32.totalorder %s15, 0
    %p63 = por %p61, %p62
    %s65 = sadd.s32 %s64, 1
    %p68 = scmp.eq.s32.totalorder %s9, 1
    %p69 = scmp.ne.s32.totalorder %s64, %s66
    %p70 = scmp.eq.s32.totalorder %s9, 0
    %p71 = por %p69, %p70
    %p72 = scmp.ne.s32.totalorder %s64, %s66
    %p73 = scmp.eq.s32.totalorder %s14, 1
    %p74 = por %p72, %p73
    %p75 = scmp.ne.s32.totalorder %s66, %s67
    %p76 = scmp.eq.s32.totalorder %s14, 0
    %p77 = por %p75, %p76
    %p78 = scmp.ne.s32.totalorder %s66, %s67
    %p79 = scmp.eq.s32.totalorder %s15, 1
    %p80 = por %p78, %p79
    %p82 = scmp.ne.s32.totalorder %s67, %s81
    %p83 = scmp.eq.s32.totalorder %s15, 0
    %p84 = por %p82, %p83
    %s85 = ssub.s32 %s9, %s16
    %p86 = scmp.eq.s32.totalorder %s85, 0
    %s88 = sadd.s32 %s87, 1
    %s89 = scalar_select %p86, %s87, %s88
    %p92 = pneg %p86
    %p93 = scmp.eq.s32.totalorder %s9, 1
    %p94 = por %p92, %p93
    %p95 = scmp.ne.s32.totalorder %s87, %s90
    %p96 = scmp.eq.s32.totalorder %s9, 0
    %p97 = por %p95, %p96
    %p98 = scmp.ne.s32.totalorder %s87, %s90
    %p99 = scmp.eq.s32.totalorder %s14, 1
    %p100 = por %p98, %p99
    %p101 = scmp.ne.s32.totalorder %s90, %s91
    %p102 = scmp.eq.s32.totalorder %s14, 0
    %p103 = por %p101, %p102
    %p104 = scmp.ne.s32.totalorder %s90, %s91
    %p105 = scmp.eq.s32.totalorder %s15, 1
    %p106 = por %p104, %p105
    %p108 = scmp.ne.s32.totalorder %s91, %s107
    %p109 = scmp.eq.s32.totalorder %s15, 0
    %p110 = por %p108, %p109
    %p111 = scmp.le.s32.totalorder 1, %s9
    %p112 = scmp.lt.s32.totalorder %s9, 3
    %p113 = pnand %p111, %p112
    %p114 = pneg %p113
    // Predicated region
    $region9: #{xlstm_axial_forward.7} parent=5 // pred_check
      _
    $region10: #{xlstm_axial_forward.7} parent=5 // pred_check_branch
      %116 = sbr.rel (%p113) target = $region12
    $region11: #{xlstm_axial_forward.7} parent=5 // pred_region
      %s117 = ssub.s32 %s9, 1
      // Predicated region
      $region13: #{xlstm_axial_forward.7} parent=11 // pred_check
        %p118 = pneg %p56
      $region14: #{xlstm_axial_forward.7} parent=11 // pred_check_branch
        %120 = sbr.rel (%p118) target = $region16
      $region15: #{xlstm_axial_forward.7} parent=11 // pred_region
        _
      $region16: #{xlstm_axial_forward.7} parent=11 // pred_fallthru
        _
      // Predicated region
      $region17: #{xlstm_axial_forward.7} parent=11 // pred_check
        %p121 = pneg %p77
      $region18: #{xlstm_axial_forward.7} parent=11 // pred_check_branch
        %123 = sbr.rel (%p121) target = $region20
      $region19: #{xlstm_axial_forward.7} parent=11 // pred_region
        _
      $region20: #{xlstm_axial_forward.7} parent=11 // pred_fallthru
        _
    $region12: #{xlstm_axial_forward.7} parent=5 // pred_fallthru
      _
    %p124 = scmp.lt.s32.totalorder %s9, 2
    // Predicated region
    $region21: #{xlstm_axial_forward.7} parent=5 // pred_check
      %p125 = pneg %p124
    $region22: #{xlstm_axial_forward.7} parent=5 // pred_check_branch
      %127 = sbr.rel (%p125) target = $region24
    $region23: #{xlstm_axial_forward.7} parent=5 // pred_region
      // Predicated region
      $region25: #{xlstm_axial_forward.7} parent=23 // pred_check
        %p128 = pneg %p29
      $region26: #{xlstm_axial_forward.7} parent=23 // pred_check_branch
        %130 = sbr.rel (%p128) target = $region28
      $region27: #{xlstm_axial_forward.7} parent=23 // pred_region
        %p131 = scmp.lt.s32.totalorder %s9, 1
        %s132 = scalar_select %p131, %s9, 1
        %s133 = smul.addr %s132, 36
        %s134 = smul.addr %s133, 8
        %s135 = scalar_lea.vmem %s0, %s134
      $region28: #{xlstm_axial_forward.7} parent=23 // pred_fallthru
        _
    $region24: #{xlstm_axial_forward.7} parent=5 // pred_fallthru
      _
    %p136 = scmp.le.s32.totalorder 1, %s9
    %p137 = scmp.lt.s32.totalorder %s9, 3
    %p138 = pnand %p136, %p137
    %p139 = pneg %p138
    // Predicated region
    $region29: #{xlstm_axial_forward.7} parent=5 // pred_check
      _
    $region30: #{xlstm_axial_forward.7} parent=5 // pred_check_branch
      %141 = sbr.rel (%p138) target = $region32
    $region31: #{xlstm_axial_forward.7} parent=5 // pred_region
      %s142 = ssub.s32 %s9, 1
      %p143 = scmp.lt.s32.totalorder %s14, 1
      %s144 = scalar_select %p143, %s14, 1
      %s145 = smul.addr %s144, 36
      %s146 = smul.addr %s145, 8
      %s147 = scalar_lea.vmem %s0, %s146
      %p148 = pneg %p35
      %p149 = pneg %p32
      %p150 = pneg %p56
      %p151 = pneg %p53
      %p152 = pneg %p77
      %p153 = pneg %p74
      %p154 = pneg %p103
      %p155 = pneg %p100
      %p156 = scmp.lt.s32.totalorder %s14, 1
      %s157 = scalar_select %p156, %s14, 1
      %s158 = smul.addr %s157, 2
      %s159 = smul.addr %s158, 8
      %s160 = scalar_lea.vmem %s3, %s159
      %p161 = scmp.lt.s32.totalorder %s14, 1
      %s162 = scalar_select %p161, %s14, 1
      %s163 = smul.addr %s162, 36
      %s164 = smul.addr %s163, 8
      %s165 = scalar_lea.vmem %s0, %s164
      %p166 = scmp.lt.s32.totalorder %s14, 1
      %s167 = scalar_select %p166, %s14, 1
      %s168 = smul.addr %s167, 2
      %s169 = smul.addr %s168, 8
      %s170 = scalar_lea.vmem %s3, %s169
      %v171 = vld [vmem:[%s1] sm:$0xff]
      %v172 = vld [vmem:[%s1 + $0x8] sm:$0xff]
      %v173 = vld [vmem:[%s165] sm:$0xff]
      %v174 = vld [vmem:[%s165 + $0x8] sm:$0xff]
      %v175 = vld [vmem:[%s165 + $0x10] sm:$0xff]
      %v176 = vld [vmem:[%s165 + $0x18] sm:$0xff]
      %v177 = vld [vmem:[%s165 + $0x20] sm:$0xff]
      %v178 = vld [vmem:[%s165 + $0x28] sm:$0xff]
      %v179 = vld [vmem:[%s165 + $0x30] sm:$0xff]
      %v180 = vld [vmem:[%s165 + $0x38] sm:$0xff]
      %v181 = vld [vmem:[%s165 + $0x40] sm:$0xff]
      %v182 = vld [vmem:[%s165 + $0x48] sm:$0xff]
      %v183 = vld [vmem:[%s165 + $0x50] sm:$0xff]
      %v184 = vld [vmem:[%s165 + $0x58] sm:$0xff]
      %v185 = vld [vmem:[%s165 + $0x60] sm:$0xff]
      %v186 = vld [vmem:[%s165 + $0x68] sm:$0xff]
      %v187 = vld [vmem:[%s165 + $0x70] sm:$0xff]
      %v188 = vld [vmem:[%s165 + $0x78] sm:$0xff]
      %v189 = vld [vmem:[%s165 + $0x80] sm:$0xff]
      %v190 = vld [vmem:[%s165 + $0x88] sm:$0xff]
      %v191 = vld [vmem:[%s165 + $0x90] sm:$0xff]
      %v192 = vld [vmem:[%s165 + $0x98] sm:$0xff]
      %v193 = vld [vmem:[%s165 + $0xa0] sm:$0xff]
      %v194 = vld [vmem:[%s165 + $0xa8] sm:$0xff]
      %v195 = vld [vmem:[%s165 + $0xb0] sm:$0xff]
      %v196 = vld [vmem:[%s165 + $0xb8] sm:$0xff]
      %v197 = vld [vmem:[%s165 + $0xc0] sm:$0xff]
      %v198 = vld [vmem:[%s165 + $0xc8] sm:$0xff]
      %v199 = vld [vmem:[%s165 + $0xd0] sm:$0xff]
      %v200 = vld [vmem:[%s165 + $0xd8] sm:$0xff]
      %v201 = vld [vmem:[%s165 + $0xe0] sm:$0xff]
      %v202 = vld [vmem:[%s165 + $0xe8] sm:$0xff]
      %v203 = vld [vmem:[%s165 + $0xf0] sm:$0xff]
      %v204 = vld [vmem:[%s165 + $0xf8] sm:$0xff]
      %v205 = vld [vmem:[%s165 + $0x100] sm:$0xff]
      %v206 = vld [vmem:[%s165 + $0x108] sm:$0xff]
      %v207 = vld [vmem:[%s165 + $0x110] sm:$0xff]
      %v208 = vld [vmem:[%s165 + $0x118] sm:$0xff]
      %v209 = vld [vmem:[%s2] sm:$0xff]
      %211 = vset.pattern.permute.xlu0 0
      %212 = vperm.xlu0 %211, %v209
      %v213 = vpop.permute.xlu0 %212
      %vm215 = vcmask 130048
      %v217 = vsel %vm215, %v172, 0
      %219 = vmatprep.subr.mxu0 %v174
      %220 = vmatpush1.msra.mxu0 %v173
      %221 = vmatprep.subr.mxu0 %v176
      %222 = vmatpush1.msra.mxu0 %v175
      %223 = vmatprep.subr.mxu0 %v178
      %224 = vmatpush1.msra.mxu0 %v177
      %225 = vmatprep.subr.mxu0 %v180
      %226 = vmatpush1.msra.mxu0 %v179
      %227 = vmatprep.subr.mxu0 %v182
      %228 = vmatpush1.msra.mxu0 %v181
      %229 = vmatprep.subr.mxu0 %v184
      %230 = vmatpush1.msra.mxu0 %v183
      %231 = vmatprep.subr.mxu0 %v186
      %232 = vmatpush1.msra.mxu0 %v185
      %233 = vmatprep.subr.mxu0 %v188
      %234 = vmatpush1.msra.mxu0 %v187
      %235 = vmatprep.subr.mxu0 %v190
      %236 = vmatpush1.msra.mxu0 %v189
      %237 = vmatprep.subr.mxu0 %v192
      %238 = vmatpush1.msra.mxu0 %v191
      %239 = vmatprep.subr.mxu0 %v194
      %240 = vmatpush1.msra.mxu0 %v193
      %241 = vmatprep.subr.mxu0 %v196
      %242 = vmatpush1.msra.mxu0 %v195
      %243 = vmatprep.subr.mxu0 %v198
      %244 = vmatpush1.msra.mxu0 %v197
      %245 = vmatprep.subr.mxu0 %v200
      %246 = vmatpush1.msra.mxu0 %v199
      %247 = vmatprep.subr.mxu0 %v202
      %248 = vmatpush1.msra.mxu0 %v201
      %249 = vmatprep.subr.mxu0 %v204
      %250 = vmatpush1.msra.mxu0 %v203
      %251 = vmatprep.subr.mxu0 %v206
      %252 = vmatpush1.msra.mxu0 %v205
      %253 = vmatprep.subr.mxu0 %v208
      %254 = vmatpush1.msra.mxu0 %v207
      %255 = vmatprep.subr.mxu0 0.0
      %256 = vmatpush1.msra.mxu0 0.0
      %257 = vmatprep.subr.mxu0 0.0
      %258 = vmatpush1.msra.mxu0 0.0
      %259 = vmatprep.subr.mxu0 0.0
      %260 = vmatpush1.msra.mxu0 0.0
      %261 = vmatprep.subr.mxu0 0.0
      %262 = vmatpush1.msra.mxu0 0.0
      %263 = vmatprep.subr.mxu0 0.0
      %264 = vmatpush1.msra.mxu0 0.0
      %265 = vmatprep.subr.mxu0 0.0
      %266 = vmatpush1.msra.mxu0 0.0
      %267 = vmatprep.subr.mxu0 0.0
      %268 = vmatpush1.msra.mxu0 0.0
      %269 = vmatprep.subr.mxu0 0.0
      %270 = vmatpush1.msra.mxu0 0.0
      %271 = vmatprep.subr.mxu0 0.0
      %272 = vmatpush1.msra.mxu0 0.0
      %273 = vmatprep.subr.mxu0 0.0
      %274 = vmatpush1.msra.mxu0 0.0
      %275 = vmatprep.subr.mxu0 0.0
      %276 = vmatpush1.msra.mxu0 0.0
      %277 = vmatprep.subr.mxu0 0.0
      %278 = vmatpush1.msra.mxu0 0.0
      %279 = vmatprep.subr.mxu0 0.0
      %280 = vmatpush1.msra.mxu0 0.0
      %281 = vmatprep.subr.mxu0 0.0
      %282 = vmatpush1.msra.mxu0 0.0
      %283 = vmatprep.mubr.f32.mxu0 %v217
      %284 = vmatmul.mubr.f32.gmra.mrb[0].mxu0 %v171
      %v285 = vpop.f32.mrb[0].mxu0
      %v286 = vadd.f32 %v213, %v285
      %v287 = vpop.f32.mrb[0].mxu0
      %v288 = vadd.f32 %v213, %v287
      %289 = vdwg.mxu0
      %v290 = vmax.f32 %v286, 0.0
      %v291 = vmax.f32 %v288, 0.0
      %292 = vst [vmem:[%s170] sm:$0xff] %v290
      %293 = vst [vmem:[%s170 + $0x8] sm:$0xff] %v291
      %p294 = scmp.lt.s32.totalorder %s14, 1
      %s295 = scalar_select %p294, %s14, 1
      %s296 = smul.addr %s295, 2
      %s297 = smul.addr %s296, 8
      %s298 = scalar_lea.vmem %s3, %s297
      // Predicated region
      $region33: #{xlstm_axial_forward.7} parent=31 // pred_check
        %p299 = pneg %p100
      $region34: #{xlstm_axial_forward.7} parent=31 // pred_check_branch
        %301 = sbr.rel (%p299) target = $region36
      $region35: #{xlstm_axial_forward.7} parent=31 // pred_region
        _
      $region36: #{xlstm_axial_forward.7} parent=31 // pred_fallthru
        _
    $region32: #{xlstm_axial_forward.7} parent=5 // pred_fallthru
      _
    %p302 = scmp.le.s32.totalorder 2, %s9
    // Predicated region
    $region37: #{xlstm_axial_forward.7} parent=5 // pred_check
      %p303 = pneg %p302
    $region38: #{xlstm_axial_forward.7} parent=5 // pred_check_branch
      %305 = sbr.rel (%p303) target = $region40
    $region39: #{xlstm_axial_forward.7} parent=5 // pred_region
      %s306 = ssub.s32 %s9, 2
      // Predicated region
      $region41: #{xlstm_axial_forward.7} parent=39 // pred_check
        %p307 = pneg %p106
      $region42: #{xlstm_axial_forward.7} parent=39 // pred_check_branch
        %309 = sbr.rel (%p307) target = $region44
      $region43: #{xlstm_axial_forward.7} parent=39 // pred_region
        %p310 = scmp.lt.s32.totalorder %s15, 1
        %s311 = scalar_select %p310, %s15, 1
        %s312 = smul.addr %s311, 2
        %s313 = smul.addr %s312, 8
        %s314 = scalar_lea.vmem %s3, %s313
      $region44: #{xlstm_axial_forward.7} parent=39 // pred_fallthru
        _
    $region40: #{xlstm_axial_forward.7} parent=5 // pred_fallthru
      _
  $region6: #{xlstm_axial_forward.7} parent=0 // loop_footer
    %s13 = sadd.s32 1, %s9
  $region7: #{xlstm_axial_forward.7} parent=0 // loop_footer_branch
    %8 = sbr.rel target = $region3
  $region8: #{xlstm_axial_forward.7} parent=0 // loop_exit
    _

</llo_original>
